<compile_context>
chip_gen: v5e
topology: v5e:2x2
jax: 0.10.0
libtpu: 0.0.40
codegen_flags: <defaults>
</compile_context>

<pallas_src>
import jax
import jax.numpy as jnp
from jax.experimental import pallas as pl
from jax.experimental.pallas import tpu as pltpu

EPS = 1e-5            # PyTorch BatchNorm default eps
GRID_RES = 45         # forward() hardcodes meshgrid [[-0.3,0.3,45],[-0.3,0.3,45]]
P_POINTS = GRID_RES * GRID_RES   # 2025 folded points (num_points arg is unused)
C_HID = 512
C_PAD = 128           # lane-padded width for the 2/3-channel tensors
TILE_P = 256          # point-rows per kernel step (multiple of 8, fits VMEM)


def _grid_points():
    """GridSamplingLayer for meshgrid [[-0.3,0.3,45],[-0.3,0.3,45]] -> (2025, 2)."""
    lin = jnp.linspace(-0.3, 0.3, GRID_RES)
    g0, g1 = jnp.meshgrid(lin, lin)          # 'xy' indexing, same as np.meshgrid
    return jnp.stack([g0.reshape(-1), g1.reshape(-1)], axis=-1).astype(jnp.float32)


# ---------------------------------------------------------------------------
# Fused decoder kernel: 6 conv1x1 layers (+BN fold, +ReLU) per point tile.
# ---------------------------------------------------------------------------
def _folding_kernel(gp_ref, c1_ref, c4_ref,
                    w1_ref, w2_ref, s2_ref, w3_ref, b3_ref,
                    w4_ref, w5_ref, s5_ref, w6_ref, b6_ref, o_ref):
    f32 = jnp.float32
    c1 = c1_ref[0]                       # (1, 512) per-batch: z@W1_lat + bias/BN fold
    c4 = c4_ref[0]                       # (1, 512) per-batch: z@W4_lat + bias/BN fold

    # fold 1: conv1 -> bn1 -> relu   (grid part via padded 128-ch matmul)
    h = jnp.dot(gp_ref[...], w1_ref[...], preferred_element_type=f32) + c1
    h = jnp.maximum(h, 0.0)
    # conv2 -> bn2 -> relu
    h = jnp.dot(h, w2_ref[...], preferred_element_type=f32) + s2_ref[...]
    h = jnp.maximum(h, 0.0)
    # conv3 (no BN / ReLU); output channels 3 padded to 128 lanes (exact)
    f = jnp.dot(h, w3_ref[...], preferred_element_type=f32) + b3_ref[...]
    # fold 2: conv4 -> bn4 -> relu   (latent part folded into c4)
    h = jnp.dot(f, w4_ref[...], preferred_element_type=f32) + c4
    h = jnp.maximum(h, 0.0)
    # conv5 -> bn5 -> relu
    h = jnp.dot(h, w5_ref[...], preferred_element_type=f32) + s5_ref[...]
    h = jnp.maximum(h, 0.0)
    # conv6; lane-dense (TILE_P, 128) store, channels 3..127 are exact zeros+bias-pad
    o_ref[0] = jnp.dot(h, w6_ref[...], preferred_element_type=f32) + b6_ref[...]


# ---------------------------------------------------------------------------
# Parameter init (synthetic, deterministic) + eval-mode folding
# ---------------------------------------------------------------------------
def init_raw_params(key, z_dim):
    ks = iter(jax.random.split(key, 28))

    def conv(cin, cout):
        w = (jax.random.normal(next(ks), (cin, cout)) / jnp.sqrt(cin)).astype(jnp.float32)
        b = (0.1 * jax.random.normal(next(ks), (cout,))).astype(jnp.float32)
        return w, b

    def bn(c):
        gamma = jax.random.uniform(next(ks), (c,), minval=0.5, maxval=1.5)
        beta = 0.1 * jax.random.normal(next(ks), (c,))
        mean = 0.1 * jax.random.normal(next(ks), (c,))
        var = jax.random.uniform(next(ks), (c,), minval=0.5, maxval=1.5)
        return tuple(a.astype(jnp.float32) for a in (gamma, beta, mean, var))

    return {
        "conv1": conv(z_dim + 2, C_HID), "bn1": bn(C_HID),
        "conv2": conv(C_HID, C_HID),     "bn2": bn(C_HID),
        "conv3": conv(C_HID, 3),
        "conv4": conv(z_dim + 3, C_HID), "bn4": bn(C_HID),
        "conv5": conv(C_HID, C_HID),     "bn5": bn(C_HID),
        "conv6": conv(C_HID, 3),
    }


def _bn_fold(bn):
    gamma, beta, mean, var = bn
    scale = gamma / jnp.sqrt(var + EPS)
    return scale, beta - scale * mean


def fold_params(raw, z):
    """Fold BN/bias/latent into kernel operands (tiny per-batch XLA ops only)."""
    B = z.shape[0]

    w1, b1 = raw["conv1"]; s1, t1 = _bn_fold(raw["bn1"])
    w1f = w1 * s1                                   # scale folded into columns
    c1 = z @ w1f[2:] + (s1 * b1 + t1)               # latent + bias + BN shift, (B,512)
    w1_p = jnp.zeros((C_PAD, C_HID), jnp.float32).at[:2].set(w1f[:2])

    w2, b2 = raw["conv2"]; s2, t2 = _bn_fold(raw["bn2"])
    w2f = w2 * s2
    c2 = (s2 * b2 + t2).reshape(1, C_HID)

    w3, b3 = raw["conv3"]
    w3_p = jnp.zeros((C_HID, C_PAD), jnp.float32).at[:, :3].set(w3)
    b3_p = jnp.zeros((1, C_PAD), jnp.float32).at[0, :3].set(b3)

    w4, b4 = raw["conv4"]; s4, t4 = _bn_fold(raw["bn4"])
    w4f = w4 * s4
    c4 = z @ w4f[3:] + (s4 * b4 + t4)
    w4_p = jnp.zeros((C_PAD, C_HID), jnp.float32).at[:3].set(w4f[:3])

    w5, b5 = raw["conv5"]; s5, t5 = _bn_fold(raw["bn5"])
    w5f = w5 * s5
    c5 = (s5 * b5 + t5).reshape(1, C_HID)

    w6, b6 = raw["conv6"]
    w6_p = jnp.zeros((C_HID, C_PAD), jnp.float32).at[:, :3].set(w6)
    b6_p = jnp.zeros((1, C_PAD), jnp.float32).at[0, :3].set(b6)

    return dict(c1=c1.reshape(B, 1, C_HID), c4=c4.reshape(B, 1, C_HID),
                w1=w1_p, w2=w2f, s2=c2, w3=w3_p, b3=b3_p,
                w4=w4_p, w5=w5f, s5=c5, w6=w6_p, b6=b6_p)


# ---------------------------------------------------------------------------
# Forward pass
# ---------------------------------------------------------------------------
def foldingnet_decoder_forward(z, raw_params, *, tile_p=TILE_P):
    """z: (B, z_dim) latent codes -> (B, 2025, 3) folded point cloud."""
    B = z.shape[0]
    P = P_POINTS
    p_pad = pl.cdiv(P, tile_p) * tile_p             # pad point rows (sliced off below)

    grid2 = _grid_points()                           # (2025, 2), shared by all batches
    gridp = jnp.zeros((p_pad, C_PAD), jnp.float32).at[:P, :2].set(grid2)
    fp = fold_params(raw_params, z)

    out = pl.pallas_call(
        _folding_kernel,
        out_shape=jax.ShapeDtypeStruct((B, p_pad, C_PAD), jnp.float32),
        grid_spec=pltpu.PrefetchScalarGridSpec(
            num_scalar_prefetch=0,
            grid=(B, p_pad // tile_p),
            in_specs=[
                pl.BlockSpec((tile_p, C_PAD), lambda b, p: (p, 0)),    # folding grid
                pl.BlockSpec((1, 1, C_HID), lambda b, p: (b, 0, 0)),   # c1 (per batch)
                pl.BlockSpec((1, 1, C_HID), lambda b, p: (b, 0, 0)),   # c4 (per batch)
                pl.BlockSpec((C_PAD, C_HID), lambda b, p: (0, 0)),     # w1 (grid part)
                pl.BlockSpec((C_HID, C_HID), lambda b, p: (0, 0)),     # w2
                pl.BlockSpec((1, C_HID), lambda b, p: (0, 0)),         # shift2
                pl.BlockSpec((C_HID, C_PAD), lambda b, p: (0, 0)),     # w3
                pl.BlockSpec((1, C_PAD), lambda b, p: (0, 0)),         # b3
                pl.BlockSpec((C_PAD, C_HID), lambda b, p: (0, 0)),     # w4 (fold part)
                pl.BlockSpec((C_HID, C_HID), lambda b, p: (0, 0)),     # w5
                pl.BlockSpec((1, C_HID), lambda b, p: (0, 0)),         # shift5
                pl.BlockSpec((C_HID, C_PAD), lambda b, p: (0, 0)),     # w6
                pl.BlockSpec((1, C_PAD), lambda b, p: (0, 0)),         # b6
            ],
            out_specs=pl.BlockSpec((1, tile_p, C_PAD), lambda b, p: (b, p, 0)),
        ),
        compiler_params=pltpu.CompilerParams(
            dimension_semantics=("parallel", "parallel"),
            vmem_limit_bytes=32 * 1024 * 1024),
    )(gridp, fp["c1"], fp["c4"], fp["w1"], fp["w2"], fp["s2"], fp["w3"], fp["b3"],
      fp["w4"], fp["w5"], fp["s5"], fp["w6"], fp["b6"])

    return out[:, :P, :3]                            # drop row/lane padding


# ---------------------------------------------------------------------------
# Pure-JAX reference that mirrors the PyTorch module structure
# ---------------------------------------------------------------------------
def reference_forward(z, raw):
    B, zd = z.shape
    g = _grid_points()
    grid_b = jnp.broadcast_to(g[None], (B, P_POINTS, 2))
    lat = jnp.broadcast_to(z[:, None, :], (B, P_POINTS, zd))

    def bn(y, p):
        gamma, beta, mean, var = p
        return (y - mean) / jnp.sqrt(var + EPS) * gamma + beta

    x = jnp.concatenate([grid_b, lat], axis=-1)
    w, b = raw["conv1"]; x = jnp.maximum(bn(x @ w + b, raw["bn1"]), 0.0)
    w, b = raw["conv2"]; x = jnp.maximum(bn(x @ w + b, raw["bn2"]), 0.0)
    w, b = raw["conv3"]; f = x @ w + b
    x = jnp.concatenate([f, lat], axis=-1)
    w, b = raw["conv4"]; x = jnp.maximum(bn(x @ w + b, raw["bn4"]), 0.0)
    w, b = raw["conv5"]; x = jnp.maximum(bn(x @ w + b, raw["bn5"]), 0.0)
    w, b = raw["conv6"]; x = x @ w + b
    return x                                          # (B, 2025, 3)


# ---------------------------------------------------------------------------
if __name__ == "__main__":
    B, Z_DIM = 2, 32
    key = jax.random.PRNGKey(0)
    kz, kp = jax.random.split(key)
    z = jax.random.normal(kz, (B, Z_DIM), dtype=jnp.float32)
    raw = init_raw_params(kp, Z_DIM)

    fwd = jax.jit(foldingnet_decoder_forward)
    out = jax.block_until_ready(fwd(z, raw))

    ref = reference_forward(z, raw)
    assert out.shape == (B, P_POINTS, 3), out.shape
    assert jnp.allclose(out, ref, atol=1e-3, rtol=1e-3), float(jnp.max(jnp.abs(out - ref)))
    print("KERNEL_OK")
</pallas_src>

<mosaic_0001>
module attributes {stable_mosaic.version = 11 : i64} {
  func.func @_folding_kernel(%arg0: i32, %arg1: i32, %arg2: memref<256x128xf32, #tpu.memory_space<vmem>>, %arg3: memref<1x1x512xf32, #tpu.memory_space<vmem>>, %arg4: memref<1x1x512xf32, #tpu.memory_space<vmem>>, %arg5: memref<128x512xf32, #tpu.memory_space<vmem>>, %arg6: memref<512x512xf32, #tpu.memory_space<vmem>>, %arg7: memref<1x512xf32, #tpu.memory_space<vmem>>, %arg8: memref<512x128xf32, #tpu.memory_space<vmem>>, %arg9: memref<1x128xf32, #tpu.memory_space<vmem>>, %arg10: memref<128x512xf32, #tpu.memory_space<vmem>>, %arg11: memref<512x512xf32, #tpu.memory_space<vmem>>, %arg12: memref<1x512xf32, #tpu.memory_space<vmem>>, %arg13: memref<512x128xf32, #tpu.memory_space<vmem>>, %arg14: memref<1x128xf32, #tpu.memory_space<vmem>>, %arg15: memref<1x256x128xf32, #tpu.memory_space<vmem>>) attributes {dimension_semantics = [#tpu.dimension_semantics<parallel>, #tpu.dimension_semantics<parallel>], iteration_bounds = array<i64: 2, 8>, scalar_prefetch = 0 : i64, scratch_operands = 0 : i64, tpu.core_type = #tpu.core_type<tc>, window_params = [{transform_indices = @transform_0, window_bounds = array<i64: 256, 128>}, {transform_indices = @transform_1, window_bounds = array<i64: 1, 1, 512>}, {transform_indices = @transform_2, window_bounds = array<i64: 1, 1, 512>}, {pipeline_mode = #tpu.pipeline_mode<synchronous>, transform_indices = @transform_3, window_bounds = array<i64: 128, 512>}, {pipeline_mode = #tpu.pipeline_mode<synchronous>, transform_indices = @transform_4, window_bounds = array<i64: 512, 512>}, {pipeline_mode = #tpu.pipeline_mode<synchronous>, transform_indices = @transform_5, window_bounds = array<i64: 1, 512>}, {pipeline_mode = #tpu.pipeline_mode<synchronous>, transform_indices = @transform_6, window_bounds = array<i64: 512, 128>}, {pipeline_mode = #tpu.pipeline_mode<synchronous>, transform_indices = @transform_7, window_bounds = array<i64: 1, 128>}, {pipeline_mode = #tpu.pipeline_mode<synchronous>, transform_indices = @transform_8, window_bounds = array<i64: 128, 512>}, {pipeline_mode = #tpu.pipeline_mode<synchronous>, transform_indices = @transform_9, window_bounds = array<i64: 512, 512>}, {pipeline_mode = #tpu.pipeline_mode<synchronous>, transform_indices = @transform_10, window_bounds = array<i64: 1, 512>}, {pipeline_mode = #tpu.pipeline_mode<synchronous>, transform_indices = @transform_11, window_bounds = array<i64: 512, 128>}, {pipeline_mode = #tpu.pipeline_mode<synchronous>, transform_indices = @transform_12, window_bounds = array<i64: 1, 128>}, {transform_indices = @transform_13, window_bounds = array<i64: 1, 256, 128>}]} {
    %c0 = arith.constant 0 : index
    %c0_0 = arith.constant 0 : index
    %c0_1 = arith.constant 0 : index
    %0 = vector.load %arg3[%c0, %c0_0, %c0_1] : memref<1x1x512xf32, #tpu.memory_space<vmem>>, vector<1x1x512xf32>
    %1 = vector.shape_cast %0 : vector<1x1x512xf32> to vector<1x512xf32>
    %c0_2 = arith.constant 0 : index
    %c0_3 = arith.constant 0 : index
    %c0_4 = arith.constant 0 : index
    %2 = vector.load %arg4[%c0_2, %c0_3, %c0_4] : memref<1x1x512xf32, #tpu.memory_space<vmem>>, vector<1x1x512xf32>
    %3 = vector.shape_cast %2 : vector<1x1x512xf32> to vector<1x512xf32>
    %c0_5 = arith.constant 0 : index
    %c0_6 = arith.constant 0 : index
    %4 = vector.load %arg2[%c0_5, %c0_6] : memref<256x128xf32, #tpu.memory_space<vmem>>, vector<256x128xf32>
    %c0_7 = arith.constant 0 : index
    %c0_8 = arith.constant 0 : index
    %5 = vector.load %arg5[%c0_7, %c0_8] : memref<128x512xf32, #tpu.memory_space<vmem>>, vector<128x512xf32>
    %cst = arith.constant dense<0.000000e+00> : vector<256x512xf32>
    %6 = tpu.matmul %4, %5, %cst {dimension_numbers = #tpu.dot_dimension_numbers<[1], [0], [0], [1], [0, 0, 1, 1], [], []>} : vector<256x128xf32>, vector<128x512xf32>, vector<256x512xf32> -> vector<256x512xf32>
    %7 = vector.broadcast %1 : vector<1x512xf32> to vector<256x512xf32>
    %8 = arith.addf %6, %7 : vector<256x512xf32>
    %cst_9 = arith.constant 0.000000e+00 : f32
    %9 = vector.broadcast %cst_9 : f32 to vector<256x512xf32>
    %10 = arith.maximumf %8, %9 : vector<256x512xf32>
    %c0_10 = arith.constant 0 : index
    %c0_11 = arith.constant 0 : index
    %11 = vector.load %arg6[%c0_10, %c0_11] : memref<512x512xf32, #tpu.memory_space<vmem>>, vector<512x512xf32>
    %cst_12 = arith.constant dense<0.000000e+00> : vector<256x512xf32>
    %12 = tpu.matmul %10, %11, %cst_12 {dimension_numbers = #tpu.dot_dimension_numbers<[1], [0], [0], [1], [0, 0, 1, 1], [], []>} : vector<256x512xf32>, vector<512x512xf32>, vector<256x512xf32> -> vector<256x512xf32>
    %c0_13 = arith.constant 0 : index
    %c0_14 = arith.constant 0 : index
    %13 = vector.load %arg7[%c0_13, %c0_14] : memref<1x512xf32, #tpu.memory_space<vmem>>, vector<1x512xf32>
    %14 = vector.broadcast %13 : vector<1x512xf32> to vector<256x512xf32>
    %15 = arith.addf %12, %14 : vector<256x512xf32>
    %cst_15 = arith.constant 0.000000e+00 : f32
    %16 = vector.broadcast %cst_15 : f32 to vector<256x512xf32>
    %17 = arith.maximumf %15, %16 : vector<256x512xf32>
    %c0_16 = arith.constant 0 : index
    %c0_17 = arith.constant 0 : index
    %18 = vector.load %arg8[%c0_16, %c0_17] : memref<512x128xf32, #tpu.memory_space<vmem>>, vector<512x128xf32>
    %cst_18 = arith.constant dense<0.000000e+00> : vector<256x128xf32>
    %19 = tpu.matmul %17, %18, %cst_18 {dimension_numbers = #tpu.dot_dimension_numbers<[1], [0], [0], [1], [0, 0, 1, 1], [], []>} : vector<256x512xf32>, vector<512x128xf32>, vector<256x128xf32> -> vector<256x128xf32>
    %c0_19 = arith.constant 0 : index
    %c0_20 = arith.constant 0 : index
    %20 = vector.load %arg9[%c0_19, %c0_20] : memref<1x128xf32, #tpu.memory_space<vmem>>, vector<1x128xf32>
    %21 = vector.broadcast %20 : vector<1x128xf32> to vector<256x128xf32>
    %22 = arith.addf %19, %21 : vector<256x128xf32>
    %c0_21 = arith.constant 0 : index
    %c0_22 = arith.constant 0 : index
    %23 = vector.load %arg10[%c0_21, %c0_22] : memref<128x512xf32, #tpu.memory_space<vmem>>, vector<128x512xf32>
    %cst_23 = arith.constant dense<0.000000e+00> : vector<256x512xf32>
    %24 = tpu.matmul %22, %23, %cst_23 {dimension_numbers = #tpu.dot_dimension_numbers<[1], [0], [0], [1], [0, 0, 1, 1], [], []>} : vector<256x128xf32>, vector<128x512xf32>, vector<256x512xf32> -> vector<256x512xf32>
    %25 = vector.broadcast %3 : vector<1x512xf32> to vector<256x512xf32>
    %26 = arith.addf %24, %25 : vector<256x512xf32>
    %cst_24 = arith.constant 0.000000e+00 : f32
    %27 = vector.broadcast %cst_24 : f32 to vector<256x512xf32>
    %28 = arith.maximumf %26, %27 : vector<256x512xf32>
    %c0_25 = arith.constant 0 : index
    %c0_26 = arith.constant 0 : index
    %29 = vector.load %arg11[%c0_25, %c0_26] : memref<512x512xf32, #tpu.memory_space<vmem>>, vector<512x512xf32>
    %cst_27 = arith.constant dense<0.000000e+00> : vector<256x512xf32>
    %30 = tpu.matmul %28, %29, %cst_27 {dimension_numbers = #tpu.dot_dimension_numbers<[1], [0], [0], [1], [0, 0, 1, 1], [], []>} : vector<256x512xf32>, vector<512x512xf32>, vector<256x512xf32> -> vector<256x512xf32>
    %c0_28 = arith.constant 0 : index
    %c0_29 = arith.constant 0 : index
    %31 = vector.load %arg12[%c0_28, %c0_29] : memref<1x512xf32, #tpu.memory_space<vmem>>, vector<1x512xf32>
    %32 = vector.broadcast %31 : vector<1x512xf32> to vector<256x512xf32>
    %33 = arith.addf %30, %32 : vector<256x512xf32>
    %cst_30 = arith.constant 0.000000e+00 : f32
    %34 = vector.broadcast %cst_30 : f32 to vector<256x512xf32>
    %35 = arith.maximumf %33, %34 : vector<256x512xf32>
    %c0_31 = arith.constant 0 : index
    %c0_32 = arith.constant 0 : index
    %36 = vector.load %arg13[%c0_31, %c0_32] : memref<512x128xf32, #tpu.memory_space<vmem>>, vector<512x128xf32>
    %cst_33 = arith.constant dense<0.000000e+00> : vector<256x128xf32>
    %37 = tpu.matmul %35, %36, %cst_33 {dimension_numbers = #tpu.dot_dimension_numbers<[1], [0], [0], [1], [0, 0, 1, 1], [], []>} : vector<256x512xf32>, vector<512x128xf32>, vector<256x128xf32> -> vector<256x128xf32>
    %c0_34 = arith.constant 0 : index
    %c0_35 = arith.constant 0 : index
    %38 = vector.load %arg14[%c0_34, %c0_35] : memref<1x128xf32, #tpu.memory_space<vmem>>, vector<1x128xf32>
    %39 = vector.broadcast %38 : vector<1x128xf32> to vector<256x128xf32>
    %40 = arith.addf %37, %39 : vector<256x128xf32>
    %c0_36 = arith.constant 0 : index
    %c0_37 = arith.constant 0 : index
    %c0_38 = arith.constant 0 : index
    %41 = vector.load %arg15[%c0_36, %c0_37, %c0_38] : memref<1x256x128xf32, #tpu.memory_space<vmem>>, vector<1x256x128xf32>
    %42 = vector.shape_cast %41 : vector<1x256x128xf32> to vector<256x128xf32>
    %43 = vector.shape_cast %40 : vector<256x128xf32> to vector<1x256x128xf32>
    tpu.vector_store %arg15[%c0_36, %c0_37, %c0_38], %43 {strides = array<i32>} : memref<1x256x128xf32, #tpu.memory_space<vmem>>, vector<1x256x128xf32>,
    return
  }
  func.func @transform_0(%arg0: i32, %arg1: i32) -> (i32, i32) {
    %c0_i32 = arith.constant 0 : i32
    %c0_i32_0 = arith.constant 0 : i32
    return %arg1, %c0_i32 : i32, i32
  }
  func.func @transform_1(%arg0: i32, %arg1: i32) -> (i32, i32, i32) {
    %c0_i32 = arith.constant 0 : i32
    %c0_i32_0 = arith.constant 0 : i32
    %c0_i32_1 = arith.constant 0 : i32
    return %arg0, %c0_i32, %c0_i32_0 : i32, i32, i32
  }
  func.func @transform_2(%arg0: i32, %arg1: i32) -> (i32, i32, i32) {
    %c0_i32 = arith.constant 0 : i32
    %c0_i32_0 = arith.constant 0 : i32
    %c0_i32_1 = arith.constant 0 : i32
    return %arg0, %c0_i32, %c0_i32_0 : i32, i32, i32
  }
  func.func @transform_3(%arg0: i32, %arg1: i32) -> (i32, i32) {
    %c0_i32 = arith.constant 0 : i32
    %c0_i32_0 = arith.constant 0 : i32
    %c0_i32_1 = arith.constant 0 : i32
    return %c0_i32, %c0_i32_0 : i32, i32
  }
  func.func @transform_4(%arg0: i32, %arg1: i32) -> (i32, i32) {
    %c0_i32 = arith.constant 0 : i32
    %c0_i32_0 = arith.constant 0 : i32
    %c0_i32_1 = arith.constant 0 : i32
    return %c0_i32, %c0_i32_0 : i32, i32
  }
  func.func @transform_5(%arg0: i32, %arg1: i32) -> (i32, i32) {
    %c0_i32 = arith.constant 0 : i32
    %c0_i32_0 = arith.constant 0 : i32
    %c0_i32_1 = arith.constant 0 : i32
    return %c0_i32, %c0_i32_0 : i32, i32
  }
  func.func @transform_6(%arg0: i32, %arg1: i32) -> (i32, i32) {
    %c0_i32 = arith.constant 0 : i32
    %c0_i32_0 = arith.constant 0 : i32
    %c0_i32_1 = arith.constant 0 : i32
    return %c0_i32, %c0_i32_0 : i32, i32
  }
  func.func @transform_7(%arg0: i32, %arg1: i32) -> (i32, i32) {
    %c0_i32 = arith.constant 0 : i32
    %c0_i32_0 = arith.constant 0 : i32
    %c0_i32_1 = arith.constant 0 : i32
    return %c0_i32, %c0_i32_0 : i32, i32
  }
  func.func @transform_8(%arg0: i32, %arg1: i32) -> (i32, i32) {
    %c0_i32 = arith.constant 0 : i32
    %c0_i32_0 = arith.constant 0 : i32
    %c0_i32_1 = arith.constant 0 : i32
    return %c0_i32, %c0_i32_0 : i32, i32
  }
  func.func @transform_9(%arg0: i32, %arg1: i32) -> (i32, i32) {
    %c0_i32 = arith.constant 0 : i32
    %c0_i32_0 = arith.constant 0 : i32
    %c0_i32_1 = arith.constant 0 : i32
    return %c0_i32, %c0_i32_0 : i32, i32
  }
  func.func @transform_10(%arg0: i32, %arg1: i32) -> (i32, i32) {
    %c0_i32 = arith.constant 0 : i32
    %c0_i32_0 = arith.constant 0 : i32
    %c0_i32_1 = arith.constant 0 : i32
    return %c0_i32, %c0_i32_0 : i32, i32
  }
  func.func @transform_11(%arg0: i32, %arg1: i32) -> (i32, i32) {
    %c0_i32 = arith.constant 0 : i32
    %c0_i32_0 = arith.constant 0 : i32
    %c0_i32_1 = arith.constant 0 : i32
    return %c0_i32, %c0_i32_0 : i32, i32
  }
  func.func @transform_12(%arg0: i32, %arg1: i32) -> (i32, i32) {
    %c0_i32 = arith.constant 0 : i32
    %c0_i32_0 = arith.constant 0 : i32
    %c0_i32_1 = arith.constant 0 : i32
    return %c0_i32, %c0_i32_0 : i32, i32
  }
  func.func @transform_13(%arg0: i32, %arg1: i32) -> (i32, i32, i32) {
    %c0_i32 = arith.constant 0 : i32
    %c0_i32_0 = arith.constant 0 : i32
    return %arg0, %arg1, %c0_i32 : i32, i32, i32
  }
}

</mosaic_0001>

<llo_original>
// kernel: foldingnet_decoder_forward.1
$region0: #{foldingnet_decoder_forward.1}
  #allocation0 [shape = 'u32[]', space=smem, size = 0x4, offset = 0x4, fixed_abs, tag = 'smem constant byte address 0x4 - core index']
  #allocation1 [shape = 'u32[72,128]{1,0:T(1,128)}', space=vmem, size = 0x9000, scoped, tag = 'internal scratch']
  %s0 = inlined_call_operand.vmem [shape: f32[2048,128], index: 0, kind: input, shape index: {}]
  %s1 = inlined_call_operand.vmem [shape: f32[2,1,512], index: 1, kind: input, shape index: {}]
  %s2 = inlined_call_operand.vmem [shape: f32[2,1,512], index: 2, kind: input, shape index: {}]
  %s3 = inlined_call_operand.vmem [shape: f32[128,512], index: 3, kind: input, shape index: {}]
  %s4 = inlined_call_operand.vmem [shape: f32[512,512], index: 4, kind: input, shape index: {}]
  %s5 = inlined_call_operand.vmem [shape: f32[1,512], index: 5, kind: input, shape index: {}]
  %s6 = inlined_call_operand.vmem [shape: f32[512,128], index: 6, kind: input, shape index: {}]
  %s7 = inlined_call_operand.vmem [shape: f32[1,128], index: 7, kind: input, shape index: {}]
  %s8 = inlined_call_operand.vmem [shape: f32[128,512], index: 8, kind: input, shape index: {}]
  %s9 = inlined_call_operand.vmem [shape: f32[512,512], index: 9, kind: input, shape index: {}]
  %s10 = inlined_call_operand.vmem [shape: f32[1,512], index: 10, kind: input, shape index: {}]
  %s11 = inlined_call_operand.vmem [shape: f32[512,128], index: 11, kind: input, shape index: {}]
  %s12 = inlined_call_operand.vmem [shape: f32[1,128], index: 12, kind: input, shape index: {}]
  %s13 = inlined_call_operand.vmem [shape: f32[2,2048,128], index: 13, kind: output, shape index: {}]
  %s14 = sld [smem:[#allocation0]]
  $region85: #{foldingnet_decoder_forward.1} parent=0
    _
  %s16 = ssub.s32 1, %s14
  %s17 = scalar_select 0, %s16, %s14
  loop: start=0, step=1, limit=18
  $region2: #{foldingnet_decoder_forward.1} parent=0 // loop_pre_header
    _
  $region3: #{foldingnet_decoder_forward.1} parent=0 // loop_header
    %s19 = sphi 0, %s23
    %p20 = scmp.ge.s32.totalorder %s19, 18
    %s26 = sphi 0, %s38
    %s27 = sphi 0, %s34
    %s28 = sphi 0, %s26
    %s29 = sphi 0, %s27
    %s30 = sphi 0, %s28
    %s31 = sphi 0, %s29
    %s41 = sphi 0, %s43
    %s44 = sphi 0, %s41
    %s45 = sphi 0, %s44
    %s61 = sphi 0, %s45
    %s67 = sphi 0, %s69
    %s70 = sphi 0, %s67
    %s71 = sphi 0, %s70
    %s87 = sphi 0, %s71
    %s93 = sphi 0, %s95
    %s96 = sphi 0, %s93
    %s97 = sphi 0, %s96
    %s113 = sphi 0, %s97
    %s117 = sphi 0, %s117
    %s119 = sphi 0, %s117
    %s120 = sphi 0, %s119
    %s134 = sphi 0, %s120
    %s138 = sphi 0, %s138
    %s140 = sphi 0, %s138
    %s141 = sphi 0, %s140
    %s155 = sphi 0, %s141
    %s159 = sphi 0, %s159
    %s161 = sphi 0, %s159
    %s162 = sphi 0, %s161
    %s176 = sphi 0, %s162
    %s180 = sphi 0, %s180
    %s182 = sphi 0, %s180
    %s183 = sphi 0, %s182
    %s197 = sphi 0, %s183
    %s201 = sphi 0, %s201
    %s203 = sphi 0, %s201
    %s204 = sphi 0, %s203
    %s218 = sphi 0, %s204
    %s222 = sphi 0, %s222
    %s224 = sphi 0, %s222
    %s225 = sphi 0, %s224
    %s239 = sphi 0, %s225
    %s243 = sphi 0, %s243
    %s245 = sphi 0, %s243
    %s246 = sphi 0, %s245
    %s260 = sphi 0, %s246
    %s264 = sphi 0, %s264
    %s266 = sphi 0, %s264
    %s267 = sphi 0, %s266
    %s281 = sphi 0, %s267
    %s285 = sphi 0, %s285
    %s287 = sphi 0, %s285
    %s288 = sphi 0, %s287
    %s302 = sphi 0, %s288
    %s306 = sphi 0, %s306
    %s308 = sphi 0, %s306
    %s309 = sphi 0, %s308
    %s323 = sphi 0, %s309
    %s331 = sphi 0, %s333
    %s334 = sphi 0, %s331
    %s335 = sphi 0, %s334
    %s351 = sphi 0, %s335
  $region4: #{foldingnet_decoder_forward.1} parent=0 // loop_header_branch
    %22 = sbr.rel (%p20) target = $region8
  $region5: #{foldingnet_decoder_forward.1} parent=0 // loop_body
    %s24 = ssub.s32 %s19, 1
    %s25 = ssub.s32 %s19, 2
    %s32 = sadd.s32 1, %s27
    %p33 = scmp.ge.s32.totalorder %s32, 8
    %s34 = scalar_select %p33, 0, %s32
    %s35 = sadd.s32 1, %s26
    %s36 = scalar_select %p33, %s35, %s26
    %p37 = scmp.ge.s32.totalorder %s36, 2
    %s38 = scalar_select %p37, 0, %s36
    %s39 = ssub.s32 %s27, %s34
    %p40 = scmp.eq.s32.totalorder %s39, 0
    %s42 = sadd.s32 %s41, 1
    %s43 = scalar_select %p40, %s41, %s42
    %p46 = pneg %p40
    %p47 = scmp.eq.s32.totalorder %s19, 15
    %p48 = por %p46, %p47
    %p49 = scmp.ne.s32.totalorder %s41, %s44
    %p50 = scmp.eq.s32.totalorder %s19, 0
    %p51 = por %p49, %p50
    %p52 = scmp.ne.s32.totalorder %s41, %s44
    %p53 = scmp.eq.s32.totalorder %s24, 15
    %p54 = por %p52, %p53
    %p55 = scmp.ne.s32.totalorder %s44, %s45
    %p56 = scmp.eq.s32.totalorder %s24, 0
    %p57 = por %p55, %p56
    %p58 = scmp.ne.s32.totalorder %s44, %s45
    %p59 = scmp.eq.s32.totalorder %s25, 15
    %p60 = por %p58, %p59
    %p62 = scmp.ne.s32.totalorder %s45, %s61
    %p63 = scmp.eq.s32.totalorder %s25, 0
    %p64 = por %p62, %p63
    %s65 = ssub.s32 %s26, %s38
    %p66 = scmp.eq.s32.totalorder %s65, 0
    %s68 = sadd.s32 %s67, 1
    %s69 = scalar_select %p66, %s67, %s68
    %p72 = pneg %p66
    %p73 = scmp.eq.s32.totalorder %s19, 15
    %p74 = por %p72, %p73
    %p75 = scmp.ne.s32.totalorder %s67, %s70
    %p76 = scmp.eq.s32.totalorder %s19, 0
    %p77 = por %p75, %p76
    %p78 = scmp.ne.s32.totalorder %s67, %s70
    %p79 = scmp.eq.s32.totalorder %s24, 15
    %p80 = por %p78, %p79
    %p81 = scmp.ne.s32.totalorder %s70, %s71
    %p82 = scmp.eq.s32.totalorder %s24, 0
    %p83 = por %p81, %p82
    %p84 = scmp.ne.s32.totalorder %s70, %s71
    %p85 = scmp.eq.s32.totalorder %s25, 15
    %p86 = por %p84, %p85
    %p88 = scmp.ne.s32.totalorder %s71, %s87
    %p89 = scmp.eq.s32.totalorder %s25, 0
    %p90 = por %p88, %p89
    %s91 = ssub.s32 %s26, %s38
    %p92 = scmp.eq.s32.totalorder %s91, 0
    %s94 = sadd.s32 %s93, 1
    %s95 = scalar_select %p92, %s93, %s94
    %p98 = pneg %p92
    %p99 = scmp.eq.s32.totalorder %s19, 15
    %p100 = por %p98, %p99
    %p101 = scmp.ne.s32.totalorder %s93, %s96
    %p102 = scmp.eq.s32.totalorder %s19, 0
    %p103 = por %p101, %p102
    %p104 = scmp.ne.s32.totalorder %s93, %s96
    %p105 = scmp.eq.s32.totalorder %s24, 15
    %p106 = por %p104, %p105
    %p107 = scmp.ne.s32.totalorder %s96, %s97
    %p108 = scmp.eq.s32.totalorder %s24, 0
    %p109 = por %p107, %p108
    %p110 = scmp.ne.s32.totalorder %s96, %s97
    %p111 = scmp.eq.s32.totalorder %s25, 15
    %p112 = por %p110, %p111
    %p114 = scmp.ne.s32.totalorder %s97, %s113
    %p115 = scmp.eq.s32.totalorder %s25, 0
    %p116 = por %p114, %p115
    %s118 = sadd.s32 %s117, 1
    %p121 = scmp.eq.s32.totalorder %s19, 15
    %p122 = scmp.ne.s32.totalorder %s117, %s119
    %p123 = scmp.eq.s32.totalorder %s19, 0
    %p124 = por %p122, %p123
    %p125 = scmp.ne.s32.totalorder %s117, %s119
    %p126 = scmp.eq.s32.totalorder %s24, 15
    %p127 = por %p125, %p126
    %p128 = scmp.ne.s32.totalorder %s119, %s120
    %p129 = scmp.eq.s32.totalorder %s24, 0
    %p130 = por %p128, %p129
    %p131 = scmp.ne.s32.totalorder %s119, %s120
    %p132 = scmp.eq.s32.totalorder %s25, 15
    %p133 = por %p131, %p132
    %p135 = scmp.ne.s32.totalorder %s120, %s134
    %p136 = scmp.eq.s32.totalorder %s25, 0
    %p137 = por %p135, %p136
    %s139 = sadd.s32 %s138, 1
    %p142 = scmp.eq.s32.totalorder %s19, 15
    %p143 = scmp.ne.s32.totalorder %s138, %s140
    %p144 = scmp.eq.s32.totalorder %s19, 0
    %p145 = por %p143, %p144
    %p146 = scmp.ne.s32.totalorder %s138, %s140
    %p147 = scmp.eq.s32.totalorder %s24, 15
    %p148 = por %p146, %p147
    %p149 = scmp.ne.s32.totalorder %s140, %s141
    %p150 = scmp.eq.s32.totalorder %s24, 0
    %p151 = por %p149, %p150
    %p152 = scmp.ne.s32.totalorder %s140, %s141
    %p153 = scmp.eq.s32.totalorder %s25, 15
    %p154 = por %p152, %p153
    %p156 = scmp.ne.s32.totalorder %s141, %s155
    %p157 = scmp.eq.s32.totalorder %s25, 0
    %p158 = por %p156, %p157
    %s160 = sadd.s32 %s159, 1
    %p163 = scmp.eq.s32.totalorder %s19, 15
    %p164 = scmp.ne.s32.totalorder %s159, %s161
    %p165 = scmp.eq.s32.totalorder %s19, 0
    %p166 = por %p164, %p165
    %p167 = scmp.ne.s32.totalorder %s159, %s161
    %p168 = scmp.eq.s32.totalorder %s24, 15
    %p169 = por %p167, %p168
    %p170 = scmp.ne.s32.totalorder %s161, %s162
    %p171 = scmp.eq.s32.totalorder %s24, 0
    %p172 = por %p170, %p171
    %p173 = scmp.ne.s32.totalorder %s161, %s162
    %p174 = scmp.eq.s32.totalorder %s25, 15
    %p175 = por %p173, %p174
    %p177 = scmp.ne.s32.totalorder %s162, %s176
    %p178 = scmp.eq.s32.totalorder %s25, 0
    %p179 = por %p177, %p178
    %s181 = sadd.s32 %s180, 1
    %p184 = scmp.eq.s32.totalorder %s19, 15
    %p185 = scmp.ne.s32.totalorder %s180, %s182
    %p186 = scmp.eq.s32.totalorder %s19, 0
    %p187 = por %p185, %p186
    %p188 = scmp.ne.s32.totalorder %s180, %s182
    %p189 = scmp.eq.s32.totalorder %s24, 15
    %p190 = por %p188, %p189
    %p191 = scmp.ne.s32.totalorder %s182, %s183
    %p192 = scmp.eq.s32.totalorder %s24, 0
    %p193 = por %p191, %p192
    %p194 = scmp.ne.s32.totalorder %s182, %s183
    %p195 = scmp.eq.s32.totalorder %s25, 15
    %p196 = por %p194, %p195
    %p198 = scmp.ne.s32.totalorder %s183, %s197
    %p199 = scmp.eq.s32.totalorder %s25, 0
    %p200 = por %p198, %p199
    %s202 = sadd.s32 %s201, 1
    %p205 = scmp.eq.s32.totalorder %s19, 15
    %p206 = scmp.ne.s32.totalorder %s201, %s203
    %p207 = scmp.eq.s32.totalorder %s19, 0
    %p208 = por %p206, %p207
    %p209 = scmp.ne.s32.totalorder %s201, %s203
    %p210 = scmp.eq.s32.totalorder %s24, 15
    %p211 = por %p209, %p210
    %p212 = scmp.ne.s32.totalorder %s203, %s204
    %p213 = scmp.eq.s32.totalorder %s24, 0
    %p214 = por %p212, %p213
    %p215 = scmp.ne.s32.totalorder %s203, %s204
    %p216 = scmp.eq.s32.totalorder %s25, 15
    %p217 = por %p215, %p216
    %p219 = scmp.ne.s32.totalorder %s204, %s218
    %p220 = scmp.eq.s32.totalorder %s25, 0
    %p221 = por %p219, %p220
    %s223 = sadd.s32 %s222, 1
    %p226 = scmp.eq.s32.totalorder %s19, 15
    %p227 = scmp.ne.s32.totalorder %s222, %s224
    %p228 = scmp.eq.s32.totalorder %s19, 0
    %p229 = por %p227, %p228
    %p230 = scmp.ne.s32.totalorder %s222, %s224
    %p231 = scmp.eq.s32.totalorder %s24, 15
    %p232 = por %p230, %p231
    %p233 = scmp.ne.s32.totalorder %s224, %s225
    %p234 = scmp.eq.s32.totalorder %s24, 0
    %p235 = por %p233, %p234
    %p236 = scmp.ne.s32.totalorder %s224, %s225
    %p237 = scmp.eq.s32.totalorder %s25, 15
    %p238 = por %p236, %p237
    %p240 = scmp.ne.s32.totalorder %s225, %s239
    %p241 = scmp.eq.s32.totalorder %s25, 0
    %p242 = por %p240, %p241
    %s244 = sadd.s32 %s243, 1
    %p247 = scmp.eq.s32.totalorder %s19, 15
    %p248 = scmp.ne.s32.totalorder %s243, %s245
    %p249 = scmp.eq.s32.totalorder %s19, 0
    %p250 = por %p248, %p249
    %p251 = scmp.ne.s32.totalorder %s243, %s245
    %p252 = scmp.eq.s32.totalorder %s24, 15
    %p253 = por %p251, %p252
    %p254 = scmp.ne.s32.totalorder %s245, %s246
    %p255 = scmp.eq.s32.totalorder %s24, 0
    %p256 = por %p254, %p255
    %p257 = scmp.ne.s32.totalorder %s245, %s246
    %p258 = scmp.eq.s32.totalorder %s25, 15
    %p259 = por %p257, %p258
    %p261 = scmp.ne.s32.totalorder %s246, %s260
    %p262 = scmp.eq.s32.totalorder %s25, 0
    %p263 = por %p261, %p262
    %s265 = sadd.s32 %s264, 1
    %p268 = scmp.eq.s32.totalorder %s19, 15
    %p269 = scmp.ne.s32.totalorder %s264, %s266
    %p270 = scmp.eq.s32.totalorder %s19, 0
    %p271 = por %p269, %p270
    %p272 = scmp.ne.s32.totalorder %s264, %s266
    %p273 = scmp.eq.s32.totalorder %s24, 15
    %p274 = por %p272, %p273
    %p275 = scmp.ne.s32.totalorder %s266, %s267
    %p276 = scmp.eq.s32.totalorder %s24, 0
    %p277 = por %p275, %p276
    %p278 = scmp.ne.s32.totalorder %s266, %s267
    %p279 = scmp.eq.s32.totalorder %s25, 15
    %p280 = por %p278, %p279
    %p282 = scmp.ne.s32.totalorder %s267, %s281
    %p283 = scmp.eq.s32.totalorder %s25, 0
    %p284 = por %p282, %p283
    %s286 = sadd.s32 %s285, 1
    %p289 = scmp.eq.s32.totalorder %s19, 15
    %p290 = scmp.ne.s32.totalorder %s285, %s287
    %p291 = scmp.eq.s32.totalorder %s19, 0
    %p292 = por %p290, %p291
    %p293 = scmp.ne.s32.totalorder %s285, %s287
    %p294 = scmp.eq.s32.totalorder %s24, 15
    %p295 = por %p293, %p294
    %p296 = scmp.ne.s32.totalorder %s287, %s288
    %p297 = scmp.eq.s32.totalorder %s24, 0
    %p298 = por %p296, %p297
    %p299 = scmp.ne.s32.totalorder %s287, %s288
    %p300 = scmp.eq.s32.totalorder %s25, 15
    %p301 = por %p299, %p300
    %p303 = scmp.ne.s32.totalorder %s288, %s302
    %p304 = scmp.eq.s32.totalorder %s25, 0
    %p305 = por %p303, %p304
    %s307 = sadd.s32 %s306, 1
    %p310 = scmp.eq.s32.totalorder %s19, 15
    %p311 = scmp.ne.s32.totalorder %s306, %s308
    %p312 = scmp.eq.s32.totalorder %s19, 0
    %p313 = por %p311, %p312
    %p314 = scmp.ne.s32.totalorder %s306, %s308
    %p315 = scmp.eq.s32.totalorder %s24, 15
    %p316 = por %p314, %p315
    %p317 = scmp.ne.s32.totalorder %s308, %s309
    %p318 = scmp.eq.s32.totalorder %s24, 0
    %p319 = por %p317, %p318
    %p320 = scmp.ne.s32.totalorder %s308, %s309
    %p321 = scmp.eq.s32.totalorder %s25, 15
    %p322 = por %p320, %p321
    %p324 = scmp.ne.s32.totalorder %s309, %s323
    %p325 = scmp.eq.s32.totalorder %s25, 0
    %p326 = por %p324, %p325
    %s327 = ssub.s32 %s26, %s38
    %s328 = ssub.s32 %s27, %s34
    %s329 = sor.u32 %s327, %s328
    %p330 = scmp.eq.s32.totalorder %s329, 0
    %s332 = sadd.s32 %s331, 1
    %s333 = scalar_select %p330, %s331, %s332
    %p336 = pneg %p330
    %p337 = scmp.eq.s32.totalorder %s19, 15
    %p338 = por %p336, %p337
    %p339 = scmp.ne.s32.totalorder %s331, %s334
    %p340 = scmp.eq.s32.totalorder %s19, 0
    %p341 = por %p339, %p340
    %p342 = scmp.ne.s32.totalorder %s331, %s334
    %p343 = scmp.eq.s32.totalorder %s24, 15
    %p344 = por %p342, %p343
    %p345 = scmp.ne.s32.totalorder %s334, %s335
    %p346 = scmp.eq.s32.totalorder %s24, 0
    %p347 = por %p345, %p346
    %p348 = scmp.ne.s32.totalorder %s334, %s335
    %p349 = scmp.eq.s32.totalorder %s25, 15
    %p350 = por %p348, %p349
    %p352 = scmp.ne.s32.totalorder %s335, %s351
    %p353 = scmp.eq.s32.totalorder %s25, 0
    %p354 = por %p352, %p353
    %p355 = scmp.le.s32.totalorder 1, %s19
    %p356 = scmp.lt.s32.totalorder %s19, 17
    %p357 = pnand %p355, %p356
    %p358 = pneg %p357
    // Predicated region
    $region9: #{foldingnet_decoder_forward.1} parent=5 // pred_check
      _
    $region10: #{foldingnet_decoder_forward.1} parent=5 // pred_check_branch
      %360 = sbr.rel (%p357) target = $region12
    $region11: #{foldingnet_decoder_forward.1} parent=5 // pred_region
      %s361 = ssub.s32 %s19, 1
      // Predicated region
      $region13: #{foldingnet_decoder_forward.1} parent=11 // pred_check
        %p362 = pneg %p130
      $region14: #{foldingnet_decoder_forward.1} parent=11 // pred_check_branch
        %364 = sbr.rel (%p362) target = $region16
      $region15: #{foldingnet_decoder_forward.1} parent=11 // pred_region
        _
      $region16: #{foldingnet_decoder_forward.1} parent=11 // pred_fallthru
        _
      // Predicated region
      $region17: #{foldingnet_decoder_forward.1} parent=11 // pred_check
        %p365 = pneg %p151
      $region18: #{foldingnet_decoder_forward.1} parent=11 // pred_check_branch
        %367 = sbr.rel (%p365) target = $region20
      $region19: #{foldingnet_decoder_forward.1} parent=11 // pred_region
        _
      $region20: #{foldingnet_decoder_forward.1} parent=11 // pred_fallthru
        _
      // Predicated region
      $region21: #{foldingnet_decoder_forward.1} parent=11 // pred_check
        %p368 = pneg %p172
      $region22: #{foldingnet_decoder_forward.1} parent=11 // pred_check_branch
        %370 = sbr.rel (%p368) target = $region24
      $region23: #{foldingnet_decoder_forward.1} parent=11 // pred_region
        _
      $region24: #{foldingnet_decoder_forward.1} parent=11 // pred_fallthru
        _
      // Predicated region
      $region25: #{foldingnet_decoder_forward.1} parent=11 // pred_check
        %p371 = pneg %p193
      $region26: #{foldingnet_decoder_forward.1} parent=11 // pred_check_branch
        %373 = sbr.rel (%p371) target = $region28
      $region27: #{foldingnet_decoder_forward.1} parent=11 // pred_region
        _
      $region28: #{foldingnet_decoder_forward.1} parent=11 // pred_fallthru
        _
      // Predicated region
      $region29: #{foldingnet_decoder_forward.1} parent=11 // pred_check
        %p374 = pneg %p214
      $region30: #{foldingnet_decoder_forward.1} parent=11 // pred_check_branch
        %376 = sbr.rel (%p374) target = $region32
      $region31: #{foldingnet_decoder_forward.1} parent=11 // pred_region
        _
      $region32: #{foldingnet_decoder_forward.1} parent=11 // pred_fallthru
        _
      // Predicated region
      $region33: #{foldingnet_decoder_forward.1} parent=11 // pred_check
        %p377 = pneg %p235
      $region34: #{foldingnet_decoder_forward.1} parent=11 // pred_check_branch
        %379 = sbr.rel (%p377) target = $region36
      $region35: #{foldingnet_decoder_forward.1} parent=11 // pred_region
        _
      $region36: #{foldingnet_decoder_forward.1} parent=11 // pred_fallthru
        _
      // Predicated region
      $region37: #{foldingnet_decoder_forward.1} parent=11 // pred_check
        %p380 = pneg %p256
      $region38: #{foldingnet_decoder_forward.1} parent=11 // pred_check_branch
        %382 = sbr.rel (%p380) target = $region40
      $region39: #{foldingnet_decoder_forward.1} parent=11 // pred_region
        _
      $region40: #{foldingnet_decoder_forward.1} parent=11 // pred_fallthru
        _
      // Predicated region
      $region41: #{foldingnet_decoder_forward.1} parent=11 // pred_check
        %p383 = pneg %p277
      $region42: #{foldingnet_decoder_forward.1} parent=11 // pred_check_branch
        %385 = sbr.rel (%p383) target = $region44
      $region43: #{foldingnet_decoder_forward.1} parent=11 // pred_region
        _
      $region44: #{foldingnet_decoder_forward.1} parent=11 // pred_fallthru
        _
      // Predicated region
      $region45: #{foldingnet_decoder_forward.1} parent=11 // pred_check
        %p386 = pneg %p298
      $region46: #{foldingnet_decoder_forward.1} parent=11 // pred_check_branch
        %388 = sbr.rel (%p386) target = $region48
      $region47: #{foldingnet_decoder_forward.1} parent=11 // pred_region
        _
      $region48: #{foldingnet_decoder_forward.1} parent=11 // pred_fallthru
        _
      // Predicated region
      $region49: #{foldingnet_decoder_forward.1} parent=11 // pred_check
        %p389 = pneg %p319
      $region50: #{foldingnet_decoder_forward.1} parent=11 // pred_check_branch
        %391 = sbr.rel (%p389) target = $region52
      $region51: #{foldingnet_decoder_forward.1} parent=11 // pred_region
        _
      $region52: #{foldingnet_decoder_forward.1} parent=11 // pred_fallthru
        _
    $region12: #{foldingnet_decoder_forward.1} parent=5 // pred_fallthru
      _
    %p392 = scmp.lt.s32.totalorder %s19, 16
    // Predicated region
    $region53: #{foldingnet_decoder_forward.1} parent=5 // pred_check
      %p393 = pneg %p392
    $region54: #{foldingnet_decoder_forward.1} parent=5 // pred_check_branch
      %395 = sbr.rel (%p393) target = $region56
    $region55: #{foldingnet_decoder_forward.1} parent=5 // pred_region
      // Predicated region
      $region57: #{foldingnet_decoder_forward.1} parent=55 // pred_check
        %p396 = pneg %p51
      $region58: #{foldingnet_decoder_forward.1} parent=55 // pred_check_branch
        %398 = sbr.rel (%p396) target = $region60
      $region59: #{foldingnet_decoder_forward.1} parent=55 // pred_region
        %s399 = smul.u32 32, %s27
        %p400 = scmp.lt.s32.totalorder %s399, 255
        %s401 = scalar_select %p400, %s399, 255
        %s402 = smul.addr %s401, 8
        %s403 = scalar_lea.vmem %s0, %s402
        %s404 = smul.u32 32, %s27
      $region60: #{foldingnet_decoder_forward.1} parent=55 // pred_fallthru
        _
      // Predicated region
      $region61: #{foldingnet_decoder_forward.1} parent=55 // pred_check
        %p405 = pneg %p77
      $region62: #{foldingnet_decoder_forward.1} parent=55 // pred_check_branch
        %407 = sbr.rel (%p405) target = $region64
      $region63: #{foldingnet_decoder_forward.1} parent=55 // pred_region
        %p408 = scmp.lt.s32.totalorder %s26, 1
        %s409 = scalar_select %p408, %s26, 1
        %s410 = smul.addr %s409, 4
        %s411 = scalar_lea.vmem %s1, %s410
      $region64: #{foldingnet_decoder_forward.1} parent=55 // pred_fallthru
        _
      // Predicated region
      $region65: #{foldingnet_decoder_forward.1} parent=55 // pred_check
        %p412 = pneg %p103
      $region66: #{foldingnet_decoder_forward.1} parent=55 // pred_check_branch
        %414 = sbr.rel (%p412) target = $region68
      $region67: #{foldingnet_decoder_forward.1} parent=55 // pred_region
        %p415 = scmp.lt.s32.totalorder %s26, 1
        %s416 = scalar_select %p415, %s26, 1
        %s417 = smul.addr %s416, 4
        %s418 = scalar_lea.vmem %s2, %s417
      $region68: #{foldingnet_decoder_forward.1} parent=55 // pred_fallthru
        _
    $region56: #{foldingnet_decoder_forward.1} parent=5 // pred_fallthru
      _
    %p419 = scmp.le.s32.totalorder 1, %s19
    %p420 = scmp.lt.s32.totalorder %s19, 17
    %p421 = pnand %p419, %p420
    %p422 = pneg %p421
    // Predicated region
    $region69: #{foldingnet_decoder_forward.1} parent=5 // pred_check
      _
    $region70: #{foldingnet_decoder_forward.1} parent=5 // pred_check_branch
      %424 = sbr.rel (%p421) target = $region72
    $region71: #{foldingnet_decoder_forward.1} parent=5 // pred_region
      %s425 = ssub.s32 %s19, 1
      %s426 = smul.u32 32, %s29
      %p427 = scmp.lt.s32.totalorder %s426, 255
      %s428 = scalar_select %p427, %s426, 255
      %s429 = smul.addr %s428, 8
      %s430 = scalar_lea.vmem %s0, %s429
      %p431 = pneg %p57
      %p432 = pneg %p54
      %p433 = scmp.lt.s32.totalorder %s28, 1
      %s434 = scalar_select %p433, %s28, 1
      %s435 = smul.addr %s434, 4
      %s436 = scalar_lea.vmem %s1, %s435
      %p437 = pneg %p83
      %p438 = pneg %p80
      %p439 = scmp.lt.s32.totalorder %s28, 1
      %s440 = scalar_select %p439, %s28, 1
      %s441 = smul.addr %s440, 4
      %s442 = scalar_lea.vmem %s2, %s441
      %p443 = pneg %p109
      %p444 = pneg %p106
      %p445 = pneg %p130
      %p446 = pneg %p127
      %p447 = pneg %p151
      %p448 = pneg %p148
      %p449 = pneg %p172
      %p450 = pneg %p169
      %p451 = pneg %p193
      %p452 = pneg %p190
      %p453 = pneg %p214
      %p454 = pneg %p211
      %p455 = pneg %p235
      %p456 = pneg %p232
      %p457 = pneg %p256
      %p458 = pneg %p253
      %p459 = pneg %p277
      %p460 = pneg %p274
      %p461 = pneg %p298
      %p462 = pneg %p295
      %p463 = pneg %p319
      %p464 = pneg %p316
      %p465 = pneg %p347
      %p466 = pneg %p344
      %s467 = smul.u32 32, %s29
      %p468 = scmp.lt.s32.totalorder %s28, 1
      %s469 = scalar_select %p468, %s28, 1
      %p470 = scmp.lt.s32.totalorder %s467, 255
      %s471 = scalar_select %p470, %s467, 255
      %s472 = smul.addr %s469, 256
      %s473 = sadd.s32 %s471, %s472
      %s474 = smul.addr %s473, 8
      %s475 = scalar_lea.vmem %s13, %s474
      %s476 = smul.u32 32, %s29
      %p477 = scmp.lt.s32.totalorder %s476, 255
      %s478 = scalar_select %p477, %s476, 255
      %s479 = smul.addr %s478, 8
      %s480 = scalar_lea.vmem %s0, %s479
      %s481 = smul.u32 32, %s29
      %p482 = scmp.lt.s32.totalorder %s28, 1
      %s483 = scalar_select %p482, %s28, 1
      %s484 = smul.addr %s483, 4
      %s485 = scalar_lea.vmem %s1, %s484
      %p486 = scmp.lt.s32.totalorder %s28, 1
      %s487 = scalar_select %p486, %s28, 1
      %s488 = smul.addr %s487, 4
      %s489 = scalar_lea.vmem %s2, %s488
      %s490 = smul.u32 32, %s29
      %p491 = scmp.lt.s32.totalorder %s28, 1
      %s492 = scalar_select %p491, %s28, 1
      %p493 = scmp.lt.s32.totalorder %s490, 255
      %s494 = scalar_select %p493, %s490, 255
      %s495 = smul.addr %s492, 256
      %s496 = sadd.s32 %s494, %s495
      %s497 = smul.addr %s496, 8
      %s498 = scalar_lea.vmem %s13, %s497
      %s499 = smul.u32 32, %s29
      %v500 = vld [vmem:[%s485] sm:$0xf]
      %v501 = vld [vmem:[%s489] sm:$0xf]
      %v502 = vld [vmem:[%s480] sm:$0xff]
      %v503 = vld [vmem:[%s480 + $0x8] sm:$0xff]
      %v504 = vld [vmem:[%s480 + $0x10] sm:$0xff]
      %v505 = vld [vmem:[%s480 + $0x18] sm:$0xff]
      %v506 = vld [vmem:[%s480 + $0x20] sm:$0xff]
      %v507 = vld [vmem:[%s480 + $0x28] sm:$0xff]
      %v508 = vld [vmem:[%s480 + $0x30] sm:$0xff]
      %v509 = vld [vmem:[%s480 + $0x38] sm:$0xff]
      %v510 = vld [vmem:[%s480 + $0x40] sm:$0xff]
      %v511 = vld [vmem:[%s480 + $0x48] sm:$0xff]
      %v512 = vld [vmem:[%s480 + $0x50] sm:$0xff]
      %v513 = vld [vmem:[%s480 + $0x58] sm:$0xff]
      %v514 = vld [vmem:[%s480 + $0x60] sm:$0xff]
      %v515 = vld [vmem:[%s480 + $0x68] sm:$0xff]
      %v516 = vld [vmem:[%s480 + $0x70] sm:$0xff]
      %v517 = vld [vmem:[%s480 + $0x78] sm:$0xff]
      %v518 = vld [vmem:[%s480 + $0x80] sm:$0xff]
      %v519 = vld [vmem:[%s480 + $0x88] sm:$0xff]
      %v520 = vld [vmem:[%s480 + $0x90] sm:$0xff]
      %v521 = vld [vmem:[%s480 + $0x98] sm:$0xff]
      %v522 = vld [vmem:[%s480 + $0xa0] sm:$0xff]
      %v523 = vld [vmem:[%s480 + $0xa8] sm:$0xff]
      %v524 = vld [vmem:[%s480 + $0xb0] sm:$0xff]
      %v525 = vld [vmem:[%s480 + $0xb8] sm:$0xff]
      %v526 = vld [vmem:[%s480 + $0xc0] sm:$0xff]
      %v527 = vld [vmem:[%s480 + $0xc8] sm:$0xff]
      %v528 = vld [vmem:[%s480 + $0xd0] sm:$0xff]
      %v529 = vld [vmem:[%s480 + $0xd8] sm:$0xff]
      %v530 = vld [vmem:[%s480 + $0xe0] sm:$0xff]
      %v531 = vld [vmem:[%s480 + $0xe8] sm:$0xff]
      %v532 = vld [vmem:[%s480 + $0xf0] sm:$0xff]
      %v533 = vld [vmem:[%s480 + $0xf8] sm:$0xff]
      %v534 = vld [vmem:[%s3] sm:$0xff]
      %v535 = vld [vmem:[%s3 + $0x8] sm:$0xff]
      %v536 = vld [vmem:[%s3 + $0x10] sm:$0xff]
      %v537 = vld [vmem:[%s3 + $0x18] sm:$0xff]
      %v538 = vld [vmem:[%s3 + $0x20] sm:$0xff]
      %v539 = vld [vmem:[%s3 + $0x28] sm:$0xff]
      %v540 = vld [vmem:[%s3 + $0x30] sm:$0xff]
      %v541 = vld [vmem:[%s3 + $0x38] sm:$0xff]
      %v542 = vld [vmem:[%s3 + $0x40] sm:$0xff]
      %v543 = vld [vmem:[%s3 + $0x48] sm:$0xff]
      %v544 = vld [vmem:[%s3 + $0x50] sm:$0xff]
      %v545 = vld [vmem:[%s3 + $0x58] sm:$0xff]
      %v546 = vld [vmem:[%s3 + $0x60] sm:$0xff]
      %v547 = vld [vmem:[%s3 + $0x68] sm:$0xff]
      %v548 = vld [vmem:[%s3 + $0x70] sm:$0xff]
      %v549 = vld [vmem:[%s3 + $0x78] sm:$0xff]
      %v550 = vld [vmem:[%s3 + $0x80] sm:$0xff]
      %v551 = vld [vmem:[%s3 + $0x88] sm:$0xff]
      %v552 = vld [vmem:[%s3 + $0x90] sm:$0xff]
      %v553 = vld [vmem:[%s3 + $0x98] sm:$0xff]
      %v554 = vld [vmem:[%s3 + $0xa0] sm:$0xff]
      %v555 = vld [vmem:[%s3 + $0xa8] sm:$0xff]
      %v556 = vld [vmem:[%s3 + $0xb0] sm:$0xff]
      %v557 = vld [vmem:[%s3 + $0xb8] sm:$0xff]
      %v558 = vld [vmem:[%s3 + $0xc0] sm:$0xff]
      %v559 = vld [vmem:[%s3 + $0xc8] sm:$0xff]
      %v560 = vld [vmem:[%s3 + $0xd0] sm:$0xff]
      %v561 = vld [vmem:[%s3 + $0xd8] sm:$0xff]
      %v562 = vld [vmem:[%s3 + $0xe0] sm:$0xff]
      %v563 = vld [vmem:[%s3 + $0xe8] sm:$0xff]
      %v564 = vld [vmem:[%s3 + $0xf0] sm:$0xff]
      %v565 = vld [vmem:[%s3 + $0xf8] sm:$0xff]
      %v566 = vld [vmem:[%s3 + $0x100] sm:$0xff]
      %v567 = vld [vmem:[%s3 + $0x108] sm:$0xff]
      %v568 = vld [vmem:[%s3 + $0x110] sm:$0xff]
      %v569 = vld [vmem:[%s3 + $0x118] sm:$0xff]
      %v570 = vld [vmem:[%s3 + $0x120] sm:$0xff]
      %v571 = vld [vmem:[%s3 + $0x128] sm:$0xff]
      %v572 = vld [vmem:[%s3 + $0x130] sm:$0xff]
      %v573 = vld [vmem:[%s3 + $0x138] sm:$0xff]
      %v574 = vld [vmem:[%s3 + $0x140] sm:$0xff]
      %v575 = vld [vmem:[%s3 + $0x148] sm:$0xff]
      %v576 = vld [vmem:[%s3 + $0x150] sm:$0xff]
      %v577 = vld [vmem:[%s3 + $0x158] sm:$0xff]
      %v578 = vld [vmem:[%s3 + $0x160] sm:$0xff]
      %v579 = vld [vmem:[%s3 + $0x168] sm:$0xff]
      %v580 = vld [vmem:[%s3 + $0x170] sm:$0xff]
      %v581 = vld [vmem:[%s3 + $0x178] sm:$0xff]
      %v582 = vld [vmem:[%s3 + $0x180] sm:$0xff]
      %v583 = vld [vmem:[%s3 + $0x188] sm:$0xff]
      %v584 = vld [vmem:[%s3 + $0x190] sm:$0xff]
      %v585 = vld [vmem:[%s3 + $0x198] sm:$0xff]
      %v586 = vld [vmem:[%s3 + $0x1a0] sm:$0xff]
      %v587 = vld [vmem:[%s3 + $0x1a8] sm:$0xff]
      %v588 = vld [vmem:[%s3 + $0x1b0] sm:$0xff]
      %v589 = vld [vmem:[%s3 + $0x1b8] sm:$0xff]
      %v590 = vld [vmem:[%s3 + $0x1c0] sm:$0xff]
      %v591 = vld [vmem:[%s3 + $0x1c8] sm:$0xff]
      %v592 = vld [vmem:[%s3 + $0x1d0] sm:$0xff]
      %v593 = vld [vmem:[%s3 + $0x1d8] sm:$0xff]
      %v594 = vld [vmem:[%s3 + $0x1e0] sm:$0xff]
      %v595 = vld [vmem:[%s3 + $0x1e8] sm:$0xff]
      %v596 = vld [vmem:[%s3 + $0x1f0] sm:$0xff]
      %v597 = vld [vmem:[%s3 + $0x1f8] sm:$0xff]
      %v599 = vperm.slane %v500, 0
      %v600 = vperm.slane %v500, 1
      %v601 = vperm.slane %v500, 2
      %v602 = vperm.slane %v500, 3
      %607 = vmatpush.msra.mxu0 %v594
      %608 = vmatpush.msra.mxu0 %v590
      %609 = vmatpush.msra.mxu0 %v586
      %610 = vmatpush.msra.mxu0 %v582
      %611 = vmatpush.msra.mxu0 %v578
      %612 = vmatpush.msra.mxu0 %v574
      %613 = vmatpush.msra.mxu0 %v570
      %614 = vmatpush.msra.mxu0 %v566
      %615 = vmatpush.msra.mxu0 %v562
      %616 = vmatpush.msra.mxu0 %v558
      %617 = vmatpush.msra.mxu0 %v554
      %618 = vmatpush.msra.mxu0 %v550
      %619 = vmatpush.msra.mxu0 %v546
      %620 = vmatpush.msra.mxu0 %v542
      %621 = vmatpush.msra.mxu0 %v538
      %622 = vmatpush.msra.mxu0 %v534
      %623 = vmatmul.f32.gmra.mxu0 %v502
      %v624 = vpop.f32.mrf.mxu0
      %v625 = vadd.f32 %v599, %v624
      %626 = vmatmul.f32.gmra.mxu0 %v503
      %v627 = vpop.f32.mrf.mxu0
      %v628 = vadd.f32 %v599, %v627
      %629 = vmatmul.f32.gmra.mxu0 %v504
      %v630 = vpop.f32.mrf.mxu0
      %v631 = vadd.f32 %v599, %v630
      %632 = vmatmul.f32.gmra.mxu0 %v505
      %v633 = vpop.f32.mrf.mxu0
      %v634 = vadd.f32 %v599, %v633
      %635 = vmatmul.f32.gmra.mxu0 %v506
      %v636 = vpop.f32.mrf.mxu0
      %v637 = vadd.f32 %v599, %v636
      %638 = vmatmul.f32.gmra.mxu0 %v507
      %v639 = vpop.f32.mrf.mxu0
      %v640 = vadd.f32 %v599, %v639
      %641 = vmatmul.f32.gmra.mxu0 %v508
      %v642 = vpop.f32.mrf.mxu0
      %v643 = vadd.f32 %v599, %v642
      %644 = vmatmul.f32.gmra.mxu0 %v509
      %v645 = vpop.f32.mrf.mxu0
      %v646 = vadd.f32 %v599, %v645
      %647 = vmatmul.f32.gmra.mxu0 %v510
      %v648 = vpop.f32.mrf.mxu0
      %v649 = vadd.f32 %v599, %v648
      %650 = vmatmul.f32.gmra.mxu0 %v511
      %v651 = vpop.f32.mrf.mxu0
      %v652 = vadd.f32 %v599, %v651
      %653 = vmatmul.f32.gmra.mxu0 %v512
      %v654 = vpop.f32.mrf.mxu0
      %v655 = vadd.f32 %v599, %v654
      %656 = vmatmul.f32.gmra.mxu0 %v513
      %v657 = vpop.f32.mrf.mxu0
      %v658 = vadd.f32 %v599, %v657
      %659 = vmatmul.f32.gmra.mxu0 %v514
      %v660 = vpop.f32.mrf.mxu0
      %v661 = vadd.f32 %v599, %v660
      %662 = vmatmul.f32.gmra.mxu0 %v515
      %v663 = vpop.f32.mrf.mxu0
      %v664 = vadd.f32 %v599, %v663
      %665 = vmatmul.f32.gmra.mxu0 %v516
      %v666 = vpop.f32.mrf.mxu0
      %v667 = vadd.f32 %v599, %v666
      %668 = vmatmul.f32.gmra.mxu0 %v517
      %v669 = vpop.f32.mrf.mxu0
      %v670 = vadd.f32 %v599, %v669
      %671 = vmatmul.f32.gmra.mxu0 %v518
      %v672 = vpop.f32.mrf.mxu0
      %v673 = vadd.f32 %v599, %v672
      %674 = vmatmul.f32.gmra.mxu0 %v519
      %v675 = vpop.f32.mrf.mxu0
      %v676 = vadd.f32 %v599, %v675
      %677 = vmatmul.f32.gmra.mxu0 %v520
      %v678 = vpop.f32.mrf.mxu0
      %v679 = vadd.f32 %v599, %v678
      %680 = vmatmul.f32.gmra.mxu0 %v521
      %v681 = vpop.f32.mrf.mxu0
      %v682 = vadd.f32 %v599, %v681
      %683 = vmatmul.f32.gmra.mxu0 %v522
      %v684 = vpop.f32.mrf.mxu0
      %v685 = vadd.f32 %v599, %v684
      %686 = vmatmul.f32.gmra.mxu0 %v523
      %v687 = vpop.f32.mrf.mxu0
      %v688 = vadd.f32 %v599, %v687
      %689 = vmatmul.f32.gmra.mxu0 %v524
      %v690 = vpop.f32.mrf.mxu0
      %v691 = vadd.f32 %v599, %v690
      %692 = vmatmul.f32.gmra.mxu0 %v525
      %v693 = vpop.f32.mrf.mxu0
      %v694 = vadd.f32 %v599, %v693
      %695 = vmatmul.f32.gmra.mxu0 %v526
      %v696 = vpop.f32.mrf.mxu0
      %v697 = vadd.f32 %v599, %v696
      %698 = vmatmul.f32.gmra.mxu0 %v527
      %v699 = vpop.f32.mrf.mxu0
      %v700 = vadd.f32 %v599, %v699
      %701 = vmatmul.f32.gmra.mxu0 %v528
      %v702 = vpop.f32.mrf.mxu0
      %v703 = vadd.f32 %v599, %v702
      %704 = vmatmul.f32.gmra.mxu0 %v529
      %v705 = vpop.f32.mrf.mxu0
      %v706 = vadd.f32 %v599, %v705
      %707 = vmatmul.f32.gmra.mxu0 %v530
      %v708 = vpop.f32.mrf.mxu0
      %v709 = vadd.f32 %v599, %v708
      %710 = vmatmul.f32.gmra.mxu0 %v531
      %v711 = vpop.f32.mrf.mxu0
      %v712 = vadd.f32 %v599, %v711
      %713 = vmatmul.f32.gmra.mxu0 %v532
      %v714 = vpop.f32.mrf.mxu0
      %v715 = vadd.f32 %v599, %v714
      %716 = vmatmul.f32.gmra.mxu0 %v533
      %v717 = vpop.f32.mrf.mxu0
      %v718 = vadd.f32 %v599, %v717
      %719 = vdwg.mxu0
      %720 = vmatpush.msra.mxu0 %v595
      %721 = vmatpush.msra.mxu0 %v591
      %722 = vmatpush.msra.mxu0 %v587
      %723 = vmatpush.msra.mxu0 %v583
      %724 = vmatpush.msra.mxu0 %v579
      %725 = vmatpush.msra.mxu0 %v575
      %726 = vmatpush.msra.mxu0 %v571
      %727 = vmatpush.msra.mxu0 %v567
      %728 = vmatpush.msra.mxu0 %v563
      %729 = vmatpush.msra.mxu0 %v559
      %730 = vmatpush.msra.mxu0 %v555
      %731 = vmatpush.msra.mxu0 %v551
      %732 = vmatpush.msra.mxu0 %v547
      %733 = vmatpush.msra.mxu0 %v543
      %734 = vmatpush.msra.mxu0 %v539
      %735 = vmatpush.msra.mxu0 %v535
      %736 = vmatmul.f32.gmra.mxu0 %v502
      %v737 = vpop.f32.mrf.mxu0
      %v738 = vadd.f32 %v600, %v737
      %739 = vmatmul.f32.gmra.mxu0 %v503
      %v740 = vpop.f32.mrf.mxu0
      %v741 = vadd.f32 %v600, %v740
      %742 = vmatmul.f32.gmra.mxu0 %v504
      %v743 = vpop.f32.mrf.mxu0
      %v744 = vadd.f32 %v600, %v743
      %745 = vmatmul.f32.gmra.mxu0 %v505
      %v746 = vpop.f32.mrf.mxu0
      %v747 = vadd.f32 %v600, %v746
      %748 = vmatmul.f32.gmra.mxu0 %v506
      %v749 = vpop.f32.mrf.mxu0
      %v750 = vadd.f32 %v600, %v749
      %751 = vmatmul.f32.gmra.mxu0 %v507
      %v752 = vpop.f32.mrf.mxu0
      %v753 = vadd.f32 %v600, %v752
      %754 = vmatmul.f32.gmra.mxu0 %v508
      %v755 = vpop.f32.mrf.mxu0
      %v756 = vadd.f32 %v600, %v755
      %757 = vmatmul.f32.gmra.mxu0 %v509
      %v758 = vpop.f32.mrf.mxu0
      %v759 = vadd.f32 %v600, %v758
      %760 = vmatmul.f32.gmra.mxu0 %v510
      %v761 = vpop.f32.mrf.mxu0
      %v762 = vadd.f32 %v600, %v761
      %763 = vmatmul.f32.gmra.mxu0 %v511
      %v764 = vpop.f32.mrf.mxu0
      %v765 = vadd.f32 %v600, %v764
      %766 = vmatmul.f32.gmra.mxu0 %v512
      %v767 = vpop.f32.mrf.mxu0
      %v768 = vadd.f32 %v600, %v767
      %769 = vmatmul.f32.gmra.mxu0 %v513
      %v770 = vpop.f32.mrf.mxu0
      %v771 = vadd.f32 %v600, %v770
      %772 = vmatmul.f32.gmra.mxu0 %v514
      %v773 = vpop.f32.mrf.mxu0
      %v774 = vadd.f32 %v600, %v773
      %775 = vmatmul.f32.gmra.mxu0 %v515
      %v776 = vpop.f32.mrf.mxu0
      %v777 = vadd.f32 %v600, %v776
      %778 = vmatmul.f32.gmra.mxu0 %v516
      %v779 = vpop.f32.mrf.mxu0
      %v780 = vadd.f32 %v600, %v779
      %781 = vmatmul.f32.gmra.mxu0 %v517
      %v782 = vpop.f32.mrf.mxu0
      %v783 = vadd.f32 %v600, %v782
      %784 = vmatmul.f32.gmra.mxu0 %v518
      %v785 = vpop.f32.mrf.mxu0
      %v786 = vadd.f32 %v600, %v785
      %787 = vmatmul.f32.gmra.mxu0 %v519
      %v788 = vpop.f32.mrf.mxu0
      %v789 = vadd.f32 %v600, %v788
      %790 = vmatmul.f32.gmra.mxu0 %v520
      %v791 = vpop.f32.mrf.mxu0
      %v792 = vadd.f32 %v600, %v791
      %793 = vmatmul.f32.gmra.mxu0 %v521
      %v794 = vpop.f32.mrf.mxu0
      %v795 = vadd.f32 %v600, %v794
      %796 = vmatmul.f32.gmra.mxu0 %v522
      %v797 = vpop.f32.mrf.mxu0
      %v798 = vadd.f32 %v600, %v797
      %799 = vmatmul.f32.gmra.mxu0 %v523
      %v800 = vpop.f32.mrf.mxu0
      %v801 = vadd.f32 %v600, %v800
      %802 = vmatmul.f32.gmra.mxu0 %v524
      %v803 = vpop.f32.mrf.mxu0
      %v804 = vadd.f32 %v600, %v803
      %805 = vmatmul.f32.gmra.mxu0 %v525
      %v806 = vpop.f32.mrf.mxu0
      %v807 = vadd.f32 %v600, %v806
      %808 = vmatmul.f32.gmra.mxu0 %v526
      %v809 = vpop.f32.mrf.mxu0
      %v810 = vadd.f32 %v600, %v809
      %811 = vmatmul.f32.gmra.mxu0 %v527
      %v812 = vpop.f32.mrf.mxu0
      %v813 = vadd.f32 %v600, %v812
      %814 = vmatmul.f32.gmra.mxu0 %v528
      %v815 = vpop.f32.mrf.mxu0
      %v816 = vadd.f32 %v600, %v815
      %817 = vmatmul.f32.gmra.mxu0 %v529
      %v818 = vpop.f32.mrf.mxu0
      %v819 = vadd.f32 %v600, %v818
      %820 = vmatmul.f32.gmra.mxu0 %v530
      %v821 = vpop.f32.mrf.mxu0
      %v822 = vadd.f32 %v600, %v821
      %823 = vmatmul.f32.gmra.mxu0 %v531
      %v824 = vpop.f32.mrf.mxu0
      %v825 = vadd.f32 %v600, %v824
      %826 = vmatmul.f32.gmra.mxu0 %v532
      %v827 = vpop.f32.mrf.mxu0
      %v828 = vadd.f32 %v600, %v827
      %829 = vmatmul.f32.gmra.mxu0 %v533
      %v830 = vpop.f32.mrf.mxu0
      %v831 = vadd.f32 %v600, %v830
      %832 = vdwg.mxu0
      %833 = vmatpush.msra.mxu0 %v596
      %834 = vmatpush.msra.mxu0 %v592
      %835 = vmatpush.msra.mxu0 %v588
      %836 = vmatpush.msra.mxu0 %v584
      %837 = vmatpush.msra.mxu0 %v580
      %838 = vmatpush.msra.mxu0 %v576
      %839 = vmatpush.msra.mxu0 %v572
      %840 = vmatpush.msra.mxu0 %v568
      %841 = vmatpush.msra.mxu0 %v564
      %842 = vmatpush.msra.mxu0 %v560
      %843 = vmatpush.msra.mxu0 %v556
      %844 = vmatpush.msra.mxu0 %v552
      %845 = vmatpush.msra.mxu0 %v548
      %846 = vmatpush.msra.mxu0 %v544
      %847 = vmatpush.msra.mxu0 %v540
      %848 = vmatpush.msra.mxu0 %v536
      %849 = vmatmul.f32.gmra.mxu0 %v502
      %v850 = vpop.f32.mrf.mxu0
      %v851 = vadd.f32 %v601, %v850
      %852 = vmatmul.f32.gmra.mxu0 %v503
      %v853 = vpop.f32.mrf.mxu0
      %v854 = vadd.f32 %v601, %v853
      %855 = vmatmul.f32.gmra.mxu0 %v504
      %v856 = vpop.f32.mrf.mxu0
      %v857 = vadd.f32 %v601, %v856
      %858 = vmatmul.f32.gmra.mxu0 %v505
      %v859 = vpop.f32.mrf.mxu0
      %v860 = vadd.f32 %v601, %v859
      %861 = vmatmul.f32.gmra.mxu0 %v506
      %v862 = vpop.f32.mrf.mxu0
      %v863 = vadd.f32 %v601, %v862
      %864 = vmatmul.f32.gmra.mxu0 %v507
      %v865 = vpop.f32.mrf.mxu0
      %v866 = vadd.f32 %v601, %v865
      %867 = vmatmul.f32.gmra.mxu0 %v508
      %v868 = vpop.f32.mrf.mxu0
      %v869 = vadd.f32 %v601, %v868
      %870 = vmatmul.f32.gmra.mxu0 %v509
      %v871 = vpop.f32.mrf.mxu0
      %v872 = vadd.f32 %v601, %v871
      %873 = vmatmul.f32.gmra.mxu0 %v510
      %v874 = vpop.f32.mrf.mxu0
      %v875 = vadd.f32 %v601, %v874
      %876 = vmatmul.f32.gmra.mxu0 %v511
      %v877 = vpop.f32.mrf.mxu0
      %v878 = vadd.f32 %v601, %v877
      %879 = vmatmul.f32.gmra.mxu0 %v512
      %v880 = vpop.f32.mrf.mxu0
      %v881 = vadd.f32 %v601, %v880
      %882 = vmatmul.f32.gmra.mxu0 %v513
      %v883 = vpop.f32.mrf.mxu0
      %v884 = vadd.f32 %v601, %v883
      %885 = vmatmul.f32.gmra.mxu0 %v514
      %v886 = vpop.f32.mrf.mxu0
      %v887 = vadd.f32 %v601, %v886
      %888 = vmatmul.f32.gmra.mxu0 %v515
      %v889 = vpop.f32.mrf.mxu0
      %v890 = vadd.f32 %v601, %v889
      %891 = vmatmul.f32.gmra.mxu0 %v516
      %v892 = vpop.f32.mrf.mxu0
      %v893 = vadd.f32 %v601, %v892
      %894 = vmatmul.f32.gmra.mxu0 %v517
      %v895 = vpop.f32.mrf.mxu0
      %v896 = vadd.f32 %v601, %v895
      %897 = vmatmul.f32.gmra.mxu0 %v518
      %v898 = vpop.f32.mrf.mxu0
      %v899 = vadd.f32 %v601, %v898
      %900 = vmatmul.f32.gmra.mxu0 %v519
      %v901 = vpop.f32.mrf.mxu0
      %v902 = vadd.f32 %v601, %v901
      %903 = vmatmul.f32.gmra.mxu0 %v520
      %v904 = vpop.f32.mrf.mxu0
      %v905 = vadd.f32 %v601, %v904
      %906 = vmatmul.f32.gmra.mxu0 %v521
      %v907 = vpop.f32.mrf.mxu0
      %v908 = vadd.f32 %v601, %v907
      %909 = vmatmul.f32.gmra.mxu0 %v522
      %v910 = vpop.f32.mrf.mxu0
      %v911 = vadd.f32 %v601, %v910
      %912 = vmatmul.f32.gmra.mxu0 %v523
      %v913 = vpop.f32.mrf.mxu0
      %v914 = vadd.f32 %v601, %v913
      %915 = vmatmul.f32.gmra.mxu0 %v524
      %v916 = vpop.f32.mrf.mxu0
      %v917 = vadd.f32 %v601, %v916
      %918 = vmatmul.f32.gmra.mxu0 %v525
      %v919 = vpop.f32.mrf.mxu0
      %v920 = vadd.f32 %v601, %v919
      %921 = vmatmul.f32.gmra.mxu0 %v526
      %v922 = vpop.f32.mrf.mxu0
      %v923 = vadd.f32 %v601, %v922
      %924 = vmatmul.f32.gmra.mxu0 %v527
      %v925 = vpop.f32.mrf.mxu0
      %v926 = vadd.f32 %v601, %v925
      %927 = vmatmul.f32.gmra.mxu0 %v528
      %v928 = vpop.f32.mrf.mxu0
      %v929 = vadd.f32 %v601, %v928
      %930 = vmatmul.f32.gmra.mxu0 %v529
      %v931 = vpop.f32.mrf.mxu0
      %v932 = vadd.f32 %v601, %v931
      %933 = vmatmul.f32.gmra.mxu0 %v530
      %v934 = vpop.f32.mrf.mxu0
      %v935 = vadd.f32 %v601, %v934
      %936 = vmatmul.f32.gmra.mxu0 %v531
      %v937 = vpop.f32.mrf.mxu0
      %v938 = vadd.f32 %v601, %v937
      %939 = vmatmul.f32.gmra.mxu0 %v532
      %v940 = vpop.f32.mrf.mxu0
      %v941 = vadd.f32 %v601, %v940
      %942 = vmatmul.f32.gmra.mxu0 %v533
      %v943 = vpop.f32.mrf.mxu0
      %v944 = vadd.f32 %v601, %v943
      %945 = vdwg.mxu0
      %946 = vmatpush.msra.mxu0 %v597
      %947 = vmatpush.msra.mxu0 %v593
      %948 = vmatpush.msra.mxu0 %v589
      %949 = vmatpush.msra.mxu0 %v585
      %950 = vmatpush.msra.mxu0 %v581
      %951 = vmatpush.msra.mxu0 %v577
      %952 = vmatpush.msra.mxu0 %v573
      %953 = vmatpush.msra.mxu0 %v569
      %954 = vmatpush.msra.mxu0 %v565
      %955 = vmatpush.msra.mxu0 %v561
      %956 = vmatpush.msra.mxu0 %v557
      %957 = vmatpush.msra.mxu0 %v553
      %958 = vmatpush.msra.mxu0 %v549
      %959 = vmatpush.msra.mxu0 %v545
      %960 = vmatpush.msra.mxu0 %v541
      %961 = vmatpush.msra.mxu0 %v537
      %962 = vmatmul.f32.gmra.mxu0 %v502
      %v963 = vpop.f32.mrf.mxu0
      %v964 = vadd.f32 %v602, %v963
      %965 = vmatmul.f32.gmra.mxu0 %v503
      %v966 = vpop.f32.mrf.mxu0
      %v967 = vadd.f32 %v602, %v966
      %968 = vmatmul.f32.gmra.mxu0 %v504
      %v969 = vpop.f32.mrf.mxu0
      %v970 = vadd.f32 %v602, %v969
      %971 = vmatmul.f32.gmra.mxu0 %v505
      %v972 = vpop.f32.mrf.mxu0
      %v973 = vadd.f32 %v602, %v972
      %974 = vmatmul.f32.gmra.mxu0 %v506
      %v975 = vpop.f32.mrf.mxu0
      %v976 = vadd.f32 %v602, %v975
      %977 = vmatmul.f32.gmra.mxu0 %v507
      %v978 = vpop.f32.mrf.mxu0
      %v979 = vadd.f32 %v602, %v978
      %980 = vmatmul.f32.gmra.mxu0 %v508
      %v981 = vpop.f32.mrf.mxu0
      %v982 = vadd.f32 %v602, %v981
      %983 = vmatmul.f32.gmra.mxu0 %v509
      %v984 = vpop.f32.mrf.mxu0
      %v985 = vadd.f32 %v602, %v984
      %986 = vmatmul.f32.gmra.mxu0 %v510
      %v987 = vpop.f32.mrf.mxu0
      %v988 = vadd.f32 %v602, %v987
      %989 = vmatmul.f32.gmra.mxu0 %v511
      %v990 = vpop.f32.mrf.mxu0
      %v991 = vadd.f32 %v602, %v990
      %992 = vmatmul.f32.gmra.mxu0 %v512
      %v993 = vpop.f32.mrf.mxu0
      %v994 = vadd.f32 %v602, %v993
      %995 = vmatmul.f32.gmra.mxu0 %v513
      %v996 = vpop.f32.mrf.mxu0
      %v997 = vadd.f32 %v602, %v996
      %998 = vmatmul.f32.gmra.mxu0 %v514
      %v999 = vpop.f32.mrf.mxu0
      %v1000 = vadd.f32 %v602, %v999
      %1001 = vmatmul.f32.gmra.mxu0 %v515
      %v1002 = vpop.f32.mrf.mxu0
      %v1003 = vadd.f32 %v602, %v1002
      %1004 = vmatmul.f32.gmra.mxu0 %v516
      %v1005 = vpop.f32.mrf.mxu0
      %v1006 = vadd.f32 %v602, %v1005
      %1007 = vmatmul.f32.gmra.mxu0 %v517
      %v1008 = vpop.f32.mrf.mxu0
      %v1009 = vadd.f32 %v602, %v1008
      %1010 = vmatmul.f32.gmra.mxu0 %v518
      %v1011 = vpop.f32.mrf.mxu0
      %v1012 = vadd.f32 %v602, %v1011
      %1013 = vmatmul.f32.gmra.mxu0 %v519
      %v1014 = vpop.f32.mrf.mxu0
      %v1015 = vadd.f32 %v602, %v1014
      %1016 = vmatmul.f32.gmra.mxu0 %v520
      %v1017 = vpop.f32.mrf.mxu0
      %v1018 = vadd.f32 %v602, %v1017
      %1019 = vmatmul.f32.gmra.mxu0 %v521
      %v1020 = vpop.f32.mrf.mxu0
      %v1021 = vadd.f32 %v602, %v1020
      %1022 = vmatmul.f32.gmra.mxu0 %v522
      %v1023 = vpop.f32.mrf.mxu0
      %v1024 = vadd.f32 %v602, %v1023
      %1025 = vmatmul.f32.gmra.mxu0 %v523
      %v1026 = vpop.f32.mrf.mxu0
      %v1027 = vadd.f32 %v602, %v1026
      %1028 = vmatmul.f32.gmra.mxu0 %v524
      %v1029 = vpop.f32.mrf.mxu0
      %v1030 = vadd.f32 %v602, %v1029
      %1031 = vmatmul.f32.gmra.mxu0 %v525
      %v1032 = vpop.f32.mrf.mxu0
      %v1033 = vadd.f32 %v602, %v1032
      %1034 = vmatmul.f32.gmra.mxu0 %v526
      %v1035 = vpop.f32.mrf.mxu0
      %v1036 = vadd.f32 %v602, %v1035
      %1037 = vmatmul.f32.gmra.mxu0 %v527
      %v1038 = vpop.f32.mrf.mxu0
      %v1039 = vadd.f32 %v602, %v1038
      %1040 = vmatmul.f32.gmra.mxu0 %v528
      %v1041 = vpop.f32.mrf.mxu0
      %v1042 = vadd.f32 %v602, %v1041
      %1043 = vmatmul.f32.gmra.mxu0 %v529
      %v1044 = vpop.f32.mrf.mxu0
      %v1045 = vadd.f32 %v602, %v1044
      %1046 = vmatmul.f32.gmra.mxu0 %v530
      %v1047 = vpop.f32.mrf.mxu0
      %v1048 = vadd.f32 %v602, %v1047
      %1049 = vmatmul.f32.gmra.mxu0 %v531
      %v1050 = vpop.f32.mrf.mxu0
      %v1051 = vadd.f32 %v602, %v1050
      %1052 = vmatmul.f32.gmra.mxu0 %v532
      %v1053 = vpop.f32.mrf.mxu0
      %v1054 = vadd.f32 %v602, %v1053
      %1055 = vmatmul.f32.gmra.mxu0 %v533
      %v1056 = vpop.f32.mrf.mxu0
      %v1057 = vadd.f32 %v602, %v1056
      %1058 = vdwg.mxu0
      %v1059 = vmax.f32 %v625, 0.0
      %v1060 = vmax.f32 %v738, 0.0
      %v1061 = vmax.f32 %v851, 0.0
      %v1062 = vmax.f32 %v964, 0.0
      %v1063 = vmax.f32 %v628, 0.0
      %v1064 = vmax.f32 %v741, 0.0
      %v1065 = vmax.f32 %v854, 0.0
      %v1066 = vmax.f32 %v967, 0.0
      %v1067 = vmax.f32 %v631, 0.0
      %v1068 = vmax.f32 %v744, 0.0
      %v1069 = vmax.f32 %v857, 0.0
      %v1070 = vmax.f32 %v970, 0.0
      %v1071 = vmax.f32 %v634, 0.0
      %v1072 = vmax.f32 %v747, 0.0
      %v1073 = vmax.f32 %v860, 0.0
      %v1074 = vmax.f32 %v973, 0.0
      %v1075 = vmax.f32 %v637, 0.0
      %v1076 = vmax.f32 %v750, 0.0
      %v1077 = vmax.f32 %v863, 0.0
      %v1078 = vmax.f32 %v976, 0.0
      %v1079 = vmax.f32 %v640, 0.0
      %v1080 = vmax.f32 %v753, 0.0
      %v1081 = vmax.f32 %v866, 0.0
      %v1082 = vmax.f32 %v979, 0.0
      %v1083 = vmax.f32 %v643, 0.0
      %v1084 = vmax.f32 %v756, 0.0
      %v1085 = vmax.f32 %v869, 0.0
      %v1086 = vmax.f32 %v982, 0.0
      %v1087 = vmax.f32 %v646, 0.0
      %v1088 = vmax.f32 %v759, 0.0
      %v1089 = vmax.f32 %v872, 0.0
      %v1090 = vmax.f32 %v985, 0.0
      %v1091 = vmax.f32 %v649, 0.0
      %v1092 = vmax.f32 %v762, 0.0
      %v1093 = vmax.f32 %v875, 0.0
      %v1094 = vmax.f32 %v988, 0.0
      %v1095 = vmax.f32 %v652, 0.0
      %v1096 = vmax.f32 %v765, 0.0
      %v1097 = vmax.f32 %v878, 0.0
      %v1098 = vmax.f32 %v991, 0.0
      %v1099 = vmax.f32 %v655, 0.0
      %v1100 = vmax.f32 %v768, 0.0
      %v1101 = vmax.f32 %v881, 0.0
      %v1102 = vmax.f32 %v994, 0.0
      %v1103 = vmax.f32 %v658, 0.0
      %v1104 = vmax.f32 %v771, 0.0
      %v1105 = vmax.f32 %v884, 0.0
      %v1106 = vmax.f32 %v997, 0.0
      %v1107 = vmax.f32 %v661, 0.0
      %v1108 = vmax.f32 %v774, 0.0
      %v1109 = vmax.f32 %v887, 0.0
      %v1110 = vmax.f32 %v1000, 0.0
      %v1111 = vmax.f32 %v664, 0.0
      %v1112 = vmax.f32 %v777, 0.0
      %v1113 = vmax.f32 %v890, 0.0
      %v1114 = vmax.f32 %v1003, 0.0
      %v1115 = vmax.f32 %v667, 0.0
      %v1116 = vmax.f32 %v780, 0.0
      %v1117 = vmax.f32 %v893, 0.0
      %v1118 = vmax.f32 %v1006, 0.0
      %v1119 = vmax.f32 %v670, 0.0
      %v1120 = vmax.f32 %v783, 0.0
      %v1121 = vmax.f32 %v896, 0.0
      %v1122 = vmax.f32 %v1009, 0.0
      %v1123 = vmax.f32 %v673, 0.0
      %v1124 = vmax.f32 %v786, 0.0
      %v1125 = vmax.f32 %v899, 0.0
      %v1126 = vmax.f32 %v1012, 0.0
      %v1127 = vmax.f32 %v676, 0.0
      %v1128 = vmax.f32 %v789, 0.0
      %v1129 = vmax.f32 %v902, 0.0
      %v1130 = vmax.f32 %v1015, 0.0
      %v1131 = vmax.f32 %v679, 0.0
      %v1132 = vmax.f32 %v792, 0.0
      %v1133 = vmax.f32 %v905, 0.0
      %v1134 = vmax.f32 %v1018, 0.0
      %v1135 = vmax.f32 %v682, 0.0
      %v1136 = vmax.f32 %v795, 0.0
      %v1137 = vmax.f32 %v908, 0.0
      %v1138 = vmax.f32 %v1021, 0.0
      %v1139 = vmax.f32 %v685, 0.0
      %v1140 = vmax.f32 %v798, 0.0
      %v1141 = vmax.f32 %v911, 0.0
      %v1142 = vmax.f32 %v1024, 0.0
      %v1143 = vmax.f32 %v688, 0.0
      %v1144 = vmax.f32 %v801, 0.0
      %v1145 = vmax.f32 %v914, 0.0
      %v1146 = vmax.f32 %v1027, 0.0
      %v1147 = vmax.f32 %v691, 0.0
      %v1148 = vmax.f32 %v804, 0.0
      %v1149 = vmax.f32 %v917, 0.0
      %v1150 = vmax.f32 %v1030, 0.0
      %v1151 = vmax.f32 %v694, 0.0
      %v1152 = vmax.f32 %v807, 0.0
      %v1153 = vmax.f32 %v920, 0.0
      %v1154 = vmax.f32 %v1033, 0.0
      %v1155 = vmax.f32 %v697, 0.0
      %v1156 = vmax.f32 %v810, 0.0
      %v1157 = vmax.f32 %v923, 0.0
      %v1158 = vmax.f32 %v1036, 0.0
      %v1159 = vmax.f32 %v700, 0.0
      %v1160 = vmax.f32 %v813, 0.0
      %v1161 = vmax.f32 %v926, 0.0
      %v1162 = vmax.f32 %v1039, 0.0
      %v1163 = vmax.f32 %v703, 0.0
      %v1164 = vmax.f32 %v816, 0.0
      %v1165 = vmax.f32 %v929, 0.0
      %v1166 = vmax.f32 %v1042, 0.0
      %v1167 = vmax.f32 %v706, 0.0
      %v1168 = vmax.f32 %v819, 0.0
      %v1169 = vmax.f32 %v932, 0.0
      %v1170 = vmax.f32 %v1045, 0.0
      %v1171 = vmax.f32 %v709, 0.0
      %v1172 = vmax.f32 %v822, 0.0
      %v1173 = vmax.f32 %v935, 0.0
      %v1174 = vmax.f32 %v1048, 0.0
      %v1175 = vmax.f32 %v712, 0.0
      %v1176 = vmax.f32 %v825, 0.0
      %v1177 = vmax.f32 %v938, 0.0
      %v1178 = vmax.f32 %v1051, 0.0
      %v1179 = vmax.f32 %v715, 0.0
      %v1180 = vmax.f32 %v828, 0.0
      %v1181 = vmax.f32 %v941, 0.0
      %v1182 = vmax.f32 %v1054, 0.0
      %v1183 = vmax.f32 %v718, 0.0
      %v1184 = vmax.f32 %v831, 0.0
      %v1185 = vmax.f32 %v944, 0.0
      %v1186 = vmax.f32 %v1057, 0.0
      %v1187 = vld [vmem:[%s4] sm:$0xff]
      %v1188 = vld [vmem:[%s4 + $0x8] sm:$0xff]
      %v1189 = vld [vmem:[%s4 + $0x10] sm:$0xff]
      %v1190 = vld [vmem:[%s4 + $0x18] sm:$0xff]
      %v1191 = vld [vmem:[%s4 + $0x20] sm:$0xff]
      %v1192 = vld [vmem:[%s4 + $0x28] sm:$0xff]
      %v1193 = vld [vmem:[%s4 + $0x30] sm:$0xff]
      %v1194 = vld [vmem:[%s4 + $0x38] sm:$0xff]
      %v1195 = vld [vmem:[%s4 + $0x40] sm:$0xff]
      %v1196 = vld [vmem:[%s4 + $0x48] sm:$0xff]
      %v1197 = vld [vmem:[%s4 + $0x50] sm:$0xff]
      %v1198 = vld [vmem:[%s4 + $0x58] sm:$0xff]
      %v1199 = vld [vmem:[%s4 + $0x60] sm:$0xff]
      %v1200 = vld [vmem:[%s4 + $0x68] sm:$0xff]
      %v1201 = vld [vmem:[%s4 + $0x70] sm:$0xff]
      %v1202 = vld [vmem:[%s4 + $0x78] sm:$0xff]
      %v1203 = vld [vmem:[%s4 + $0x80] sm:$0xff]
      %v1204 = vld [vmem:[%s4 + $0x88] sm:$0xff]
      %v1205 = vld [vmem:[%s4 + $0x90] sm:$0xff]
      %v1206 = vld [vmem:[%s4 + $0x98] sm:$0xff]
      %v1207 = vld [vmem:[%s4 + $0xa0] sm:$0xff]
      %v1208 = vld [vmem:[%s4 + $0xa8] sm:$0xff]
      %v1209 = vld [vmem:[%s4 + $0xb0] sm:$0xff]
      %v1210 = vld [vmem:[%s4 + $0xb8] sm:$0xff]
      %v1211 = vld [vmem:[%s4 + $0xc0] sm:$0xff]
      %v1212 = vld [vmem:[%s4 + $0xc8] sm:$0xff]
      %v1213 = vld [vmem:[%s4 + $0xd0] sm:$0xff]
      %v1214 = vld [vmem:[%s4 + $0xd8] sm:$0xff]
      %v1215 = vld [vmem:[%s4 + $0xe0] sm:$0xff]
      %v1216 = vld [vmem:[%s4 + $0xe8] sm:$0xff]
      %v1217 = vld [vmem:[%s4 + $0xf0] sm:$0xff]
      %v1218 = vld [vmem:[%s4 + $0xf8] sm:$0xff]
      %v1219 = vld [vmem:[%s4 + $0x100] sm:$0xff]
      %v1220 = vld [vmem:[%s4 + $0x108] sm:$0xff]
      %v1221 = vld [vmem:[%s4 + $0x110] sm:$0xff]
      %v1222 = vld [vmem:[%s4 + $0x118] sm:$0xff]
      %v1223 = vld [vmem:[%s4 + $0x120] sm:$0xff]
      %v1224 = vld [vmem:[%s4 + $0x128] sm:$0xff]
      %v1225 = vld [vmem:[%s4 + $0x130] sm:$0xff]
      %v1226 = vld [vmem:[%s4 + $0x138] sm:$0xff]
      %v1227 = vld [vmem:[%s4 + $0x140] sm:$0xff]
      %v1228 = vld [vmem:[%s4 + $0x148] sm:$0xff]
      %v1229 = vld [vmem:[%s4 + $0x150] sm:$0xff]
      %v1230 = vld [vmem:[%s4 + $0x158] sm:$0xff]
      %v1231 = vld [vmem:[%s4 + $0x160] sm:$0xff]
      %v1232 = vld [vmem:[%s4 + $0x168] sm:$0xff]
      %v1233 = vld [vmem:[%s4 + $0x170] sm:$0xff]
      %v1234 = vld [vmem:[%s4 + $0x178] sm:$0xff]
      %v1235 = vld [vmem:[%s4 + $0x180] sm:$0xff]
      %v1236 = vld [vmem:[%s4 + $0x188] sm:$0xff]
      %v1237 = vld [vmem:[%s4 + $0x190] sm:$0xff]
      %v1238 = vld [vmem:[%s4 + $0x198] sm:$0xff]
      %v1239 = vld [vmem:[%s4 + $0x1a0] sm:$0xff]
      %v1240 = vld [vmem:[%s4 + $0x1a8] sm:$0xff]
      %v1241 = vld [vmem:[%s4 + $0x1b0] sm:$0xff]
      %v1242 = vld [vmem:[%s4 + $0x1b8] sm:$0xff]
      %v1243 = vld [vmem:[%s4 + $0x1c0] sm:$0xff]
      %v1244 = vld [vmem:[%s4 + $0x1c8] sm:$0xff]
      %v1245 = vld [vmem:[%s4 + $0x1d0] sm:$0xff]
      %v1246 = vld [vmem:[%s4 + $0x1d8] sm:$0xff]
      %v1247 = vld [vmem:[%s4 + $0x1e0] sm:$0xff]
      %v1248 = vld [vmem:[%s4 + $0x1e8] sm:$0xff]
      %v1249 = vld [vmem:[%s4 + $0x1f0] sm:$0xff]
      %v1250 = vld [vmem:[%s4 + $0x1f8] sm:$0xff]
      %v1251 = vld [vmem:[%s4 + $0x200] sm:$0xff]
      %v1252 = vld [vmem:[%s4 + $0x208] sm:$0xff]
      %v1253 = vld [vmem:[%s4 + $0x210] sm:$0xff]
      %v1254 = vld [vmem:[%s4 + $0x218] sm:$0xff]
      %v1255 = vld [vmem:[%s4 + $0x220] sm:$0xff]
      %v1256 = vld [vmem:[%s4 + $0x228] sm:$0xff]
      %v1257 = vld [vmem:[%s4 + $0x230] sm:$0xff]
      %v1258 = vld [vmem:[%s4 + $0x238] sm:$0xff]
      %v1259 = vld [vmem:[%s4 + $0x240] sm:$0xff]
      %v1260 = vld [vmem:[%s4 + $0x248] sm:$0xff]
      %v1261 = vld [vmem:[%s4 + $0x250] sm:$0xff]
      %v1262 = vld [vmem:[%s4 + $0x258] sm:$0xff]
      %v1263 = vld [vmem:[%s4 + $0x260] sm:$0xff]
      %v1264 = vld [vmem:[%s4 + $0x268] sm:$0xff]
      %v1265 = vld [vmem:[%s4 + $0x270] sm:$0xff]
      %v1266 = vld [vmem:[%s4 + $0x278] sm:$0xff]
      %v1267 = vld [vmem:[%s4 + $0x280] sm:$0xff]
      %v1268 = vld [vmem:[%s4 + $0x288] sm:$0xff]
      %v1269 = vld [vmem:[%s4 + $0x290] sm:$0xff]
      %v1270 = vld [vmem:[%s4 + $0x298] sm:$0xff]
      %v1271 = vld [vmem:[%s4 + $0x2a0] sm:$0xff]
      %v1272 = vld [vmem:[%s4 + $0x2a8] sm:$0xff]
      %v1273 = vld [vmem:[%s4 + $0x2b0] sm:$0xff]
      %v1274 = vld [vmem:[%s4 + $0x2b8] sm:$0xff]
      %v1275 = vld [vmem:[%s4 + $0x2c0] sm:$0xff]
      %v1276 = vld [vmem:[%s4 + $0x2c8] sm:$0xff]
      %v1277 = vld [vmem:[%s4 + $0x2d0] sm:$0xff]
      %v1278 = vld [vmem:[%s4 + $0x2d8] sm:$0xff]
      %v1279 = vld [vmem:[%s4 + $0x2e0] sm:$0xff]
      %v1280 = vld [vmem:[%s4 + $0x2e8] sm:$0xff]
      %v1281 = vld [vmem:[%s4 + $0x2f0] sm:$0xff]
      %v1282 = vld [vmem:[%s4 + $0x2f8] sm:$0xff]
      %v1283 = vld [vmem:[%s4 + $0x300] sm:$0xff]
      %v1284 = vld [vmem:[%s4 + $0x308] sm:$0xff]
      %v1285 = vld [vmem:[%s4 + $0x310] sm:$0xff]
      %v1286 = vld [vmem:[%s4 + $0x318] sm:$0xff]
      %v1287 = vld [vmem:[%s4 + $0x320] sm:$0xff]
      %v1288 = vld [vmem:[%s4 + $0x328] sm:$0xff]
      %v1289 = vld [vmem:[%s4 + $0x330] sm:$0xff]
      %v1290 = vld [vmem:[%s4 + $0x338] sm:$0xff]
      %v1291 = vld [vmem:[%s4 + $0x340] sm:$0xff]
      %v1292 = vld [vmem:[%s4 + $0x348] sm:$0xff]
      %v1293 = vld [vmem:[%s4 + $0x350] sm:$0xff]
      %v1294 = vld [vmem:[%s4 + $0x358] sm:$0xff]
      %v1295 = vld [vmem:[%s4 + $0x360] sm:$0xff]
      %v1296 = vld [vmem:[%s4 + $0x368] sm:$0xff]
      %v1297 = vld [vmem:[%s4 + $0x370] sm:$0xff]
      %v1298 = vld [vmem:[%s4 + $0x378] sm:$0xff]
      %v1299 = vld [vmem:[%s4 + $0x380] sm:$0xff]
      %v1300 = vld [vmem:[%s4 + $0x388] sm:$0xff]
      %v1301 = vld [vmem:[%s4 + $0x390] sm:$0xff]
      %v1302 = vld [vmem:[%s4 + $0x398] sm:$0xff]
      %v1303 = vld [vmem:[%s4 + $0x3a0] sm:$0xff]
      %v1304 = vld [vmem:[%s4 + $0x3a8] sm:$0xff]
      %v1305 = vld [vmem:[%s4 + $0x3b0] sm:$0xff]
      %v1306 = vld [vmem:[%s4 + $0x3b8] sm:$0xff]
      %v1307 = vld [vmem:[%s4 + $0x3c0] sm:$0xff]
      %v1308 = vld [vmem:[%s4 + $0x3c8] sm:$0xff]
      %v1309 = vld [vmem:[%s4 + $0x3d0] sm:$0xff]
      %v1310 = vld [vmem:[%s4 + $0x3d8] sm:$0xff]
      %v1311 = vld [vmem:[%s4 + $0x3e0] sm:$0xff]
      %v1312 = vld [vmem:[%s4 + $0x3e8] sm:$0xff]
      %v1313 = vld [vmem:[%s4 + $0x3f0] sm:$0xff]
      %v1314 = vld [vmem:[%s4 + $0x3f8] sm:$0xff]
      %v1315 = vld [vmem:[%s4 + $0x400] sm:$0xff]
      %v1316 = vld [vmem:[%s4 + $0x408] sm:$0xff]
      %v1317 = vld [vmem:[%s4 + $0x410] sm:$0xff]
      %v1318 = vld [vmem:[%s4 + $0x418] sm:$0xff]
      %v1319 = vld [vmem:[%s4 + $0x420] sm:$0xff]
      %v1320 = vld [vmem:[%s4 + $0x428] sm:$0xff]
      %v1321 = vld [vmem:[%s4 + $0x430] sm:$0xff]
      %v1322 = vld [vmem:[%s4 + $0x438] sm:$0xff]
      %v1323 = vld [vmem:[%s4 + $0x440] sm:$0xff]
      %v1324 = vld [vmem:[%s4 + $0x448] sm:$0xff]
      %v1325 = vld [vmem:[%s4 + $0x450] sm:$0xff]
      %v1326 = vld [vmem:[%s4 + $0x458] sm:$0xff]
      %v1327 = vld [vmem:[%s4 + $0x460] sm:$0xff]
      %v1328 = vld [vmem:[%s4 + $0x468] sm:$0xff]
      %v1329 = vld [vmem:[%s4 + $0x470] sm:$0xff]
      %v1330 = vld [vmem:[%s4 + $0x478] sm:$0xff]
      %v1331 = vld [vmem:[%s4 + $0x480] sm:$0xff]
      %v1332 = vld [vmem:[%s4 + $0x488] sm:$0xff]
      %v1333 = vld [vmem:[%s4 + $0x490] sm:$0xff]
      %v1334 = vld [vmem:[%s4 + $0x498] sm:$0xff]
      %v1335 = vld [vmem:[%s4 + $0x4a0] sm:$0xff]
      %v1336 = vld [vmem:[%s4 + $0x4a8] sm:$0xff]
      %v1337 = vld [vmem:[%s4 + $0x4b0] sm:$0xff]
      %v1338 = vld [vmem:[%s4 + $0x4b8] sm:$0xff]
      %v1339 = vld [vmem:[%s4 + $0x4c0] sm:$0xff]
      %v1340 = vld [vmem:[%s4 + $0x4c8] sm:$0xff]
      %v1341 = vld [vmem:[%s4 + $0x4d0] sm:$0xff]
      %v1342 = vld [vmem:[%s4 + $0x4d8] sm:$0xff]
      %v1343 = vld [vmem:[%s4 + $0x4e0] sm:$0xff]
      %v1344 = vld [vmem:[%s4 + $0x4e8] sm:$0xff]
      %v1345 = vld [vmem:[%s4 + $0x4f0] sm:$0xff]
      %v1346 = vld [vmem:[%s4 + $0x4f8] sm:$0xff]
      %v1347 = vld [vmem:[%s4 + $0x500] sm:$0xff]
      %v1348 = vld [vmem:[%s4 + $0x508] sm:$0xff]
      %v1349 = vld [vmem:[%s4 + $0x510] sm:$0xff]
      %v1350 = vld [vmem:[%s4 + $0x518] sm:$0xff]
      %v1351 = vld [vmem:[%s4 + $0x520] sm:$0xff]
      %v1352 = vld [vmem:[%s4 + $0x528] sm:$0xff]
      %v1353 = vld [vmem:[%s4 + $0x530] sm:$0xff]
      %v1354 = vld [vmem:[%s4 + $0x538] sm:$0xff]
      %v1355 = vld [vmem:[%s4 + $0x540] sm:$0xff]
      %v1356 = vld [vmem:[%s4 + $0x548] sm:$0xff]
      %v1357 = vld [vmem:[%s4 + $0x550] sm:$0xff]
      %v1358 = vld [vmem:[%s4 + $0x558] sm:$0xff]
      %v1359 = vld [vmem:[%s4 + $0x560] sm:$0xff]
      %v1360 = vld [vmem:[%s4 + $0x568] sm:$0xff]
      %v1361 = vld [vmem:[%s4 + $0x570] sm:$0xff]
      %v1362 = vld [vmem:[%s4 + $0x578] sm:$0xff]
      %v1363 = vld [vmem:[%s4 + $0x580] sm:$0xff]
      %v1364 = vld [vmem:[%s4 + $0x588] sm:$0xff]
      %v1365 = vld [vmem:[%s4 + $0x590] sm:$0xff]
      %v1366 = vld [vmem:[%s4 + $0x598] sm:$0xff]
      %v1367 = vld [vmem:[%s4 + $0x5a0] sm:$0xff]
      %v1368 = vld [vmem:[%s4 + $0x5a8] sm:$0xff]
      %v1369 = vld [vmem:[%s4 + $0x5b0] sm:$0xff]
      %v1370 = vld [vmem:[%s4 + $0x5b8] sm:$0xff]
      %v1371 = vld [vmem:[%s4 + $0x5c0] sm:$0xff]
      %v1372 = vld [vmem:[%s4 + $0x5c8] sm:$0xff]
      %v1373 = vld [vmem:[%s4 + $0x5d0] sm:$0xff]
      %v1374 = vld [vmem:[%s4 + $0x5d8] sm:$0xff]
      %v1375 = vld [vmem:[%s4 + $0x5e0] sm:$0xff]
      %v1376 = vld [vmem:[%s4 + $0x5e8] sm:$0xff]
      %v1377 = vld [vmem:[%s4 + $0x5f0] sm:$0xff]
      %v1378 = vld [vmem:[%s4 + $0x5f8] sm:$0xff]
      %v1379 = vld [vmem:[%s4 + $0x600] sm:$0xff]
      %v1380 = vld [vmem:[%s4 + $0x608] sm:$0xff]
      %v1381 = vld [vmem:[%s4 + $0x610] sm:$0xff]
      %v1382 = vld [vmem:[%s4 + $0x618] sm:$0xff]
      %v1383 = vld [vmem:[%s4 + $0x620] sm:$0xff]
      %v1384 = vld [vmem:[%s4 + $0x628] sm:$0xff]
      %v1385 = vld [vmem:[%s4 + $0x630] sm:$0xff]
      %v1386 = vld [vmem:[%s4 + $0x638] sm:$0xff]
      %v1387 = vld [vmem:[%s4 + $0x640] sm:$0xff]
      %v1388 = vld [vmem:[%s4 + $0x648] sm:$0xff]
      %v1389 = vld [vmem:[%s4 + $0x650] sm:$0xff]
      %v1390 = vld [vmem:[%s4 + $0x658] sm:$0xff]
      %v1391 = vld [vmem:[%s4 + $0x660] sm:$0xff]
      %v1392 = vld [vmem:[%s4 + $0x668] sm:$0xff]
      %v1393 = vld [vmem:[%s4 + $0x670] sm:$0xff]
      %v1394 = vld [vmem:[%s4 + $0x678] sm:$0xff]
      %v1395 = vld [vmem:[%s4 + $0x680] sm:$0xff]
      %v1396 = vld [vmem:[%s4 + $0x688] sm:$0xff]
      %v1397 = vld [vmem:[%s4 + $0x690] sm:$0xff]
      %v1398 = vld [vmem:[%s4 + $0x698] sm:$0xff]
      %v1399 = vld [vmem:[%s4 + $0x6a0] sm:$0xff]
      %v1400 = vld [vmem:[%s4 + $0x6a8] sm:$0xff]
      %v1401 = vld [vmem:[%s4 + $0x6b0] sm:$0xff]
      %v1402 = vld [vmem:[%s4 + $0x6b8] sm:$0xff]
      %v1403 = vld [vmem:[%s4 + $0x6c0] sm:$0xff]
      %v1404 = vld [vmem:[%s4 + $0x6c8] sm:$0xff]
      %v1405 = vld [vmem:[%s4 + $0x6d0] sm:$0xff]
      %v1406 = vld [vmem:[%s4 + $0x6d8] sm:$0xff]
      %v1407 = vld [vmem:[%s4 + $0x6e0] sm:$0xff]
      %v1408 = vld [vmem:[%s4 + $0x6e8] sm:$0xff]
      %v1409 = vld [vmem:[%s4 + $0x6f0] sm:$0xff]
      %v1410 = vld [vmem:[%s4 + $0x6f8] sm:$0xff]
      %v1411 = vld [vmem:[%s4 + $0x700] sm:$0xff]
      %v1412 = vld [vmem:[%s4 + $0x708] sm:$0xff]
      %v1413 = vld [vmem:[%s4 + $0x710] sm:$0xff]
      %v1414 = vld [vmem:[%s4 + $0x718] sm:$0xff]
      %v1415 = vld [vmem:[%s4 + $0x720] sm:$0xff]
      %v1416 = vld [vmem:[%s4 + $0x728] sm:$0xff]
      %v1417 = vld [vmem:[%s4 + $0x730] sm:$0xff]
      %v1418 = vld [vmem:[%s4 + $0x738] sm:$0xff]
      %v1419 = vld [vmem:[%s4 + $0x740] sm:$0xff]
      %v1420 = vld [vmem:[%s4 + $0x748] sm:$0xff]
      %v1421 = vld [vmem:[%s4 + $0x750] sm:$0xff]
      %v1422 = vld [vmem:[%s4 + $0x758] sm:$0xff]
      %v1423 = vld [vmem:[%s4 + $0x760] sm:$0xff]
      %v1424 = vld [vmem:[%s4 + $0x768] sm:$0xff]
      %v1425 = vld [vmem:[%s4 + $0x770] sm:$0xff]
      %v1426 = vld [vmem:[%s4 + $0x778] sm:$0xff]
      %v1427 = vld [vmem:[%s4 + $0x780] sm:$0xff]
      %v1428 = vld [vmem:[%s4 + $0x788] sm:$0xff]
      %v1429 = vld [vmem:[%s4 + $0x790] sm:$0xff]
      %v1430 = vld [vmem:[%s4 + $0x798] sm:$0xff]
      %v1431 = vld [vmem:[%s4 + $0x7a0] sm:$0xff]
      %v1432 = vld [vmem:[%s4 + $0x7a8] sm:$0xff]
      %v1433 = vld [vmem:[%s4 + $0x7b0] sm:$0xff]
      %v1434 = vld [vmem:[%s4 + $0x7b8] sm:$0xff]
      %v1435 = vld [vmem:[%s4 + $0x7c0] sm:$0xff]
      %v1436 = vld [vmem:[%s4 + $0x7c8] sm:$0xff]
      %v1437 = vld [vmem:[%s4 + $0x7d0] sm:$0xff]
      %v1438 = vld [vmem:[%s4 + $0x7d8] sm:$0xff]
      %v1439 = vld [vmem:[%s4 + $0x7e0] sm:$0xff]
      %v1440 = vld [vmem:[%s4 + $0x7e8] sm:$0xff]
      %v1441 = vld [vmem:[%s4 + $0x7f0] sm:$0xff]
      %v1442 = vld [vmem:[%s4 + $0x7f8] sm:$0xff]
      %v1443 = vld [vmem:[%s5] sm:$0xf]
      %v1445 = vperm.slane %v1443, 0
      %v1446 = vperm.slane %v1443, 1
      %v1447 = vperm.slane %v1443, 2
      %v1448 = vperm.slane %v1443, 3
      %1453 = vmatpush.msra.mxu0 %v1247
      %1454 = vmatpush.msra.mxu0 %v1243
      %1455 = vmatpush.msra.mxu0 %v1239
      %1456 = vmatpush.msra.mxu0 %v1235
      %1457 = vmatpush.msra.mxu0 %v1231
      %1458 = vmatpush.msra.mxu0 %v1227
      %1459 = vmatpush.msra.mxu0 %v1223
      %1460 = vmatpush.msra.mxu0 %v1219
      %1461 = vmatpush.msra.mxu0 %v1215
      %1462 = vmatpush.msra.mxu0 %v1211
      %1463 = vmatpush.msra.mxu0 %v1207
      %1464 = vmatpush.msra.mxu0 %v1203
      %1465 = vmatpush.msra.mxu0 %v1199
      %1466 = vmatpush.msra.mxu0 %v1195
      %1467 = vmatpush.msra.mxu0 %v1191
      %1468 = vmatpush.msra.mxu0 %v1187
      %1469 = vmatmul.f32.gmra.mxu0 %v1059
      %v1470 = vpop.f32.mrf.mxu0
      %v1471 = vadd.f32 %v1445, %v1470
      %1472 = vmatmul.f32.gmra.mxu0 %v1063
      %v1473 = vpop.f32.mrf.mxu0
      %v1474 = vadd.f32 %v1445, %v1473
      %1475 = vmatmul.f32.gmra.mxu0 %v1067
      %v1476 = vpop.f32.mrf.mxu0
      %v1477 = vadd.f32 %v1445, %v1476
      %1478 = vmatmul.f32.gmra.mxu0 %v1071
      %v1479 = vpop.f32.mrf.mxu0
      %v1480 = vadd.f32 %v1445, %v1479
      %1481 = vmatmul.f32.gmra.mxu0 %v1075
      %v1482 = vpop.f32.mrf.mxu0
      %v1483 = vadd.f32 %v1445, %v1482
      %1484 = vmatmul.f32.gmra.mxu0 %v1079
      %v1485 = vpop.f32.mrf.mxu0
      %v1486 = vadd.f32 %v1445, %v1485
      %1487 = vmatmul.f32.gmra.mxu0 %v1083
      %v1488 = vpop.f32.mrf.mxu0
      %v1489 = vadd.f32 %v1445, %v1488
      %1490 = vmatmul.f32.gmra.mxu0 %v1087
      %v1491 = vpop.f32.mrf.mxu0
      %v1492 = vadd.f32 %v1445, %v1491
      %1493 = vmatmul.f32.gmra.mxu0 %v1091
      %v1494 = vpop.f32.mrf.mxu0
      %v1495 = vadd.f32 %v1445, %v1494
      %1496 = vmatmul.f32.gmra.mxu0 %v1095
      %v1497 = vpop.f32.mrf.mxu0
      %v1498 = vadd.f32 %v1445, %v1497
      %1499 = vmatmul.f32.gmra.mxu0 %v1099
      %v1500 = vpop.f32.mrf.mxu0
      %v1501 = vadd.f32 %v1445, %v1500
      %1502 = vmatmul.f32.gmra.mxu0 %v1103
      %v1503 = vpop.f32.mrf.mxu0
      %v1504 = vadd.f32 %v1445, %v1503
      %1505 = vmatmul.f32.gmra.mxu0 %v1107
      %v1506 = vpop.f32.mrf.mxu0
      %v1507 = vadd.f32 %v1445, %v1506
      %1508 = vmatmul.f32.gmra.mxu0 %v1111
      %v1509 = vpop.f32.mrf.mxu0
      %v1510 = vadd.f32 %v1445, %v1509
      %1511 = vmatmul.f32.gmra.mxu0 %v1115
      %v1512 = vpop.f32.mrf.mxu0
      %v1513 = vadd.f32 %v1445, %v1512
      %1514 = vmatmul.f32.gmra.mxu0 %v1119
      %v1515 = vpop.f32.mrf.mxu0
      %v1516 = vadd.f32 %v1445, %v1515
      %1517 = vmatmul.f32.gmra.mxu0 %v1123
      %v1518 = vpop.f32.mrf.mxu0
      %v1519 = vadd.f32 %v1445, %v1518
      %1520 = vmatmul.f32.gmra.mxu0 %v1127
      %v1521 = vpop.f32.mrf.mxu0
      %v1522 = vadd.f32 %v1445, %v1521
      %1523 = vmatmul.f32.gmra.mxu0 %v1131
      %v1524 = vpop.f32.mrf.mxu0
      %v1525 = vadd.f32 %v1445, %v1524
      %1526 = vmatmul.f32.gmra.mxu0 %v1135
      %v1527 = vpop.f32.mrf.mxu0
      %v1528 = vadd.f32 %v1445, %v1527
      %1529 = vmatmul.f32.gmra.mxu0 %v1139
      %v1530 = vpop.f32.mrf.mxu0
      %v1531 = vadd.f32 %v1445, %v1530
      %1532 = vmatmul.f32.gmra.mxu0 %v1143
      %v1533 = vpop.f32.mrf.mxu0
      %v1534 = vadd.f32 %v1445, %v1533
      %1535 = vmatmul.f32.gmra.mxu0 %v1147
      %v1536 = vpop.f32.mrf.mxu0
      %v1537 = vadd.f32 %v1445, %v1536
      %1538 = vmatmul.f32.gmra.mxu0 %v1151
      %v1539 = vpop.f32.mrf.mxu0
      %v1540 = vadd.f32 %v1445, %v1539
      %1541 = vmatmul.f32.gmra.mxu0 %v1155
      %v1542 = vpop.f32.mrf.mxu0
      %v1543 = vadd.f32 %v1445, %v1542
      %1544 = vmatmul.f32.gmra.mxu0 %v1159
      %v1545 = vpop.f32.mrf.mxu0
      %v1546 = vadd.f32 %v1445, %v1545
      %1547 = vmatmul.f32.gmra.mxu0 %v1163
      %v1548 = vpop.f32.mrf.mxu0
      %v1549 = vadd.f32 %v1445, %v1548
      %1550 = vmatmul.f32.gmra.mxu0 %v1167
      %v1551 = vpop.f32.mrf.mxu0
      %v1552 = vadd.f32 %v1445, %v1551
      %1553 = vmatmul.f32.gmra.mxu0 %v1171
      %v1554 = vpop.f32.mrf.mxu0
      %v1555 = vadd.f32 %v1445, %v1554
      %1556 = vmatmul.f32.gmra.mxu0 %v1175
      %v1557 = vpop.f32.mrf.mxu0
      %v1558 = vadd.f32 %v1445, %v1557
      %1559 = vmatmul.f32.gmra.mxu0 %v1179
      %v1560 = vpop.f32.mrf.mxu0
      %v1561 = vadd.f32 %v1445, %v1560
      %1562 = vmatmul.f32.gmra.mxu0 %v1183
      %v1563 = vpop.f32.mrf.mxu0
      %v1564 = vadd.f32 %v1445, %v1563
      %1565 = vdwg.mxu0
      %1566 = vmatpush.msra.mxu0 %v1311
      %1567 = vmatpush.msra.mxu0 %v1307
      %1568 = vmatpush.msra.mxu0 %v1303
      %1569 = vmatpush.msra.mxu0 %v1299
      %1570 = vmatpush.msra.mxu0 %v1295
      %1571 = vmatpush.msra.mxu0 %v1291
      %1572 = vmatpush.msra.mxu0 %v1287
      %1573 = vmatpush.msra.mxu0 %v1283
      %1574 = vmatpush.msra.mxu0 %v1279
      %1575 = vmatpush.msra.mxu0 %v1275
      %1576 = vmatpush.msra.mxu0 %v1271
      %1577 = vmatpush.msra.mxu0 %v1267
      %1578 = vmatpush.msra.mxu0 %v1263
      %1579 = vmatpush.msra.mxu0 %v1259
      %1580 = vmatpush.msra.mxu0 %v1255
      %1581 = vmatpush.msra.mxu0 %v1251
      %1582 = vmatmul.f32.gmra.mxu0 %v1060
      %v1583 = vpop.f32.mrf.mxu0
      %v1584 = vadd.f32 %v1471, %v1583
      %1585 = vmatmul.f32.gmra.mxu0 %v1064
      %v1586 = vpop.f32.mrf.mxu0
      %v1587 = vadd.f32 %v1474, %v1586
      %1588 = vmatmul.f32.gmra.mxu0 %v1068
      %v1589 = vpop.f32.mrf.mxu0
      %v1590 = vadd.f32 %v1477, %v1589
      %1591 = vmatmul.f32.gmra.mxu0 %v1072
      %v1592 = vpop.f32.mrf.mxu0
      %v1593 = vadd.f32 %v1480, %v1592
      %1594 = vmatmul.f32.gmra.mxu0 %v1076
      %v1595 = vpop.f32.mrf.mxu0
      %v1596 = vadd.f32 %v1483, %v1595
      %1597 = vmatmul.f32.gmra.mxu0 %v1080
      %v1598 = vpop.f32.mrf.mxu0
      %v1599 = vadd.f32 %v1486, %v1598
      %1600 = vmatmul.f32.gmra.mxu0 %v1084
      %v1601 = vpop.f32.mrf.mxu0
      %v1602 = vadd.f32 %v1489, %v1601
      %1603 = vmatmul.f32.gmra.mxu0 %v1088
      %v1604 = vpop.f32.mrf.mxu0
      %v1605 = vadd.f32 %v1492, %v1604
      %1606 = vmatmul.f32.gmra.mxu0 %v1092
      %v1607 = vpop.f32.mrf.mxu0
      %v1608 = vadd.f32 %v1495, %v1607
      %1609 = vmatmul.f32.gmra.mxu0 %v1096
      %v1610 = vpop.f32.mrf.mxu0
      %v1611 = vadd.f32 %v1498, %v1610
      %1612 = vmatmul.f32.gmra.mxu0 %v1100
      %v1613 = vpop.f32.mrf.mxu0
      %v1614 = vadd.f32 %v1501, %v1613
      %1615 = vmatmul.f32.gmra.mxu0 %v1104
      %v1616 = vpop.f32.mrf.mxu0
      %v1617 = vadd.f32 %v1504, %v1616
      %1618 = vmatmul.f32.gmra.mxu0 %v1108
      %v1619 = vpop.f32.mrf.mxu0
      %v1620 = vadd.f32 %v1507, %v1619
      %1621 = vmatmul.f32.gmra.mxu0 %v1112
      %v1622 = vpop.f32.mrf.mxu0
      %v1623 = vadd.f32 %v1510, %v1622
      %1624 = vmatmul.f32.gmra.mxu0 %v1116
      %v1625 = vpop.f32.mrf.mxu0
      %v1626 = vadd.f32 %v1513, %v1625
      %1627 = vmatmul.f32.gmra.mxu0 %v1120
      %v1628 = vpop.f32.mrf.mxu0
      %v1629 = vadd.f32 %v1516, %v1628
      %1630 = vmatmul.f32.gmra.mxu0 %v1124
      %v1631 = vpop.f32.mrf.mxu0
      %v1632 = vadd.f32 %v1519, %v1631
      %1633 = vmatmul.f32.gmra.mxu0 %v1128
      %v1634 = vpop.f32.mrf.mxu0
      %v1635 = vadd.f32 %v1522, %v1634
      %1636 = vmatmul.f32.gmra.mxu0 %v1132
      %v1637 = vpop.f32.mrf.mxu0
      %v1638 = vadd.f32 %v1525, %v1637
      %1639 = vmatmul.f32.gmra.mxu0 %v1136
      %v1640 = vpop.f32.mrf.mxu0
      %v1641 = vadd.f32 %v1528, %v1640
      %1642 = vmatmul.f32.gmra.mxu0 %v1140
      %v1643 = vpop.f32.mrf.mxu0
      %v1644 = vadd.f32 %v1531, %v1643
      %1645 = vmatmul.f32.gmra.mxu0 %v1144
      %v1646 = vpop.f32.mrf.mxu0
      %v1647 = vadd.f32 %v1534, %v1646
      %1648 = vmatmul.f32.gmra.mxu0 %v1148
      %v1649 = vpop.f32.mrf.mxu0
      %v1650 = vadd.f32 %v1537, %v1649
      %1651 = vmatmul.f32.gmra.mxu0 %v1152
      %v1652 = vpop.f32.mrf.mxu0
      %v1653 = vadd.f32 %v1540, %v1652
      %1654 = vmatmul.f32.gmra.mxu0 %v1156
      %v1655 = vpop.f32.mrf.mxu0
      %v1656 = vadd.f32 %v1543, %v1655
      %1657 = vmatmul.f32.gmra.mxu0 %v1160
      %v1658 = vpop.f32.mrf.mxu0
      %v1659 = vadd.f32 %v1546, %v1658
      %1660 = vmatmul.f32.gmra.mxu0 %v1164
      %v1661 = vpop.f32.mrf.mxu0
      %v1662 = vadd.f32 %v1549, %v1661
      %1663 = vmatmul.f32.gmra.mxu0 %v1168
      %v1664 = vpop.f32.mrf.mxu0
      %v1665 = vadd.f32 %v1552, %v1664
      %1666 = vmatmul.f32.gmra.mxu0 %v1172
      %v1667 = vpop.f32.mrf.mxu0
      %v1668 = vadd.f32 %v1555, %v1667
      %1669 = vmatmul.f32.gmra.mxu0 %v1176
      %v1670 = vpop.f32.mrf.mxu0
      %v1671 = vadd.f32 %v1558, %v1670
      %1672 = vmatmul.f32.gmra.mxu0 %v1180
      %v1673 = vpop.f32.mrf.mxu0
      %v1674 = vadd.f32 %v1561, %v1673
      %1675 = vmatmul.f32.gmra.mxu0 %v1184
      %v1676 = vpop.f32.mrf.mxu0
      %v1677 = vadd.f32 %v1564, %v1676
      %1678 = vdwg.mxu0
      %1679 = vmatpush.msra.mxu0 %v1375
      %1680 = vmatpush.msra.mxu0 %v1371
      %1681 = vmatpush.msra.mxu0 %v1367
      %1682 = vmatpush.msra.mxu0 %v1363
      %1683 = vmatpush.msra.mxu0 %v1359
      %1684 = vmatpush.msra.mxu0 %v1355
      %1685 = vmatpush.msra.mxu0 %v1351
      %1686 = vmatpush.msra.mxu0 %v1347
      %1687 = vmatpush.msra.mxu0 %v1343
      %1688 = vmatpush.msra.mxu0 %v1339
      %1689 = vmatpush.msra.mxu0 %v1335
      %1690 = vmatpush.msra.mxu0 %v1331
      %1691 = vmatpush.msra.mxu0 %v1327
      %1692 = vmatpush.msra.mxu0 %v1323
      %1693 = vmatpush.msra.mxu0 %v1319
      %1694 = vmatpush.msra.mxu0 %v1315
      %1695 = vmatmul.f32.gmra.mxu0 %v1061
      %v1696 = vpop.f32.mrf.mxu0
      %v1697 = vadd.f32 %v1584, %v1696
      %1698 = vmatmul.f32.gmra.mxu0 %v1065
      %v1699 = vpop.f32.mrf.mxu0
      %v1700 = vadd.f32 %v1587, %v1699
      %1701 = vmatmul.f32.gmra.mxu0 %v1069
      %v1702 = vpop.f32.mrf.mxu0
      %v1703 = vadd.f32 %v1590, %v1702
      %1704 = vmatmul.f32.gmra.mxu0 %v1073
      %v1705 = vpop.f32.mrf.mxu0
      %v1706 = vadd.f32 %v1593, %v1705
      %1707 = vmatmul.f32.gmra.mxu0 %v1077
      %v1708 = vpop.f32.mrf.mxu0
      %v1709 = vadd.f32 %v1596, %v1708
      %1710 = vmatmul.f32.gmra.mxu0 %v1081
      %v1711 = vpop.f32.mrf.mxu0
      %v1712 = vadd.f32 %v1599, %v1711
      %1713 = vmatmul.f32.gmra.mxu0 %v1085
      %v1714 = vpop.f32.mrf.mxu0
      %v1715 = vadd.f32 %v1602, %v1714
      %1716 = vmatmul.f32.gmra.mxu0 %v1089
      %v1717 = vpop.f32.mrf.mxu0
      %v1718 = vadd.f32 %v1605, %v1717
      %1719 = vmatmul.f32.gmra.mxu0 %v1093
      %v1720 = vpop.f32.mrf.mxu0
      %v1721 = vadd.f32 %v1608, %v1720
      %1722 = vmatmul.f32.gmra.mxu0 %v1097
      %v1723 = vpop.f32.mrf.mxu0
      %v1724 = vadd.f32 %v1611, %v1723
      %1725 = vmatmul.f32.gmra.mxu0 %v1101
      %v1726 = vpop.f32.mrf.mxu0
      %v1727 = vadd.f32 %v1614, %v1726
      %1728 = vmatmul.f32.gmra.mxu0 %v1105
      %v1729 = vpop.f32.mrf.mxu0
      %v1730 = vadd.f32 %v1617, %v1729
      %1731 = vmatmul.f32.gmra.mxu0 %v1109
      %v1732 = vpop.f32.mrf.mxu0
      %v1733 = vadd.f32 %v1620, %v1732
      %1734 = vmatmul.f32.gmra.mxu0 %v1113
      %v1735 = vpop.f32.mrf.mxu0
      %v1736 = vadd.f32 %v1623, %v1735
      %1737 = vmatmul.f32.gmra.mxu0 %v1117
      %v1738 = vpop.f32.mrf.mxu0
      %v1739 = vadd.f32 %v1626, %v1738
      %1740 = vmatmul.f32.gmra.mxu0 %v1121
      %v1741 = vpop.f32.mrf.mxu0
      %v1742 = vadd.f32 %v1629, %v1741
      %1743 = vmatmul.f32.gmra.mxu0 %v1125
      %v1744 = vpop.f32.mrf.mxu0
      %v1745 = vadd.f32 %v1632, %v1744
      %1746 = vmatmul.f32.gmra.mxu0 %v1129
      %v1747 = vpop.f32.mrf.mxu0
      %v1748 = vadd.f32 %v1635, %v1747
      %1749 = vmatmul.f32.gmra.mxu0 %v1133
      %v1750 = vpop.f32.mrf.mxu0
      %v1751 = vadd.f32 %v1638, %v1750
      %1752 = vmatmul.f32.gmra.mxu0 %v1137
      %v1753 = vpop.f32.mrf.mxu0
      %v1754 = vadd.f32 %v1641, %v1753
      %1755 = vmatmul.f32.gmra.mxu0 %v1141
      %v1756 = vpop.f32.mrf.mxu0
      %v1757 = vadd.f32 %v1644, %v1756
      %1758 = vmatmul.f32.gmra.mxu0 %v1145
      %v1759 = vpop.f32.mrf.mxu0
      %v1760 = vadd.f32 %v1647, %v1759
      %1761 = vmatmul.f32.gmra.mxu0 %v1149
      %v1762 = vpop.f32.mrf.mxu0
      %v1763 = vadd.f32 %v1650, %v1762
      %1764 = vmatmul.f32.gmra.mxu0 %v1153
      %v1765 = vpop.f32.mrf.mxu0
      %v1766 = vadd.f32 %v1653, %v1765
      %1767 = vmatmul.f32.gmra.mxu0 %v1157
      %v1768 = vpop.f32.mrf.mxu0
      %v1769 = vadd.f32 %v1656, %v1768
      %1770 = vmatmul.f32.gmra.mxu0 %v1161
      %v1771 = vpop.f32.mrf.mxu0
      %v1772 = vadd.f32 %v1659, %v1771
      %1773 = vmatmul.f32.gmra.mxu0 %v1165
      %v1774 = vpop.f32.mrf.mxu0
      %v1775 = vadd.f32 %v1662, %v1774
      %1776 = vmatmul.f32.gmra.mxu0 %v1169
      %v1777 = vpop.f32.mrf.mxu0
      %v1778 = vadd.f32 %v1665, %v1777
      %1779 = vmatmul.f32.gmra.mxu0 %v1173
      %v1780 = vpop.f32.mrf.mxu0
      %v1781 = vadd.f32 %v1668, %v1780
      %1782 = vmatmul.f32.gmra.mxu0 %v1177
      %v1783 = vpop.f32.mrf.mxu0
      %v1784 = vadd.f32 %v1671, %v1783
      %1785 = vmatmul.f32.gmra.mxu0 %v1181
      %v1786 = vpop.f32.mrf.mxu0
      %v1787 = vadd.f32 %v1674, %v1786
      %1788 = vmatmul.f32.gmra.mxu0 %v1185
      %v1789 = vpop.f32.mrf.mxu0
      %v1790 = vadd.f32 %v1677, %v1789
      %1791 = vdwg.mxu0
      %1792 = vmatpush.msra.mxu0 %v1439
      %1793 = vmatpush.msra.mxu0 %v1435
      %1794 = vmatpush.msra.mxu0 %v1431
      %1795 = vmatpush.msra.mxu0 %v1427
      %1796 = vmatpush.msra.mxu0 %v1423
      %1797 = vmatpush.msra.mxu0 %v1419
      %1798 = vmatpush.msra.mxu0 %v1415
      %1799 = vmatpush.msra.mxu0 %v1411
      %1800 = vmatpush.msra.mxu0 %v1407
      %1801 = vmatpush.msra.mxu0 %v1403
      %1802 = vmatpush.msra.mxu0 %v1399
      %1803 = vmatpush.msra.mxu0 %v1395
      %1804 = vmatpush.msra.mxu0 %v1391
      %1805 = vmatpush.msra.mxu0 %v1387
      %1806 = vmatpush.msra.mxu0 %v1383
      %1807 = vmatpush.msra.mxu0 %v1379
      %1808 = vmatmul.f32.gmra.mxu0 %v1062
      %v1809 = vpop.f32.mrf.mxu0
      %v1810 = vadd.f32 %v1697, %v1809
      %1811 = vmatmul.f32.gmra.mxu0 %v1066
      %v1812 = vpop.f32.mrf.mxu0
      %v1813 = vadd.f32 %v1700, %v1812
      %1814 = vmatmul.f32.gmra.mxu0 %v1070
      %v1815 = vpop.f32.mrf.mxu0
      %v1816 = vadd.f32 %v1703, %v1815
      %1817 = vmatmul.f32.gmra.mxu0 %v1074
      %v1818 = vpop.f32.mrf.mxu0
      %v1819 = vadd.f32 %v1706, %v1818
      %1820 = vmatmul.f32.gmra.mxu0 %v1078
      %v1821 = vpop.f32.mrf.mxu0
      %v1822 = vadd.f32 %v1709, %v1821
      %1823 = vmatmul.f32.gmra.mxu0 %v1082
      %v1824 = vpop.f32.mrf.mxu0
      %v1825 = vadd.f32 %v1712, %v1824
      %1826 = vmatmul.f32.gmra.mxu0 %v1086
      %v1827 = vpop.f32.mrf.mxu0
      %v1828 = vadd.f32 %v1715, %v1827
      %1829 = vmatmul.f32.gmra.mxu0 %v1090
      %v1830 = vpop.f32.mrf.mxu0
      %v1831 = vadd.f32 %v1718, %v1830
      %1832 = vmatmul.f32.gmra.mxu0 %v1094
      %v1833 = vpop.f32.mrf.mxu0
      %v1834 = vadd.f32 %v1721, %v1833
      %1835 = vmatmul.f32.gmra.mxu0 %v1098
      %v1836 = vpop.f32.mrf.mxu0
      %v1837 = vadd.f32 %v1724, %v1836
      %1838 = vmatmul.f32.gmra.mxu0 %v1102
      %v1839 = vpop.f32.mrf.mxu0
      %v1840 = vadd.f32 %v1727, %v1839
      %1841 = vmatmul.f32.gmra.mxu0 %v1106
      %v1842 = vpop.f32.mrf.mxu0
      %v1843 = vadd.f32 %v1730, %v1842
      %1844 = vmatmul.f32.gmra.mxu0 %v1110
      %v1845 = vpop.f32.mrf.mxu0
      %v1846 = vadd.f32 %v1733, %v1845
      %1847 = vmatmul.f32.gmra.mxu0 %v1114
      %v1848 = vpop.f32.mrf.mxu0
      %v1849 = vadd.f32 %v1736, %v1848
      %1850 = vmatmul.f32.gmra.mxu0 %v1118
      %v1851 = vpop.f32.mrf.mxu0
      %v1852 = vadd.f32 %v1739, %v1851
      %1853 = vmatmul.f32.gmra.mxu0 %v1122
      %v1854 = vpop.f32.mrf.mxu0
      %v1855 = vadd.f32 %v1742, %v1854
      %1856 = vmatmul.f32.gmra.mxu0 %v1126
      %v1857 = vpop.f32.mrf.mxu0
      %v1858 = vadd.f32 %v1745, %v1857
      %1859 = vmatmul.f32.gmra.mxu0 %v1130
      %v1860 = vpop.f32.mrf.mxu0
      %v1861 = vadd.f32 %v1748, %v1860
      %1862 = vmatmul.f32.gmra.mxu0 %v1134
      %v1863 = vpop.f32.mrf.mxu0
      %v1864 = vadd.f32 %v1751, %v1863
      %1865 = vmatmul.f32.gmra.mxu0 %v1138
      %v1866 = vpop.f32.mrf.mxu0
      %v1867 = vadd.f32 %v1754, %v1866
      %1868 = vmatmul.f32.gmra.mxu0 %v1142
      %v1869 = vpop.f32.mrf.mxu0
      %v1870 = vadd.f32 %v1757, %v1869
      %1871 = vmatmul.f32.gmra.mxu0 %v1146
      %v1872 = vpop.f32.mrf.mxu0
      %v1873 = vadd.f32 %v1760, %v1872
      %1874 = vmatmul.f32.gmra.mxu0 %v1150
      %v1875 = vpop.f32.mrf.mxu0
      %v1876 = vadd.f32 %v1763, %v1875
      %1877 = vmatmul.f32.gmra.mxu0 %v1154
      %v1878 = vpop.f32.mrf.mxu0
      %v1879 = vadd.f32 %v1766, %v1878
      %1880 = vmatmul.f32.gmra.mxu0 %v1158
      %v1881 = vpop.f32.mrf.mxu0
      %v1882 = vadd.f32 %v1769, %v1881
      %1883 = vmatmul.f32.gmra.mxu0 %v1162
      %v1884 = vpop.f32.mrf.mxu0
      %v1885 = vadd.f32 %v1772, %v1884
      %1886 = vmatmul.f32.gmra.mxu0 %v1166
      %v1887 = vpop.f32.mrf.mxu0
      %v1888 = vadd.f32 %v1775, %v1887
      %1889 = vmatmul.f32.gmra.mxu0 %v1170
      %v1890 = vpop.f32.mrf.mxu0
      %v1891 = vadd.f32 %v1778, %v1890
      %1892 = vmatmul.f32.gmra.mxu0 %v1174
      %v1893 = vpop.f32.mrf.mxu0
      %v1894 = vadd.f32 %v1781, %v1893
      %1895 = vmatmul.f32.gmra.mxu0 %v1178
      %v1896 = vpop.f32.mrf.mxu0
      %v1897 = vadd.f32 %v1784, %v1896
      %1898 = vmatmul.f32.gmra.mxu0 %v1182
      %v1899 = vpop.f32.mrf.mxu0
      %v1900 = vadd.f32 %v1787, %v1899
      %1901 = vmatmul.f32.gmra.mxu0 %v1186
      %v1902 = vpop.f32.mrf.mxu0
      %v1903 = vadd.f32 %v1790, %v1902
      %1904 = vdwg.mxu0
      %1905 = vmatpush.msra.mxu0 %v1248
      %1906 = vmatpush.msra.mxu0 %v1244
      %1907 = vmatpush.msra.mxu0 %v1240
      %1908 = vmatpush.msra.mxu0 %v1236
      %1909 = vmatpush.msra.mxu0 %v1232
      %1910 = vmatpush.msra.mxu0 %v1228
      %1911 = vmatpush.msra.mxu0 %v1224
      %1912 = vmatpush.msra.mxu0 %v1220
      %1913 = vmatpush.msra.mxu0 %v1216
      %1914 = vmatpush.msra.mxu0 %v1212
      %1915 = vmatpush.msra.mxu0 %v1208
      %1916 = vmatpush.msra.mxu0 %v1204
      %1917 = vmatpush.msra.mxu0 %v1200
      %1918 = vmatpush.msra.mxu0 %v1196
      %1919 = vmatpush.msra.mxu0 %v1192
      %1920 = vmatpush.msra.mxu0 %v1188
      %1921 = vmatmul.f32.gmra.mxu0 %v1059
      %v1922 = vpop.f32.mrf.mxu0
      %v1923 = vadd.f32 %v1446, %v1922
      %1924 = vmatmul.f32.gmra.mxu0 %v1063
      %v1925 = vpop.f32.mrf.mxu0
      %v1926 = vadd.f32 %v1446, %v1925
      %1927 = vmatmul.f32.gmra.mxu0 %v1067
      %v1928 = vpop.f32.mrf.mxu0
      %v1929 = vadd.f32 %v1446, %v1928
      %1930 = vmatmul.f32.gmra.mxu0 %v1071
      %v1931 = vpop.f32.mrf.mxu0
      %v1932 = vadd.f32 %v1446, %v1931
      %1933 = vmatmul.f32.gmra.mxu0 %v1075
      %v1934 = vpop.f32.mrf.mxu0
      %v1935 = vadd.f32 %v1446, %v1934
      %1936 = vmatmul.f32.gmra.mxu0 %v1079
      %v1937 = vpop.f32.mrf.mxu0
      %v1938 = vadd.f32 %v1446, %v1937
      %1939 = vmatmul.f32.gmra.mxu0 %v1083
      %v1940 = vpop.f32.mrf.mxu0
      %v1941 = vadd.f32 %v1446, %v1940
      %1942 = vmatmul.f32.gmra.mxu0 %v1087
      %v1943 = vpop.f32.mrf.mxu0
      %v1944 = vadd.f32 %v1446, %v1943
      %1945 = vmatmul.f32.gmra.mxu0 %v1091
      %v1946 = vpop.f32.mrf.mxu0
      %v1947 = vadd.f32 %v1446, %v1946
      %1948 = vmatmul.f32.gmra.mxu0 %v1095
      %v1949 = vpop.f32.mrf.mxu0
      %v1950 = vadd.f32 %v1446, %v1949
      %1951 = vmatmul.f32.gmra.mxu0 %v1099
      %v1952 = vpop.f32.mrf.mxu0
      %v1953 = vadd.f32 %v1446, %v1952
      %1954 = vmatmul.f32.gmra.mxu0 %v1103
      %v1955 = vpop.f32.mrf.mxu0
      %v1956 = vadd.f32 %v1446, %v1955
      %1957 = vmatmul.f32.gmra.mxu0 %v1107
      %v1958 = vpop.f32.mrf.mxu0
      %v1959 = vadd.f32 %v1446, %v1958
      %1960 = vmatmul.f32.gmra.mxu0 %v1111
      %v1961 = vpop.f32.mrf.mxu0
      %v1962 = vadd.f32 %v1446, %v1961
      %1963 = vmatmul.f32.gmra.mxu0 %v1115
      %v1964 = vpop.f32.mrf.mxu0
      %v1965 = vadd.f32 %v1446, %v1964
      %1966 = vmatmul.f32.gmra.mxu0 %v1119
      %v1967 = vpop.f32.mrf.mxu0
      %v1968 = vadd.f32 %v1446, %v1967
      %1969 = vmatmul.f32.gmra.mxu0 %v1123
      %v1970 = vpop.f32.mrf.mxu0
      %v1971 = vadd.f32 %v1446, %v1970
      %1972 = vmatmul.f32.gmra.mxu0 %v1127
      %v1973 = vpop.f32.mrf.mxu0
      %v1974 = vadd.f32 %v1446, %v1973
      %1975 = vmatmul.f32.gmra.mxu0 %v1131
      %v1976 = vpop.f32.mrf.mxu0
      %v1977 = vadd.f32 %v1446, %v1976
      %1978 = vmatmul.f32.gmra.mxu0 %v1135
      %v1979 = vpop.f32.mrf.mxu0
      %v1980 = vadd.f32 %v1446, %v1979
      %1981 = vmatmul.f32.gmra.mxu0 %v1139
      %v1982 = vpop.f32.mrf.mxu0
      %v1983 = vadd.f32 %v1446, %v1982
      %1984 = vmatmul.f32.gmra.mxu0 %v1143
      %v1985 = vpop.f32.mrf.mxu0
      %v1986 = vadd.f32 %v1446, %v1985
      %1987 = vmatmul.f32.gmra.mxu0 %v1147
      %v1988 = vpop.f32.mrf.mxu0
      %v1989 = vadd.f32 %v1446, %v1988
      %1990 = vmatmul.f32.gmra.mxu0 %v1151
      %v1991 = vpop.f32.mrf.mxu0
      %v1992 = vadd.f32 %v1446, %v1991
      %1993 = vmatmul.f32.gmra.mxu0 %v1155
      %v1994 = vpop.f32.mrf.mxu0
      %v1995 = vadd.f32 %v1446, %v1994
      %1996 = vmatmul.f32.gmra.mxu0 %v1159
      %v1997 = vpop.f32.mrf.mxu0
      %v1998 = vadd.f32 %v1446, %v1997
      %1999 = vmatmul.f32.gmra.mxu0 %v1163
      %v2000 = vpop.f32.mrf.mxu0
      %v2001 = vadd.f32 %v1446, %v2000
      %2002 = vmatmul.f32.gmra.mxu0 %v1167
      %v2003 = vpop.f32.mrf.mxu0
      %v2004 = vadd.f32 %v1446, %v2003
      %2005 = vmatmul.f32.gmra.mxu0 %v1171
      %v2006 = vpop.f32.mrf.mxu0
      %v2007 = vadd.f32 %v1446, %v2006
      %2008 = vmatmul.f32.gmra.mxu0 %v1175
      %v2009 = vpop.f32.mrf.mxu0
      %v2010 = vadd.f32 %v1446, %v2009
      %2011 = vmatmul.f32.gmra.mxu0 %v1179
      %v2012 = vpop.f32.mrf.mxu0
      %v2013 = vadd.f32 %v1446, %v2012
      %2014 = vmatmul.f32.gmra.mxu0 %v1183
      %v2015 = vpop.f32.mrf.mxu0
      %v2016 = vadd.f32 %v1446, %v2015
      %2017 = vdwg.mxu0
      %2018 = vmatpush.msra.mxu0 %v1312
      %2019 = vmatpush.msra.mxu0 %v1308
      %2020 = vmatpush.msra.mxu0 %v1304
      %2021 = vmatpush.msra.mxu0 %v1300
      %2022 = vmatpush.msra.mxu0 %v1296
      %2023 = vmatpush.msra.mxu0 %v1292
      %2024 = vmatpush.msra.mxu0 %v1288
      %2025 = vmatpush.msra.mxu0 %v1284
      %2026 = vmatpush.msra.mxu0 %v1280
      %2027 = vmatpush.msra.mxu0 %v1276
      %2028 = vmatpush.msra.mxu0 %v1272
      %2029 = vmatpush.msra.mxu0 %v1268
      %2030 = vmatpush.msra.mxu0 %v1264
      %2031 = vmatpush.msra.mxu0 %v1260
      %2032 = vmatpush.msra.mxu0 %v1256
      %2033 = vmatpush.msra.mxu0 %v1252
      %2034 = vmatmul.f32.gmra.mxu0 %v1060
      %v2035 = vpop.f32.mrf.mxu0
      %v2036 = vadd.f32 %v1923, %v2035
      %2037 = vmatmul.f32.gmra.mxu0 %v1064
      %v2038 = vpop.f32.mrf.mxu0
      %v2039 = vadd.f32 %v1926, %v2038
      %2040 = vmatmul.f32.gmra.mxu0 %v1068
      %v2041 = vpop.f32.mrf.mxu0
      %v2042 = vadd.f32 %v1929, %v2041
      %2043 = vmatmul.f32.gmra.mxu0 %v1072
      %v2044 = vpop.f32.mrf.mxu0
      %v2045 = vadd.f32 %v1932, %v2044
      %2046 = vmatmul.f32.gmra.mxu0 %v1076
      %v2047 = vpop.f32.mrf.mxu0
      %v2048 = vadd.f32 %v1935, %v2047
      %2049 = vmatmul.f32.gmra.mxu0 %v1080
      %v2050 = vpop.f32.mrf.mxu0
      %v2051 = vadd.f32 %v1938, %v2050
      %2052 = vmatmul.f32.gmra.mxu0 %v1084
      %v2053 = vpop.f32.mrf.mxu0
      %v2054 = vadd.f32 %v1941, %v2053
      %2055 = vmatmul.f32.gmra.mxu0 %v1088
      %v2056 = vpop.f32.mrf.mxu0
      %v2057 = vadd.f32 %v1944, %v2056
      %2058 = vmatmul.f32.gmra.mxu0 %v1092
      %v2059 = vpop.f32.mrf.mxu0
      %v2060 = vadd.f32 %v1947, %v2059
      %2061 = vmatmul.f32.gmra.mxu0 %v1096
      %v2062 = vpop.f32.mrf.mxu0
      %v2063 = vadd.f32 %v1950, %v2062
      %2064 = vmatmul.f32.gmra.mxu0 %v1100
      %v2065 = vpop.f32.mrf.mxu0
      %v2066 = vadd.f32 %v1953, %v2065
      %2067 = vmatmul.f32.gmra.mxu0 %v1104
      %v2068 = vpop.f32.mrf.mxu0
      %v2069 = vadd.f32 %v1956, %v2068
      %2070 = vmatmul.f32.gmra.mxu0 %v1108
      %v2071 = vpop.f32.mrf.mxu0
      %v2072 = vadd.f32 %v1959, %v2071
      %2073 = vmatmul.f32.gmra.mxu0 %v1112
      %v2074 = vpop.f32.mrf.mxu0
      %v2075 = vadd.f32 %v1962, %v2074
      %2076 = vmatmul.f32.gmra.mxu0 %v1116
      %v2077 = vpop.f32.mrf.mxu0
      %v2078 = vadd.f32 %v1965, %v2077
      %2079 = vmatmul.f32.gmra.mxu0 %v1120
      %v2080 = vpop.f32.mrf.mxu0
      %v2081 = vadd.f32 %v1968, %v2080
      %2082 = vmatmul.f32.gmra.mxu0 %v1124
      %v2083 = vpop.f32.mrf.mxu0
      %v2084 = vadd.f32 %v1971, %v2083
      %2085 = vmatmul.f32.gmra.mxu0 %v1128
      %v2086 = vpop.f32.mrf.mxu0
      %v2087 = vadd.f32 %v1974, %v2086
      %2088 = vmatmul.f32.gmra.mxu0 %v1132
      %v2089 = vpop.f32.mrf.mxu0
      %v2090 = vadd.f32 %v1977, %v2089
      %2091 = vmatmul.f32.gmra.mxu0 %v1136
      %v2092 = vpop.f32.mrf.mxu0
      %v2093 = vadd.f32 %v1980, %v2092
      %2094 = vmatmul.f32.gmra.mxu0 %v1140
      %v2095 = vpop.f32.mrf.mxu0
      %v2096 = vadd.f32 %v1983, %v2095
      %2097 = vmatmul.f32.gmra.mxu0 %v1144
      %v2098 = vpop.f32.mrf.mxu0
      %v2099 = vadd.f32 %v1986, %v2098
      %2100 = vmatmul.f32.gmra.mxu0 %v1148
      %v2101 = vpop.f32.mrf.mxu0
      %v2102 = vadd.f32 %v1989, %v2101
      %2103 = vmatmul.f32.gmra.mxu0 %v1152
      %v2104 = vpop.f32.mrf.mxu0
      %v2105 = vadd.f32 %v1992, %v2104
      %2106 = vmatmul.f32.gmra.mxu0 %v1156
      %v2107 = vpop.f32.mrf.mxu0
      %v2108 = vadd.f32 %v1995, %v2107
      %2109 = vmatmul.f32.gmra.mxu0 %v1160
      %v2110 = vpop.f32.mrf.mxu0
      %v2111 = vadd.f32 %v1998, %v2110
      %2112 = vmatmul.f32.gmra.mxu0 %v1164
      %v2113 = vpop.f32.mrf.mxu0
      %v2114 = vadd.f32 %v2001, %v2113
      %2115 = vmatmul.f32.gmra.mxu0 %v1168
      %v2116 = vpop.f32.mrf.mxu0
      %v2117 = vadd.f32 %v2004, %v2116
      %2118 = vmatmul.f32.gmra.mxu0 %v1172
      %v2119 = vpop.f32.mrf.mxu0
      %v2120 = vadd.f32 %v2007, %v2119
      %2121 = vmatmul.f32.gmra.mxu0 %v1176
      %v2122 = vpop.f32.mrf.mxu0
      %v2123 = vadd.f32 %v2010, %v2122
      %2124 = vmatmul.f32.gmra.mxu0 %v1180
      %v2125 = vpop.f32.mrf.mxu0
      %v2126 = vadd.f32 %v2013, %v2125
      %2127 = vmatmul.f32.gmra.mxu0 %v1184
      %v2128 = vpop.f32.mrf.mxu0
      %v2129 = vadd.f32 %v2016, %v2128
      %2130 = vdwg.mxu0
      %2131 = vmatpush.msra.mxu0 %v1376
      %2132 = vmatpush.msra.mxu0 %v1372
      %2133 = vmatpush.msra.mxu0 %v1368
      %2134 = vmatpush.msra.mxu0 %v1364
      %2135 = vmatpush.msra.mxu0 %v1360
      %2136 = vmatpush.msra.mxu0 %v1356
      %2137 = vmatpush.msra.mxu0 %v1352
      %2138 = vmatpush.msra.mxu0 %v1348
      %2139 = vmatpush.msra.mxu0 %v1344
      %2140 = vmatpush.msra.mxu0 %v1340
      %2141 = vmatpush.msra.mxu0 %v1336
      %2142 = vmatpush.msra.mxu0 %v1332
      %2143 = vmatpush.msra.mxu0 %v1328
      %2144 = vmatpush.msra.mxu0 %v1324
      %2145 = vmatpush.msra.mxu0 %v1320
      %2146 = vmatpush.msra.mxu0 %v1316
      %2147 = vmatmul.f32.gmra.mxu0 %v1061
      %v2148 = vpop.f32.mrf.mxu0
      %v2149 = vadd.f32 %v2036, %v2148
      %2150 = vmatmul.f32.gmra.mxu0 %v1065
      %v2151 = vpop.f32.mrf.mxu0
      %v2152 = vadd.f32 %v2039, %v2151
      %2153 = vmatmul.f32.gmra.mxu0 %v1069
      %v2154 = vpop.f32.mrf.mxu0
      %v2155 = vadd.f32 %v2042, %v2154
      %2156 = vmatmul.f32.gmra.mxu0 %v1073
      %v2157 = vpop.f32.mrf.mxu0
      %v2158 = vadd.f32 %v2045, %v2157
      %2159 = vmatmul.f32.gmra.mxu0 %v1077
      %v2160 = vpop.f32.mrf.mxu0
      %v2161 = vadd.f32 %v2048, %v2160
      %2162 = vmatmul.f32.gmra.mxu0 %v1081
      %v2163 = vpop.f32.mrf.mxu0
      %v2164 = vadd.f32 %v2051, %v2163
      %2165 = vmatmul.f32.gmra.mxu0 %v1085
      %v2166 = vpop.f32.mrf.mxu0
      %v2167 = vadd.f32 %v2054, %v2166
      %2168 = vmatmul.f32.gmra.mxu0 %v1089
      %v2169 = vpop.f32.mrf.mxu0
      %v2170 = vadd.f32 %v2057, %v2169
      %2171 = vmatmul.f32.gmra.mxu0 %v1093
      %v2172 = vpop.f32.mrf.mxu0
      %v2173 = vadd.f32 %v2060, %v2172
      %2174 = vmatmul.f32.gmra.mxu0 %v1097
      %v2175 = vpop.f32.mrf.mxu0
      %v2176 = vadd.f32 %v2063, %v2175
      %2177 = vmatmul.f32.gmra.mxu0 %v1101
      %v2178 = vpop.f32.mrf.mxu0
      %v2179 = vadd.f32 %v2066, %v2178
      %2180 = vmatmul.f32.gmra.mxu0 %v1105
      %v2181 = vpop.f32.mrf.mxu0
      %v2182 = vadd.f32 %v2069, %v2181
      %2183 = vmatmul.f32.gmra.mxu0 %v1109
      %v2184 = vpop.f32.mrf.mxu0
      %v2185 = vadd.f32 %v2072, %v2184
      %2186 = vmatmul.f32.gmra.mxu0 %v1113
      %v2187 = vpop.f32.mrf.mxu0
      %v2188 = vadd.f32 %v2075, %v2187
      %2189 = vmatmul.f32.gmra.mxu0 %v1117
      %v2190 = vpop.f32.mrf.mxu0
      %v2191 = vadd.f32 %v2078, %v2190
      %2192 = vmatmul.f32.gmra.mxu0 %v1121
      %v2193 = vpop.f32.mrf.mxu0
      %v2194 = vadd.f32 %v2081, %v2193
      %2195 = vmatmul.f32.gmra.mxu0 %v1125
      %v2196 = vpop.f32.mrf.mxu0
      %v2197 = vadd.f32 %v2084, %v2196
      %2198 = vmatmul.f32.gmra.mxu0 %v1129
      %v2199 = vpop.f32.mrf.mxu0
      %v2200 = vadd.f32 %v2087, %v2199
      %2201 = vmatmul.f32.gmra.mxu0 %v1133
      %v2202 = vpop.f32.mrf.mxu0
      %v2203 = vadd.f32 %v2090, %v2202
      %2204 = vmatmul.f32.gmra.mxu0 %v1137
      %v2205 = vpop.f32.mrf.mxu0
      %v2206 = vadd.f32 %v2093, %v2205
      %2207 = vmatmul.f32.gmra.mxu0 %v1141
      %v2208 = vpop.f32.mrf.mxu0
      %v2209 = vadd.f32 %v2096, %v2208
      %2210 = vmatmul.f32.gmra.mxu0 %v1145
      %v2211 = vpop.f32.mrf.mxu0
      %v2212 = vadd.f32 %v2099, %v2211
      %2213 = vmatmul.f32.gmra.mxu0 %v1149
      %v2214 = vpop.f32.mrf.mxu0
      %v2215 = vadd.f32 %v2102, %v2214
      %2216 = vmatmul.f32.gmra.mxu0 %v1153
      %v2217 = vpop.f32.mrf.mxu0
      %v2218 = vadd.f32 %v2105, %v2217
      %2219 = vmatmul.f32.gmra.mxu0 %v1157
      %v2220 = vpop.f32.mrf.mxu0
      %v2221 = vadd.f32 %v2108, %v2220
      %2222 = vmatmul.f32.gmra.mxu0 %v1161
      %v2223 = vpop.f32.mrf.mxu0
      %v2224 = vadd.f32 %v2111, %v2223
      %2225 = vmatmul.f32.gmra.mxu0 %v1165
      %v2226 = vpop.f32.mrf.mxu0
      %v2227 = vadd.f32 %v2114, %v2226
      %2228 = vmatmul.f32.gmra.mxu0 %v1169
      %v2229 = vpop.f32.mrf.mxu0
      %v2230 = vadd.f32 %v2117, %v2229
      %2231 = vmatmul.f32.gmra.mxu0 %v1173
      %v2232 = vpop.f32.mrf.mxu0
      %v2233 = vadd.f32 %v2120, %v2232
      %2234 = vmatmul.f32.gmra.mxu0 %v1177
      %v2235 = vpop.f32.mrf.mxu0
      %v2236 = vadd.f32 %v2123, %v2235
      %2237 = vmatmul.f32.gmra.mxu0 %v1181
      %v2238 = vpop.f32.mrf.mxu0
      %v2239 = vadd.f32 %v2126, %v2238
      %2240 = vmatmul.f32.gmra.mxu0 %v1185
      %v2241 = vpop.f32.mrf.mxu0
      %v2242 = vadd.f32 %v2129, %v2241
      %2243 = vdwg.mxu0
      %2244 = vmatpush.msra.mxu0 %v1440
      %2245 = vmatpush.msra.mxu0 %v1436
      %2246 = vmatpush.msra.mxu0 %v1432
      %2247 = vmatpush.msra.mxu0 %v1428
      %2248 = vmatpush.msra.mxu0 %v1424
      %2249 = vmatpush.msra.mxu0 %v1420
      %2250 = vmatpush.msra.mxu0 %v1416
      %2251 = vmatpush.msra.mxu0 %v1412
      %2252 = vmatpush.msra.mxu0 %v1408
      %2253 = vmatpush.msra.mxu0 %v1404
      %2254 = vmatpush.msra.mxu0 %v1400
      %2255 = vmatpush.msra.mxu0 %v1396
      %2256 = vmatpush.msra.mxu0 %v1392
      %2257 = vmatpush.msra.mxu0 %v1388
      %2258 = vmatpush.msra.mxu0 %v1384
      %2259 = vmatpush.msra.mxu0 %v1380
      %2260 = vmatmul.f32.gmra.mxu0 %v1062
      %v2261 = vpop.f32.mrf.mxu0
      %v2262 = vadd.f32 %v2149, %v2261
      %2263 = vmatmul.f32.gmra.mxu0 %v1066
      %v2264 = vpop.f32.mrf.mxu0
      %v2265 = vadd.f32 %v2152, %v2264
      %2266 = vmatmul.f32.gmra.mxu0 %v1070
      %v2267 = vpop.f32.mrf.mxu0
      %v2268 = vadd.f32 %v2155, %v2267
      %2269 = vmatmul.f32.gmra.mxu0 %v1074
      %v2270 = vpop.f32.mrf.mxu0
      %v2271 = vadd.f32 %v2158, %v2270
      %2272 = vmatmul.f32.gmra.mxu0 %v1078
      %v2273 = vpop.f32.mrf.mxu0
      %v2274 = vadd.f32 %v2161, %v2273
      %2275 = vmatmul.f32.gmra.mxu0 %v1082
      %v2276 = vpop.f32.mrf.mxu0
      %v2277 = vadd.f32 %v2164, %v2276
      %2278 = vmatmul.f32.gmra.mxu0 %v1086
      %v2279 = vpop.f32.mrf.mxu0
      %v2280 = vadd.f32 %v2167, %v2279
      %2281 = vmatmul.f32.gmra.mxu0 %v1090
      %v2282 = vpop.f32.mrf.mxu0
      %v2283 = vadd.f32 %v2170, %v2282
      %2284 = vmatmul.f32.gmra.mxu0 %v1094
      %v2285 = vpop.f32.mrf.mxu0
      %v2286 = vadd.f32 %v2173, %v2285
      %2287 = vmatmul.f32.gmra.mxu0 %v1098
      %v2288 = vpop.f32.mrf.mxu0
      %v2289 = vadd.f32 %v2176, %v2288
      %2290 = vmatmul.f32.gmra.mxu0 %v1102
      %v2291 = vpop.f32.mrf.mxu0
      %v2292 = vadd.f32 %v2179, %v2291
      %2293 = vmatmul.f32.gmra.mxu0 %v1106
      %v2294 = vpop.f32.mrf.mxu0
      %v2295 = vadd.f32 %v2182, %v2294
      %2296 = vmatmul.f32.gmra.mxu0 %v1110
      %v2297 = vpop.f32.mrf.mxu0
      %v2298 = vadd.f32 %v2185, %v2297
      %2299 = vmatmul.f32.gmra.mxu0 %v1114
      %v2300 = vpop.f32.mrf.mxu0
      %v2301 = vadd.f32 %v2188, %v2300
      %2302 = vmatmul.f32.gmra.mxu0 %v1118
      %v2303 = vpop.f32.mrf.mxu0
      %v2304 = vadd.f32 %v2191, %v2303
      %2305 = vmatmul.f32.gmra.mxu0 %v1122
      %v2306 = vpop.f32.mrf.mxu0
      %v2307 = vadd.f32 %v2194, %v2306
      %2308 = vmatmul.f32.gmra.mxu0 %v1126
      %v2309 = vpop.f32.mrf.mxu0
      %v2310 = vadd.f32 %v2197, %v2309
      %2311 = vmatmul.f32.gmra.mxu0 %v1130
      %v2312 = vpop.f32.mrf.mxu0
      %v2313 = vadd.f32 %v2200, %v2312
      %2314 = vmatmul.f32.gmra.mxu0 %v1134
      %v2315 = vpop.f32.mrf.mxu0
      %v2316 = vadd.f32 %v2203, %v2315
      %2317 = vmatmul.f32.gmra.mxu0 %v1138
      %v2318 = vpop.f32.mrf.mxu0
      %v2319 = vadd.f32 %v2206, %v2318
      %2320 = vmatmul.f32.gmra.mxu0 %v1142
      %v2321 = vpop.f32.mrf.mxu0
      %v2322 = vadd.f32 %v2209, %v2321
      %2323 = vmatmul.f32.gmra.mxu0 %v1146
      %v2324 = vpop.f32.mrf.mxu0
      %v2325 = vadd.f32 %v2212, %v2324
      %2326 = vmatmul.f32.gmra.mxu0 %v1150
      %v2327 = vpop.f32.mrf.mxu0
      %v2328 = vadd.f32 %v2215, %v2327
      %2329 = vmatmul.f32.gmra.mxu0 %v1154
      %v2330 = vpop.f32.mrf.mxu0
      %v2331 = vadd.f32 %v2218, %v2330
      %2332 = vmatmul.f32.gmra.mxu0 %v1158
      %v2333 = vpop.f32.mrf.mxu0
      %v2334 = vadd.f32 %v2221, %v2333
      %2335 = vmatmul.f32.gmra.mxu0 %v1162
      %v2336 = vpop.f32.mrf.mxu0
      %v2337 = vadd.f32 %v2224, %v2336
      %2338 = vmatmul.f32.gmra.mxu0 %v1166
      %v2339 = vpop.f32.mrf.mxu0
      %v2340 = vadd.f32 %v2227, %v2339
      %2341 = vmatmul.f32.gmra.mxu0 %v1170
      %v2342 = vpop.f32.mrf.mxu0
      %v2343 = vadd.f32 %v2230, %v2342
      %2344 = vmatmul.f32.gmra.mxu0 %v1174
      %v2345 = vpop.f32.mrf.mxu0
      %v2346 = vadd.f32 %v2233, %v2345
      %2347 = vmatmul.f32.gmra.mxu0 %v1178
      %v2348 = vpop.f32.mrf.mxu0
      %v2349 = vadd.f32 %v2236, %v2348
      %2350 = vmatmul.f32.gmra.mxu0 %v1182
      %v2351 = vpop.f32.mrf.mxu0
      %v2352 = vadd.f32 %v2239, %v2351
      %2353 = vmatmul.f32.gmra.mxu0 %v1186
      %v2354 = vpop.f32.mrf.mxu0
      %v2355 = vadd.f32 %v2242, %v2354
      %2356 = vdwg.mxu0
      %2357 = vmatpush.msra.mxu0 %v1249
      %2358 = vmatpush.msra.mxu0 %v1245
      %2359 = vmatpush.msra.mxu0 %v1241
      %2360 = vmatpush.msra.mxu0 %v1237
      %2361 = vmatpush.msra.mxu0 %v1233
      %2362 = vmatpush.msra.mxu0 %v1229
      %2363 = vmatpush.msra.mxu0 %v1225
      %2364 = vmatpush.msra.mxu0 %v1221
      %2365 = vmatpush.msra.mxu0 %v1217
      %2366 = vmatpush.msra.mxu0 %v1213
      %2367 = vmatpush.msra.mxu0 %v1209
      %2368 = vmatpush.msra.mxu0 %v1205
      %2369 = vmatpush.msra.mxu0 %v1201
      %2370 = vmatpush.msra.mxu0 %v1197
      %2371 = vmatpush.msra.mxu0 %v1193
      %2372 = vmatpush.msra.mxu0 %v1189
      %2373 = vmatmul.f32.gmra.mxu0 %v1059
      %v2374 = vpop.f32.mrf.mxu0
      %v2375 = vadd.f32 %v1447, %v2374
      %2376 = vmatmul.f32.gmra.mxu0 %v1063
      %v2377 = vpop.f32.mrf.mxu0
      %v2378 = vadd.f32 %v1447, %v2377
      %2379 = vmatmul.f32.gmra.mxu0 %v1067
      %v2380 = vpop.f32.mrf.mxu0
      %v2381 = vadd.f32 %v1447, %v2380
      %2382 = vmatmul.f32.gmra.mxu0 %v1071
      %v2383 = vpop.f32.mrf.mxu0
      %v2384 = vadd.f32 %v1447, %v2383
      %2385 = vmatmul.f32.gmra.mxu0 %v1075
      %v2386 = vpop.f32.mrf.mxu0
      %v2387 = vadd.f32 %v1447, %v2386
      %2388 = vmatmul.f32.gmra.mxu0 %v1079
      %v2389 = vpop.f32.mrf.mxu0
      %v2390 = vadd.f32 %v1447, %v2389
      %2391 = vmatmul.f32.gmra.mxu0 %v1083
      %v2392 = vpop.f32.mrf.mxu0
      %v2393 = vadd.f32 %v1447, %v2392
      %2394 = vmatmul.f32.gmra.mxu0 %v1087
      %v2395 = vpop.f32.mrf.mxu0
      %v2396 = vadd.f32 %v1447, %v2395
      %2397 = vmatmul.f32.gmra.mxu0 %v1091
      %v2398 = vpop.f32.mrf.mxu0
      %v2399 = vadd.f32 %v1447, %v2398
      %2400 = vmatmul.f32.gmra.mxu0 %v1095
      %v2401 = vpop.f32.mrf.mxu0
      %v2402 = vadd.f32 %v1447, %v2401
      %2403 = vmatmul.f32.gmra.mxu0 %v1099
      %v2404 = vpop.f32.mrf.mxu0
      %v2405 = vadd.f32 %v1447, %v2404
      %2406 = vmatmul.f32.gmra.mxu0 %v1103
      %v2407 = vpop.f32.mrf.mxu0
      %v2408 = vadd.f32 %v1447, %v2407
      %2409 = vmatmul.f32.gmra.mxu0 %v1107
      %v2410 = vpop.f32.mrf.mxu0
      %v2411 = vadd.f32 %v1447, %v2410
      %2412 = vmatmul.f32.gmra.mxu0 %v1111
      %v2413 = vpop.f32.mrf.mxu0
      %v2414 = vadd.f32 %v1447, %v2413
      %2415 = vmatmul.f32.gmra.mxu0 %v1115
      %v2416 = vpop.f32.mrf.mxu0
      %v2417 = vadd.f32 %v1447, %v2416
      %2418 = vmatmul.f32.gmra.mxu0 %v1119
      %v2419 = vpop.f32.mrf.mxu0
      %v2420 = vadd.f32 %v1447, %v2419
      %2421 = vmatmul.f32.gmra.mxu0 %v1123
      %v2422 = vpop.f32.mrf.mxu0
      %v2423 = vadd.f32 %v1447, %v2422
      %2424 = vmatmul.f32.gmra.mxu0 %v1127
      %v2425 = vpop.f32.mrf.mxu0
      %v2426 = vadd.f32 %v1447, %v2425
      %2427 = vmatmul.f32.gmra.mxu0 %v1131
      %v2428 = vpop.f32.mrf.mxu0
      %v2429 = vadd.f32 %v1447, %v2428
      %2430 = vmatmul.f32.gmra.mxu0 %v1135
      %v2431 = vpop.f32.mrf.mxu0
      %v2432 = vadd.f32 %v1447, %v2431
      %2433 = vmatmul.f32.gmra.mxu0 %v1139
      %v2434 = vpop.f32.mrf.mxu0
      %v2435 = vadd.f32 %v1447, %v2434
      %2436 = vmatmul.f32.gmra.mxu0 %v1143
      %v2437 = vpop.f32.mrf.mxu0
      %v2438 = vadd.f32 %v1447, %v2437
      %2439 = vmatmul.f32.gmra.mxu0 %v1147
      %v2440 = vpop.f32.mrf.mxu0
      %v2441 = vadd.f32 %v1447, %v2440
      %2442 = vmatmul.f32.gmra.mxu0 %v1151
      %v2443 = vpop.f32.mrf.mxu0
      %v2444 = vadd.f32 %v1447, %v2443
      %2445 = vmatmul.f32.gmra.mxu0 %v1155
      %v2446 = vpop.f32.mrf.mxu0
      %v2447 = vadd.f32 %v1447, %v2446
      %2448 = vmatmul.f32.gmra.mxu0 %v1159
      %v2449 = vpop.f32.mrf.mxu0
      %v2450 = vadd.f32 %v1447, %v2449
      %2451 = vmatmul.f32.gmra.mxu0 %v1163
      %v2452 = vpop.f32.mrf.mxu0
      %v2453 = vadd.f32 %v1447, %v2452
      %2454 = vmatmul.f32.gmra.mxu0 %v1167
      %v2455 = vpop.f32.mrf.mxu0
      %v2456 = vadd.f32 %v1447, %v2455
      %2457 = vmatmul.f32.gmra.mxu0 %v1171
      %v2458 = vpop.f32.mrf.mxu0
      %v2459 = vadd.f32 %v1447, %v2458
      %2460 = vmatmul.f32.gmra.mxu0 %v1175
      %v2461 = vpop.f32.mrf.mxu0
      %v2462 = vadd.f32 %v1447, %v2461
      %2463 = vmatmul.f32.gmra.mxu0 %v1179
      %v2464 = vpop.f32.mrf.mxu0
      %v2465 = vadd.f32 %v1447, %v2464
      %2466 = vmatmul.f32.gmra.mxu0 %v1183
      %v2467 = vpop.f32.mrf.mxu0
      %v2468 = vadd.f32 %v1447, %v2467
      %2469 = vdwg.mxu0
      %2470 = vmatpush.msra.mxu0 %v1313
      %2471 = vmatpush.msra.mxu0 %v1309
      %2472 = vmatpush.msra.mxu0 %v1305
      %2473 = vmatpush.msra.mxu0 %v1301
      %2474 = vmatpush.msra.mxu0 %v1297
      %2475 = vmatpush.msra.mxu0 %v1293
      %2476 = vmatpush.msra.mxu0 %v1289
      %2477 = vmatpush.msra.mxu0 %v1285
      %2478 = vmatpush.msra.mxu0 %v1281
      %2479 = vmatpush.msra.mxu0 %v1277
      %2480 = vmatpush.msra.mxu0 %v1273
      %2481 = vmatpush.msra.mxu0 %v1269
      %2482 = vmatpush.msra.mxu0 %v1265
      %2483 = vmatpush.msra.mxu0 %v1261
      %2484 = vmatpush.msra.mxu0 %v1257
      %2485 = vmatpush.msra.mxu0 %v1253
      %2486 = vmatmul.f32.gmra.mxu0 %v1060
      %v2487 = vpop.f32.mrf.mxu0
      %v2488 = vadd.f32 %v2375, %v2487
      %2489 = vmatmul.f32.gmra.mxu0 %v1064
      %v2490 = vpop.f32.mrf.mxu0
      %v2491 = vadd.f32 %v2378, %v2490
      %2492 = vmatmul.f32.gmra.mxu0 %v1068
      %v2493 = vpop.f32.mrf.mxu0
      %v2494 = vadd.f32 %v2381, %v2493
      %2495 = vmatmul.f32.gmra.mxu0 %v1072
      %v2496 = vpop.f32.mrf.mxu0
      %v2497 = vadd.f32 %v2384, %v2496
      %2498 = vmatmul.f32.gmra.mxu0 %v1076
      %v2499 = vpop.f32.mrf.mxu0
      %v2500 = vadd.f32 %v2387, %v2499
      %2501 = vmatmul.f32.gmra.mxu0 %v1080
      %v2502 = vpop.f32.mrf.mxu0
      %v2503 = vadd.f32 %v2390, %v2502
      %2504 = vmatmul.f32.gmra.mxu0 %v1084
      %v2505 = vpop.f32.mrf.mxu0
      %v2506 = vadd.f32 %v2393, %v2505
      %2507 = vmatmul.f32.gmra.mxu0 %v1088
      %v2508 = vpop.f32.mrf.mxu0
      %v2509 = vadd.f32 %v2396, %v2508
      %2510 = vmatmul.f32.gmra.mxu0 %v1092
      %v2511 = vpop.f32.mrf.mxu0
      %v2512 = vadd.f32 %v2399, %v2511
      %2513 = vmatmul.f32.gmra.mxu0 %v1096
      %v2514 = vpop.f32.mrf.mxu0
      %v2515 = vadd.f32 %v2402, %v2514
      %2516 = vmatmul.f32.gmra.mxu0 %v1100
      %v2517 = vpop.f32.mrf.mxu0
      %v2518 = vadd.f32 %v2405, %v2517
      %2519 = vmatmul.f32.gmra.mxu0 %v1104
      %v2520 = vpop.f32.mrf.mxu0
      %v2521 = vadd.f32 %v2408, %v2520
      %2522 = vmatmul.f32.gmra.mxu0 %v1108
      %v2523 = vpop.f32.mrf.mxu0
      %v2524 = vadd.f32 %v2411, %v2523
      %2525 = vmatmul.f32.gmra.mxu0 %v1112
      %v2526 = vpop.f32.mrf.mxu0
      %v2527 = vadd.f32 %v2414, %v2526
      %2528 = vmatmul.f32.gmra.mxu0 %v1116
      %v2529 = vpop.f32.mrf.mxu0
      %v2530 = vadd.f32 %v2417, %v2529
      %2531 = vmatmul.f32.gmra.mxu0 %v1120
      %v2532 = vpop.f32.mrf.mxu0
      %v2533 = vadd.f32 %v2420, %v2532
      %2534 = vmatmul.f32.gmra.mxu0 %v1124
      %v2535 = vpop.f32.mrf.mxu0
      %v2536 = vadd.f32 %v2423, %v2535
      %2537 = vmatmul.f32.gmra.mxu0 %v1128
      %v2538 = vpop.f32.mrf.mxu0
      %v2539 = vadd.f32 %v2426, %v2538
      %2540 = vmatmul.f32.gmra.mxu0 %v1132
      %v2541 = vpop.f32.mrf.mxu0
      %v2542 = vadd.f32 %v2429, %v2541
      %2543 = vmatmul.f32.gmra.mxu0 %v1136
      %v2544 = vpop.f32.mrf.mxu0
      %v2545 = vadd.f32 %v2432, %v2544
      %2546 = vmatmul.f32.gmra.mxu0 %v1140
      %v2547 = vpop.f32.mrf.mxu0
      %v2548 = vadd.f32 %v2435, %v2547
      %2549 = vmatmul.f32.gmra.mxu0 %v1144
      %v2550 = vpop.f32.mrf.mxu0
      %v2551 = vadd.f32 %v2438, %v2550
      %2552 = vmatmul.f32.gmra.mxu0 %v1148
      %v2553 = vpop.f32.mrf.mxu0
      %v2554 = vadd.f32 %v2441, %v2553
      %2555 = vmatmul.f32.gmra.mxu0 %v1152
      %v2556 = vpop.f32.mrf.mxu0
      %v2557 = vadd.f32 %v2444, %v2556
      %2558 = vmatmul.f32.gmra.mxu0 %v1156
      %v2559 = vpop.f32.mrf.mxu0
      %v2560 = vadd.f32 %v2447, %v2559
      %2561 = vmatmul.f32.gmra.mxu0 %v1160
      %v2562 = vpop.f32.mrf.mxu0
      %v2563 = vadd.f32 %v2450, %v2562
      %2564 = vmatmul.f32.gmra.mxu0 %v1164
      %v2565 = vpop.f32.mrf.mxu0
      %v2566 = vadd.f32 %v2453, %v2565
      %2567 = vmatmul.f32.gmra.mxu0 %v1168
      %v2568 = vpop.f32.mrf.mxu0
      %v2569 = vadd.f32 %v2456, %v2568
      %2570 = vmatmul.f32.gmra.mxu0 %v1172
      %v2571 = vpop.f32.mrf.mxu0
      %v2572 = vadd.f32 %v2459, %v2571
      %2573 = vmatmul.f32.gmra.mxu0 %v1176
      %v2574 = vpop.f32.mrf.mxu0
      %v2575 = vadd.f32 %v2462, %v2574
      %2576 = vmatmul.f32.gmra.mxu0 %v1180
      %v2577 = vpop.f32.mrf.mxu0
      %v2578 = vadd.f32 %v2465, %v2577
      %2579 = vmatmul.f32.gmra.mxu0 %v1184
      %v2580 = vpop.f32.mrf.mxu0
      %v2581 = vadd.f32 %v2468, %v2580
      %2582 = vdwg.mxu0
      %2583 = vmatpush.msra.mxu0 %v1377
      %2584 = vmatpush.msra.mxu0 %v1373
      %2585 = vmatpush.msra.mxu0 %v1369
      %2586 = vmatpush.msra.mxu0 %v1365
      %2587 = vmatpush.msra.mxu0 %v1361
      %2588 = vmatpush.msra.mxu0 %v1357
      %2589 = vmatpush.msra.mxu0 %v1353
      %2590 = vmatpush.msra.mxu0 %v1349
      %2591 = vmatpush.msra.mxu0 %v1345
      %2592 = vmatpush.msra.mxu0 %v1341
      %2593 = vmatpush.msra.mxu0 %v1337
      %2594 = vmatpush.msra.mxu0 %v1333
      %2595 = vmatpush.msra.mxu0 %v1329
      %2596 = vmatpush.msra.mxu0 %v1325
      %2597 = vmatpush.msra.mxu0 %v1321
      %2598 = vmatpush.msra.mxu0 %v1317
      %2599 = vmatmul.f32.gmra.mxu0 %v1061
      %v2600 = vpop.f32.mrf.mxu0
      %v2601 = vadd.f32 %v2488, %v2600
      %2602 = vmatmul.f32.gmra.mxu0 %v1065
      %v2603 = vpop.f32.mrf.mxu0
      %v2604 = vadd.f32 %v2491, %v2603
      %2605 = vmatmul.f32.gmra.mxu0 %v1069
      %v2606 = vpop.f32.mrf.mxu0
      %v2607 = vadd.f32 %v2494, %v2606
      %2608 = vmatmul.f32.gmra.mxu0 %v1073
      %v2609 = vpop.f32.mrf.mxu0
      %v2610 = vadd.f32 %v2497, %v2609
      %2611 = vmatmul.f32.gmra.mxu0 %v1077
      %v2612 = vpop.f32.mrf.mxu0
      %v2613 = vadd.f32 %v2500, %v2612
      %2614 = vmatmul.f32.gmra.mxu0 %v1081
      %v2615 = vpop.f32.mrf.mxu0
      %v2616 = vadd.f32 %v2503, %v2615
      %2617 = vmatmul.f32.gmra.mxu0 %v1085
      %v2618 = vpop.f32.mrf.mxu0
      %v2619 = vadd.f32 %v2506, %v2618
      %2620 = vmatmul.f32.gmra.mxu0 %v1089
      %v2621 = vpop.f32.mrf.mxu0
      %v2622 = vadd.f32 %v2509, %v2621
      %2623 = vmatmul.f32.gmra.mxu0 %v1093
      %v2624 = vpop.f32.mrf.mxu0
      %v2625 = vadd.f32 %v2512, %v2624
      %2626 = vmatmul.f32.gmra.mxu0 %v1097
      %v2627 = vpop.f32.mrf.mxu0
      %v2628 = vadd.f32 %v2515, %v2627
      %2629 = vmatmul.f32.gmra.mxu0 %v1101
      %v2630 = vpop.f32.mrf.mxu0
      %v2631 = vadd.f32 %v2518, %v2630
      %2632 = vmatmul.f32.gmra.mxu0 %v1105
      %v2633 = vpop.f32.mrf.mxu0
      %v2634 = vadd.f32 %v2521, %v2633
      %2635 = vmatmul.f32.gmra.mxu0 %v1109
      %v2636 = vpop.f32.mrf.mxu0
      %v2637 = vadd.f32 %v2524, %v2636
      %2638 = vmatmul.f32.gmra.mxu0 %v1113
      %v2639 = vpop.f32.mrf.mxu0
      %v2640 = vadd.f32 %v2527, %v2639
      %2641 = vmatmul.f32.gmra.mxu0 %v1117
      %v2642 = vpop.f32.mrf.mxu0
      %v2643 = vadd.f32 %v2530, %v2642
      %2644 = vmatmul.f32.gmra.mxu0 %v1121
      %v2645 = vpop.f32.mrf.mxu0
      %v2646 = vadd.f32 %v2533, %v2645
      %2647 = vmatmul.f32.gmra.mxu0 %v1125
      %v2648 = vpop.f32.mrf.mxu0
      %v2649 = vadd.f32 %v2536, %v2648
      %2650 = vmatmul.f32.gmra.mxu0 %v1129
      %v2651 = vpop.f32.mrf.mxu0
      %v2652 = vadd.f32 %v2539, %v2651
      %2653 = vmatmul.f32.gmra.mxu0 %v1133
      %v2654 = vpop.f32.mrf.mxu0
      %v2655 = vadd.f32 %v2542, %v2654
      %2656 = vmatmul.f32.gmra.mxu0 %v1137
      %v2657 = vpop.f32.mrf.mxu0
      %v2658 = vadd.f32 %v2545, %v2657
      %2659 = vmatmul.f32.gmra.mxu0 %v1141
      %v2660 = vpop.f32.mrf.mxu0
      %v2661 = vadd.f32 %v2548, %v2660
      %2662 = vmatmul.f32.gmra.mxu0 %v1145
      %v2663 = vpop.f32.mrf.mxu0
      %v2664 = vadd.f32 %v2551, %v2663
      %2665 = vmatmul.f32.gmra.mxu0 %v1149
      %v2666 = vpop.f32.mrf.mxu0
      %v2667 = vadd.f32 %v2554, %v2666
      %2668 = vmatmul.f32.gmra.mxu0 %v1153
      %v2669 = vpop.f32.mrf.mxu0
      %v2670 = vadd.f32 %v2557, %v2669
      %2671 = vmatmul.f32.gmra.mxu0 %v1157
      %v2672 = vpop.f32.mrf.mxu0
      %v2673 = vadd.f32 %v2560, %v2672
      %2674 = vmatmul.f32.gmra.mxu0 %v1161
      %v2675 = vpop.f32.mrf.mxu0
      %v2676 = vadd.f32 %v2563, %v2675
      %2677 = vmatmul.f32.gmra.mxu0 %v1165
      %v2678 = vpop.f32.mrf.mxu0
      %v2679 = vadd.f32 %v2566, %v2678
      %2680 = vmatmul.f32.gmra.mxu0 %v1169
      %v2681 = vpop.f32.mrf.mxu0
      %v2682 = vadd.f32 %v2569, %v2681
      %2683 = vmatmul.f32.gmra.mxu0 %v1173
      %v2684 = vpop.f32.mrf.mxu0
      %v2685 = vadd.f32 %v2572, %v2684
      %2686 = vmatmul.f32.gmra.mxu0 %v1177
      %v2687 = vpop.f32.mrf.mxu0
      %v2688 = vadd.f32 %v2575, %v2687
      %2689 = vmatmul.f32.gmra.mxu0 %v1181
      %v2690 = vpop.f32.mrf.mxu0
      %v2691 = vadd.f32 %v2578, %v2690
      %2692 = vmatmul.f32.gmra.mxu0 %v1185
      %v2693 = vpop.f32.mrf.mxu0
      %v2694 = vadd.f32 %v2581, %v2693
      %2695 = vdwg.mxu0
      %2696 = vmatpush.msra.mxu0 %v1441
      %2697 = vmatpush.msra.mxu0 %v1437
      %2698 = vmatpush.msra.mxu0 %v1433
      %2699 = vmatpush.msra.mxu0 %v1429
      %2700 = vmatpush.msra.mxu0 %v1425
      %2701 = vmatpush.msra.mxu0 %v1421
      %2702 = vmatpush.msra.mxu0 %v1417
      %2703 = vmatpush.msra.mxu0 %v1413
      %2704 = vmatpush.msra.mxu0 %v1409
      %2705 = vmatpush.msra.mxu0 %v1405
      %2706 = vmatpush.msra.mxu0 %v1401
      %2707 = vmatpush.msra.mxu0 %v1397
      %2708 = vmatpush.msra.mxu0 %v1393
      %2709 = vmatpush.msra.mxu0 %v1389
      %2710 = vmatpush.msra.mxu0 %v1385
      %2711 = vmatpush.msra.mxu0 %v1381
      %2712 = vmatmul.f32.gmra.mxu0 %v1062
      %v2713 = vpop.f32.mrf.mxu0
      %v2714 = vadd.f32 %v2601, %v2713
      %2715 = vmatmul.f32.gmra.mxu0 %v1066
      %v2716 = vpop.f32.mrf.mxu0
      %v2717 = vadd.f32 %v2604, %v2716
      %2718 = vmatmul.f32.gmra.mxu0 %v1070
      %v2719 = vpop.f32.mrf.mxu0
      %v2720 = vadd.f32 %v2607, %v2719
      %2721 = vmatmul.f32.gmra.mxu0 %v1074
      %v2722 = vpop.f32.mrf.mxu0
      %v2723 = vadd.f32 %v2610, %v2722
      %2724 = vmatmul.f32.gmra.mxu0 %v1078
      %v2725 = vpop.f32.mrf.mxu0
      %v2726 = vadd.f32 %v2613, %v2725
      %2727 = vmatmul.f32.gmra.mxu0 %v1082
      %v2728 = vpop.f32.mrf.mxu0
      %v2729 = vadd.f32 %v2616, %v2728
      %2730 = vmatmul.f32.gmra.mxu0 %v1086
      %v2731 = vpop.f32.mrf.mxu0
      %v2732 = vadd.f32 %v2619, %v2731
      %2733 = vmatmul.f32.gmra.mxu0 %v1090
      %v2734 = vpop.f32.mrf.mxu0
      %v2735 = vadd.f32 %v2622, %v2734
      %2736 = vmatmul.f32.gmra.mxu0 %v1094
      %v2737 = vpop.f32.mrf.mxu0
      %v2738 = vadd.f32 %v2625, %v2737
      %2739 = vmatmul.f32.gmra.mxu0 %v1098
      %v2740 = vpop.f32.mrf.mxu0
      %v2741 = vadd.f32 %v2628, %v2740
      %2742 = vmatmul.f32.gmra.mxu0 %v1102
      %v2743 = vpop.f32.mrf.mxu0
      %v2744 = vadd.f32 %v2631, %v2743
      %2745 = vmatmul.f32.gmra.mxu0 %v1106
      %v2746 = vpop.f32.mrf.mxu0
      %v2747 = vadd.f32 %v2634, %v2746
      %2748 = vmatmul.f32.gmra.mxu0 %v1110
      %v2749 = vpop.f32.mrf.mxu0
      %v2750 = vadd.f32 %v2637, %v2749
      %2751 = vmatmul.f32.gmra.mxu0 %v1114
      %v2752 = vpop.f32.mrf.mxu0
      %v2753 = vadd.f32 %v2640, %v2752
      %2754 = vmatmul.f32.gmra.mxu0 %v1118
      %v2755 = vpop.f32.mrf.mxu0
      %v2756 = vadd.f32 %v2643, %v2755
      %2757 = vmatmul.f32.gmra.mxu0 %v1122
      %v2758 = vpop.f32.mrf.mxu0
      %v2759 = vadd.f32 %v2646, %v2758
      %2760 = vmatmul.f32.gmra.mxu0 %v1126
      %v2761 = vpop.f32.mrf.mxu0
      %v2762 = vadd.f32 %v2649, %v2761
      %2763 = vmatmul.f32.gmra.mxu0 %v1130
      %v2764 = vpop.f32.mrf.mxu0
      %v2765 = vadd.f32 %v2652, %v2764
      %2766 = vmatmul.f32.gmra.mxu0 %v1134
      %v2767 = vpop.f32.mrf.mxu0
      %v2768 = vadd.f32 %v2655, %v2767
      %2769 = vmatmul.f32.gmra.mxu0 %v1138
      %v2770 = vpop.f32.mrf.mxu0
      %v2771 = vadd.f32 %v2658, %v2770
      %2772 = vmatmul.f32.gmra.mxu0 %v1142
      %v2773 = vpop.f32.mrf.mxu0
      %v2774 = vadd.f32 %v2661, %v2773
      %2775 = vmatmul.f32.gmra.mxu0 %v1146
      %v2776 = vpop.f32.mrf.mxu0
      %v2777 = vadd.f32 %v2664, %v2776
      %2778 = vmatmul.f32.gmra.mxu0 %v1150
      %v2779 = vpop.f32.mrf.mxu0
      %v2780 = vadd.f32 %v2667, %v2779
      %2781 = vmatmul.f32.gmra.mxu0 %v1154
      %v2782 = vpop.f32.mrf.mxu0
      %v2783 = vadd.f32 %v2670, %v2782
      %2784 = vmatmul.f32.gmra.mxu0 %v1158
      %v2785 = vpop.f32.mrf.mxu0
      %v2786 = vadd.f32 %v2673, %v2785
      %2787 = vmatmul.f32.gmra.mxu0 %v1162
      %v2788 = vpop.f32.mrf.mxu0
      %v2789 = vadd.f32 %v2676, %v2788
      %2790 = vmatmul.f32.gmra.mxu0 %v1166
      %v2791 = vpop.f32.mrf.mxu0
      %v2792 = vadd.f32 %v2679, %v2791
      %2793 = vmatmul.f32.gmra.mxu0 %v1170
      %v2794 = vpop.f32.mrf.mxu0
      %v2795 = vadd.f32 %v2682, %v2794
      %2796 = vmatmul.f32.gmra.mxu0 %v1174
      %v2797 = vpop.f32.mrf.mxu0
      %v2798 = vadd.f32 %v2685, %v2797
      %2799 = vmatmul.f32.gmra.mxu0 %v1178
      %v2800 = vpop.f32.mrf.mxu0
      %v2801 = vadd.f32 %v2688, %v2800
      %2802 = vmatmul.f32.gmra.mxu0 %v1182
      %v2803 = vpop.f32.mrf.mxu0
      %v2804 = vadd.f32 %v2691, %v2803
      %2805 = vmatmul.f32.gmra.mxu0 %v1186
      %v2806 = vpop.f32.mrf.mxu0
      %v2807 = vadd.f32 %v2694, %v2806
      %2808 = vdwg.mxu0
      %2809 = vmatpush.msra.mxu0 %v1250
      %2810 = vmatpush.msra.mxu0 %v1246
      %2811 = vmatpush.msra.mxu0 %v1242
      %2812 = vmatpush.msra.mxu0 %v1238
      %2813 = vmatpush.msra.mxu0 %v1234
      %2814 = vmatpush.msra.mxu0 %v1230
      %2815 = vmatpush.msra.mxu0 %v1226
      %2816 = vmatpush.msra.mxu0 %v1222
      %2817 = vmatpush.msra.mxu0 %v1218
      %2818 = vmatpush.msra.mxu0 %v1214
      %2819 = vmatpush.msra.mxu0 %v1210
      %2820 = vmatpush.msra.mxu0 %v1206
      %2821 = vmatpush.msra.mxu0 %v1202
      %2822 = vmatpush.msra.mxu0 %v1198
      %2823 = vmatpush.msra.mxu0 %v1194
      %2824 = vmatpush.msra.mxu0 %v1190
      %2825 = vmatmul.f32.gmra.mxu0 %v1059
      %v2826 = vpop.f32.mrf.mxu0
      %v2827 = vadd.f32 %v1448, %v2826
      %2828 = vmatmul.f32.gmra.mxu0 %v1063
      %v2829 = vpop.f32.mrf.mxu0
      %v2830 = vadd.f32 %v1448, %v2829
      %2831 = vmatmul.f32.gmra.mxu0 %v1067
      %v2832 = vpop.f32.mrf.mxu0
      %v2833 = vadd.f32 %v1448, %v2832
      %2834 = vmatmul.f32.gmra.mxu0 %v1071
      %v2835 = vpop.f32.mrf.mxu0
      %v2836 = vadd.f32 %v1448, %v2835
      %2837 = vmatmul.f32.gmra.mxu0 %v1075
      %v2838 = vpop.f32.mrf.mxu0
      %v2839 = vadd.f32 %v1448, %v2838
      %2840 = vmatmul.f32.gmra.mxu0 %v1079
      %v2841 = vpop.f32.mrf.mxu0
      %v2842 = vadd.f32 %v1448, %v2841
      %2843 = vmatmul.f32.gmra.mxu0 %v1083
      %v2844 = vpop.f32.mrf.mxu0
      %v2845 = vadd.f32 %v1448, %v2844
      %2846 = vmatmul.f32.gmra.mxu0 %v1087
      %v2847 = vpop.f32.mrf.mxu0
      %v2848 = vadd.f32 %v1448, %v2847
      %2849 = vmatmul.f32.gmra.mxu0 %v1091
      %v2850 = vpop.f32.mrf.mxu0
      %v2851 = vadd.f32 %v1448, %v2850
      %2852 = vmatmul.f32.gmra.mxu0 %v1095
      %v2853 = vpop.f32.mrf.mxu0
      %v2854 = vadd.f32 %v1448, %v2853
      %2855 = vmatmul.f32.gmra.mxu0 %v1099
      %v2856 = vpop.f32.mrf.mxu0
      %v2857 = vadd.f32 %v1448, %v2856
      %2858 = vmatmul.f32.gmra.mxu0 %v1103
      %v2859 = vpop.f32.mrf.mxu0
      %v2860 = vadd.f32 %v1448, %v2859
      %2861 = vmatmul.f32.gmra.mxu0 %v1107
      %v2862 = vpop.f32.mrf.mxu0
      %v2863 = vadd.f32 %v1448, %v2862
      %2864 = vmatmul.f32.gmra.mxu0 %v1111
      %v2865 = vpop.f32.mrf.mxu0
      %v2866 = vadd.f32 %v1448, %v2865
      %2867 = vmatmul.f32.gmra.mxu0 %v1115
      %v2868 = vpop.f32.mrf.mxu0
      %v2869 = vadd.f32 %v1448, %v2868
      %2870 = vmatmul.f32.gmra.mxu0 %v1119
      %v2871 = vpop.f32.mrf.mxu0
      %v2872 = vadd.f32 %v1448, %v2871
      %2873 = vmatmul.f32.gmra.mxu0 %v1123
      %v2874 = vpop.f32.mrf.mxu0
      %v2875 = vadd.f32 %v1448, %v2874
      %2876 = vmatmul.f32.gmra.mxu0 %v1127
      %v2877 = vpop.f32.mrf.mxu0
      %v2878 = vadd.f32 %v1448, %v2877
      %2879 = vmatmul.f32.gmra.mxu0 %v1131
      %v2880 = vpop.f32.mrf.mxu0
      %v2881 = vadd.f32 %v1448, %v2880
      %2882 = vmatmul.f32.gmra.mxu0 %v1135
      %v2883 = vpop.f32.mrf.mxu0
      %v2884 = vadd.f32 %v1448, %v2883
      %2885 = vmatmul.f32.gmra.mxu0 %v1139
      %v2886 = vpop.f32.mrf.mxu0
      %v2887 = vadd.f32 %v1448, %v2886
      %2888 = vmatmul.f32.gmra.mxu0 %v1143
      %v2889 = vpop.f32.mrf.mxu0
      %v2890 = vadd.f32 %v1448, %v2889
      %2891 = vmatmul.f32.gmra.mxu0 %v1147
      %v2892 = vpop.f32.mrf.mxu0
      %v2893 = vadd.f32 %v1448, %v2892
      %2894 = vmatmul.f32.gmra.mxu0 %v1151
      %v2895 = vpop.f32.mrf.mxu0
      %v2896 = vadd.f32 %v1448, %v2895
      %2897 = vmatmul.f32.gmra.mxu0 %v1155
      %v2898 = vpop.f32.mrf.mxu0
      %v2899 = vadd.f32 %v1448, %v2898
      %2900 = vmatmul.f32.gmra.mxu0 %v1159
      %v2901 = vpop.f32.mrf.mxu0
      %v2902 = vadd.f32 %v1448, %v2901
      %2903 = vmatmul.f32.gmra.mxu0 %v1163
      %v2904 = vpop.f32.mrf.mxu0
      %v2905 = vadd.f32 %v1448, %v2904
      %2906 = vmatmul.f32.gmra.mxu0 %v1167
      %v2907 = vpop.f32.mrf.mxu0
      %v2908 = vadd.f32 %v1448, %v2907
      %2909 = vmatmul.f32.gmra.mxu0 %v1171
      %v2910 = vpop.f32.mrf.mxu0
      %v2911 = vadd.f32 %v1448, %v2910
      %2912 = vmatmul.f32.gmra.mxu0 %v1175
      %v2913 = vpop.f32.mrf.mxu0
      %v2914 = vadd.f32 %v1448, %v2913
      %2915 = vmatmul.f32.gmra.mxu0 %v1179
      %v2916 = vpop.f32.mrf.mxu0
      %v2917 = vadd.f32 %v1448, %v2916
      %2918 = vmatmul.f32.gmra.mxu0 %v1183
      %v2919 = vpop.f32.mrf.mxu0
      %v2920 = vadd.f32 %v1448, %v2919
      %2921 = vdwg.mxu0
      %2922 = vmatpush.msra.mxu0 %v1314
      %2923 = vmatpush.msra.mxu0 %v1310
      %2924 = vmatpush.msra.mxu0 %v1306
      %2925 = vmatpush.msra.mxu0 %v1302
      %2926 = vmatpush.msra.mxu0 %v1298
      %2927 = vmatpush.msra.mxu0 %v1294
      %2928 = vmatpush.msra.mxu0 %v1290
      %2929 = vmatpush.msra.mxu0 %v1286
      %2930 = vmatpush.msra.mxu0 %v1282
      %2931 = vmatpush.msra.mxu0 %v1278
      %2932 = vmatpush.msra.mxu0 %v1274
      %2933 = vmatpush.msra.mxu0 %v1270
      %2934 = vmatpush.msra.mxu0 %v1266
      %2935 = vmatpush.msra.mxu0 %v1262
      %2936 = vmatpush.msra.mxu0 %v1258
      %2937 = vmatpush.msra.mxu0 %v1254
      %2938 = vmatmul.f32.gmra.mxu0 %v1060
      %v2939 = vpop.f32.mrf.mxu0
      %v2940 = vadd.f32 %v2827, %v2939
      %2941 = vmatmul.f32.gmra.mxu0 %v1064
      %v2942 = vpop.f32.mrf.mxu0
      %v2943 = vadd.f32 %v2830, %v2942
      %2944 = vmatmul.f32.gmra.mxu0 %v1068
      %v2945 = vpop.f32.mrf.mxu0
      %v2946 = vadd.f32 %v2833, %v2945
      %2947 = vmatmul.f32.gmra.mxu0 %v1072
      %v2948 = vpop.f32.mrf.mxu0
      %v2949 = vadd.f32 %v2836, %v2948
      %2950 = vmatmul.f32.gmra.mxu0 %v1076
      %v2951 = vpop.f32.mrf.mxu0
      %v2952 = vadd.f32 %v2839, %v2951
      %2953 = vmatmul.f32.gmra.mxu0 %v1080
      %v2954 = vpop.f32.mrf.mxu0
      %v2955 = vadd.f32 %v2842, %v2954
      %2956 = vmatmul.f32.gmra.mxu0 %v1084
      %v2957 = vpop.f32.mrf.mxu0
      %v2958 = vadd.f32 %v2845, %v2957
      %2959 = vmatmul.f32.gmra.mxu0 %v1088
      %v2960 = vpop.f32.mrf.mxu0
      %v2961 = vadd.f32 %v2848, %v2960
      %2962 = vmatmul.f32.gmra.mxu0 %v1092
      %v2963 = vpop.f32.mrf.mxu0
      %v2964 = vadd.f32 %v2851, %v2963
      %2965 = vmatmul.f32.gmra.mxu0 %v1096
      %v2966 = vpop.f32.mrf.mxu0
      %v2967 = vadd.f32 %v2854, %v2966
      %2968 = vmatmul.f32.gmra.mxu0 %v1100
      %v2969 = vpop.f32.mrf.mxu0
      %v2970 = vadd.f32 %v2857, %v2969
      %2971 = vmatmul.f32.gmra.mxu0 %v1104
      %v2972 = vpop.f32.mrf.mxu0
      %v2973 = vadd.f32 %v2860, %v2972
      %2974 = vmatmul.f32.gmra.mxu0 %v1108
      %v2975 = vpop.f32.mrf.mxu0
      %v2976 = vadd.f32 %v2863, %v2975
      %2977 = vmatmul.f32.gmra.mxu0 %v1112
      %v2978 = vpop.f32.mrf.mxu0
      %v2979 = vadd.f32 %v2866, %v2978
      %2980 = vmatmul.f32.gmra.mxu0 %v1116
      %v2981 = vpop.f32.mrf.mxu0
      %v2982 = vadd.f32 %v2869, %v2981
      %2983 = vmatmul.f32.gmra.mxu0 %v1120
      %v2984 = vpop.f32.mrf.mxu0
      %v2985 = vadd.f32 %v2872, %v2984
      %2986 = vmatmul.f32.gmra.mxu0 %v1124
      %v2987 = vpop.f32.mrf.mxu0
      %v2988 = vadd.f32 %v2875, %v2987
      %2989 = vmatmul.f32.gmra.mxu0 %v1128
      %v2990 = vpop.f32.mrf.mxu0
      %v2991 = vadd.f32 %v2878, %v2990
      %2992 = vmatmul.f32.gmra.mxu0 %v1132
      %v2993 = vpop.f32.mrf.mxu0
      %v2994 = vadd.f32 %v2881, %v2993
      %2995 = vmatmul.f32.gmra.mxu0 %v1136
      %v2996 = vpop.f32.mrf.mxu0
      %v2997 = vadd.f32 %v2884, %v2996
      %2998 = vmatmul.f32.gmra.mxu0 %v1140
      %v2999 = vpop.f32.mrf.mxu0
      %v3000 = vadd.f32 %v2887, %v2999
      %3001 = vmatmul.f32.gmra.mxu0 %v1144
      %v3002 = vpop.f32.mrf.mxu0
      %v3003 = vadd.f32 %v2890, %v3002
      %3004 = vmatmul.f32.gmra.mxu0 %v1148
      %v3005 = vpop.f32.mrf.mxu0
      %v3006 = vadd.f32 %v2893, %v3005
      %3007 = vmatmul.f32.gmra.mxu0 %v1152
      %v3008 = vpop.f32.mrf.mxu0
      %v3009 = vadd.f32 %v2896, %v3008
      %3010 = vmatmul.f32.gmra.mxu0 %v1156
      %v3011 = vpop.f32.mrf.mxu0
      %v3012 = vadd.f32 %v2899, %v3011
      %3013 = vmatmul.f32.gmra.mxu0 %v1160
      %v3014 = vpop.f32.mrf.mxu0
      %v3015 = vadd.f32 %v2902, %v3014
      %3016 = vmatmul.f32.gmra.mxu0 %v1164
      %v3017 = vpop.f32.mrf.mxu0
      %v3018 = vadd.f32 %v2905, %v3017
      %3019 = vmatmul.f32.gmra.mxu0 %v1168
      %v3020 = vpop.f32.mrf.mxu0
      %v3021 = vadd.f32 %v2908, %v3020
      %3022 = vmatmul.f32.gmra.mxu0 %v1172
      %v3023 = vpop.f32.mrf.mxu0
      %v3024 = vadd.f32 %v2911, %v3023
      %3025 = vmatmul.f32.gmra.mxu0 %v1176
      %v3026 = vpop.f32.mrf.mxu0
      %v3027 = vadd.f32 %v2914, %v3026
      %3028 = vmatmul.f32.gmra.mxu0 %v1180
      %v3029 = vpop.f32.mrf.mxu0
      %v3030 = vadd.f32 %v2917, %v3029
      %3031 = vmatmul.f32.gmra.mxu0 %v1184
      %v3032 = vpop.f32.mrf.mxu0
      %v3033 = vadd.f32 %v2920, %v3032
      %3034 = vdwg.mxu0
      %3035 = vmatpush.msra.mxu0 %v1378
      %3036 = vmatpush.msra.mxu0 %v1374
      %3037 = vmatpush.msra.mxu0 %v1370
      %3038 = vmatpush.msra.mxu0 %v1366
      %3039 = vmatpush.msra.mxu0 %v1362
      %3040 = vmatpush.msra.mxu0 %v1358
      %3041 = vmatpush.msra.mxu0 %v1354
      %3042 = vmatpush.msra.mxu0 %v1350
      %3043 = vmatpush.msra.mxu0 %v1346
      %3044 = vmatpush.msra.mxu0 %v1342
      %3045 = vmatpush.msra.mxu0 %v1338
      %3046 = vmatpush.msra.mxu0 %v1334
      %3047 = vmatpush.msra.mxu0 %v1330
      %3048 = vmatpush.msra.mxu0 %v1326
      %3049 = vmatpush.msra.mxu0 %v1322
      %3050 = vmatpush.msra.mxu0 %v1318
      %3051 = vmatmul.f32.gmra.mxu0 %v1061
      %v3052 = vpop.f32.mrf.mxu0
      %v3053 = vadd.f32 %v2940, %v3052
      %3054 = vmatmul.f32.gmra.mxu0 %v1065
      %v3055 = vpop.f32.mrf.mxu0
      %v3056 = vadd.f32 %v2943, %v3055
      %3057 = vmatmul.f32.gmra.mxu0 %v1069
      %v3058 = vpop.f32.mrf.mxu0
      %v3059 = vadd.f32 %v2946, %v3058
      %3060 = vmatmul.f32.gmra.mxu0 %v1073
      %v3061 = vpop.f32.mrf.mxu0
      %v3062 = vadd.f32 %v2949, %v3061
      %3063 = vmatmul.f32.gmra.mxu0 %v1077
      %v3064 = vpop.f32.mrf.mxu0
      %v3065 = vadd.f32 %v2952, %v3064
      %3066 = vmatmul.f32.gmra.mxu0 %v1081
      %v3067 = vpop.f32.mrf.mxu0
      %v3068 = vadd.f32 %v2955, %v3067
      %3069 = vmatmul.f32.gmra.mxu0 %v1085
      %v3070 = vpop.f32.mrf.mxu0
      %v3071 = vadd.f32 %v2958, %v3070
      %3072 = vmatmul.f32.gmra.mxu0 %v1089
      %v3073 = vpop.f32.mrf.mxu0
      %v3074 = vadd.f32 %v2961, %v3073
      %3075 = vmatmul.f32.gmra.mxu0 %v1093
      %v3076 = vpop.f32.mrf.mxu0
      %v3077 = vadd.f32 %v2964, %v3076
      %3078 = vmatmul.f32.gmra.mxu0 %v1097
      %v3079 = vpop.f32.mrf.mxu0
      %v3080 = vadd.f32 %v2967, %v3079
      %3081 = vmatmul.f32.gmra.mxu0 %v1101
      %v3082 = vpop.f32.mrf.mxu0
      %v3083 = vadd.f32 %v2970, %v3082
      %3084 = vmatmul.f32.gmra.mxu0 %v1105
      %v3085 = vpop.f32.mrf.mxu0
      %v3086 = vadd.f32 %v2973, %v3085
      %3087 = vmatmul.f32.gmra.mxu0 %v1109
      %v3088 = vpop.f32.mrf.mxu0
      %v3089 = vadd.f32 %v2976, %v3088
      %3090 = vmatmul.f32.gmra.mxu0 %v1113
      %v3091 = vpop.f32.mrf.mxu0
      %v3092 = vadd.f32 %v2979, %v3091
      %3093 = vmatmul.f32.gmra.mxu0 %v1117
      %v3094 = vpop.f32.mrf.mxu0
      %v3095 = vadd.f32 %v2982, %v3094
      %3096 = vmatmul.f32.gmra.mxu0 %v1121
      %v3097 = vpop.f32.mrf.mxu0
      %v3098 = vadd.f32 %v2985, %v3097
      %3099 = vmatmul.f32.gmra.mxu0 %v1125
      %v3100 = vpop.f32.mrf.mxu0
      %v3101 = vadd.f32 %v2988, %v3100
      %3102 = vmatmul.f32.gmra.mxu0 %v1129
      %v3103 = vpop.f32.mrf.mxu0
      %v3104 = vadd.f32 %v2991, %v3103
      %3105 = vmatmul.f32.gmra.mxu0 %v1133
      %v3106 = vpop.f32.mrf.mxu0
      %v3107 = vadd.f32 %v2994, %v3106
      %3108 = vmatmul.f32.gmra.mxu0 %v1137
      %v3109 = vpop.f32.mrf.mxu0
      %v3110 = vadd.f32 %v2997, %v3109
      %3111 = vmatmul.f32.gmra.mxu0 %v1141
      %v3112 = vpop.f32.mrf.mxu0
      %v3113 = vadd.f32 %v3000, %v3112
      %3114 = vmatmul.f32.gmra.mxu0 %v1145
      %v3115 = vpop.f32.mrf.mxu0
      %v3116 = vadd.f32 %v3003, %v3115
      %3117 = vmatmul.f32.gmra.mxu0 %v1149
      %v3118 = vpop.f32.mrf.mxu0
      %v3119 = vadd.f32 %v3006, %v3118
      %3120 = vmatmul.f32.gmra.mxu0 %v1153
      %v3121 = vpop.f32.mrf.mxu0
      %v3122 = vadd.f32 %v3009, %v3121
      %3123 = vmatmul.f32.gmra.mxu0 %v1157
      %v3124 = vpop.f32.mrf.mxu0
      %v3125 = vadd.f32 %v3012, %v3124
      %3126 = vmatmul.f32.gmra.mxu0 %v1161
      %v3127 = vpop.f32.mrf.mxu0
      %v3128 = vadd.f32 %v3015, %v3127
      %3129 = vmatmul.f32.gmra.mxu0 %v1165
      %v3130 = vpop.f32.mrf.mxu0
      %v3131 = vadd.f32 %v3018, %v3130
      %3132 = vmatmul.f32.gmra.mxu0 %v1169
      %v3133 = vpop.f32.mrf.mxu0
      %v3134 = vadd.f32 %v3021, %v3133
      %3135 = vmatmul.f32.gmra.mxu0 %v1173
      %v3136 = vpop.f32.mrf.mxu0
      %v3137 = vadd.f32 %v3024, %v3136
      %3138 = vmatmul.f32.gmra.mxu0 %v1177
      %v3139 = vpop.f32.mrf.mxu0
      %v3140 = vadd.f32 %v3027, %v3139
      %3141 = vmatmul.f32.gmra.mxu0 %v1181
      %v3142 = vpop.f32.mrf.mxu0
      %v3143 = vadd.f32 %v3030, %v3142
      %3144 = vmatmul.f32.gmra.mxu0 %v1185
      %v3145 = vpop.f32.mrf.mxu0
      %v3146 = vadd.f32 %v3033, %v3145
      %3147 = vdwg.mxu0
      %3148 = vmatpush.msra.mxu0 %v1442
      %3149 = vmatpush.msra.mxu0 %v1438
      %3150 = vmatpush.msra.mxu0 %v1434
      %3151 = vmatpush.msra.mxu0 %v1430
      %3152 = vmatpush.msra.mxu0 %v1426
      %3153 = vmatpush.msra.mxu0 %v1422
      %3154 = vmatpush.msra.mxu0 %v1418
      %3155 = vmatpush.msra.mxu0 %v1414
      %3156 = vmatpush.msra.mxu0 %v1410
      %3157 = vmatpush.msra.mxu0 %v1406
      %3158 = vmatpush.msra.mxu0 %v1402
      %3159 = vmatpush.msra.mxu0 %v1398
      %3160 = vmatpush.msra.mxu0 %v1394
      %3161 = vmatpush.msra.mxu0 %v1390
      %3162 = vmatpush.msra.mxu0 %v1386
      %3163 = vmatpush.msra.mxu0 %v1382
      %3164 = vmatmul.f32.gmra.mxu0 %v1062
      %v3165 = vpop.f32.mrf.mxu0
      %v3166 = vadd.f32 %v3053, %v3165
      %3167 = vmatmul.f32.gmra.mxu0 %v1066
      %v3168 = vpop.f32.mrf.mxu0
      %v3169 = vadd.f32 %v3056, %v3168
      %3170 = vmatmul.f32.gmra.mxu0 %v1070
      %v3171 = vpop.f32.mrf.mxu0
      %v3172 = vadd.f32 %v3059, %v3171
      %3173 = vmatmul.f32.gmra.mxu0 %v1074
      %v3174 = vpop.f32.mrf.mxu0
      %v3175 = vadd.f32 %v3062, %v3174
      %3176 = vmatmul.f32.gmra.mxu0 %v1078
      %v3177 = vpop.f32.mrf.mxu0
      %v3178 = vadd.f32 %v3065, %v3177
      %3179 = vmatmul.f32.gmra.mxu0 %v1082
      %v3180 = vpop.f32.mrf.mxu0
      %v3181 = vadd.f32 %v3068, %v3180
      %3182 = vmatmul.f32.gmra.mxu0 %v1086
      %v3183 = vpop.f32.mrf.mxu0
      %v3184 = vadd.f32 %v3071, %v3183
      %3185 = vmatmul.f32.gmra.mxu0 %v1090
      %v3186 = vpop.f32.mrf.mxu0
      %v3187 = vadd.f32 %v3074, %v3186
      %3188 = vmatmul.f32.gmra.mxu0 %v1094
      %v3189 = vpop.f32.mrf.mxu0
      %v3190 = vadd.f32 %v3077, %v3189
      %3191 = vmatmul.f32.gmra.mxu0 %v1098
      %v3192 = vpop.f32.mrf.mxu0
      %v3193 = vadd.f32 %v3080, %v3192
      %3194 = vmatmul.f32.gmra.mxu0 %v1102
      %v3195 = vpop.f32.mrf.mxu0
      %v3196 = vadd.f32 %v3083, %v3195
      %3197 = vmatmul.f32.gmra.mxu0 %v1106
      %v3198 = vpop.f32.mrf.mxu0
      %v3199 = vadd.f32 %v3086, %v3198
      %3200 = vmatmul.f32.gmra.mxu0 %v1110
      %v3201 = vpop.f32.mrf.mxu0
      %v3202 = vadd.f32 %v3089, %v3201
      %3203 = vmatmul.f32.gmra.mxu0 %v1114
      %v3204 = vpop.f32.mrf.mxu0
      %v3205 = vadd.f32 %v3092, %v3204
      %3206 = vmatmul.f32.gmra.mxu0 %v1118
      %v3207 = vpop.f32.mrf.mxu0
      %v3208 = vadd.f32 %v3095, %v3207
      %3209 = vmatmul.f32.gmra.mxu0 %v1122
      %v3210 = vpop.f32.mrf.mxu0
      %v3211 = vadd.f32 %v3098, %v3210
      %3212 = vmatmul.f32.gmra.mxu0 %v1126
      %v3213 = vpop.f32.mrf.mxu0
      %v3214 = vadd.f32 %v3101, %v3213
      %3215 = vmatmul.f32.gmra.mxu0 %v1130
      %v3216 = vpop.f32.mrf.mxu0
      %v3217 = vadd.f32 %v3104, %v3216
      %3218 = vmatmul.f32.gmra.mxu0 %v1134
      %v3219 = vpop.f32.mrf.mxu0
      %v3220 = vadd.f32 %v3107, %v3219
      %3221 = vmatmul.f32.gmra.mxu0 %v1138
      %v3222 = vpop.f32.mrf.mxu0
      %v3223 = vadd.f32 %v3110, %v3222
      %3224 = vmatmul.f32.gmra.mxu0 %v1142
      %v3225 = vpop.f32.mrf.mxu0
      %v3226 = vadd.f32 %v3113, %v3225
      %3227 = vmatmul.f32.gmra.mxu0 %v1146
      %v3228 = vpop.f32.mrf.mxu0
      %v3229 = vadd.f32 %v3116, %v3228
      %3230 = vmatmul.f32.gmra.mxu0 %v1150
      %v3231 = vpop.f32.mrf.mxu0
      %v3232 = vadd.f32 %v3119, %v3231
      %3233 = vmatmul.f32.gmra.mxu0 %v1154
      %v3234 = vpop.f32.mrf.mxu0
      %v3235 = vadd.f32 %v3122, %v3234
      %3236 = vmatmul.f32.gmra.mxu0 %v1158
      %v3237 = vpop.f32.mrf.mxu0
      %v3238 = vadd.f32 %v3125, %v3237
      %3239 = vmatmul.f32.gmra.mxu0 %v1162
      %v3240 = vpop.f32.mrf.mxu0
      %v3241 = vadd.f32 %v3128, %v3240
      %3242 = vmatmul.f32.gmra.mxu0 %v1166
      %v3243 = vpop.f32.mrf.mxu0
      %v3244 = vadd.f32 %v3131, %v3243
      %3245 = vmatmul.f32.gmra.mxu0 %v1170
      %v3246 = vpop.f32.mrf.mxu0
      %v3247 = vadd.f32 %v3134, %v3246
      %3248 = vmatmul.f32.gmra.mxu0 %v1174
      %v3249 = vpop.f32.mrf.mxu0
      %v3250 = vadd.f32 %v3137, %v3249
      %3251 = vmatmul.f32.gmra.mxu0 %v1178
      %v3252 = vpop.f32.mrf.mxu0
      %v3253 = vadd.f32 %v3140, %v3252
      %3254 = vmatmul.f32.gmra.mxu0 %v1182
      %v3255 = vpop.f32.mrf.mxu0
      %v3256 = vadd.f32 %v3143, %v3255
      %3257 = vmatmul.f32.gmra.mxu0 %v1186
      %v3258 = vpop.f32.mrf.mxu0
      %v3259 = vadd.f32 %v3146, %v3258
      %3260 = vdwg.mxu0
      %v3261 = vmax.f32 %v1810, 0.0
      %v3262 = vmax.f32 %v2262, 0.0
      %v3263 = vmax.f32 %v2714, 0.0
      %v3264 = vmax.f32 %v3166, 0.0
      %v3265 = vmax.f32 %v1813, 0.0
      %v3266 = vmax.f32 %v2265, 0.0
      %v3267 = vmax.f32 %v2717, 0.0
      %v3268 = vmax.f32 %v3169, 0.0
      %v3269 = vmax.f32 %v1816, 0.0
      %v3270 = vmax.f32 %v2268, 0.0
      %v3271 = vmax.f32 %v2720, 0.0
      %v3272 = vmax.f32 %v3172, 0.0
      %v3273 = vmax.f32 %v1819, 0.0
      %v3274 = vmax.f32 %v2271, 0.0
      %v3275 = vmax.f32 %v2723, 0.0
      %v3276 = vmax.f32 %v3175, 0.0
      %v3277 = vmax.f32 %v1822, 0.0
      %v3278 = vmax.f32 %v2274, 0.0
      %v3279 = vmax.f32 %v2726, 0.0
      %v3280 = vmax.f32 %v3178, 0.0
      %v3281 = vmax.f32 %v1825, 0.0
      %v3282 = vmax.f32 %v2277, 0.0
      %v3283 = vmax.f32 %v2729, 0.0
      %v3284 = vmax.f32 %v3181, 0.0
      %v3285 = vmax.f32 %v1828, 0.0
      %v3286 = vmax.f32 %v2280, 0.0
      %v3287 = vmax.f32 %v2732, 0.0
      %v3288 = vmax.f32 %v3184, 0.0
      %v3289 = vmax.f32 %v1831, 0.0
      %v3290 = vmax.f32 %v2283, 0.0
      %v3291 = vmax.f32 %v2735, 0.0
      %v3292 = vmax.f32 %v3187, 0.0
      %v3293 = vmax.f32 %v1834, 0.0
      %v3294 = vmax.f32 %v2286, 0.0
      %v3295 = vmax.f32 %v2738, 0.0
      %v3296 = vmax.f32 %v3190, 0.0
      %v3297 = vmax.f32 %v1837, 0.0
      %v3298 = vmax.f32 %v2289, 0.0
      %v3299 = vmax.f32 %v2741, 0.0
      %v3300 = vmax.f32 %v3193, 0.0
      %v3301 = vmax.f32 %v1840, 0.0
      %v3302 = vmax.f32 %v2292, 0.0
      %v3303 = vmax.f32 %v2744, 0.0
      %v3304 = vmax.f32 %v3196, 0.0
      %v3305 = vmax.f32 %v1843, 0.0
      %v3306 = vmax.f32 %v2295, 0.0
      %v3307 = vmax.f32 %v2747, 0.0
      %v3308 = vmax.f32 %v3199, 0.0
      %v3309 = vmax.f32 %v1846, 0.0
      %v3310 = vmax.f32 %v2298, 0.0
      %v3311 = vmax.f32 %v2750, 0.0
      %v3312 = vmax.f32 %v3202, 0.0
      %v3313 = vmax.f32 %v1849, 0.0
      %v3314 = vmax.f32 %v2301, 0.0
      %v3315 = vmax.f32 %v2753, 0.0
      %v3316 = vmax.f32 %v3205, 0.0
      %v3317 = vmax.f32 %v1852, 0.0
      %v3318 = vmax.f32 %v2304, 0.0
      %v3319 = vmax.f32 %v2756, 0.0
      %v3320 = vmax.f32 %v3208, 0.0
      %v3321 = vmax.f32 %v1855, 0.0
      %v3322 = vmax.f32 %v2307, 0.0
      %v3323 = vmax.f32 %v2759, 0.0
      %v3324 = vmax.f32 %v3211, 0.0
      %v3325 = vmax.f32 %v1858, 0.0
      %v3326 = vmax.f32 %v2310, 0.0
      %v3327 = vmax.f32 %v2762, 0.0
      %v3328 = vmax.f32 %v3214, 0.0
      %v3329 = vmax.f32 %v1861, 0.0
      %v3330 = vmax.f32 %v2313, 0.0
      %v3331 = vmax.f32 %v2765, 0.0
      %v3332 = vmax.f32 %v3217, 0.0
      %v3333 = vmax.f32 %v1864, 0.0
      %v3334 = vmax.f32 %v2316, 0.0
      %v3335 = vmax.f32 %v2768, 0.0
      %v3336 = vmax.f32 %v3220, 0.0
      %v3337 = vmax.f32 %v1867, 0.0
      %v3338 = vmax.f32 %v2319, 0.0
      %v3339 = vmax.f32 %v2771, 0.0
      %v3340 = vmax.f32 %v3223, 0.0
      %v3341 = vmax.f32 %v1870, 0.0
      %v3342 = vmax.f32 %v2322, 0.0
      %v3343 = vmax.f32 %v2774, 0.0
      %v3344 = vmax.f32 %v3226, 0.0
      %v3345 = vmax.f32 %v1873, 0.0
      %v3346 = vmax.f32 %v2325, 0.0
      %v3347 = vmax.f32 %v2777, 0.0
      %v3348 = vmax.f32 %v3229, 0.0
      %v3349 = vmax.f32 %v1876, 0.0
      %v3350 = vmax.f32 %v2328, 0.0
      %v3351 = vmax.f32 %v2780, 0.0
      %v3352 = vmax.f32 %v3232, 0.0
      %v3353 = vmax.f32 %v1879, 0.0
      %v3354 = vmax.f32 %v2331, 0.0
      %v3355 = vmax.f32 %v2783, 0.0
      %v3356 = vmax.f32 %v3235, 0.0
      %v3357 = vmax.f32 %v1882, 0.0
      %v3358 = vmax.f32 %v2334, 0.0
      %v3359 = vmax.f32 %v2786, 0.0
      %v3360 = vmax.f32 %v3238, 0.0
      %v3361 = vmax.f32 %v1885, 0.0
      %v3362 = vmax.f32 %v2337, 0.0
      %v3363 = vmax.f32 %v2789, 0.0
      %v3364 = vmax.f32 %v3241, 0.0
      %v3365 = vmax.f32 %v1888, 0.0
      %v3366 = vmax.f32 %v2340, 0.0
      %v3367 = vmax.f32 %v2792, 0.0
      %v3368 = vmax.f32 %v3244, 0.0
      %v3369 = vmax.f32 %v1891, 0.0
      %v3370 = vmax.f32 %v2343, 0.0
      %v3371 = vmax.f32 %v2795, 0.0
      %v3372 = vmax.f32 %v3247, 0.0
      %v3373 = vmax.f32 %v1894, 0.0
      %v3374 = vmax.f32 %v2346, 0.0
      %v3375 = vmax.f32 %v2798, 0.0
      %v3376 = vmax.f32 %v3250, 0.0
      %v3377 = vmax.f32 %v1897, 0.0
      %v3378 = vmax.f32 %v2349, 0.0
      %v3379 = vmax.f32 %v2801, 0.0
      %v3380 = vmax.f32 %v3253, 0.0
      %v3381 = vmax.f32 %v1900, 0.0
      %v3382 = vmax.f32 %v2352, 0.0
      %v3383 = vmax.f32 %v2804, 0.0
      %v3384 = vmax.f32 %v3256, 0.0
      %v3385 = vmax.f32 %v1903, 0.0
      %v3386 = vmax.f32 %v2355, 0.0
      %v3387 = vmax.f32 %v2807, 0.0
      %v3388 = vmax.f32 %v3259, 0.0
      %v3389 = vld [vmem:[%s6] sm:$0xff]
      %v3390 = vld [vmem:[%s6 + $0x8] sm:$0xff]
      %v3391 = vld [vmem:[%s6 + $0x10] sm:$0xff]
      %v3392 = vld [vmem:[%s6 + $0x18] sm:$0xff]
      %v3393 = vld [vmem:[%s6 + $0x20] sm:$0xff]
      %v3394 = vld [vmem:[%s6 + $0x28] sm:$0xff]
      %v3395 = vld [vmem:[%s6 + $0x30] sm:$0xff]
      %v3396 = vld [vmem:[%s6 + $0x38] sm:$0xff]
      %v3397 = vld [vmem:[%s6 + $0x40] sm:$0xff]
      %v3398 = vld [vmem:[%s6 + $0x48] sm:$0xff]
      %v3399 = vld [vmem:[%s6 + $0x50] sm:$0xff]
      %v3400 = vld [vmem:[%s6 + $0x58] sm:$0xff]
      %v3401 = vld [vmem:[%s6 + $0x60] sm:$0xff]
      %v3402 = vld [vmem:[%s6 + $0x68] sm:$0xff]
      %v3403 = vld [vmem:[%s6 + $0x70] sm:$0xff]
      %v3404 = vld [vmem:[%s6 + $0x78] sm:$0xff]
      %v3405 = vld [vmem:[%s6 + $0x80] sm:$0xff]
      %v3406 = vld [vmem:[%s6 + $0x88] sm:$0xff]
      %v3407 = vld [vmem:[%s6 + $0x90] sm:$0xff]
      %v3408 = vld [vmem:[%s6 + $0x98] sm:$0xff]
      %v3409 = vld [vmem:[%s6 + $0xa0] sm:$0xff]
      %v3410 = vld [vmem:[%s6 + $0xa8] sm:$0xff]
      %v3411 = vld [vmem:[%s6 + $0xb0] sm:$0xff]
      %v3412 = vld [vmem:[%s6 + $0xb8] sm:$0xff]
      %v3413 = vld [vmem:[%s6 + $0xc0] sm:$0xff]
      %v3414 = vld [vmem:[%s6 + $0xc8] sm:$0xff]
      %v3415 = vld [vmem:[%s6 + $0xd0] sm:$0xff]
      %v3416 = vld [vmem:[%s6 + $0xd8] sm:$0xff]
      %v3417 = vld [vmem:[%s6 + $0xe0] sm:$0xff]
      %v3418 = vld [vmem:[%s6 + $0xe8] sm:$0xff]
      %v3419 = vld [vmem:[%s6 + $0xf0] sm:$0xff]
      %v3420 = vld [vmem:[%s6 + $0xf8] sm:$0xff]
      %v3421 = vld [vmem:[%s6 + $0x100] sm:$0xff]
      %v3422 = vld [vmem:[%s6 + $0x108] sm:$0xff]
      %v3423 = vld [vmem:[%s6 + $0x110] sm:$0xff]
      %v3424 = vld [vmem:[%s6 + $0x118] sm:$0xff]
      %v3425 = vld [vmem:[%s6 + $0x120] sm:$0xff]
      %v3426 = vld [vmem:[%s6 + $0x128] sm:$0xff]
      %v3427 = vld [vmem:[%s6 + $0x130] sm:$0xff]
      %v3428 = vld [vmem:[%s6 + $0x138] sm:$0xff]
      %v3429 = vld [vmem:[%s6 + $0x140] sm:$0xff]
      %v3430 = vld [vmem:[%s6 + $0x148] sm:$0xff]
      %v3431 = vld [vmem:[%s6 + $0x150] sm:$0xff]
      %v3432 = vld [vmem:[%s6 + $0x158] sm:$0xff]
      %v3433 = vld [vmem:[%s6 + $0x160] sm:$0xff]
      %v3434 = vld [vmem:[%s6 + $0x168] sm:$0xff]
      %v3435 = vld [vmem:[%s6 + $0x170] sm:$0xff]
      %v3436 = vld [vmem:[%s6 + $0x178] sm:$0xff]
      %v3437 = vld [vmem:[%s6 + $0x180] sm:$0xff]
      %v3438 = vld [vmem:[%s6 + $0x188] sm:$0xff]
      %v3439 = vld [vmem:[%s6 + $0x190] sm:$0xff]
      %v3440 = vld [vmem:[%s6 + $0x198] sm:$0xff]
      %v3441 = vld [vmem:[%s6 + $0x1a0] sm:$0xff]
      %v3442 = vld [vmem:[%s6 + $0x1a8] sm:$0xff]
      %v3443 = vld [vmem:[%s6 + $0x1b0] sm:$0xff]
      %v3444 = vld [vmem:[%s6 + $0x1b8] sm:$0xff]
      %v3445 = vld [vmem:[%s6 + $0x1c0] sm:$0xff]
      %v3446 = vld [vmem:[%s6 + $0x1c8] sm:$0xff]
      %v3447 = vld [vmem:[%s6 + $0x1d0] sm:$0xff]
      %v3448 = vld [vmem:[%s6 + $0x1d8] sm:$0xff]
      %v3449 = vld [vmem:[%s6 + $0x1e0] sm:$0xff]
      %v3450 = vld [vmem:[%s6 + $0x1e8] sm:$0xff]
      %v3451 = vld [vmem:[%s6 + $0x1f0] sm:$0xff]
      %v3452 = vld [vmem:[%s6 + $0x1f8] sm:$0xff]
      %v3453 = vld [vmem:[%s7] sm:$0x1]
      %v3455 = vperm.slane %v3453, 0
      %3457 = vmatpush.msra.mxu0 %v3404
      %3458 = vmatpush.msra.mxu0 %v3403
      %3459 = vmatpush.msra.mxu0 %v3402
      %3460 = vmatpush.msra.mxu0 %v3401
      %3461 = vmatpush.msra.mxu0 %v3400
      %3462 = vmatpush.msra.mxu0 %v3399
      %3463 = vmatpush.msra.mxu0 %v3398
      %3464 = vmatpush.msra.mxu0 %v3397
      %3465 = vmatpush.msra.mxu0 %v3396
      %3466 = vmatpush.msra.mxu0 %v3395
      %3467 = vmatpush.msra.mxu0 %v3394
      %3468 = vmatpush.msra.mxu0 %v3393
      %3469 = vmatpush.msra.mxu0 %v3392
      %3470 = vmatpush.msra.mxu0 %v3391
      %3471 = vmatpush.msra.mxu0 %v3390
      %3472 = vmatpush.msra.mxu0 %v3389
      %3473 = vmatmul.f32.gmra.mxu0 %v3261
      %v3474 = vpop.f32.mrf.mxu0
      %v3475 = vadd.f32 %v3455, %v3474
      %3476 = vmatmul.f32.gmra.mxu0 %v3265
      %v3477 = vpop.f32.mrf.mxu0
      %v3478 = vadd.f32 %v3455, %v3477
      %3479 = vmatmul.f32.gmra.mxu0 %v3269
      %v3480 = vpop.f32.mrf.mxu0
      %v3481 = vadd.f32 %v3455, %v3480
      %3482 = vmatmul.f32.gmra.mxu0 %v3273
      %v3483 = vpop.f32.mrf.mxu0
      %v3484 = vadd.f32 %v3455, %v3483
      %3485 = vmatmul.f32.gmra.mxu0 %v3277
      %v3486 = vpop.f32.mrf.mxu0
      %v3487 = vadd.f32 %v3455, %v3486
      %3488 = vmatmul.f32.gmra.mxu0 %v3281
      %v3489 = vpop.f32.mrf.mxu0
      %v3490 = vadd.f32 %v3455, %v3489
      %3491 = vmatmul.f32.gmra.mxu0 %v3285
      %v3492 = vpop.f32.mrf.mxu0
      %v3493 = vadd.f32 %v3455, %v3492
      %3494 = vmatmul.f32.gmra.mxu0 %v3289
      %v3495 = vpop.f32.mrf.mxu0
      %v3496 = vadd.f32 %v3455, %v3495
      %3497 = vmatmul.f32.gmra.mxu0 %v3293
      %v3498 = vpop.f32.mrf.mxu0
      %v3499 = vadd.f32 %v3455, %v3498
      %3500 = vmatmul.f32.gmra.mxu0 %v3297
      %v3501 = vpop.f32.mrf.mxu0
      %v3502 = vadd.f32 %v3455, %v3501
      %3503 = vmatmul.f32.gmra.mxu0 %v3301
      %v3504 = vpop.f32.mrf.mxu0
      %v3505 = vadd.f32 %v3455, %v3504
      %3506 = vmatmul.f32.gmra.mxu0 %v3305
      %v3507 = vpop.f32.mrf.mxu0
      %v3508 = vadd.f32 %v3455, %v3507
      %3509 = vmatmul.f32.gmra.mxu0 %v3309
      %v3510 = vpop.f32.mrf.mxu0
      %v3511 = vadd.f32 %v3455, %v3510
      %3512 = vmatmul.f32.gmra.mxu0 %v3313
      %v3513 = vpop.f32.mrf.mxu0
      %v3514 = vadd.f32 %v3455, %v3513
      %3515 = vmatmul.f32.gmra.mxu0 %v3317
      %v3516 = vpop.f32.mrf.mxu0
      %v3517 = vadd.f32 %v3455, %v3516
      %3518 = vmatmul.f32.gmra.mxu0 %v3321
      %v3519 = vpop.f32.mrf.mxu0
      %v3520 = vadd.f32 %v3455, %v3519
      %3521 = vmatmul.f32.gmra.mxu0 %v3325
      %v3522 = vpop.f32.mrf.mxu0
      %v3523 = vadd.f32 %v3455, %v3522
      %3524 = vmatmul.f32.gmra.mxu0 %v3329
      %v3525 = vpop.f32.mrf.mxu0
      %v3526 = vadd.f32 %v3455, %v3525
      %3527 = vmatmul.f32.gmra.mxu0 %v3333
      %v3528 = vpop.f32.mrf.mxu0
      %v3529 = vadd.f32 %v3455, %v3528
      %3530 = vmatmul.f32.gmra.mxu0 %v3337
      %v3531 = vpop.f32.mrf.mxu0
      %v3532 = vadd.f32 %v3455, %v3531
      %3533 = vmatmul.f32.gmra.mxu0 %v3341
      %v3534 = vpop.f32.mrf.mxu0
      %v3535 = vadd.f32 %v3455, %v3534
      %3536 = vmatmul.f32.gmra.mxu0 %v3345
      %v3537 = vpop.f32.mrf.mxu0
      %v3538 = vadd.f32 %v3455, %v3537
      %3539 = vmatmul.f32.gmra.mxu0 %v3349
      %v3540 = vpop.f32.mrf.mxu0
      %v3541 = vadd.f32 %v3455, %v3540
      %3542 = vmatmul.f32.gmra.mxu0 %v3353
      %v3543 = vpop.f32.mrf.mxu0
      %v3544 = vadd.f32 %v3455, %v3543
      %3545 = vmatmul.f32.gmra.mxu0 %v3357
      %v3546 = vpop.f32.mrf.mxu0
      %v3547 = vadd.f32 %v3455, %v3546
      %3548 = vmatmul.f32.gmra.mxu0 %v3361
      %v3549 = vpop.f32.mrf.mxu0
      %v3550 = vadd.f32 %v3455, %v3549
      %3551 = vmatmul.f32.gmra.mxu0 %v3365
      %v3552 = vpop.f32.mrf.mxu0
      %v3553 = vadd.f32 %v3455, %v3552
      %3554 = vmatmul.f32.gmra.mxu0 %v3369
      %v3555 = vpop.f32.mrf.mxu0
      %v3556 = vadd.f32 %v3455, %v3555
      %3557 = vmatmul.f32.gmra.mxu0 %v3373
      %v3558 = vpop.f32.mrf.mxu0
      %v3559 = vadd.f32 %v3455, %v3558
      %3560 = vmatmul.f32.gmra.mxu0 %v3377
      %v3561 = vpop.f32.mrf.mxu0
      %v3562 = vadd.f32 %v3455, %v3561
      %3563 = vmatmul.f32.gmra.mxu0 %v3381
      %v3564 = vpop.f32.mrf.mxu0
      %v3565 = vadd.f32 %v3455, %v3564
      %3566 = vmatmul.f32.gmra.mxu0 %v3385
      %v3567 = vpop.f32.mrf.mxu0
      %v3568 = vadd.f32 %v3455, %v3567
      %3569 = vdwg.mxu0
      %3570 = vmatpush.msra.mxu0 %v3420
      %3571 = vmatpush.msra.mxu0 %v3419
      %3572 = vmatpush.msra.mxu0 %v3418
      %3573 = vmatpush.msra.mxu0 %v3417
      %3574 = vmatpush.msra.mxu0 %v3416
      %3575 = vmatpush.msra.mxu0 %v3415
      %3576 = vmatpush.msra.mxu0 %v3414
      %3577 = vmatpush.msra.mxu0 %v3413
      %3578 = vmatpush.msra.mxu0 %v3412
      %3579 = vmatpush.msra.mxu0 %v3411
      %3580 = vmatpush.msra.mxu0 %v3410
      %3581 = vmatpush.msra.mxu0 %v3409
      %3582 = vmatpush.msra.mxu0 %v3408
      %3583 = vmatpush.msra.mxu0 %v3407
      %3584 = vmatpush.msra.mxu0 %v3406
      %3585 = vmatpush.msra.mxu0 %v3405
      %3586 = vmatmul.f32.gmra.mxu0 %v3262
      %v3587 = vpop.f32.mrf.mxu0
      %v3588 = vadd.f32 %v3475, %v3587
      %3589 = vmatmul.f32.gmra.mxu0 %v3266
      %v3590 = vpop.f32.mrf.mxu0
      %v3591 = vadd.f32 %v3478, %v3590
      %3592 = vmatmul.f32.gmra.mxu0 %v3270
      %v3593 = vpop.f32.mrf.mxu0
      %v3594 = vadd.f32 %v3481, %v3593
      %3595 = vmatmul.f32.gmra.mxu0 %v3274
      %v3596 = vpop.f32.mrf.mxu0
      %v3597 = vadd.f32 %v3484, %v3596
      %3598 = vmatmul.f32.gmra.mxu0 %v3278
      %v3599 = vpop.f32.mrf.mxu0
      %v3600 = vadd.f32 %v3487, %v3599
      %3601 = vmatmul.f32.gmra.mxu0 %v3282
      %v3602 = vpop.f32.mrf.mxu0
      %v3603 = vadd.f32 %v3490, %v3602
      %3604 = vmatmul.f32.gmra.mxu0 %v3286
      %v3605 = vpop.f32.mrf.mxu0
      %v3606 = vadd.f32 %v3493, %v3605
      %3607 = vmatmul.f32.gmra.mxu0 %v3290
      %v3608 = vpop.f32.mrf.mxu0
      %v3609 = vadd.f32 %v3496, %v3608
      %3610 = vmatmul.f32.gmra.mxu0 %v3294
      %v3611 = vpop.f32.mrf.mxu0
      %v3612 = vadd.f32 %v3499, %v3611
      %3613 = vmatmul.f32.gmra.mxu0 %v3298
      %v3614 = vpop.f32.mrf.mxu0
      %v3615 = vadd.f32 %v3502, %v3614
      %3616 = vmatmul.f32.gmra.mxu0 %v3302
      %v3617 = vpop.f32.mrf.mxu0
      %v3618 = vadd.f32 %v3505, %v3617
      %3619 = vmatmul.f32.gmra.mxu0 %v3306
      %v3620 = vpop.f32.mrf.mxu0
      %v3621 = vadd.f32 %v3508, %v3620
      %3622 = vmatmul.f32.gmra.mxu0 %v3310
      %v3623 = vpop.f32.mrf.mxu0
      %v3624 = vadd.f32 %v3511, %v3623
      %3625 = vmatmul.f32.gmra.mxu0 %v3314
      %v3626 = vpop.f32.mrf.mxu0
      %v3627 = vadd.f32 %v3514, %v3626
      %3628 = vmatmul.f32.gmra.mxu0 %v3318
      %v3629 = vpop.f32.mrf.mxu0
      %v3630 = vadd.f32 %v3517, %v3629
      %3631 = vmatmul.f32.gmra.mxu0 %v3322
      %v3632 = vpop.f32.mrf.mxu0
      %v3633 = vadd.f32 %v3520, %v3632
      %3634 = vmatmul.f32.gmra.mxu0 %v3326
      %v3635 = vpop.f32.mrf.mxu0
      %v3636 = vadd.f32 %v3523, %v3635
      %3637 = vmatmul.f32.gmra.mxu0 %v3330
      %v3638 = vpop.f32.mrf.mxu0
      %v3639 = vadd.f32 %v3526, %v3638
      %3640 = vmatmul.f32.gmra.mxu0 %v3334
      %v3641 = vpop.f32.mrf.mxu0
      %v3642 = vadd.f32 %v3529, %v3641
      %3643 = vmatmul.f32.gmra.mxu0 %v3338
      %v3644 = vpop.f32.mrf.mxu0
      %v3645 = vadd.f32 %v3532, %v3644
      %3646 = vmatmul.f32.gmra.mxu0 %v3342
      %v3647 = vpop.f32.mrf.mxu0
      %v3648 = vadd.f32 %v3535, %v3647
      %3649 = vmatmul.f32.gmra.mxu0 %v3346
      %v3650 = vpop.f32.mrf.mxu0
      %v3651 = vadd.f32 %v3538, %v3650
      %3652 = vmatmul.f32.gmra.mxu0 %v3350
      %v3653 = vpop.f32.mrf.mxu0
      %v3654 = vadd.f32 %v3541, %v3653
      %3655 = vmatmul.f32.gmra.mxu0 %v3354
      %v3656 = vpop.f32.mrf.mxu0
      %v3657 = vadd.f32 %v3544, %v3656
      %3658 = vmatmul.f32.gmra.mxu0 %v3358
      %v3659 = vpop.f32.mrf.mxu0
      %v3660 = vadd.f32 %v3547, %v3659
      %3661 = vmatmul.f32.gmra.mxu0 %v3362
      %v3662 = vpop.f32.mrf.mxu0
      %v3663 = vadd.f32 %v3550, %v3662
      %3664 = vmatmul.f32.gmra.mxu0 %v3366
      %v3665 = vpop.f32.mrf.mxu0
      %v3666 = vadd.f32 %v3553, %v3665
      %3667 = vmatmul.f32.gmra.mxu0 %v3370
      %v3668 = vpop.f32.mrf.mxu0
      %v3669 = vadd.f32 %v3556, %v3668
      %3670 = vmatmul.f32.gmra.mxu0 %v3374
      %v3671 = vpop.f32.mrf.mxu0
      %v3672 = vadd.f32 %v3559, %v3671
      %3673 = vmatmul.f32.gmra.mxu0 %v3378
      %v3674 = vpop.f32.mrf.mxu0
      %v3675 = vadd.f32 %v3562, %v3674
      %3676 = vmatmul.f32.gmra.mxu0 %v3382
      %v3677 = vpop.f32.mrf.mxu0
      %v3678 = vadd.f32 %v3565, %v3677
      %3679 = vmatmul.f32.gmra.mxu0 %v3386
      %v3680 = vpop.f32.mrf.mxu0
      %v3681 = vadd.f32 %v3568, %v3680
      %3682 = vdwg.mxu0
      %3683 = vmatpush.msra.mxu0 %v3436
      %3684 = vmatpush.msra.mxu0 %v3435
      %3685 = vmatpush.msra.mxu0 %v3434
      %3686 = vmatpush.msra.mxu0 %v3433
      %3687 = vmatpush.msra.mxu0 %v3432
      %3688 = vmatpush.msra.mxu0 %v3431
      %3689 = vmatpush.msra.mxu0 %v3430
      %3690 = vmatpush.msra.mxu0 %v3429
      %3691 = vmatpush.msra.mxu0 %v3428
      %3692 = vmatpush.msra.mxu0 %v3427
      %3693 = vmatpush.msra.mxu0 %v3426
      %3694 = vmatpush.msra.mxu0 %v3425
      %3695 = vmatpush.msra.mxu0 %v3424
      %3696 = vmatpush.msra.mxu0 %v3423
      %3697 = vmatpush.msra.mxu0 %v3422
      %3698 = vmatpush.msra.mxu0 %v3421
      %3699 = vmatmul.f32.gmra.mxu0 %v3263
      %v3700 = vpop.f32.mrf.mxu0
      %v3701 = vadd.f32 %v3588, %v3700
      %3702 = vmatmul.f32.gmra.mxu0 %v3267
      %v3703 = vpop.f32.mrf.mxu0
      %v3704 = vadd.f32 %v3591, %v3703
      %3705 = vmatmul.f32.gmra.mxu0 %v3271
      %v3706 = vpop.f32.mrf.mxu0
      %v3707 = vadd.f32 %v3594, %v3706
      %3708 = vmatmul.f32.gmra.mxu0 %v3275
      %v3709 = vpop.f32.mrf.mxu0
      %v3710 = vadd.f32 %v3597, %v3709
      %3711 = vmatmul.f32.gmra.mxu0 %v3279
      %v3712 = vpop.f32.mrf.mxu0
      %v3713 = vadd.f32 %v3600, %v3712
      %3714 = vmatmul.f32.gmra.mxu0 %v3283
      %v3715 = vpop.f32.mrf.mxu0
      %v3716 = vadd.f32 %v3603, %v3715
      %3717 = vmatmul.f32.gmra.mxu0 %v3287
      %v3718 = vpop.f32.mrf.mxu0
      %v3719 = vadd.f32 %v3606, %v3718
      %3720 = vmatmul.f32.gmra.mxu0 %v3291
      %v3721 = vpop.f32.mrf.mxu0
      %v3722 = vadd.f32 %v3609, %v3721
      %3723 = vmatmul.f32.gmra.mxu0 %v3295
      %v3724 = vpop.f32.mrf.mxu0
      %v3725 = vadd.f32 %v3612, %v3724
      %3726 = vmatmul.f32.gmra.mxu0 %v3299
      %v3727 = vpop.f32.mrf.mxu0
      %v3728 = vadd.f32 %v3615, %v3727
      %3729 = vmatmul.f32.gmra.mxu0 %v3303
      %v3730 = vpop.f32.mrf.mxu0
      %v3731 = vadd.f32 %v3618, %v3730
      %3732 = vmatmul.f32.gmra.mxu0 %v3307
      %v3733 = vpop.f32.mrf.mxu0
      %v3734 = vadd.f32 %v3621, %v3733
      %3735 = vmatmul.f32.gmra.mxu0 %v3311
      %v3736 = vpop.f32.mrf.mxu0
      %v3737 = vadd.f32 %v3624, %v3736
      %3738 = vmatmul.f32.gmra.mxu0 %v3315
      %v3739 = vpop.f32.mrf.mxu0
      %v3740 = vadd.f32 %v3627, %v3739
      %3741 = vmatmul.f32.gmra.mxu0 %v3319
      %v3742 = vpop.f32.mrf.mxu0
      %v3743 = vadd.f32 %v3630, %v3742
      %3744 = vmatmul.f32.gmra.mxu0 %v3323
      %v3745 = vpop.f32.mrf.mxu0
      %v3746 = vadd.f32 %v3633, %v3745
      %3747 = vmatmul.f32.gmra.mxu0 %v3327
      %v3748 = vpop.f32.mrf.mxu0
      %v3749 = vadd.f32 %v3636, %v3748
      %3750 = vmatmul.f32.gmra.mxu0 %v3331
      %v3751 = vpop.f32.mrf.mxu0
      %v3752 = vadd.f32 %v3639, %v3751
      %3753 = vmatmul.f32.gmra.mxu0 %v3335
      %v3754 = vpop.f32.mrf.mxu0
      %v3755 = vadd.f32 %v3642, %v3754
      %3756 = vmatmul.f32.gmra.mxu0 %v3339
      %v3757 = vpop.f32.mrf.mxu0
      %v3758 = vadd.f32 %v3645, %v3757
      %3759 = vmatmul.f32.gmra.mxu0 %v3343
      %v3760 = vpop.f32.mrf.mxu0
      %v3761 = vadd.f32 %v3648, %v3760
      %3762 = vmatmul.f32.gmra.mxu0 %v3347
      %v3763 = vpop.f32.mrf.mxu0
      %v3764 = vadd.f32 %v3651, %v3763
      %3765 = vmatmul.f32.gmra.mxu0 %v3351
      %v3766 = vpop.f32.mrf.mxu0
      %v3767 = vadd.f32 %v3654, %v3766
      %3768 = vmatmul.f32.gmra.mxu0 %v3355
      %v3769 = vpop.f32.mrf.mxu0
      %v3770 = vadd.f32 %v3657, %v3769
      %3771 = vmatmul.f32.gmra.mxu0 %v3359
      %v3772 = vpop.f32.mrf.mxu0
      %v3773 = vadd.f32 %v3660, %v3772
      %3774 = vmatmul.f32.gmra.mxu0 %v3363
      %v3775 = vpop.f32.mrf.mxu0
      %v3776 = vadd.f32 %v3663, %v3775
      %3777 = vmatmul.f32.gmra.mxu0 %v3367
      %v3778 = vpop.f32.mrf.mxu0
      %v3779 = vadd.f32 %v3666, %v3778
      %3780 = vmatmul.f32.gmra.mxu0 %v3371
      %v3781 = vpop.f32.mrf.mxu0
      %v3782 = vadd.f32 %v3669, %v3781
      %3783 = vmatmul.f32.gmra.mxu0 %v3375
      %v3784 = vpop.f32.mrf.mxu0
      %v3785 = vadd.f32 %v3672, %v3784
      %3786 = vmatmul.f32.gmra.mxu0 %v3379
      %v3787 = vpop.f32.mrf.mxu0
      %v3788 = vadd.f32 %v3675, %v3787
      %3789 = vmatmul.f32.gmra.mxu0 %v3383
      %v3790 = vpop.f32.mrf.mxu0
      %v3791 = vadd.f32 %v3678, %v3790
      %3792 = vmatmul.f32.gmra.mxu0 %v3387
      %v3793 = vpop.f32.mrf.mxu0
      %v3794 = vadd.f32 %v3681, %v3793
      %3795 = vdwg.mxu0
      %3796 = vmatpush.msra.mxu0 %v3452
      %3797 = vmatpush.msra.mxu0 %v3451
      %3798 = vmatpush.msra.mxu0 %v3450
      %3799 = vmatpush.msra.mxu0 %v3449
      %3800 = vmatpush.msra.mxu0 %v3448
      %3801 = vmatpush.msra.mxu0 %v3447
      %3802 = vmatpush.msra.mxu0 %v3446
      %3803 = vmatpush.msra.mxu0 %v3445
      %3804 = vmatpush.msra.mxu0 %v3444
      %3805 = vmatpush.msra.mxu0 %v3443
      %3806 = vmatpush.msra.mxu0 %v3442
      %3807 = vmatpush.msra.mxu0 %v3441
      %3808 = vmatpush.msra.mxu0 %v3440
      %3809 = vmatpush.msra.mxu0 %v3439
      %3810 = vmatpush.msra.mxu0 %v3438
      %3811 = vmatpush.msra.mxu0 %v3437
      %3812 = vmatmul.f32.gmra.mxu0 %v3264
      %v3813 = vpop.f32.mrf.mxu0
      %v3814 = vadd.f32 %v3701, %v3813
      %3815 = vmatmul.f32.gmra.mxu0 %v3268
      %v3816 = vpop.f32.mrf.mxu0
      %v3817 = vadd.f32 %v3704, %v3816
      %3818 = vmatmul.f32.gmra.mxu0 %v3272
      %v3819 = vpop.f32.mrf.mxu0
      %v3820 = vadd.f32 %v3707, %v3819
      %3821 = vmatmul.f32.gmra.mxu0 %v3276
      %v3822 = vpop.f32.mrf.mxu0
      %v3823 = vadd.f32 %v3710, %v3822
      %3824 = vmatmul.f32.gmra.mxu0 %v3280
      %v3825 = vpop.f32.mrf.mxu0
      %v3826 = vadd.f32 %v3713, %v3825
      %3827 = vmatmul.f32.gmra.mxu0 %v3284
      %v3828 = vpop.f32.mrf.mxu0
      %v3829 = vadd.f32 %v3716, %v3828
      %3830 = vmatmul.f32.gmra.mxu0 %v3288
      %v3831 = vpop.f32.mrf.mxu0
      %v3832 = vadd.f32 %v3719, %v3831
      %3833 = vmatmul.f32.gmra.mxu0 %v3292
      %v3834 = vpop.f32.mrf.mxu0
      %v3835 = vadd.f32 %v3722, %v3834
      %3836 = vmatmul.f32.gmra.mxu0 %v3296
      %v3837 = vpop.f32.mrf.mxu0
      %v3838 = vadd.f32 %v3725, %v3837
      %3839 = vmatmul.f32.gmra.mxu0 %v3300
      %v3840 = vpop.f32.mrf.mxu0
      %v3841 = vadd.f32 %v3728, %v3840
      %3842 = vmatmul.f32.gmra.mxu0 %v3304
      %v3843 = vpop.f32.mrf.mxu0
      %v3844 = vadd.f32 %v3731, %v3843
      %3845 = vmatmul.f32.gmra.mxu0 %v3308
      %v3846 = vpop.f32.mrf.mxu0
      %v3847 = vadd.f32 %v3734, %v3846
      %3848 = vmatmul.f32.gmra.mxu0 %v3312
      %v3849 = vpop.f32.mrf.mxu0
      %v3850 = vadd.f32 %v3737, %v3849
      %3851 = vmatmul.f32.gmra.mxu0 %v3316
      %v3852 = vpop.f32.mrf.mxu0
      %v3853 = vadd.f32 %v3740, %v3852
      %3854 = vmatmul.f32.gmra.mxu0 %v3320
      %v3855 = vpop.f32.mrf.mxu0
      %v3856 = vadd.f32 %v3743, %v3855
      %3857 = vmatmul.f32.gmra.mxu0 %v3324
      %v3858 = vpop.f32.mrf.mxu0
      %v3859 = vadd.f32 %v3746, %v3858
      %3860 = vmatmul.f32.gmra.mxu0 %v3328
      %v3861 = vpop.f32.mrf.mxu0
      %v3862 = vadd.f32 %v3749, %v3861
      %3863 = vmatmul.f32.gmra.mxu0 %v3332
      %v3864 = vpop.f32.mrf.mxu0
      %v3865 = vadd.f32 %v3752, %v3864
      %3866 = vmatmul.f32.gmra.mxu0 %v3336
      %v3867 = vpop.f32.mrf.mxu0
      %v3868 = vadd.f32 %v3755, %v3867
      %3869 = vmatmul.f32.gmra.mxu0 %v3340
      %v3870 = vpop.f32.mrf.mxu0
      %v3871 = vadd.f32 %v3758, %v3870
      %3872 = vmatmul.f32.gmra.mxu0 %v3344
      %v3873 = vpop.f32.mrf.mxu0
      %v3874 = vadd.f32 %v3761, %v3873
      %3875 = vmatmul.f32.gmra.mxu0 %v3348
      %v3876 = vpop.f32.mrf.mxu0
      %v3877 = vadd.f32 %v3764, %v3876
      %3878 = vmatmul.f32.gmra.mxu0 %v3352
      %v3879 = vpop.f32.mrf.mxu0
      %v3880 = vadd.f32 %v3767, %v3879
      %3881 = vmatmul.f32.gmra.mxu0 %v3356
      %v3882 = vpop.f32.mrf.mxu0
      %v3883 = vadd.f32 %v3770, %v3882
      %3884 = vmatmul.f32.gmra.mxu0 %v3360
      %v3885 = vpop.f32.mrf.mxu0
      %v3886 = vadd.f32 %v3773, %v3885
      %3887 = vmatmul.f32.gmra.mxu0 %v3364
      %v3888 = vpop.f32.mrf.mxu0
      %v3889 = vadd.f32 %v3776, %v3888
      %3890 = vmatmul.f32.gmra.mxu0 %v3368
      %v3891 = vpop.f32.mrf.mxu0
      %v3892 = vadd.f32 %v3779, %v3891
      %3893 = vmatmul.f32.gmra.mxu0 %v3372
      %v3894 = vpop.f32.mrf.mxu0
      %v3895 = vadd.f32 %v3782, %v3894
      %3896 = vmatmul.f32.gmra.mxu0 %v3376
      %v3897 = vpop.f32.mrf.mxu0
      %v3898 = vadd.f32 %v3785, %v3897
      %3899 = vmatmul.f32.gmra.mxu0 %v3380
      %v3900 = vpop.f32.mrf.mxu0
      %v3901 = vadd.f32 %v3788, %v3900
      %3902 = vmatmul.f32.gmra.mxu0 %v3384
      %v3903 = vpop.f32.mrf.mxu0
      %v3904 = vadd.f32 %v3791, %v3903
      %3905 = vmatmul.f32.gmra.mxu0 %v3388
      %v3906 = vpop.f32.mrf.mxu0
      %v3907 = vadd.f32 %v3794, %v3906
      %3908 = vdwg.mxu0
      %v3909 = vld [vmem:[%s8] sm:$0xff]
      %v3910 = vld [vmem:[%s8 + $0x8] sm:$0xff]
      %v3911 = vld [vmem:[%s8 + $0x10] sm:$0xff]
      %v3912 = vld [vmem:[%s8 + $0x18] sm:$0xff]
      %v3913 = vld [vmem:[%s8 + $0x20] sm:$0xff]
      %v3914 = vld [vmem:[%s8 + $0x28] sm:$0xff]
      %v3915 = vld [vmem:[%s8 + $0x30] sm:$0xff]
      %v3916 = vld [vmem:[%s8 + $0x38] sm:$0xff]
      %v3917 = vld [vmem:[%s8 + $0x40] sm:$0xff]
      %v3918 = vld [vmem:[%s8 + $0x48] sm:$0xff]
      %v3919 = vld [vmem:[%s8 + $0x50] sm:$0xff]
      %v3920 = vld [vmem:[%s8 + $0x58] sm:$0xff]
      %v3921 = vld [vmem:[%s8 + $0x60] sm:$0xff]
      %v3922 = vld [vmem:[%s8 + $0x68] sm:$0xff]
      %v3923 = vld [vmem:[%s8 + $0x70] sm:$0xff]
      %v3924 = vld [vmem:[%s8 + $0x78] sm:$0xff]
      %v3925 = vld [vmem:[%s8 + $0x80] sm:$0xff]
      %v3926 = vld [vmem:[%s8 + $0x88] sm:$0xff]
      %v3927 = vld [vmem:[%s8 + $0x90] sm:$0xff]
      %v3928 = vld [vmem:[%s8 + $0x98] sm:$0xff]
      %v3929 = vld [vmem:[%s8 + $0xa0] sm:$0xff]
      %v3930 = vld [vmem:[%s8 + $0xa8] sm:$0xff]
      %v3931 = vld [vmem:[%s8 + $0xb0] sm:$0xff]
      %v3932 = vld [vmem:[%s8 + $0xb8] sm:$0xff]
      %v3933 = vld [vmem:[%s8 + $0xc0] sm:$0xff]
      %v3934 = vld [vmem:[%s8 + $0xc8] sm:$0xff]
      %v3935 = vld [vmem:[%s8 + $0xd0] sm:$0xff]
      %v3936 = vld [vmem:[%s8 + $0xd8] sm:$0xff]
      %v3937 = vld [vmem:[%s8 + $0xe0] sm:$0xff]
      %v3938 = vld [vmem:[%s8 + $0xe8] sm:$0xff]
      %v3939 = vld [vmem:[%s8 + $0xf0] sm:$0xff]
      %v3940 = vld [vmem:[%s8 + $0xf8] sm:$0xff]
      %v3941 = vld [vmem:[%s8 + $0x100] sm:$0xff]
      %v3942 = vld [vmem:[%s8 + $0x108] sm:$0xff]
      %v3943 = vld [vmem:[%s8 + $0x110] sm:$0xff]
      %v3944 = vld [vmem:[%s8 + $0x118] sm:$0xff]
      %v3945 = vld [vmem:[%s8 + $0x120] sm:$0xff]
      %v3946 = vld [vmem:[%s8 + $0x128] sm:$0xff]
      %v3947 = vld [vmem:[%s8 + $0x130] sm:$0xff]
      %v3948 = vld [vmem:[%s8 + $0x138] sm:$0xff]
      %v3949 = vld [vmem:[%s8 + $0x140] sm:$0xff]
      %v3950 = vld [vmem:[%s8 + $0x148] sm:$0xff]
      %v3951 = vld [vmem:[%s8 + $0x150] sm:$0xff]
      %v3952 = vld [vmem:[%s8 + $0x158] sm:$0xff]
      %v3953 = vld [vmem:[%s8 + $0x160] sm:$0xff]
      %v3954 = vld [vmem:[%s8 + $0x168] sm:$0xff]
      %v3955 = vld [vmem:[%s8 + $0x170] sm:$0xff]
      %v3956 = vld [vmem:[%s8 + $0x178] sm:$0xff]
      %v3957 = vld [vmem:[%s8 + $0x180] sm:$0xff]
      %v3958 = vld [vmem:[%s8 + $0x188] sm:$0xff]
      %v3959 = vld [vmem:[%s8 + $0x190] sm:$0xff]
      %v3960 = vld [vmem:[%s8 + $0x198] sm:$0xff]
      %v3961 = vld [vmem:[%s8 + $0x1a0] sm:$0xff]
      %v3962 = vld [vmem:[%s8 + $0x1a8] sm:$0xff]
      %v3963 = vld [vmem:[%s8 + $0x1b0] sm:$0xff]
      %v3964 = vld [vmem:[%s8 + $0x1b8] sm:$0xff]
      %v3965 = vld [vmem:[%s8 + $0x1c0] sm:$0xff]
      %v3966 = vld [vmem:[%s8 + $0x1c8] sm:$0xff]
      %v3967 = vld [vmem:[%s8 + $0x1d0] sm:$0xff]
      %v3968 = vld [vmem:[%s8 + $0x1d8] sm:$0xff]
      %v3969 = vld [vmem:[%s8 + $0x1e0] sm:$0xff]
      %v3970 = vld [vmem:[%s8 + $0x1e8] sm:$0xff]
      %v3971 = vld [vmem:[%s8 + $0x1f0] sm:$0xff]
      %v3972 = vld [vmem:[%s8 + $0x1f8] sm:$0xff]
      %v3974 = vperm.slane %v501, 0
      %v3975 = vperm.slane %v501, 1
      %v3976 = vperm.slane %v501, 2
      %v3977 = vperm.slane %v501, 3
      %3982 = vmatpush.msra.mxu0 %v3969
      %3983 = vmatpush.msra.mxu0 %v3965
      %3984 = vmatpush.msra.mxu0 %v3961
      %3985 = vmatpush.msra.mxu0 %v3957
      %3986 = vmatpush.msra.mxu0 %v3953
      %3987 = vmatpush.msra.mxu0 %v3949
      %3988 = vmatpush.msra.mxu0 %v3945
      %3989 = vmatpush.msra.mxu0 %v3941
      %3990 = vmatpush.msra.mxu0 %v3937
      %3991 = vmatpush.msra.mxu0 %v3933
      %3992 = vmatpush.msra.mxu0 %v3929
      %3993 = vmatpush.msra.mxu0 %v3925
      %3994 = vmatpush.msra.mxu0 %v3921
      %3995 = vmatpush.msra.mxu0 %v3917
      %3996 = vmatpush.msra.mxu0 %v3913
      %3997 = vmatpush.msra.mxu0 %v3909
      %3998 = vmatmul.f32.gmra.mxu0 %v3814
      %v3999 = vpop.f32.mrf.mxu0
      %v4000 = vadd.f32 %v3974, %v3999
      %4001 = vmatmul.f32.gmra.mxu0 %v3817
      %v4002 = vpop.f32.mrf.mxu0
      %v4003 = vadd.f32 %v3974, %v4002
      %4004 = vmatmul.f32.gmra.mxu0 %v3820
      %v4005 = vpop.f32.mrf.mxu0
      %v4006 = vadd.f32 %v3974, %v4005
      %4007 = vmatmul.f32.gmra.mxu0 %v3823
      %v4008 = vpop.f32.mrf.mxu0
      %v4009 = vadd.f32 %v3974, %v4008
      %4010 = vmatmul.f32.gmra.mxu0 %v3826
      %v4011 = vpop.f32.mrf.mxu0
      %v4012 = vadd.f32 %v3974, %v4011
      %4013 = vmatmul.f32.gmra.mxu0 %v3829
      %v4014 = vpop.f32.mrf.mxu0
      %v4015 = vadd.f32 %v3974, %v4014
      %4016 = vmatmul.f32.gmra.mxu0 %v3832
      %v4017 = vpop.f32.mrf.mxu0
      %v4018 = vadd.f32 %v3974, %v4017
      %4019 = vmatmul.f32.gmra.mxu0 %v3835
      %v4020 = vpop.f32.mrf.mxu0
      %v4021 = vadd.f32 %v3974, %v4020
      %4022 = vmatmul.f32.gmra.mxu0 %v3838
      %v4023 = vpop.f32.mrf.mxu0
      %v4024 = vadd.f32 %v3974, %v4023
      %4025 = vmatmul.f32.gmra.mxu0 %v3841
      %v4026 = vpop.f32.mrf.mxu0
      %v4027 = vadd.f32 %v3974, %v4026
      %4028 = vmatmul.f32.gmra.mxu0 %v3844
      %v4029 = vpop.f32.mrf.mxu0
      %v4030 = vadd.f32 %v3974, %v4029
      %4031 = vmatmul.f32.gmra.mxu0 %v3847
      %v4032 = vpop.f32.mrf.mxu0
      %v4033 = vadd.f32 %v3974, %v4032
      %4034 = vmatmul.f32.gmra.mxu0 %v3850
      %v4035 = vpop.f32.mrf.mxu0
      %v4036 = vadd.f32 %v3974, %v4035
      %4037 = vmatmul.f32.gmra.mxu0 %v3853
      %v4038 = vpop.f32.mrf.mxu0
      %v4039 = vadd.f32 %v3974, %v4038
      %4040 = vmatmul.f32.gmra.mxu0 %v3856
      %v4041 = vpop.f32.mrf.mxu0
      %v4042 = vadd.f32 %v3974, %v4041
      %4043 = vmatmul.f32.gmra.mxu0 %v3859
      %v4044 = vpop.f32.mrf.mxu0
      %v4045 = vadd.f32 %v3974, %v4044
      %4046 = vmatmul.f32.gmra.mxu0 %v3862
      %v4047 = vpop.f32.mrf.mxu0
      %v4048 = vadd.f32 %v3974, %v4047
      %4049 = vmatmul.f32.gmra.mxu0 %v3865
      %v4050 = vpop.f32.mrf.mxu0
      %v4051 = vadd.f32 %v3974, %v4050
      %4052 = vmatmul.f32.gmra.mxu0 %v3868
      %v4053 = vpop.f32.mrf.mxu0
      %v4054 = vadd.f32 %v3974, %v4053
      %4055 = vmatmul.f32.gmra.mxu0 %v3871
      %v4056 = vpop.f32.mrf.mxu0
      %v4057 = vadd.f32 %v3974, %v4056
      %4058 = vmatmul.f32.gmra.mxu0 %v3874
      %v4059 = vpop.f32.mrf.mxu0
      %v4060 = vadd.f32 %v3974, %v4059
      %4061 = vmatmul.f32.gmra.mxu0 %v3877
      %v4062 = vpop.f32.mrf.mxu0
      %v4063 = vadd.f32 %v3974, %v4062
      %4064 = vmatmul.f32.gmra.mxu0 %v3880
      %v4065 = vpop.f32.mrf.mxu0
      %v4066 = vadd.f32 %v3974, %v4065
      %4067 = vmatmul.f32.gmra.mxu0 %v3883
      %v4068 = vpop.f32.mrf.mxu0
      %v4069 = vadd.f32 %v3974, %v4068
      %4070 = vmatmul.f32.gmra.mxu0 %v3886
      %v4071 = vpop.f32.mrf.mxu0
      %v4072 = vadd.f32 %v3974, %v4071
      %4073 = vmatmul.f32.gmra.mxu0 %v3889
      %v4074 = vpop.f32.mrf.mxu0
      %v4075 = vadd.f32 %v3974, %v4074
      %4076 = vmatmul.f32.gmra.mxu0 %v3892
      %v4077 = vpop.f32.mrf.mxu0
      %v4078 = vadd.f32 %v3974, %v4077
      %4079 = vmatmul.f32.gmra.mxu0 %v3895
      %v4080 = vpop.f32.mrf.mxu0
      %v4081 = vadd.f32 %v3974, %v4080
      %4082 = vmatmul.f32.gmra.mxu0 %v3898
      %v4083 = vpop.f32.mrf.mxu0
      %v4084 = vadd.f32 %v3974, %v4083
      %4085 = vmatmul.f32.gmra.mxu0 %v3901
      %v4086 = vpop.f32.mrf.mxu0
      %v4087 = vadd.f32 %v3974, %v4086
      %4088 = vmatmul.f32.gmra.mxu0 %v3904
      %v4089 = vpop.f32.mrf.mxu0
      %v4090 = vadd.f32 %v3974, %v4089
      %4091 = vmatmul.f32.gmra.mxu0 %v3907
      %v4092 = vpop.f32.mrf.mxu0
      %v4093 = vadd.f32 %v3974, %v4092
      %4094 = vdwg.mxu0
      %4095 = vmatpush.msra.mxu0 %v3970
      %4096 = vmatpush.msra.mxu0 %v3966
      %4097 = vmatpush.msra.mxu0 %v3962
      %4098 = vmatpush.msra.mxu0 %v3958
      %4099 = vmatpush.msra.mxu0 %v3954
      %4100 = vmatpush.msra.mxu0 %v3950
      %4101 = vmatpush.msra.mxu0 %v3946
      %4102 = vmatpush.msra.mxu0 %v3942
      %4103 = vmatpush.msra.mxu0 %v3938
      %4104 = vmatpush.msra.mxu0 %v3934
      %4105 = vmatpush.msra.mxu0 %v3930
      %4106 = vmatpush.msra.mxu0 %v3926
      %4107 = vmatpush.msra.mxu0 %v3922
      %4108 = vmatpush.msra.mxu0 %v3918
      %4109 = vmatpush.msra.mxu0 %v3914
      %4110 = vmatpush.msra.mxu0 %v3910
      %4111 = vmatmul.f32.gmra.mxu0 %v3814
      %v4112 = vpop.f32.mrf.mxu0
      %v4113 = vadd.f32 %v3975, %v4112
      %4114 = vmatmul.f32.gmra.mxu0 %v3817
      %v4115 = vpop.f32.mrf.mxu0
      %v4116 = vadd.f32 %v3975, %v4115
      %4117 = vmatmul.f32.gmra.mxu0 %v3820
      %v4118 = vpop.f32.mrf.mxu0
      %v4119 = vadd.f32 %v3975, %v4118
      %4120 = vmatmul.f32.gmra.mxu0 %v3823
      %v4121 = vpop.f32.mrf.mxu0
      %v4122 = vadd.f32 %v3975, %v4121
      %4123 = vmatmul.f32.gmra.mxu0 %v3826
      %v4124 = vpop.f32.mrf.mxu0
      %v4125 = vadd.f32 %v3975, %v4124
      %4126 = vmatmul.f32.gmra.mxu0 %v3829
      %v4127 = vpop.f32.mrf.mxu0
      %v4128 = vadd.f32 %v3975, %v4127
      %4129 = vmatmul.f32.gmra.mxu0 %v3832
      %v4130 = vpop.f32.mrf.mxu0
      %v4131 = vadd.f32 %v3975, %v4130
      %4132 = vmatmul.f32.gmra.mxu0 %v3835
      %v4133 = vpop.f32.mrf.mxu0
      %v4134 = vadd.f32 %v3975, %v4133
      %4135 = vmatmul.f32.gmra.mxu0 %v3838
      %v4136 = vpop.f32.mrf.mxu0
      %v4137 = vadd.f32 %v3975, %v4136
      %4138 = vmatmul.f32.gmra.mxu0 %v3841
      %v4139 = vpop.f32.mrf.mxu0
      %v4140 = vadd.f32 %v3975, %v4139
      %4141 = vmatmul.f32.gmra.mxu0 %v3844
      %v4142 = vpop.f32.mrf.mxu0
      %v4143 = vadd.f32 %v3975, %v4142
      %4144 = vmatmul.f32.gmra.mxu0 %v3847
      %v4145 = vpop.f32.mrf.mxu0
      %v4146 = vadd.f32 %v3975, %v4145
      %4147 = vmatmul.f32.gmra.mxu0 %v3850
      %v4148 = vpop.f32.mrf.mxu0
      %v4149 = vadd.f32 %v3975, %v4148
      %4150 = vmatmul.f32.gmra.mxu0 %v3853
      %v4151 = vpop.f32.mrf.mxu0
      %v4152 = vadd.f32 %v3975, %v4151
      %4153 = vmatmul.f32.gmra.mxu0 %v3856
      %v4154 = vpop.f32.mrf.mxu0
      %v4155 = vadd.f32 %v3975, %v4154
      %4156 = vmatmul.f32.gmra.mxu0 %v3859
      %v4157 = vpop.f32.mrf.mxu0
      %v4158 = vadd.f32 %v3975, %v4157
      %4159 = vmatmul.f32.gmra.mxu0 %v3862
      %v4160 = vpop.f32.mrf.mxu0
      %v4161 = vadd.f32 %v3975, %v4160
      %4162 = vmatmul.f32.gmra.mxu0 %v3865
      %v4163 = vpop.f32.mrf.mxu0
      %v4164 = vadd.f32 %v3975, %v4163
      %4165 = vmatmul.f32.gmra.mxu0 %v3868
      %v4166 = vpop.f32.mrf.mxu0
      %v4167 = vadd.f32 %v3975, %v4166
      %4168 = vmatmul.f32.gmra.mxu0 %v3871
      %v4169 = vpop.f32.mrf.mxu0
      %v4170 = vadd.f32 %v3975, %v4169
      %4171 = vmatmul.f32.gmra.mxu0 %v3874
      %v4172 = vpop.f32.mrf.mxu0
      %v4173 = vadd.f32 %v3975, %v4172
      %4174 = vmatmul.f32.gmra.mxu0 %v3877
      %v4175 = vpop.f32.mrf.mxu0
      %v4176 = vadd.f32 %v3975, %v4175
      %4177 = vmatmul.f32.gmra.mxu0 %v3880
      %v4178 = vpop.f32.mrf.mxu0
      %v4179 = vadd.f32 %v3975, %v4178
      %4180 = vmatmul.f32.gmra.mxu0 %v3883
      %v4181 = vpop.f32.mrf.mxu0
      %v4182 = vadd.f32 %v3975, %v4181
      %4183 = vmatmul.f32.gmra.mxu0 %v3886
      %v4184 = vpop.f32.mrf.mxu0
      %v4185 = vadd.f32 %v3975, %v4184
      %4186 = vmatmul.f32.gmra.mxu0 %v3889
      %v4187 = vpop.f32.mrf.mxu0
      %v4188 = vadd.f32 %v3975, %v4187
      %4189 = vmatmul.f32.gmra.mxu0 %v3892
      %v4190 = vpop.f32.mrf.mxu0
      %v4191 = vadd.f32 %v3975, %v4190
      %4192 = vmatmul.f32.gmra.mxu0 %v3895
      %v4193 = vpop.f32.mrf.mxu0
      %v4194 = vadd.f32 %v3975, %v4193
      %4195 = vmatmul.f32.gmra.mxu0 %v3898
      %v4196 = vpop.f32.mrf.mxu0
      %v4197 = vadd.f32 %v3975, %v4196
      %4198 = vmatmul.f32.gmra.mxu0 %v3901
      %v4199 = vpop.f32.mrf.mxu0
      %v4200 = vadd.f32 %v3975, %v4199
      %4201 = vmatmul.f32.gmra.mxu0 %v3904
      %v4202 = vpop.f32.mrf.mxu0
      %v4203 = vadd.f32 %v3975, %v4202
      %4204 = vmatmul.f32.gmra.mxu0 %v3907
      %v4205 = vpop.f32.mrf.mxu0
      %v4206 = vadd.f32 %v3975, %v4205
      %4207 = vdwg.mxu0
      %4208 = vmatpush.msra.mxu0 %v3971
      %4209 = vmatpush.msra.mxu0 %v3967
      %4210 = vmatpush.msra.mxu0 %v3963
      %4211 = vmatpush.msra.mxu0 %v3959
      %4212 = vmatpush.msra.mxu0 %v3955
      %4213 = vmatpush.msra.mxu0 %v3951
      %4214 = vmatpush.msra.mxu0 %v3947
      %4215 = vmatpush.msra.mxu0 %v3943
      %4216 = vmatpush.msra.mxu0 %v3939
      %4217 = vmatpush.msra.mxu0 %v3935
      %4218 = vmatpush.msra.mxu0 %v3931
      %4219 = vmatpush.msra.mxu0 %v3927
      %4220 = vmatpush.msra.mxu0 %v3923
      %4221 = vmatpush.msra.mxu0 %v3919
      %4222 = vmatpush.msra.mxu0 %v3915
      %4223 = vmatpush.msra.mxu0 %v3911
      %4224 = vmatmul.f32.gmra.mxu0 %v3814
      %v4225 = vpop.f32.mrf.mxu0
      %v4226 = vadd.f32 %v3976, %v4225
      %4227 = vmatmul.f32.gmra.mxu0 %v3817
      %v4228 = vpop.f32.mrf.mxu0
      %v4229 = vadd.f32 %v3976, %v4228
      %4230 = vmatmul.f32.gmra.mxu0 %v3820
      %v4231 = vpop.f32.mrf.mxu0
      %v4232 = vadd.f32 %v3976, %v4231
      %4233 = vmatmul.f32.gmra.mxu0 %v3823
      %v4234 = vpop.f32.mrf.mxu0
      %v4235 = vadd.f32 %v3976, %v4234
      %4236 = vmatmul.f32.gmra.mxu0 %v3826
      %v4237 = vpop.f32.mrf.mxu0
      %v4238 = vadd.f32 %v3976, %v4237
      %4239 = vmatmul.f32.gmra.mxu0 %v3829
      %v4240 = vpop.f32.mrf.mxu0
      %v4241 = vadd.f32 %v3976, %v4240
      %4242 = vmatmul.f32.gmra.mxu0 %v3832
      %v4243 = vpop.f32.mrf.mxu0
      %v4244 = vadd.f32 %v3976, %v4243
      %4245 = vmatmul.f32.gmra.mxu0 %v3835
      %v4246 = vpop.f32.mrf.mxu0
      %v4247 = vadd.f32 %v3976, %v4246
      %4248 = vmatmul.f32.gmra.mxu0 %v3838
      %v4249 = vpop.f32.mrf.mxu0
      %v4250 = vadd.f32 %v3976, %v4249
      %4251 = vmatmul.f32.gmra.mxu0 %v3841
      %v4252 = vpop.f32.mrf.mxu0
      %v4253 = vadd.f32 %v3976, %v4252
      %4254 = vmatmul.f32.gmra.mxu0 %v3844
      %v4255 = vpop.f32.mrf.mxu0
      %v4256 = vadd.f32 %v3976, %v4255
      %4257 = vmatmul.f32.gmra.mxu0 %v3847
      %v4258 = vpop.f32.mrf.mxu0
      %v4259 = vadd.f32 %v3976, %v4258
      %4260 = vmatmul.f32.gmra.mxu0 %v3850
      %v4261 = vpop.f32.mrf.mxu0
      %v4262 = vadd.f32 %v3976, %v4261
      %4263 = vmatmul.f32.gmra.mxu0 %v3853
      %v4264 = vpop.f32.mrf.mxu0
      %v4265 = vadd.f32 %v3976, %v4264
      %4266 = vmatmul.f32.gmra.mxu0 %v3856
      %v4267 = vpop.f32.mrf.mxu0
      %v4268 = vadd.f32 %v3976, %v4267
      %4269 = vmatmul.f32.gmra.mxu0 %v3859
      %v4270 = vpop.f32.mrf.mxu0
      %v4271 = vadd.f32 %v3976, %v4270
      %4272 = vmatmul.f32.gmra.mxu0 %v3862
      %v4273 = vpop.f32.mrf.mxu0
      %v4274 = vadd.f32 %v3976, %v4273
      %4275 = vmatmul.f32.gmra.mxu0 %v3865
      %v4276 = vpop.f32.mrf.mxu0
      %v4277 = vadd.f32 %v3976, %v4276
      %4278 = vmatmul.f32.gmra.mxu0 %v3868
      %v4279 = vpop.f32.mrf.mxu0
      %v4280 = vadd.f32 %v3976, %v4279
      %4281 = vmatmul.f32.gmra.mxu0 %v3871
      %v4282 = vpop.f32.mrf.mxu0
      %v4283 = vadd.f32 %v3976, %v4282
      %4284 = vmatmul.f32.gmra.mxu0 %v3874
      %v4285 = vpop.f32.mrf.mxu0
      %v4286 = vadd.f32 %v3976, %v4285
      %4287 = vmatmul.f32.gmra.mxu0 %v3877
      %v4288 = vpop.f32.mrf.mxu0
      %v4289 = vadd.f32 %v3976, %v4288
      %4290 = vmatmul.f32.gmra.mxu0 %v3880
      %v4291 = vpop.f32.mrf.mxu0
      %v4292 = vadd.f32 %v3976, %v4291
      %4293 = vmatmul.f32.gmra.mxu0 %v3883
      %v4294 = vpop.f32.mrf.mxu0
      %v4295 = vadd.f32 %v3976, %v4294
      %4296 = vmatmul.f32.gmra.mxu0 %v3886
      %v4297 = vpop.f32.mrf.mxu0
      %v4298 = vadd.f32 %v3976, %v4297
      %4299 = vmatmul.f32.gmra.mxu0 %v3889
      %v4300 = vpop.f32.mrf.mxu0
      %v4301 = vadd.f32 %v3976, %v4300
      %4302 = vmatmul.f32.gmra.mxu0 %v3892
      %v4303 = vpop.f32.mrf.mxu0
      %v4304 = vadd.f32 %v3976, %v4303
      %4305 = vmatmul.f32.gmra.mxu0 %v3895
      %v4306 = vpop.f32.mrf.mxu0
      %v4307 = vadd.f32 %v3976, %v4306
      %4308 = vmatmul.f32.gmra.mxu0 %v3898
      %v4309 = vpop.f32.mrf.mxu0
      %v4310 = vadd.f32 %v3976, %v4309
      %4311 = vmatmul.f32.gmra.mxu0 %v3901
      %v4312 = vpop.f32.mrf.mxu0
      %v4313 = vadd.f32 %v3976, %v4312
      %4314 = vmatmul.f32.gmra.mxu0 %v3904
      %v4315 = vpop.f32.mrf.mxu0
      %v4316 = vadd.f32 %v3976, %v4315
      %4317 = vmatmul.f32.gmra.mxu0 %v3907
      %v4318 = vpop.f32.mrf.mxu0
      %v4319 = vadd.f32 %v3976, %v4318
      %4320 = vdwg.mxu0
      %4321 = vmatpush.msra.mxu0 %v3972
      %4322 = vmatpush.msra.mxu0 %v3968
      %4323 = vmatpush.msra.mxu0 %v3964
      %4324 = vmatpush.msra.mxu0 %v3960
      %4325 = vmatpush.msra.mxu0 %v3956
      %4326 = vmatpush.msra.mxu0 %v3952
      %4327 = vmatpush.msra.mxu0 %v3948
      %4328 = vmatpush.msra.mxu0 %v3944
      %4329 = vmatpush.msra.mxu0 %v3940
      %4330 = vmatpush.msra.mxu0 %v3936
      %4331 = vmatpush.msra.mxu0 %v3932
      %4332 = vmatpush.msra.mxu0 %v3928
      %4333 = vmatpush.msra.mxu0 %v3924
      %4334 = vmatpush.msra.mxu0 %v3920
      %4335 = vmatpush.msra.mxu0 %v3916
      %4336 = vmatpush.msra.mxu0 %v3912
      %4337 = vmatmul.f32.gmra.mxu0 %v3814
      %v4338 = vpop.f32.mrf.mxu0
      %v4339 = vadd.f32 %v3977, %v4338
      %4340 = vmatmul.f32.gmra.mxu0 %v3817
      %v4341 = vpop.f32.mrf.mxu0
      %v4342 = vadd.f32 %v3977, %v4341
      %4343 = vmatmul.f32.gmra.mxu0 %v3820
      %v4344 = vpop.f32.mrf.mxu0
      %v4345 = vadd.f32 %v3977, %v4344
      %4346 = vmatmul.f32.gmra.mxu0 %v3823
      %v4347 = vpop.f32.mrf.mxu0
      %v4348 = vadd.f32 %v3977, %v4347
      %4349 = vmatmul.f32.gmra.mxu0 %v3826
      %v4350 = vpop.f32.mrf.mxu0
      %v4351 = vadd.f32 %v3977, %v4350
      %4352 = vmatmul.f32.gmra.mxu0 %v3829
      %v4353 = vpop.f32.mrf.mxu0
      %v4354 = vadd.f32 %v3977, %v4353
      %4355 = vmatmul.f32.gmra.mxu0 %v3832
      %v4356 = vpop.f32.mrf.mxu0
      %v4357 = vadd.f32 %v3977, %v4356
      %4358 = vmatmul.f32.gmra.mxu0 %v3835
      %v4359 = vpop.f32.mrf.mxu0
      %v4360 = vadd.f32 %v3977, %v4359
      %4361 = vmatmul.f32.gmra.mxu0 %v3838
      %v4362 = vpop.f32.mrf.mxu0
      %v4363 = vadd.f32 %v3977, %v4362
      %4364 = vmatmul.f32.gmra.mxu0 %v3841
      %v4365 = vpop.f32.mrf.mxu0
      %v4366 = vadd.f32 %v3977, %v4365
      %4367 = vmatmul.f32.gmra.mxu0 %v3844
      %v4368 = vpop.f32.mrf.mxu0
      %v4369 = vadd.f32 %v3977, %v4368
      %4370 = vmatmul.f32.gmra.mxu0 %v3847
      %v4371 = vpop.f32.mrf.mxu0
      %v4372 = vadd.f32 %v3977, %v4371
      %4373 = vmatmul.f32.gmra.mxu0 %v3850
      %v4374 = vpop.f32.mrf.mxu0
      %v4375 = vadd.f32 %v3977, %v4374
      %4376 = vmatmul.f32.gmra.mxu0 %v3853
      %v4377 = vpop.f32.mrf.mxu0
      %v4378 = vadd.f32 %v3977, %v4377
      %4379 = vmatmul.f32.gmra.mxu0 %v3856
      %v4380 = vpop.f32.mrf.mxu0
      %v4381 = vadd.f32 %v3977, %v4380
      %4382 = vmatmul.f32.gmra.mxu0 %v3859
      %v4383 = vpop.f32.mrf.mxu0
      %v4384 = vadd.f32 %v3977, %v4383
      %4385 = vmatmul.f32.gmra.mxu0 %v3862
      %v4386 = vpop.f32.mrf.mxu0
      %v4387 = vadd.f32 %v3977, %v4386
      %4388 = vmatmul.f32.gmra.mxu0 %v3865
      %v4389 = vpop.f32.mrf.mxu0
      %v4390 = vadd.f32 %v3977, %v4389
      %4391 = vmatmul.f32.gmra.mxu0 %v3868
      %v4392 = vpop.f32.mrf.mxu0
      %v4393 = vadd.f32 %v3977, %v4392
      %4394 = vmatmul.f32.gmra.mxu0 %v3871
      %v4395 = vpop.f32.mrf.mxu0
      %v4396 = vadd.f32 %v3977, %v4395
      %4397 = vmatmul.f32.gmra.mxu0 %v3874
      %v4398 = vpop.f32.mrf.mxu0
      %v4399 = vadd.f32 %v3977, %v4398
      %4400 = vmatmul.f32.gmra.mxu0 %v3877
      %v4401 = vpop.f32.mrf.mxu0
      %v4402 = vadd.f32 %v3977, %v4401
      %4403 = vmatmul.f32.gmra.mxu0 %v3880
      %v4404 = vpop.f32.mrf.mxu0
      %v4405 = vadd.f32 %v3977, %v4404
      %4406 = vmatmul.f32.gmra.mxu0 %v3883
      %v4407 = vpop.f32.mrf.mxu0
      %v4408 = vadd.f32 %v3977, %v4407
      %4409 = vmatmul.f32.gmra.mxu0 %v3886
      %v4410 = vpop.f32.mrf.mxu0
      %v4411 = vadd.f32 %v3977, %v4410
      %4412 = vmatmul.f32.gmra.mxu0 %v3889
      %v4413 = vpop.f32.mrf.mxu0
      %v4414 = vadd.f32 %v3977, %v4413
      %4415 = vmatmul.f32.gmra.mxu0 %v3892
      %v4416 = vpop.f32.mrf.mxu0
      %v4417 = vadd.f32 %v3977, %v4416
      %4418 = vmatmul.f32.gmra.mxu0 %v3895
      %v4419 = vpop.f32.mrf.mxu0
      %v4420 = vadd.f32 %v3977, %v4419
      %4421 = vmatmul.f32.gmra.mxu0 %v3898
      %v4422 = vpop.f32.mrf.mxu0
      %v4423 = vadd.f32 %v3977, %v4422
      %4424 = vmatmul.f32.gmra.mxu0 %v3901
      %v4425 = vpop.f32.mrf.mxu0
      %v4426 = vadd.f32 %v3977, %v4425
      %4427 = vmatmul.f32.gmra.mxu0 %v3904
      %v4428 = vpop.f32.mrf.mxu0
      %v4429 = vadd.f32 %v3977, %v4428
      %4430 = vmatmul.f32.gmra.mxu0 %v3907
      %v4431 = vpop.f32.mrf.mxu0
      %v4432 = vadd.f32 %v3977, %v4431
      %4433 = vdwg.mxu0
      %v4434 = vmax.f32 %v4000, 0.0
      %v4435 = vmax.f32 %v4113, 0.0
      %v4436 = vmax.f32 %v4226, 0.0
      %v4437 = vmax.f32 %v4339, 0.0
      %v4438 = vmax.f32 %v4003, 0.0
      %v4439 = vmax.f32 %v4116, 0.0
      %v4440 = vmax.f32 %v4229, 0.0
      %v4441 = vmax.f32 %v4342, 0.0
      %v4442 = vmax.f32 %v4006, 0.0
      %v4443 = vmax.f32 %v4119, 0.0
      %v4444 = vmax.f32 %v4232, 0.0
      %v4445 = vmax.f32 %v4345, 0.0
      %v4446 = vmax.f32 %v4009, 0.0
      %v4447 = vmax.f32 %v4122, 0.0
      %v4448 = vmax.f32 %v4235, 0.0
      %v4449 = vmax.f32 %v4348, 0.0
      %v4450 = vmax.f32 %v4012, 0.0
      %v4451 = vmax.f32 %v4125, 0.0
      %v4452 = vmax.f32 %v4238, 0.0
      %v4453 = vmax.f32 %v4351, 0.0
      %v4454 = vmax.f32 %v4015, 0.0
      %v4455 = vmax.f32 %v4128, 0.0
      %v4456 = vmax.f32 %v4241, 0.0
      %v4457 = vmax.f32 %v4354, 0.0
      %v4458 = vmax.f32 %v4018, 0.0
      %v4459 = vmax.f32 %v4131, 0.0
      %v4460 = vmax.f32 %v4244, 0.0
      %v4461 = vmax.f32 %v4357, 0.0
      %v4462 = vmax.f32 %v4021, 0.0
      %v4463 = vmax.f32 %v4134, 0.0
      %v4464 = vmax.f32 %v4247, 0.0
      %v4465 = vmax.f32 %v4360, 0.0
      %v4466 = vmax.f32 %v4024, 0.0
      %v4467 = vmax.f32 %v4137, 0.0
      %v4468 = vmax.f32 %v4250, 0.0
      %v4469 = vmax.f32 %v4363, 0.0
      %v4470 = vmax.f32 %v4027, 0.0
      %v4471 = vmax.f32 %v4140, 0.0
      %v4472 = vmax.f32 %v4253, 0.0
      %v4473 = vmax.f32 %v4366, 0.0
      %v4474 = vmax.f32 %v4030, 0.0
      %v4475 = vmax.f32 %v4143, 0.0
      %v4476 = vmax.f32 %v4256, 0.0
      %v4477 = vmax.f32 %v4369, 0.0
      %v4478 = vmax.f32 %v4033, 0.0
      %v4479 = vmax.f32 %v4146, 0.0
      %v4480 = vmax.f32 %v4259, 0.0
      %v4481 = vmax.f32 %v4372, 0.0
      %v4482 = vmax.f32 %v4036, 0.0
      %v4483 = vmax.f32 %v4149, 0.0
      %v4484 = vmax.f32 %v4262, 0.0
      %v4485 = vmax.f32 %v4375, 0.0
      %v4486 = vmax.f32 %v4039, 0.0
      %v4487 = vmax.f32 %v4152, 0.0
      %v4488 = vmax.f32 %v4265, 0.0
      %v4489 = vmax.f32 %v4378, 0.0
      %v4490 = vmax.f32 %v4042, 0.0
      %v4491 = vmax.f32 %v4155, 0.0
      %v4492 = vmax.f32 %v4268, 0.0
      %v4493 = vmax.f32 %v4381, 0.0
      %v4494 = vmax.f32 %v4045, 0.0
      %v4495 = vmax.f32 %v4158, 0.0
      %v4496 = vmax.f32 %v4271, 0.0
      %v4497 = vmax.f32 %v4384, 0.0
      %v4498 = vmax.f32 %v4048, 0.0
      %v4499 = vmax.f32 %v4161, 0.0
      %v4500 = vmax.f32 %v4274, 0.0
      %v4501 = vmax.f32 %v4387, 0.0
      %v4502 = vmax.f32 %v4051, 0.0
      %v4503 = vmax.f32 %v4164, 0.0
      %v4504 = vmax.f32 %v4277, 0.0
      %v4505 = vmax.f32 %v4390, 0.0
      %v4506 = vmax.f32 %v4054, 0.0
      %v4507 = vmax.f32 %v4167, 0.0
      %v4508 = vmax.f32 %v4280, 0.0
      %v4509 = vmax.f32 %v4393, 0.0
      %v4510 = vmax.f32 %v4057, 0.0
      %v4511 = vmax.f32 %v4170, 0.0
      %v4512 = vmax.f32 %v4283, 0.0
      %v4513 = vmax.f32 %v4396, 0.0
      %v4514 = vmax.f32 %v4060, 0.0
      %v4515 = vmax.f32 %v4173, 0.0
      %v4516 = vmax.f32 %v4286, 0.0
      %v4517 = vmax.f32 %v4399, 0.0
      %v4518 = vmax.f32 %v4063, 0.0
      %v4519 = vmax.f32 %v4176, 0.0
      %v4520 = vmax.f32 %v4289, 0.0
      %v4521 = vmax.f32 %v4402, 0.0
      %v4522 = vmax.f32 %v4066, 0.0
      %v4523 = vmax.f32 %v4179, 0.0
      %v4524 = vmax.f32 %v4292, 0.0
      %v4525 = vmax.f32 %v4405, 0.0
      %v4526 = vmax.f32 %v4069, 0.0
      %v4527 = vmax.f32 %v4182, 0.0
      %v4528 = vmax.f32 %v4295, 0.0
      %v4529 = vmax.f32 %v4408, 0.0
      %v4530 = vmax.f32 %v4072, 0.0
      %v4531 = vmax.f32 %v4185, 0.0
      %v4532 = vmax.f32 %v4298, 0.0
      %v4533 = vmax.f32 %v4411, 0.0
      %v4534 = vmax.f32 %v4075, 0.0
      %v4535 = vmax.f32 %v4188, 0.0
      %v4536 = vmax.f32 %v4301, 0.0
      %v4537 = vmax.f32 %v4414, 0.0
      %v4538 = vmax.f32 %v4078, 0.0
      %v4539 = vmax.f32 %v4191, 0.0
      %v4540 = vmax.f32 %v4304, 0.0
      %v4541 = vmax.f32 %v4417, 0.0
      %v4542 = vmax.f32 %v4081, 0.0
      %v4543 = vmax.f32 %v4194, 0.0
      %v4544 = vmax.f32 %v4307, 0.0
      %v4545 = vmax.f32 %v4420, 0.0
      %v4546 = vmax.f32 %v4084, 0.0
      %v4547 = vmax.f32 %v4197, 0.0
      %v4548 = vmax.f32 %v4310, 0.0
      %v4549 = vmax.f32 %v4423, 0.0
      %v4550 = vmax.f32 %v4087, 0.0
      %v4551 = vmax.f32 %v4200, 0.0
      %v4552 = vmax.f32 %v4313, 0.0
      %v4553 = vmax.f32 %v4426, 0.0
      %v4554 = vmax.f32 %v4090, 0.0
      %v4555 = vmax.f32 %v4203, 0.0
      %v4556 = vmax.f32 %v4316, 0.0
      %v4557 = vmax.f32 %v4429, 0.0
      %v4558 = vmax.f32 %v4093, 0.0
      %v4559 = vmax.f32 %v4206, 0.0
      %v4560 = vmax.f32 %v4319, 0.0
      %v4561 = vmax.f32 %v4432, 0.0
      %v4562 = vld [vmem:[%s9] sm:$0xff]
      %v4563 = vld [vmem:[%s9 + $0x8] sm:$0xff]
      %v4564 = vld [vmem:[%s9 + $0x10] sm:$0xff]
      %v4565 = vld [vmem:[%s9 + $0x18] sm:$0xff]
      %v4566 = vld [vmem:[%s9 + $0x20] sm:$0xff]
      %v4567 = vld [vmem:[%s9 + $0x28] sm:$0xff]
      %v4568 = vld [vmem:[%s9 + $0x30] sm:$0xff]
      %v4569 = vld [vmem:[%s9 + $0x38] sm:$0xff]
      %v4570 = vld [vmem:[%s9 + $0x40] sm:$0xff]
      %v4571 = vld [vmem:[%s9 + $0x48] sm:$0xff]
      %v4572 = vld [vmem:[%s9 + $0x50] sm:$0xff]
      %v4573 = vld [vmem:[%s9 + $0x58] sm:$0xff]
      %v4574 = vld [vmem:[%s9 + $0x60] sm:$0xff]
      %v4575 = vld [vmem:[%s9 + $0x68] sm:$0xff]
      %v4576 = vld [vmem:[%s9 + $0x70] sm:$0xff]
      %v4577 = vld [vmem:[%s9 + $0x78] sm:$0xff]
      %v4578 = vld [vmem:[%s9 + $0x80] sm:$0xff]
      %v4579 = vld [vmem:[%s9 + $0x88] sm:$0xff]
      %v4580 = vld [vmem:[%s9 + $0x90] sm:$0xff]
      %v4581 = vld [vmem:[%s9 + $0x98] sm:$0xff]
      %v4582 = vld [vmem:[%s9 + $0xa0] sm:$0xff]
      %v4583 = vld [vmem:[%s9 + $0xa8] sm:$0xff]
      %v4584 = vld [vmem:[%s9 + $0xb0] sm:$0xff]
      %v4585 = vld [vmem:[%s9 + $0xb8] sm:$0xff]
      %v4586 = vld [vmem:[%s9 + $0xc0] sm:$0xff]
      %v4587 = vld [vmem:[%s9 + $0xc8] sm:$0xff]
      %v4588 = vld [vmem:[%s9 + $0xd0] sm:$0xff]
      %v4589 = vld [vmem:[%s9 + $0xd8] sm:$0xff]
      %v4590 = vld [vmem:[%s9 + $0xe0] sm:$0xff]
      %v4591 = vld [vmem:[%s9 + $0xe8] sm:$0xff]
      %v4592 = vld [vmem:[%s9 + $0xf0] sm:$0xff]
      %v4593 = vld [vmem:[%s9 + $0xf8] sm:$0xff]
      %v4594 = vld [vmem:[%s9 + $0x100] sm:$0xff]
      %v4595 = vld [vmem:[%s9 + $0x108] sm:$0xff]
      %v4596 = vld [vmem:[%s9 + $0x110] sm:$0xff]
      %v4597 = vld [vmem:[%s9 + $0x118] sm:$0xff]
      %v4598 = vld [vmem:[%s9 + $0x120] sm:$0xff]
      %v4599 = vld [vmem:[%s9 + $0x128] sm:$0xff]
      %v4600 = vld [vmem:[%s9 + $0x130] sm:$0xff]
      %v4601 = vld [vmem:[%s9 + $0x138] sm:$0xff]
      %v4602 = vld [vmem:[%s9 + $0x140] sm:$0xff]
      %v4603 = vld [vmem:[%s9 + $0x148] sm:$0xff]
      %v4604 = vld [vmem:[%s9 + $0x150] sm:$0xff]
      %v4605 = vld [vmem:[%s9 + $0x158] sm:$0xff]
      %v4606 = vld [vmem:[%s9 + $0x160] sm:$0xff]
      %v4607 = vld [vmem:[%s9 + $0x168] sm:$0xff]
      %v4608 = vld [vmem:[%s9 + $0x170] sm:$0xff]
      %v4609 = vld [vmem:[%s9 + $0x178] sm:$0xff]
      %v4610 = vld [vmem:[%s9 + $0x180] sm:$0xff]
      %v4611 = vld [vmem:[%s9 + $0x188] sm:$0xff]
      %v4612 = vld [vmem:[%s9 + $0x190] sm:$0xff]
      %v4613 = vld [vmem:[%s9 + $0x198] sm:$0xff]
      %v4614 = vld [vmem:[%s9 + $0x1a0] sm:$0xff]
      %v4615 = vld [vmem:[%s9 + $0x1a8] sm:$0xff]
      %v4616 = vld [vmem:[%s9 + $0x1b0] sm:$0xff]
      %v4617 = vld [vmem:[%s9 + $0x1b8] sm:$0xff]
      %v4618 = vld [vmem:[%s9 + $0x1c0] sm:$0xff]
      %v4619 = vld [vmem:[%s9 + $0x1c8] sm:$0xff]
      %v4620 = vld [vmem:[%s9 + $0x1d0] sm:$0xff]
      %v4621 = vld [vmem:[%s9 + $0x1d8] sm:$0xff]
      %v4622 = vld [vmem:[%s9 + $0x1e0] sm:$0xff]
      %v4623 = vld [vmem:[%s9 + $0x1e8] sm:$0xff]
      %v4624 = vld [vmem:[%s9 + $0x1f0] sm:$0xff]
      %v4625 = vld [vmem:[%s9 + $0x1f8] sm:$0xff]
      %v4626 = vld [vmem:[%s9 + $0x200] sm:$0xff]
      %v4627 = vld [vmem:[%s9 + $0x208] sm:$0xff]
      %v4628 = vld [vmem:[%s9 + $0x210] sm:$0xff]
      %v4629 = vld [vmem:[%s9 + $0x218] sm:$0xff]
      %v4630 = vld [vmem:[%s9 + $0x220] sm:$0xff]
      %v4631 = vld [vmem:[%s9 + $0x228] sm:$0xff]
      %v4632 = vld [vmem:[%s9 + $0x230] sm:$0xff]
      %v4633 = vld [vmem:[%s9 + $0x238] sm:$0xff]
      %v4634 = vld [vmem:[%s9 + $0x240] sm:$0xff]
      %v4635 = vld [vmem:[%s9 + $0x248] sm:$0xff]
      %v4636 = vld [vmem:[%s9 + $0x250] sm:$0xff]
      %v4637 = vld [vmem:[%s9 + $0x258] sm:$0xff]
      %v4638 = vld [vmem:[%s9 + $0x260] sm:$0xff]
      %v4639 = vld [vmem:[%s9 + $0x268] sm:$0xff]
      %v4640 = vld [vmem:[%s9 + $0x270] sm:$0xff]
      %v4641 = vld [vmem:[%s9 + $0x278] sm:$0xff]
      %v4642 = vld [vmem:[%s9 + $0x280] sm:$0xff]
      %v4643 = vld [vmem:[%s9 + $0x288] sm:$0xff]
      %v4644 = vld [vmem:[%s9 + $0x290] sm:$0xff]
      %v4645 = vld [vmem:[%s9 + $0x298] sm:$0xff]
      %v4646 = vld [vmem:[%s9 + $0x2a0] sm:$0xff]
      %v4647 = vld [vmem:[%s9 + $0x2a8] sm:$0xff]
      %v4648 = vld [vmem:[%s9 + $0x2b0] sm:$0xff]
      %v4649 = vld [vmem:[%s9 + $0x2b8] sm:$0xff]
      %v4650 = vld [vmem:[%s9 + $0x2c0] sm:$0xff]
      %v4651 = vld [vmem:[%s9 + $0x2c8] sm:$0xff]
      %v4652 = vld [vmem:[%s9 + $0x2d0] sm:$0xff]
      %v4653 = vld [vmem:[%s9 + $0x2d8] sm:$0xff]
      %v4654 = vld [vmem:[%s9 + $0x2e0] sm:$0xff]
      %v4655 = vld [vmem:[%s9 + $0x2e8] sm:$0xff]
      %v4656 = vld [vmem:[%s9 + $0x2f0] sm:$0xff]
      %v4657 = vld [vmem:[%s9 + $0x2f8] sm:$0xff]
      %v4658 = vld [vmem:[%s9 + $0x300] sm:$0xff]
      %v4659 = vld [vmem:[%s9 + $0x308] sm:$0xff]
      %v4660 = vld [vmem:[%s9 + $0x310] sm:$0xff]
      %v4661 = vld [vmem:[%s9 + $0x318] sm:$0xff]
      %v4662 = vld [vmem:[%s9 + $0x320] sm:$0xff]
      %v4663 = vld [vmem:[%s9 + $0x328] sm:$0xff]
      %v4664 = vld [vmem:[%s9 + $0x330] sm:$0xff]
      %v4665 = vld [vmem:[%s9 + $0x338] sm:$0xff]
      %v4666 = vld [vmem:[%s9 + $0x340] sm:$0xff]
      %v4667 = vld [vmem:[%s9 + $0x348] sm:$0xff]
      %v4668 = vld [vmem:[%s9 + $0x350] sm:$0xff]
      %v4669 = vld [vmem:[%s9 + $0x358] sm:$0xff]
      %v4670 = vld [vmem:[%s9 + $0x360] sm:$0xff]
      %v4671 = vld [vmem:[%s9 + $0x368] sm:$0xff]
      %v4672 = vld [vmem:[%s9 + $0x370] sm:$0xff]
      %v4673 = vld [vmem:[%s9 + $0x378] sm:$0xff]
      %v4674 = vld [vmem:[%s9 + $0x380] sm:$0xff]
      %v4675 = vld [vmem:[%s9 + $0x388] sm:$0xff]
      %v4676 = vld [vmem:[%s9 + $0x390] sm:$0xff]
      %v4677 = vld [vmem:[%s9 + $0x398] sm:$0xff]
      %v4678 = vld [vmem:[%s9 + $0x3a0] sm:$0xff]
      %v4679 = vld [vmem:[%s9 + $0x3a8] sm:$0xff]
      %v4680 = vld [vmem:[%s9 + $0x3b0] sm:$0xff]
      %v4681 = vld [vmem:[%s9 + $0x3b8] sm:$0xff]
      %v4682 = vld [vmem:[%s9 + $0x3c0] sm:$0xff]
      %v4683 = vld [vmem:[%s9 + $0x3c8] sm:$0xff]
      %v4684 = vld [vmem:[%s9 + $0x3d0] sm:$0xff]
      %v4685 = vld [vmem:[%s9 + $0x3d8] sm:$0xff]
      %v4686 = vld [vmem:[%s9 + $0x3e0] sm:$0xff]
      %v4687 = vld [vmem:[%s9 + $0x3e8] sm:$0xff]
      %v4688 = vld [vmem:[%s9 + $0x3f0] sm:$0xff]
      %v4689 = vld [vmem:[%s9 + $0x3f8] sm:$0xff]
      %v4690 = vld [vmem:[%s9 + $0x400] sm:$0xff]
      %v4691 = vld [vmem:[%s9 + $0x408] sm:$0xff]
      %v4692 = vld [vmem:[%s9 + $0x410] sm:$0xff]
      %v4693 = vld [vmem:[%s9 + $0x418] sm:$0xff]
      %v4694 = vld [vmem:[%s9 + $0x420] sm:$0xff]
      %v4695 = vld [vmem:[%s9 + $0x428] sm:$0xff]
      %v4696 = vld [vmem:[%s9 + $0x430] sm:$0xff]
      %v4697 = vld [vmem:[%s9 + $0x438] sm:$0xff]
      %v4698 = vld [vmem:[%s9 + $0x440] sm:$0xff]
      %v4699 = vld [vmem:[%s9 + $0x448] sm:$0xff]
      %v4700 = vld [vmem:[%s9 + $0x450] sm:$0xff]
      %v4701 = vld [vmem:[%s9 + $0x458] sm:$0xff]
      %v4702 = vld [vmem:[%s9 + $0x460] sm:$0xff]
      %v4703 = vld [vmem:[%s9 + $0x468] sm:$0xff]
      %v4704 = vld [vmem:[%s9 + $0x470] sm:$0xff]
      %v4705 = vld [vmem:[%s9 + $0x478] sm:$0xff]
      %v4706 = vld [vmem:[%s9 + $0x480] sm:$0xff]
      %v4707 = vld [vmem:[%s9 + $0x488] sm:$0xff]
      %v4708 = vld [vmem:[%s9 + $0x490] sm:$0xff]
      %v4709 = vld [vmem:[%s9 + $0x498] sm:$0xff]
      %v4710 = vld [vmem:[%s9 + $0x4a0] sm:$0xff]
      %v4711 = vld [vmem:[%s9 + $0x4a8] sm:$0xff]
      %v4712 = vld [vmem:[%s9 + $0x4b0] sm:$0xff]
      %v4713 = vld [vmem:[%s9 + $0x4b8] sm:$0xff]
      %v4714 = vld [vmem:[%s9 + $0x4c0] sm:$0xff]
      %v4715 = vld [vmem:[%s9 + $0x4c8] sm:$0xff]
      %v4716 = vld [vmem:[%s9 + $0x4d0] sm:$0xff]
      %v4717 = vld [vmem:[%s9 + $0x4d8] sm:$0xff]
      %v4718 = vld [vmem:[%s9 + $0x4e0] sm:$0xff]
      %v4719 = vld [vmem:[%s9 + $0x4e8] sm:$0xff]
      %v4720 = vld [vmem:[%s9 + $0x4f0] sm:$0xff]
      %v4721 = vld [vmem:[%s9 + $0x4f8] sm:$0xff]
      %v4722 = vld [vmem:[%s9 + $0x500] sm:$0xff]
      %v4723 = vld [vmem:[%s9 + $0x508] sm:$0xff]
      %v4724 = vld [vmem:[%s9 + $0x510] sm:$0xff]
      %v4725 = vld [vmem:[%s9 + $0x518] sm:$0xff]
      %v4726 = vld [vmem:[%s9 + $0x520] sm:$0xff]
      %v4727 = vld [vmem:[%s9 + $0x528] sm:$0xff]
      %v4728 = vld [vmem:[%s9 + $0x530] sm:$0xff]
      %v4729 = vld [vmem:[%s9 + $0x538] sm:$0xff]
      %v4730 = vld [vmem:[%s9 + $0x540] sm:$0xff]
      %v4731 = vld [vmem:[%s9 + $0x548] sm:$0xff]
      %v4732 = vld [vmem:[%s9 + $0x550] sm:$0xff]
      %v4733 = vld [vmem:[%s9 + $0x558] sm:$0xff]
      %v4734 = vld [vmem:[%s9 + $0x560] sm:$0xff]
      %v4735 = vld [vmem:[%s9 + $0x568] sm:$0xff]
      %v4736 = vld [vmem:[%s9 + $0x570] sm:$0xff]
      %v4737 = vld [vmem:[%s9 + $0x578] sm:$0xff]
      %v4738 = vld [vmem:[%s9 + $0x580] sm:$0xff]
      %v4739 = vld [vmem:[%s9 + $0x588] sm:$0xff]
      %v4740 = vld [vmem:[%s9 + $0x590] sm:$0xff]
      %v4741 = vld [vmem:[%s9 + $0x598] sm:$0xff]
      %v4742 = vld [vmem:[%s9 + $0x5a0] sm:$0xff]
      %v4743 = vld [vmem:[%s9 + $0x5a8] sm:$0xff]
      %v4744 = vld [vmem:[%s9 + $0x5b0] sm:$0xff]
      %v4745 = vld [vmem:[%s9 + $0x5b8] sm:$0xff]
      %v4746 = vld [vmem:[%s9 + $0x5c0] sm:$0xff]
      %v4747 = vld [vmem:[%s9 + $0x5c8] sm:$0xff]
      %v4748 = vld [vmem:[%s9 + $0x5d0] sm:$0xff]
      %v4749 = vld [vmem:[%s9 + $0x5d8] sm:$0xff]
      %v4750 = vld [vmem:[%s9 + $0x5e0] sm:$0xff]
      %v4751 = vld [vmem:[%s9 + $0x5e8] sm:$0xff]
      %v4752 = vld [vmem:[%s9 + $0x5f0] sm:$0xff]
      %v4753 = vld [vmem:[%s9 + $0x5f8] sm:$0xff]
      %v4754 = vld [vmem:[%s9 + $0x600] sm:$0xff]
      %v4755 = vld [vmem:[%s9 + $0x608] sm:$0xff]
      %v4756 = vld [vmem:[%s9 + $0x610] sm:$0xff]
      %v4757 = vld [vmem:[%s9 + $0x618] sm:$0xff]
      %v4758 = vld [vmem:[%s9 + $0x620] sm:$0xff]
      %v4759 = vld [vmem:[%s9 + $0x628] sm:$0xff]
      %v4760 = vld [vmem:[%s9 + $0x630] sm:$0xff]
      %v4761 = vld [vmem:[%s9 + $0x638] sm:$0xff]
      %v4762 = vld [vmem:[%s9 + $0x640] sm:$0xff]
      %v4763 = vld [vmem:[%s9 + $0x648] sm:$0xff]
      %v4764 = vld [vmem:[%s9 + $0x650] sm:$0xff]
      %v4765 = vld [vmem:[%s9 + $0x658] sm:$0xff]
      %v4766 = vld [vmem:[%s9 + $0x660] sm:$0xff]
      %v4767 = vld [vmem:[%s9 + $0x668] sm:$0xff]
      %v4768 = vld [vmem:[%s9 + $0x670] sm:$0xff]
      %v4769 = vld [vmem:[%s9 + $0x678] sm:$0xff]
      %v4770 = vld [vmem:[%s9 + $0x680] sm:$0xff]
      %v4771 = vld [vmem:[%s9 + $0x688] sm:$0xff]
      %v4772 = vld [vmem:[%s9 + $0x690] sm:$0xff]
      %v4773 = vld [vmem:[%s9 + $0x698] sm:$0xff]
      %v4774 = vld [vmem:[%s9 + $0x6a0] sm:$0xff]
      %v4775 = vld [vmem:[%s9 + $0x6a8] sm:$0xff]
      %v4776 = vld [vmem:[%s9 + $0x6b0] sm:$0xff]
      %v4777 = vld [vmem:[%s9 + $0x6b8] sm:$0xff]
      %v4778 = vld [vmem:[%s9 + $0x6c0] sm:$0xff]
      %v4779 = vld [vmem:[%s9 + $0x6c8] sm:$0xff]
      %v4780 = vld [vmem:[%s9 + $0x6d0] sm:$0xff]
      %v4781 = vld [vmem:[%s9 + $0x6d8] sm:$0xff]
      %v4782 = vld [vmem:[%s9 + $0x6e0] sm:$0xff]
      %v4783 = vld [vmem:[%s9 + $0x6e8] sm:$0xff]
      %v4784 = vld [vmem:[%s9 + $0x6f0] sm:$0xff]
      %v4785 = vld [vmem:[%s9 + $0x6f8] sm:$0xff]
      %v4786 = vld [vmem:[%s9 + $0x700] sm:$0xff]
      %v4787 = vld [vmem:[%s9 + $0x708] sm:$0xff]
      %v4788 = vld [vmem:[%s9 + $0x710] sm:$0xff]
      %v4789 = vld [vmem:[%s9 + $0x718] sm:$0xff]
      %v4790 = vld [vmem:[%s9 + $0x720] sm:$0xff]
      %v4791 = vld [vmem:[%s9 + $0x728] sm:$0xff]
      %v4792 = vld [vmem:[%s9 + $0x730] sm:$0xff]
      %v4793 = vld [vmem:[%s9 + $0x738] sm:$0xff]
      %v4794 = vld [vmem:[%s9 + $0x740] sm:$0xff]
      %v4795 = vld [vmem:[%s9 + $0x748] sm:$0xff]
      %v4796 = vld [vmem:[%s9 + $0x750] sm:$0xff]
      %v4797 = vld [vmem:[%s9 + $0x758] sm:$0xff]
      %v4798 = vld [vmem:[%s9 + $0x760] sm:$0xff]
      %v4799 = vld [vmem:[%s9 + $0x768] sm:$0xff]
      %v4800 = vld [vmem:[%s9 + $0x770] sm:$0xff]
      %v4801 = vld [vmem:[%s9 + $0x778] sm:$0xff]
      %v4802 = vld [vmem:[%s9 + $0x780] sm:$0xff]
      %v4803 = vld [vmem:[%s9 + $0x788] sm:$0xff]
      %v4804 = vld [vmem:[%s9 + $0x790] sm:$0xff]
      %v4805 = vld [vmem:[%s9 + $0x798] sm:$0xff]
      %v4806 = vld [vmem:[%s9 + $0x7a0] sm:$0xff]
      %v4807 = vld [vmem:[%s9 + $0x7a8] sm:$0xff]
      %v4808 = vld [vmem:[%s9 + $0x7b0] sm:$0xff]
      %v4809 = vld [vmem:[%s9 + $0x7b8] sm:$0xff]
      %v4810 = vld [vmem:[%s9 + $0x7c0] sm:$0xff]
      %v4811 = vld [vmem:[%s9 + $0x7c8] sm:$0xff]
      %v4812 = vld [vmem:[%s9 + $0x7d0] sm:$0xff]
      %v4813 = vld [vmem:[%s9 + $0x7d8] sm:$0xff]
      %v4814 = vld [vmem:[%s9 + $0x7e0] sm:$0xff]
      %v4815 = vld [vmem:[%s9 + $0x7e8] sm:$0xff]
      %v4816 = vld [vmem:[%s9 + $0x7f0] sm:$0xff]
      %v4817 = vld [vmem:[%s9 + $0x7f8] sm:$0xff]
      %v4818 = vld [vmem:[%s10] sm:$0xf]
      %v4820 = vperm.slane %v4818, 0
      %v4821 = vperm.slane %v4818, 1
      %v4822 = vperm.slane %v4818, 2
      %v4823 = vperm.slane %v4818, 3
      %4828 = vmatpush.msra.mxu0 %v4622
      %4829 = vmatpush.msra.mxu0 %v4618
      %4830 = vmatpush.msra.mxu0 %v4614
      %4831 = vmatpush.msra.mxu0 %v4610
      %4832 = vmatpush.msra.mxu0 %v4606
      %4833 = vmatpush.msra.mxu0 %v4602
      %4834 = vmatpush.msra.mxu0 %v4598
      %4835 = vmatpush.msra.mxu0 %v4594
      %4836 = vmatpush.msra.mxu0 %v4590
      %4837 = vmatpush.msra.mxu0 %v4586
      %4838 = vmatpush.msra.mxu0 %v4582
      %4839 = vmatpush.msra.mxu0 %v4578
      %4840 = vmatpush.msra.mxu0 %v4574
      %4841 = vmatpush.msra.mxu0 %v4570
      %4842 = vmatpush.msra.mxu0 %v4566
      %4843 = vmatpush.msra.mxu0 %v4562
      %4844 = vmatmul.f32.gmra.mxu0 %v4434
      %v4845 = vpop.f32.mrf.mxu0
      %v4846 = vadd.f32 %v4820, %v4845
      %4847 = vmatmul.f32.gmra.mxu0 %v4438
      %v4848 = vpop.f32.mrf.mxu0
      %v4849 = vadd.f32 %v4820, %v4848
      %4850 = vmatmul.f32.gmra.mxu0 %v4442
      %v4851 = vpop.f32.mrf.mxu0
      %v4852 = vadd.f32 %v4820, %v4851
      %4853 = vmatmul.f32.gmra.mxu0 %v4446
      %v4854 = vpop.f32.mrf.mxu0
      %v4855 = vadd.f32 %v4820, %v4854
      %4856 = vmatmul.f32.gmra.mxu0 %v4450
      %v4857 = vpop.f32.mrf.mxu0
      %v4858 = vadd.f32 %v4820, %v4857
      %4859 = vmatmul.f32.gmra.mxu0 %v4454
      %v4860 = vpop.f32.mrf.mxu0
      %v4861 = vadd.f32 %v4820, %v4860
      %4862 = vmatmul.f32.gmra.mxu0 %v4458
      %v4863 = vpop.f32.mrf.mxu0
      %v4864 = vadd.f32 %v4820, %v4863
      %4865 = vmatmul.f32.gmra.mxu0 %v4462
      %v4866 = vpop.f32.mrf.mxu0
      %v4867 = vadd.f32 %v4820, %v4866
      %4868 = vmatmul.f32.gmra.mxu0 %v4466
      %v4869 = vpop.f32.mrf.mxu0
      %v4870 = vadd.f32 %v4820, %v4869
      %4871 = vmatmul.f32.gmra.mxu0 %v4470
      %v4872 = vpop.f32.mrf.mxu0
      %v4873 = vadd.f32 %v4820, %v4872
      %4874 = vmatmul.f32.gmra.mxu0 %v4474
      %v4875 = vpop.f32.mrf.mxu0
      %v4876 = vadd.f32 %v4820, %v4875
      %4877 = vmatmul.f32.gmra.mxu0 %v4478
      %v4878 = vpop.f32.mrf.mxu0
      %v4879 = vadd.f32 %v4820, %v4878
      %4880 = vmatmul.f32.gmra.mxu0 %v4482
      %v4881 = vpop.f32.mrf.mxu0
      %v4882 = vadd.f32 %v4820, %v4881
      %4883 = vmatmul.f32.gmra.mxu0 %v4486
      %v4884 = vpop.f32.mrf.mxu0
      %v4885 = vadd.f32 %v4820, %v4884
      %4886 = vmatmul.f32.gmra.mxu0 %v4490
      %v4887 = vpop.f32.mrf.mxu0
      %v4888 = vadd.f32 %v4820, %v4887
      %4889 = vmatmul.f32.gmra.mxu0 %v4494
      %v4890 = vpop.f32.mrf.mxu0
      %v4891 = vadd.f32 %v4820, %v4890
      %4892 = vmatmul.f32.gmra.mxu0 %v4498
      %v4893 = vpop.f32.mrf.mxu0
      %v4894 = vadd.f32 %v4820, %v4893
      %4895 = vmatmul.f32.gmra.mxu0 %v4502
      %v4896 = vpop.f32.mrf.mxu0
      %v4897 = vadd.f32 %v4820, %v4896
      %4898 = vmatmul.f32.gmra.mxu0 %v4506
      %v4899 = vpop.f32.mrf.mxu0
      %v4900 = vadd.f32 %v4820, %v4899
      %4901 = vmatmul.f32.gmra.mxu0 %v4510
      %v4902 = vpop.f32.mrf.mxu0
      %v4903 = vadd.f32 %v4820, %v4902
      %4904 = vmatmul.f32.gmra.mxu0 %v4514
      %v4905 = vpop.f32.mrf.mxu0
      %v4906 = vadd.f32 %v4820, %v4905
      %4907 = vmatmul.f32.gmra.mxu0 %v4518
      %v4908 = vpop.f32.mrf.mxu0
      %v4909 = vadd.f32 %v4820, %v4908
      %4910 = vmatmul.f32.gmra.mxu0 %v4522
      %v4911 = vpop.f32.mrf.mxu0
      %v4912 = vadd.f32 %v4820, %v4911
      %4913 = vmatmul.f32.gmra.mxu0 %v4526
      %v4914 = vpop.f32.mrf.mxu0
      %v4915 = vadd.f32 %v4820, %v4914
      %4916 = vmatmul.f32.gmra.mxu0 %v4530
      %v4917 = vpop.f32.mrf.mxu0
      %v4918 = vadd.f32 %v4820, %v4917
      %4919 = vmatmul.f32.gmra.mxu0 %v4534
      %v4920 = vpop.f32.mrf.mxu0
      %v4921 = vadd.f32 %v4820, %v4920
      %4922 = vmatmul.f32.gmra.mxu0 %v4538
      %v4923 = vpop.f32.mrf.mxu0
      %v4924 = vadd.f32 %v4820, %v4923
      %4925 = vmatmul.f32.gmra.mxu0 %v4542
      %v4926 = vpop.f32.mrf.mxu0
      %v4927 = vadd.f32 %v4820, %v4926
      %4928 = vmatmul.f32.gmra.mxu0 %v4546
      %v4929 = vpop.f32.mrf.mxu0
      %v4930 = vadd.f32 %v4820, %v4929
      %4931 = vmatmul.f32.gmra.mxu0 %v4550
      %v4932 = vpop.f32.mrf.mxu0
      %v4933 = vadd.f32 %v4820, %v4932
      %4934 = vmatmul.f32.gmra.mxu0 %v4554
      %v4935 = vpop.f32.mrf.mxu0
      %v4936 = vadd.f32 %v4820, %v4935
      %4937 = vmatmul.f32.gmra.mxu0 %v4558
      %v4938 = vpop.f32.mrf.mxu0
      %v4939 = vadd.f32 %v4820, %v4938
      %4940 = vdwg.mxu0
      %4941 = vmatpush.msra.mxu0 %v4686
      %4942 = vmatpush.msra.mxu0 %v4682
      %4943 = vmatpush.msra.mxu0 %v4678
      %4944 = vmatpush.msra.mxu0 %v4674
      %4945 = vmatpush.msra.mxu0 %v4670
      %4946 = vmatpush.msra.mxu0 %v4666
      %4947 = vmatpush.msra.mxu0 %v4662
      %4948 = vmatpush.msra.mxu0 %v4658
      %4949 = vmatpush.msra.mxu0 %v4654
      %4950 = vmatpush.msra.mxu0 %v4650
      %4951 = vmatpush.msra.mxu0 %v4646
      %4952 = vmatpush.msra.mxu0 %v4642
      %4953 = vmatpush.msra.mxu0 %v4638
      %4954 = vmatpush.msra.mxu0 %v4634
      %4955 = vmatpush.msra.mxu0 %v4630
      %4956 = vmatpush.msra.mxu0 %v4626
      %4957 = vmatmul.f32.gmra.mxu0 %v4435
      %v4958 = vpop.f32.mrf.mxu0
      %v4959 = vadd.f32 %v4846, %v4958
      %4960 = vmatmul.f32.gmra.mxu0 %v4439
      %v4961 = vpop.f32.mrf.mxu0
      %v4962 = vadd.f32 %v4849, %v4961
      %4963 = vmatmul.f32.gmra.mxu0 %v4443
      %v4964 = vpop.f32.mrf.mxu0
      %v4965 = vadd.f32 %v4852, %v4964
      %4966 = vmatmul.f32.gmra.mxu0 %v4447
      %v4967 = vpop.f32.mrf.mxu0
      %v4968 = vadd.f32 %v4855, %v4967
      %4969 = vmatmul.f32.gmra.mxu0 %v4451
      %v4970 = vpop.f32.mrf.mxu0
      %v4971 = vadd.f32 %v4858, %v4970
      %4972 = vmatmul.f32.gmra.mxu0 %v4455
      %v4973 = vpop.f32.mrf.mxu0
      %v4974 = vadd.f32 %v4861, %v4973
      %4975 = vmatmul.f32.gmra.mxu0 %v4459
      %v4976 = vpop.f32.mrf.mxu0
      %v4977 = vadd.f32 %v4864, %v4976
      %4978 = vmatmul.f32.gmra.mxu0 %v4463
      %v4979 = vpop.f32.mrf.mxu0
      %v4980 = vadd.f32 %v4867, %v4979
      %4981 = vmatmul.f32.gmra.mxu0 %v4467
      %v4982 = vpop.f32.mrf.mxu0
      %v4983 = vadd.f32 %v4870, %v4982
      %4984 = vmatmul.f32.gmra.mxu0 %v4471
      %v4985 = vpop.f32.mrf.mxu0
      %v4986 = vadd.f32 %v4873, %v4985
      %4987 = vmatmul.f32.gmra.mxu0 %v4475
      %v4988 = vpop.f32.mrf.mxu0
      %v4989 = vadd.f32 %v4876, %v4988
      %4990 = vmatmul.f32.gmra.mxu0 %v4479
      %v4991 = vpop.f32.mrf.mxu0
      %v4992 = vadd.f32 %v4879, %v4991
      %4993 = vmatmul.f32.gmra.mxu0 %v4483
      %v4994 = vpop.f32.mrf.mxu0
      %v4995 = vadd.f32 %v4882, %v4994
      %4996 = vmatmul.f32.gmra.mxu0 %v4487
      %v4997 = vpop.f32.mrf.mxu0
      %v4998 = vadd.f32 %v4885, %v4997
      %4999 = vmatmul.f32.gmra.mxu0 %v4491
      %v5000 = vpop.f32.mrf.mxu0
      %v5001 = vadd.f32 %v4888, %v5000
      %5002 = vmatmul.f32.gmra.mxu0 %v4495
      %v5003 = vpop.f32.mrf.mxu0
      %v5004 = vadd.f32 %v4891, %v5003
      %5005 = vmatmul.f32.gmra.mxu0 %v4499
      %v5006 = vpop.f32.mrf.mxu0
      %v5007 = vadd.f32 %v4894, %v5006
      %5008 = vmatmul.f32.gmra.mxu0 %v4503
      %v5009 = vpop.f32.mrf.mxu0
      %v5010 = vadd.f32 %v4897, %v5009
      %5011 = vmatmul.f32.gmra.mxu0 %v4507
      %v5012 = vpop.f32.mrf.mxu0
      %v5013 = vadd.f32 %v4900, %v5012
      %5014 = vmatmul.f32.gmra.mxu0 %v4511
      %v5015 = vpop.f32.mrf.mxu0
      %v5016 = vadd.f32 %v4903, %v5015
      %5017 = vmatmul.f32.gmra.mxu0 %v4515
      %v5018 = vpop.f32.mrf.mxu0
      %v5019 = vadd.f32 %v4906, %v5018
      %5020 = vmatmul.f32.gmra.mxu0 %v4519
      %v5021 = vpop.f32.mrf.mxu0
      %v5022 = vadd.f32 %v4909, %v5021
      %5023 = vmatmul.f32.gmra.mxu0 %v4523
      %v5024 = vpop.f32.mrf.mxu0
      %v5025 = vadd.f32 %v4912, %v5024
      %5026 = vmatmul.f32.gmra.mxu0 %v4527
      %v5027 = vpop.f32.mrf.mxu0
      %v5028 = vadd.f32 %v4915, %v5027
      %5029 = vmatmul.f32.gmra.mxu0 %v4531
      %v5030 = vpop.f32.mrf.mxu0
      %v5031 = vadd.f32 %v4918, %v5030
      %5032 = vmatmul.f32.gmra.mxu0 %v4535
      %v5033 = vpop.f32.mrf.mxu0
      %v5034 = vadd.f32 %v4921, %v5033
      %5035 = vmatmul.f32.gmra.mxu0 %v4539
      %v5036 = vpop.f32.mrf.mxu0
      %v5037 = vadd.f32 %v4924, %v5036
      %5038 = vmatmul.f32.gmra.mxu0 %v4543
      %v5039 = vpop.f32.mrf.mxu0
      %v5040 = vadd.f32 %v4927, %v5039
      %5041 = vmatmul.f32.gmra.mxu0 %v4547
      %v5042 = vpop.f32.mrf.mxu0
      %v5043 = vadd.f32 %v4930, %v5042
      %5044 = vmatmul.f32.gmra.mxu0 %v4551
      %v5045 = vpop.f32.mrf.mxu0
      %v5046 = vadd.f32 %v4933, %v5045
      %5047 = vmatmul.f32.gmra.mxu0 %v4555
      %v5048 = vpop.f32.mrf.mxu0
      %v5049 = vadd.f32 %v4936, %v5048
      %5050 = vmatmul.f32.gmra.mxu0 %v4559
      %v5051 = vpop.f32.mrf.mxu0
      %v5052 = vadd.f32 %v4939, %v5051
      %5053 = vdwg.mxu0
      %5054 = vmatpush.msra.mxu0 %v4750
      %5055 = vmatpush.msra.mxu0 %v4746
      %5056 = vmatpush.msra.mxu0 %v4742
      %5057 = vmatpush.msra.mxu0 %v4738
      %5058 = vmatpush.msra.mxu0 %v4734
      %5059 = vmatpush.msra.mxu0 %v4730
      %5060 = vmatpush.msra.mxu0 %v4726
      %5061 = vmatpush.msra.mxu0 %v4722
      %5062 = vmatpush.msra.mxu0 %v4718
      %5063 = vmatpush.msra.mxu0 %v4714
      %5064 = vmatpush.msra.mxu0 %v4710
      %5065 = vmatpush.msra.mxu0 %v4706
      %5066 = vmatpush.msra.mxu0 %v4702
      %5067 = vmatpush.msra.mxu0 %v4698
      %5068 = vmatpush.msra.mxu0 %v4694
      %5069 = vmatpush.msra.mxu0 %v4690
      %5070 = vmatmul.f32.gmra.mxu0 %v4436
      %v5071 = vpop.f32.mrf.mxu0
      %v5072 = vadd.f32 %v4959, %v5071
      %5073 = vmatmul.f32.gmra.mxu0 %v4440
      %v5074 = vpop.f32.mrf.mxu0
      %v5075 = vadd.f32 %v4962, %v5074
      %5076 = vmatmul.f32.gmra.mxu0 %v4444
      %v5077 = vpop.f32.mrf.mxu0
      %v5078 = vadd.f32 %v4965, %v5077
      %5079 = vmatmul.f32.gmra.mxu0 %v4448
      %v5080 = vpop.f32.mrf.mxu0
      %v5081 = vadd.f32 %v4968, %v5080
      %5082 = vmatmul.f32.gmra.mxu0 %v4452
      %v5083 = vpop.f32.mrf.mxu0
      %v5084 = vadd.f32 %v4971, %v5083
      %5085 = vmatmul.f32.gmra.mxu0 %v4456
      %v5086 = vpop.f32.mrf.mxu0
      %v5087 = vadd.f32 %v4974, %v5086
      %5088 = vmatmul.f32.gmra.mxu0 %v4460
      %v5089 = vpop.f32.mrf.mxu0
      %v5090 = vadd.f32 %v4977, %v5089
      %5091 = vmatmul.f32.gmra.mxu0 %v4464
      %v5092 = vpop.f32.mrf.mxu0
      %v5093 = vadd.f32 %v4980, %v5092
      %5094 = vmatmul.f32.gmra.mxu0 %v4468
      %v5095 = vpop.f32.mrf.mxu0
      %v5096 = vadd.f32 %v4983, %v5095
      %5097 = vmatmul.f32.gmra.mxu0 %v4472
      %v5098 = vpop.f32.mrf.mxu0
      %v5099 = vadd.f32 %v4986, %v5098
      %5100 = vmatmul.f32.gmra.mxu0 %v4476
      %v5101 = vpop.f32.mrf.mxu0
      %v5102 = vadd.f32 %v4989, %v5101
      %5103 = vmatmul.f32.gmra.mxu0 %v4480
      %v5104 = vpop.f32.mrf.mxu0
      %v5105 = vadd.f32 %v4992, %v5104
      %5106 = vmatmul.f32.gmra.mxu0 %v4484
      %v5107 = vpop.f32.mrf.mxu0
      %v5108 = vadd.f32 %v4995, %v5107
      %5109 = vmatmul.f32.gmra.mxu0 %v4488
      %v5110 = vpop.f32.mrf.mxu0
      %v5111 = vadd.f32 %v4998, %v5110
      %5112 = vmatmul.f32.gmra.mxu0 %v4492
      %v5113 = vpop.f32.mrf.mxu0
      %v5114 = vadd.f32 %v5001, %v5113
      %5115 = vmatmul.f32.gmra.mxu0 %v4496
      %v5116 = vpop.f32.mrf.mxu0
      %v5117 = vadd.f32 %v5004, %v5116
      %5118 = vmatmul.f32.gmra.mxu0 %v4500
      %v5119 = vpop.f32.mrf.mxu0
      %v5120 = vadd.f32 %v5007, %v5119
      %5121 = vmatmul.f32.gmra.mxu0 %v4504
      %v5122 = vpop.f32.mrf.mxu0
      %v5123 = vadd.f32 %v5010, %v5122
      %5124 = vmatmul.f32.gmra.mxu0 %v4508
      %v5125 = vpop.f32.mrf.mxu0
      %v5126 = vadd.f32 %v5013, %v5125
      %5127 = vmatmul.f32.gmra.mxu0 %v4512
      %v5128 = vpop.f32.mrf.mxu0
      %v5129 = vadd.f32 %v5016, %v5128
      %5130 = vmatmul.f32.gmra.mxu0 %v4516
      %v5131 = vpop.f32.mrf.mxu0
      %v5132 = vadd.f32 %v5019, %v5131
      %5133 = vmatmul.f32.gmra.mxu0 %v4520
      %v5134 = vpop.f32.mrf.mxu0
      %v5135 = vadd.f32 %v5022, %v5134
      %5136 = vmatmul.f32.gmra.mxu0 %v4524
      %v5137 = vpop.f32.mrf.mxu0
      %v5138 = vadd.f32 %v5025, %v5137
      %5139 = vmatmul.f32.gmra.mxu0 %v4528
      %v5140 = vpop.f32.mrf.mxu0
      %v5141 = vadd.f32 %v5028, %v5140
      %5142 = vmatmul.f32.gmra.mxu0 %v4532
      %v5143 = vpop.f32.mrf.mxu0
      %v5144 = vadd.f32 %v5031, %v5143
      %5145 = vmatmul.f32.gmra.mxu0 %v4536
      %v5146 = vpop.f32.mrf.mxu0
      %v5147 = vadd.f32 %v5034, %v5146
      %5148 = vmatmul.f32.gmra.mxu0 %v4540
      %v5149 = vpop.f32.mrf.mxu0
      %v5150 = vadd.f32 %v5037, %v5149
      %5151 = vmatmul.f32.gmra.mxu0 %v4544
      %v5152 = vpop.f32.mrf.mxu0
      %v5153 = vadd.f32 %v5040, %v5152
      %5154 = vmatmul.f32.gmra.mxu0 %v4548
      %v5155 = vpop.f32.mrf.mxu0
      %v5156 = vadd.f32 %v5043, %v5155
      %5157 = vmatmul.f32.gmra.mxu0 %v4552
      %v5158 = vpop.f32.mrf.mxu0
      %v5159 = vadd.f32 %v5046, %v5158
      %5160 = vmatmul.f32.gmra.mxu0 %v4556
      %v5161 = vpop.f32.mrf.mxu0
      %v5162 = vadd.f32 %v5049, %v5161
      %5163 = vmatmul.f32.gmra.mxu0 %v4560
      %v5164 = vpop.f32.mrf.mxu0
      %v5165 = vadd.f32 %v5052, %v5164
      %5166 = vdwg.mxu0
      %5167 = vmatpush.msra.mxu0 %v4814
      %5168 = vmatpush.msra.mxu0 %v4810
      %5169 = vmatpush.msra.mxu0 %v4806
      %5170 = vmatpush.msra.mxu0 %v4802
      %5171 = vmatpush.msra.mxu0 %v4798
      %5172 = vmatpush.msra.mxu0 %v4794
      %5173 = vmatpush.msra.mxu0 %v4790
      %5174 = vmatpush.msra.mxu0 %v4786
      %5175 = vmatpush.msra.mxu0 %v4782
      %5176 = vmatpush.msra.mxu0 %v4778
      %5177 = vmatpush.msra.mxu0 %v4774
      %5178 = vmatpush.msra.mxu0 %v4770
      %5179 = vmatpush.msra.mxu0 %v4766
      %5180 = vmatpush.msra.mxu0 %v4762
      %5181 = vmatpush.msra.mxu0 %v4758
      %5182 = vmatpush.msra.mxu0 %v4754
      %5183 = vmatmul.f32.gmra.mxu0 %v4437
      %v5184 = vpop.f32.mrf.mxu0
      %v5185 = vadd.f32 %v5072, %v5184
      %5186 = vmatmul.f32.gmra.mxu0 %v4441
      %v5187 = vpop.f32.mrf.mxu0
      %v5188 = vadd.f32 %v5075, %v5187
      %5189 = vmatmul.f32.gmra.mxu0 %v4445
      %v5190 = vpop.f32.mrf.mxu0
      %v5191 = vadd.f32 %v5078, %v5190
      %5192 = vmatmul.f32.gmra.mxu0 %v4449
      %v5193 = vpop.f32.mrf.mxu0
      %v5194 = vadd.f32 %v5081, %v5193
      %5195 = vmatmul.f32.gmra.mxu0 %v4453
      %v5196 = vpop.f32.mrf.mxu0
      %v5197 = vadd.f32 %v5084, %v5196
      %5198 = vmatmul.f32.gmra.mxu0 %v4457
      %v5199 = vpop.f32.mrf.mxu0
      %v5200 = vadd.f32 %v5087, %v5199
      %5201 = vmatmul.f32.gmra.mxu0 %v4461
      %v5202 = vpop.f32.mrf.mxu0
      %v5203 = vadd.f32 %v5090, %v5202
      %5204 = vmatmul.f32.gmra.mxu0 %v4465
      %v5205 = vpop.f32.mrf.mxu0
      %v5206 = vadd.f32 %v5093, %v5205
      %5207 = vmatmul.f32.gmra.mxu0 %v4469
      %v5208 = vpop.f32.mrf.mxu0
      %v5209 = vadd.f32 %v5096, %v5208
      %5210 = vmatmul.f32.gmra.mxu0 %v4473
      %v5211 = vpop.f32.mrf.mxu0
      %v5212 = vadd.f32 %v5099, %v5211
      %5213 = vmatmul.f32.gmra.mxu0 %v4477
      %v5214 = vpop.f32.mrf.mxu0
      %v5215 = vadd.f32 %v5102, %v5214
      %5216 = vmatmul.f32.gmra.mxu0 %v4481
      %v5217 = vpop.f32.mrf.mxu0
      %v5218 = vadd.f32 %v5105, %v5217
      %5219 = vmatmul.f32.gmra.mxu0 %v4485
      %v5220 = vpop.f32.mrf.mxu0
      %v5221 = vadd.f32 %v5108, %v5220
      %5222 = vmatmul.f32.gmra.mxu0 %v4489
      %v5223 = vpop.f32.mrf.mxu0
      %v5224 = vadd.f32 %v5111, %v5223
      %5225 = vmatmul.f32.gmra.mxu0 %v4493
      %v5226 = vpop.f32.mrf.mxu0
      %v5227 = vadd.f32 %v5114, %v5226
      %5228 = vmatmul.f32.gmra.mxu0 %v4497
      %v5229 = vpop.f32.mrf.mxu0
      %v5230 = vadd.f32 %v5117, %v5229
      %5231 = vmatmul.f32.gmra.mxu0 %v4501
      %v5232 = vpop.f32.mrf.mxu0
      %v5233 = vadd.f32 %v5120, %v5232
      %5234 = vmatmul.f32.gmra.mxu0 %v4505
      %v5235 = vpop.f32.mrf.mxu0
      %v5236 = vadd.f32 %v5123, %v5235
      %5237 = vmatmul.f32.gmra.mxu0 %v4509
      %v5238 = vpop.f32.mrf.mxu0
      %v5239 = vadd.f32 %v5126, %v5238
      %5240 = vmatmul.f32.gmra.mxu0 %v4513
      %v5241 = vpop.f32.mrf.mxu0
      %v5242 = vadd.f32 %v5129, %v5241
      %5243 = vmatmul.f32.gmra.mxu0 %v4517
      %v5244 = vpop.f32.mrf.mxu0
      %v5245 = vadd.f32 %v5132, %v5244
      %5246 = vmatmul.f32.gmra.mxu0 %v4521
      %v5247 = vpop.f32.mrf.mxu0
      %v5248 = vadd.f32 %v5135, %v5247
      %5249 = vmatmul.f32.gmra.mxu0 %v4525
      %v5250 = vpop.f32.mrf.mxu0
      %v5251 = vadd.f32 %v5138, %v5250
      %5252 = vmatmul.f32.gmra.mxu0 %v4529
      %v5253 = vpop.f32.mrf.mxu0
      %v5254 = vadd.f32 %v5141, %v5253
      %5255 = vmatmul.f32.gmra.mxu0 %v4533
      %v5256 = vpop.f32.mrf.mxu0
      %v5257 = vadd.f32 %v5144, %v5256
      %5258 = vmatmul.f32.gmra.mxu0 %v4537
      %v5259 = vpop.f32.mrf.mxu0
      %v5260 = vadd.f32 %v5147, %v5259
      %5261 = vmatmul.f32.gmra.mxu0 %v4541
      %v5262 = vpop.f32.mrf.mxu0
      %v5263 = vadd.f32 %v5150, %v5262
      %5264 = vmatmul.f32.gmra.mxu0 %v4545
      %v5265 = vpop.f32.mrf.mxu0
      %v5266 = vadd.f32 %v5153, %v5265
      %5267 = vmatmul.f32.gmra.mxu0 %v4549
      %v5268 = vpop.f32.mrf.mxu0
      %v5269 = vadd.f32 %v5156, %v5268
      %5270 = vmatmul.f32.gmra.mxu0 %v4553
      %v5271 = vpop.f32.mrf.mxu0
      %v5272 = vadd.f32 %v5159, %v5271
      %5273 = vmatmul.f32.gmra.mxu0 %v4557
      %v5274 = vpop.f32.mrf.mxu0
      %v5275 = vadd.f32 %v5162, %v5274
      %5276 = vmatmul.f32.gmra.mxu0 %v4561
      %v5277 = vpop.f32.mrf.mxu0
      %v5278 = vadd.f32 %v5165, %v5277
      %5279 = vdwg.mxu0
      %5280 = vmatpush.msra.mxu0 %v4623
      %5281 = vmatpush.msra.mxu0 %v4619
      %5282 = vmatpush.msra.mxu0 %v4615
      %5283 = vmatpush.msra.mxu0 %v4611
      %5284 = vmatpush.msra.mxu0 %v4607
      %5285 = vmatpush.msra.mxu0 %v4603
      %5286 = vmatpush.msra.mxu0 %v4599
      %5287 = vmatpush.msra.mxu0 %v4595
      %5288 = vmatpush.msra.mxu0 %v4591
      %5289 = vmatpush.msra.mxu0 %v4587
      %5290 = vmatpush.msra.mxu0 %v4583
      %5291 = vmatpush.msra.mxu0 %v4579
      %5292 = vmatpush.msra.mxu0 %v4575
      %5293 = vmatpush.msra.mxu0 %v4571
      %5294 = vmatpush.msra.mxu0 %v4567
      %5295 = vmatpush.msra.mxu0 %v4563
      %5296 = vmatmul.f32.gmra.mxu0 %v4434
      %v5297 = vpop.f32.mrf.mxu0
      %v5298 = vadd.f32 %v4821, %v5297
      %5299 = vmatmul.f32.gmra.mxu0 %v4438
      %v5300 = vpop.f32.mrf.mxu0
      %v5301 = vadd.f32 %v4821, %v5300
      %5302 = vmatmul.f32.gmra.mxu0 %v4442
      %v5303 = vpop.f32.mrf.mxu0
      %v5304 = vadd.f32 %v4821, %v5303
      %5305 = vmatmul.f32.gmra.mxu0 %v4446
      %v5306 = vpop.f32.mrf.mxu0
      %v5307 = vadd.f32 %v4821, %v5306
      %5308 = vmatmul.f32.gmra.mxu0 %v4450
      %v5309 = vpop.f32.mrf.mxu0
      %v5310 = vadd.f32 %v4821, %v5309
      %5311 = vmatmul.f32.gmra.mxu0 %v4454
      %v5312 = vpop.f32.mrf.mxu0
      %v5313 = vadd.f32 %v4821, %v5312
      %5314 = vmatmul.f32.gmra.mxu0 %v4458
      %v5315 = vpop.f32.mrf.mxu0
      %v5316 = vadd.f32 %v4821, %v5315
      %5317 = vmatmul.f32.gmra.mxu0 %v4462
      %v5318 = vpop.f32.mrf.mxu0
      %v5319 = vadd.f32 %v4821, %v5318
      %5320 = vmatmul.f32.gmra.mxu0 %v4466
      %v5321 = vpop.f32.mrf.mxu0
      %v5322 = vadd.f32 %v4821, %v5321
      %5323 = vmatmul.f32.gmra.mxu0 %v4470
      %v5324 = vpop.f32.mrf.mxu0
      %v5325 = vadd.f32 %v4821, %v5324
      %5326 = vmatmul.f32.gmra.mxu0 %v4474
      %v5327 = vpop.f32.mrf.mxu0
      %v5328 = vadd.f32 %v4821, %v5327
      %5329 = vmatmul.f32.gmra.mxu0 %v4478
      %v5330 = vpop.f32.mrf.mxu0
      %v5331 = vadd.f32 %v4821, %v5330
      %5332 = vmatmul.f32.gmra.mxu0 %v4482
      %v5333 = vpop.f32.mrf.mxu0
      %v5334 = vadd.f32 %v4821, %v5333
      %5335 = vmatmul.f32.gmra.mxu0 %v4486
      %v5336 = vpop.f32.mrf.mxu0
      %v5337 = vadd.f32 %v4821, %v5336
      %5338 = vmatmul.f32.gmra.mxu0 %v4490
      %v5339 = vpop.f32.mrf.mxu0
      %v5340 = vadd.f32 %v4821, %v5339
      %5341 = vmatmul.f32.gmra.mxu0 %v4494
      %v5342 = vpop.f32.mrf.mxu0
      %v5343 = vadd.f32 %v4821, %v5342
      %5344 = vmatmul.f32.gmra.mxu0 %v4498
      %v5345 = vpop.f32.mrf.mxu0
      %v5346 = vadd.f32 %v4821, %v5345
      %5347 = vmatmul.f32.gmra.mxu0 %v4502
      %v5348 = vpop.f32.mrf.mxu0
      %v5349 = vadd.f32 %v4821, %v5348
      %5350 = vmatmul.f32.gmra.mxu0 %v4506
      %v5351 = vpop.f32.mrf.mxu0
      %v5352 = vadd.f32 %v4821, %v5351
      %5353 = vmatmul.f32.gmra.mxu0 %v4510
      %v5354 = vpop.f32.mrf.mxu0
      %v5355 = vadd.f32 %v4821, %v5354
      %5356 = vmatmul.f32.gmra.mxu0 %v4514
      %v5357 = vpop.f32.mrf.mxu0
      %v5358 = vadd.f32 %v4821, %v5357
      %5359 = vmatmul.f32.gmra.mxu0 %v4518
      %v5360 = vpop.f32.mrf.mxu0
      %v5361 = vadd.f32 %v4821, %v5360
      %5362 = vmatmul.f32.gmra.mxu0 %v4522
      %v5363 = vpop.f32.mrf.mxu0
      %v5364 = vadd.f32 %v4821, %v5363
      %5365 = vmatmul.f32.gmra.mxu0 %v4526
      %v5366 = vpop.f32.mrf.mxu0
      %v5367 = vadd.f32 %v4821, %v5366
      %5368 = vmatmul.f32.gmra.mxu0 %v4530
      %v5369 = vpop.f32.mrf.mxu0
      %v5370 = vadd.f32 %v4821, %v5369
      %5371 = vmatmul.f32.gmra.mxu0 %v4534
      %v5372 = vpop.f32.mrf.mxu0
      %v5373 = vadd.f32 %v4821, %v5372
      %5374 = vmatmul.f32.gmra.mxu0 %v4538
      %v5375 = vpop.f32.mrf.mxu0
      %v5376 = vadd.f32 %v4821, %v5375
      %5377 = vmatmul.f32.gmra.mxu0 %v4542
      %v5378 = vpop.f32.mrf.mxu0
      %v5379 = vadd.f32 %v4821, %v5378
      %5380 = vmatmul.f32.gmra.mxu0 %v4546
      %v5381 = vpop.f32.mrf.mxu0
      %v5382 = vadd.f32 %v4821, %v5381
      %5383 = vmatmul.f32.gmra.mxu0 %v4550
      %v5384 = vpop.f32.mrf.mxu0
      %v5385 = vadd.f32 %v4821, %v5384
      %5386 = vmatmul.f32.gmra.mxu0 %v4554
      %v5387 = vpop.f32.mrf.mxu0
      %v5388 = vadd.f32 %v4821, %v5387
      %5389 = vmatmul.f32.gmra.mxu0 %v4558
      %v5390 = vpop.f32.mrf.mxu0
      %v5391 = vadd.f32 %v4821, %v5390
      %5392 = vdwg.mxu0
      %5393 = vmatpush.msra.mxu0 %v4687
      %5394 = vmatpush.msra.mxu0 %v4683
      %5395 = vmatpush.msra.mxu0 %v4679
      %5396 = vmatpush.msra.mxu0 %v4675
      %5397 = vmatpush.msra.mxu0 %v4671
      %5398 = vmatpush.msra.mxu0 %v4667
      %5399 = vmatpush.msra.mxu0 %v4663
      %5400 = vmatpush.msra.mxu0 %v4659
      %5401 = vmatpush.msra.mxu0 %v4655
      %5402 = vmatpush.msra.mxu0 %v4651
      %5403 = vmatpush.msra.mxu0 %v4647
      %5404 = vmatpush.msra.mxu0 %v4643
      %5405 = vmatpush.msra.mxu0 %v4639
      %5406 = vmatpush.msra.mxu0 %v4635
      %5407 = vmatpush.msra.mxu0 %v4631
      %5408 = vmatpush.msra.mxu0 %v4627
      %5409 = vmatmul.f32.gmra.mxu0 %v4435
      %v5410 = vpop.f32.mrf.mxu0
      %v5411 = vadd.f32 %v5298, %v5410
      %5412 = vmatmul.f32.gmra.mxu0 %v4439
      %v5413 = vpop.f32.mrf.mxu0
      %v5414 = vadd.f32 %v5301, %v5413
      %5415 = vmatmul.f32.gmra.mxu0 %v4443
      %v5416 = vpop.f32.mrf.mxu0
      %v5417 = vadd.f32 %v5304, %v5416
      %5418 = vmatmul.f32.gmra.mxu0 %v4447
      %v5419 = vpop.f32.mrf.mxu0
      %v5420 = vadd.f32 %v5307, %v5419
      %5421 = vmatmul.f32.gmra.mxu0 %v4451
      %v5422 = vpop.f32.mrf.mxu0
      %v5423 = vadd.f32 %v5310, %v5422
      %5424 = vmatmul.f32.gmra.mxu0 %v4455
      %v5425 = vpop.f32.mrf.mxu0
      %v5426 = vadd.f32 %v5313, %v5425
      %5427 = vmatmul.f32.gmra.mxu0 %v4459
      %v5428 = vpop.f32.mrf.mxu0
      %v5429 = vadd.f32 %v5316, %v5428
      %5430 = vmatmul.f32.gmra.mxu0 %v4463
      %v5431 = vpop.f32.mrf.mxu0
      %v5432 = vadd.f32 %v5319, %v5431
      %5433 = vmatmul.f32.gmra.mxu0 %v4467
      %v5434 = vpop.f32.mrf.mxu0
      %v5435 = vadd.f32 %v5322, %v5434
      %5436 = vmatmul.f32.gmra.mxu0 %v4471
      %v5437 = vpop.f32.mrf.mxu0
      %v5438 = vadd.f32 %v5325, %v5437
      %5439 = vmatmul.f32.gmra.mxu0 %v4475
      %v5440 = vpop.f32.mrf.mxu0
      %v5441 = vadd.f32 %v5328, %v5440
      %5442 = vmatmul.f32.gmra.mxu0 %v4479
      %v5443 = vpop.f32.mrf.mxu0
      %v5444 = vadd.f32 %v5331, %v5443
      %5445 = vmatmul.f32.gmra.mxu0 %v4483
      %v5446 = vpop.f32.mrf.mxu0
      %v5447 = vadd.f32 %v5334, %v5446
      %5448 = vmatmul.f32.gmra.mxu0 %v4487
      %v5449 = vpop.f32.mrf.mxu0
      %v5450 = vadd.f32 %v5337, %v5449
      %5451 = vmatmul.f32.gmra.mxu0 %v4491
      %v5452 = vpop.f32.mrf.mxu0
      %v5453 = vadd.f32 %v5340, %v5452
      %5454 = vmatmul.f32.gmra.mxu0 %v4495
      %v5455 = vpop.f32.mrf.mxu0
      %v5456 = vadd.f32 %v5343, %v5455
      %5457 = vmatmul.f32.gmra.mxu0 %v4499
      %v5458 = vpop.f32.mrf.mxu0
      %v5459 = vadd.f32 %v5346, %v5458
      %5460 = vmatmul.f32.gmra.mxu0 %v4503
      %v5461 = vpop.f32.mrf.mxu0
      %v5462 = vadd.f32 %v5349, %v5461
      %5463 = vmatmul.f32.gmra.mxu0 %v4507
      %v5464 = vpop.f32.mrf.mxu0
      %v5465 = vadd.f32 %v5352, %v5464
      %5466 = vmatmul.f32.gmra.mxu0 %v4511
      %v5467 = vpop.f32.mrf.mxu0
      %v5468 = vadd.f32 %v5355, %v5467
      %5469 = vmatmul.f32.gmra.mxu0 %v4515
      %v5470 = vpop.f32.mrf.mxu0
      %v5471 = vadd.f32 %v5358, %v5470
      %5472 = vmatmul.f32.gmra.mxu0 %v4519
      %v5473 = vpop.f32.mrf.mxu0
      %v5474 = vadd.f32 %v5361, %v5473
      %5475 = vmatmul.f32.gmra.mxu0 %v4523
      %v5476 = vpop.f32.mrf.mxu0
      %v5477 = vadd.f32 %v5364, %v5476
      %5478 = vmatmul.f32.gmra.mxu0 %v4527
      %v5479 = vpop.f32.mrf.mxu0
      %v5480 = vadd.f32 %v5367, %v5479
      %5481 = vmatmul.f32.gmra.mxu0 %v4531
      %v5482 = vpop.f32.mrf.mxu0
      %v5483 = vadd.f32 %v5370, %v5482
      %5484 = vmatmul.f32.gmra.mxu0 %v4535
      %v5485 = vpop.f32.mrf.mxu0
      %v5486 = vadd.f32 %v5373, %v5485
      %5487 = vmatmul.f32.gmra.mxu0 %v4539
      %v5488 = vpop.f32.mrf.mxu0
      %v5489 = vadd.f32 %v5376, %v5488
      %5490 = vmatmul.f32.gmra.mxu0 %v4543
      %v5491 = vpop.f32.mrf.mxu0
      %v5492 = vadd.f32 %v5379, %v5491
      %5493 = vmatmul.f32.gmra.mxu0 %v4547
      %v5494 = vpop.f32.mrf.mxu0
      %v5495 = vadd.f32 %v5382, %v5494
      %5496 = vmatmul.f32.gmra.mxu0 %v4551
      %v5497 = vpop.f32.mrf.mxu0
      %v5498 = vadd.f32 %v5385, %v5497
      %5499 = vmatmul.f32.gmra.mxu0 %v4555
      %v5500 = vpop.f32.mrf.mxu0
      %v5501 = vadd.f32 %v5388, %v5500
      %5502 = vmatmul.f32.gmra.mxu0 %v4559
      %v5503 = vpop.f32.mrf.mxu0
      %v5504 = vadd.f32 %v5391, %v5503
      %5505 = vdwg.mxu0
      %5506 = vmatpush.msra.mxu0 %v4751
      %5507 = vmatpush.msra.mxu0 %v4747
      %5508 = vmatpush.msra.mxu0 %v4743
      %5509 = vmatpush.msra.mxu0 %v4739
      %5510 = vmatpush.msra.mxu0 %v4735
      %5511 = vmatpush.msra.mxu0 %v4731
      %5512 = vmatpush.msra.mxu0 %v4727
      %5513 = vmatpush.msra.mxu0 %v4723
      %5514 = vmatpush.msra.mxu0 %v4719
      %5515 = vmatpush.msra.mxu0 %v4715
      %5516 = vmatpush.msra.mxu0 %v4711
      %5517 = vmatpush.msra.mxu0 %v4707
      %5518 = vmatpush.msra.mxu0 %v4703
      %5519 = vmatpush.msra.mxu0 %v4699
      %5520 = vmatpush.msra.mxu0 %v4695
      %5521 = vmatpush.msra.mxu0 %v4691
      %5522 = vmatmul.f32.gmra.mxu0 %v4436
      %v5523 = vpop.f32.mrf.mxu0
      %v5524 = vadd.f32 %v5411, %v5523
      %5525 = vmatmul.f32.gmra.mxu0 %v4440
      %v5526 = vpop.f32.mrf.mxu0
      %v5527 = vadd.f32 %v5414, %v5526
      %5528 = vmatmul.f32.gmra.mxu0 %v4444
      %v5529 = vpop.f32.mrf.mxu0
      %v5530 = vadd.f32 %v5417, %v5529
      %5531 = vmatmul.f32.gmra.mxu0 %v4448
      %v5532 = vpop.f32.mrf.mxu0
      %v5533 = vadd.f32 %v5420, %v5532
      %5534 = vmatmul.f32.gmra.mxu0 %v4452
      %v5535 = vpop.f32.mrf.mxu0
      %v5536 = vadd.f32 %v5423, %v5535
      %5537 = vmatmul.f32.gmra.mxu0 %v4456
      %v5538 = vpop.f32.mrf.mxu0
      %v5539 = vadd.f32 %v5426, %v5538
      %5540 = vmatmul.f32.gmra.mxu0 %v4460
      %v5541 = vpop.f32.mrf.mxu0
      %v5542 = vadd.f32 %v5429, %v5541
      %5543 = vmatmul.f32.gmra.mxu0 %v4464
      %v5544 = vpop.f32.mrf.mxu0
      %v5545 = vadd.f32 %v5432, %v5544
      %5546 = vmatmul.f32.gmra.mxu0 %v4468
      %v5547 = vpop.f32.mrf.mxu0
      %v5548 = vadd.f32 %v5435, %v5547
      %5549 = vmatmul.f32.gmra.mxu0 %v4472
      %v5550 = vpop.f32.mrf.mxu0
      %v5551 = vadd.f32 %v5438, %v5550
      %5552 = vmatmul.f32.gmra.mxu0 %v4476
      %v5553 = vpop.f32.mrf.mxu0
      %v5554 = vadd.f32 %v5441, %v5553
      %5555 = vmatmul.f32.gmra.mxu0 %v4480
      %v5556 = vpop.f32.mrf.mxu0
      %v5557 = vadd.f32 %v5444, %v5556
      %5558 = vmatmul.f32.gmra.mxu0 %v4484
      %v5559 = vpop.f32.mrf.mxu0
      %v5560 = vadd.f32 %v5447, %v5559
      %5561 = vmatmul.f32.gmra.mxu0 %v4488
      %v5562 = vpop.f32.mrf.mxu0
      %v5563 = vadd.f32 %v5450, %v5562
      %5564 = vmatmul.f32.gmra.mxu0 %v4492
      %v5565 = vpop.f32.mrf.mxu0
      %v5566 = vadd.f32 %v5453, %v5565
      %5567 = vmatmul.f32.gmra.mxu0 %v4496
      %v5568 = vpop.f32.mrf.mxu0
      %v5569 = vadd.f32 %v5456, %v5568
      %5570 = vmatmul.f32.gmra.mxu0 %v4500
      %v5571 = vpop.f32.mrf.mxu0
      %v5572 = vadd.f32 %v5459, %v5571
      %5573 = vmatmul.f32.gmra.mxu0 %v4504
      %v5574 = vpop.f32.mrf.mxu0
      %v5575 = vadd.f32 %v5462, %v5574
      %5576 = vmatmul.f32.gmra.mxu0 %v4508
      %v5577 = vpop.f32.mrf.mxu0
      %v5578 = vadd.f32 %v5465, %v5577
      %5579 = vmatmul.f32.gmra.mxu0 %v4512
      %v5580 = vpop.f32.mrf.mxu0
      %v5581 = vadd.f32 %v5468, %v5580
      %5582 = vmatmul.f32.gmra.mxu0 %v4516
      %v5583 = vpop.f32.mrf.mxu0
      %v5584 = vadd.f32 %v5471, %v5583
      %5585 = vmatmul.f32.gmra.mxu0 %v4520
      %v5586 = vpop.f32.mrf.mxu0
      %v5587 = vadd.f32 %v5474, %v5586
      %5588 = vmatmul.f32.gmra.mxu0 %v4524
      %v5589 = vpop.f32.mrf.mxu0
      %v5590 = vadd.f32 %v5477, %v5589
      %5591 = vmatmul.f32.gmra.mxu0 %v4528
      %v5592 = vpop.f32.mrf.mxu0
      %v5593 = vadd.f32 %v5480, %v5592
      %5594 = vmatmul.f32.gmra.mxu0 %v4532
      %v5595 = vpop.f32.mrf.mxu0
      %v5596 = vadd.f32 %v5483, %v5595
      %5597 = vmatmul.f32.gmra.mxu0 %v4536
      %v5598 = vpop.f32.mrf.mxu0
      %v5599 = vadd.f32 %v5486, %v5598
      %5600 = vmatmul.f32.gmra.mxu0 %v4540
      %v5601 = vpop.f32.mrf.mxu0
      %v5602 = vadd.f32 %v5489, %v5601
      %5603 = vmatmul.f32.gmra.mxu0 %v4544
      %v5604 = vpop.f32.mrf.mxu0
      %v5605 = vadd.f32 %v5492, %v5604
      %5606 = vmatmul.f32.gmra.mxu0 %v4548
      %v5607 = vpop.f32.mrf.mxu0
      %v5608 = vadd.f32 %v5495, %v5607
      %5609 = vmatmul.f32.gmra.mxu0 %v4552
      %v5610 = vpop.f32.mrf.mxu0
      %v5611 = vadd.f32 %v5498, %v5610
      %5612 = vmatmul.f32.gmra.mxu0 %v4556
      %v5613 = vpop.f32.mrf.mxu0
      %v5614 = vadd.f32 %v5501, %v5613
      %5615 = vmatmul.f32.gmra.mxu0 %v4560
      %v5616 = vpop.f32.mrf.mxu0
      %v5617 = vadd.f32 %v5504, %v5616
      %5618 = vdwg.mxu0
      %5619 = vmatpush.msra.mxu0 %v4815
      %5620 = vmatpush.msra.mxu0 %v4811
      %5621 = vmatpush.msra.mxu0 %v4807
      %5622 = vmatpush.msra.mxu0 %v4803
      %5623 = vmatpush.msra.mxu0 %v4799
      %5624 = vmatpush.msra.mxu0 %v4795
      %5625 = vmatpush.msra.mxu0 %v4791
      %5626 = vmatpush.msra.mxu0 %v4787
      %5627 = vmatpush.msra.mxu0 %v4783
      %5628 = vmatpush.msra.mxu0 %v4779
      %5629 = vmatpush.msra.mxu0 %v4775
      %5630 = vmatpush.msra.mxu0 %v4771
      %5631 = vmatpush.msra.mxu0 %v4767
      %5632 = vmatpush.msra.mxu0 %v4763
      %5633 = vmatpush.msra.mxu0 %v4759
      %5634 = vmatpush.msra.mxu0 %v4755
      %5635 = vmatmul.f32.gmra.mxu0 %v4437
      %v5636 = vpop.f32.mrf.mxu0
      %v5637 = vadd.f32 %v5524, %v5636
      %5638 = vmatmul.f32.gmra.mxu0 %v4441
      %v5639 = vpop.f32.mrf.mxu0
      %v5640 = vadd.f32 %v5527, %v5639
      %5641 = vmatmul.f32.gmra.mxu0 %v4445
      %v5642 = vpop.f32.mrf.mxu0
      %v5643 = vadd.f32 %v5530, %v5642
      %5644 = vmatmul.f32.gmra.mxu0 %v4449
      %v5645 = vpop.f32.mrf.mxu0
      %v5646 = vadd.f32 %v5533, %v5645
      %5647 = vmatmul.f32.gmra.mxu0 %v4453
      %v5648 = vpop.f32.mrf.mxu0
      %v5649 = vadd.f32 %v5536, %v5648
      %5650 = vmatmul.f32.gmra.mxu0 %v4457
      %v5651 = vpop.f32.mrf.mxu0
      %v5652 = vadd.f32 %v5539, %v5651
      %5653 = vmatmul.f32.gmra.mxu0 %v4461
      %v5654 = vpop.f32.mrf.mxu0
      %v5655 = vadd.f32 %v5542, %v5654
      %5656 = vmatmul.f32.gmra.mxu0 %v4465
      %v5657 = vpop.f32.mrf.mxu0
      %v5658 = vadd.f32 %v5545, %v5657
      %5659 = vmatmul.f32.gmra.mxu0 %v4469
      %v5660 = vpop.f32.mrf.mxu0
      %v5661 = vadd.f32 %v5548, %v5660
      %5662 = vmatmul.f32.gmra.mxu0 %v4473
      %v5663 = vpop.f32.mrf.mxu0
      %v5664 = vadd.f32 %v5551, %v5663
      %5665 = vmatmul.f32.gmra.mxu0 %v4477
      %v5666 = vpop.f32.mrf.mxu0
      %v5667 = vadd.f32 %v5554, %v5666
      %5668 = vmatmul.f32.gmra.mxu0 %v4481
      %v5669 = vpop.f32.mrf.mxu0
      %v5670 = vadd.f32 %v5557, %v5669
      %5671 = vmatmul.f32.gmra.mxu0 %v4485
      %v5672 = vpop.f32.mrf.mxu0
      %v5673 = vadd.f32 %v5560, %v5672
      %5674 = vmatmul.f32.gmra.mxu0 %v4489
      %v5675 = vpop.f32.mrf.mxu0
      %v5676 = vadd.f32 %v5563, %v5675
      %5677 = vmatmul.f32.gmra.mxu0 %v4493
      %v5678 = vpop.f32.mrf.mxu0
      %v5679 = vadd.f32 %v5566, %v5678
      %5680 = vmatmul.f32.gmra.mxu0 %v4497
      %v5681 = vpop.f32.mrf.mxu0
      %v5682 = vadd.f32 %v5569, %v5681
      %5683 = vmatmul.f32.gmra.mxu0 %v4501
      %v5684 = vpop.f32.mrf.mxu0
      %v5685 = vadd.f32 %v5572, %v5684
      %5686 = vmatmul.f32.gmra.mxu0 %v4505
      %v5687 = vpop.f32.mrf.mxu0
      %v5688 = vadd.f32 %v5575, %v5687
      %5689 = vmatmul.f32.gmra.mxu0 %v4509
      %v5690 = vpop.f32.mrf.mxu0
      %v5691 = vadd.f32 %v5578, %v5690
      %5692 = vmatmul.f32.gmra.mxu0 %v4513
      %v5693 = vpop.f32.mrf.mxu0
      %v5694 = vadd.f32 %v5581, %v5693
      %5695 = vmatmul.f32.gmra.mxu0 %v4517
      %v5696 = vpop.f32.mrf.mxu0
      %v5697 = vadd.f32 %v5584, %v5696
      %5698 = vmatmul.f32.gmra.mxu0 %v4521
      %v5699 = vpop.f32.mrf.mxu0
      %v5700 = vadd.f32 %v5587, %v5699
      %5701 = vmatmul.f32.gmra.mxu0 %v4525
      %v5702 = vpop.f32.mrf.mxu0
      %v5703 = vadd.f32 %v5590, %v5702
      %5704 = vmatmul.f32.gmra.mxu0 %v4529
      %v5705 = vpop.f32.mrf.mxu0
      %v5706 = vadd.f32 %v5593, %v5705
      %5707 = vmatmul.f32.gmra.mxu0 %v4533
      %v5708 = vpop.f32.mrf.mxu0
      %v5709 = vadd.f32 %v5596, %v5708
      %5710 = vmatmul.f32.gmra.mxu0 %v4537
      %v5711 = vpop.f32.mrf.mxu0
      %v5712 = vadd.f32 %v5599, %v5711
      %5713 = vmatmul.f32.gmra.mxu0 %v4541
      %v5714 = vpop.f32.mrf.mxu0
      %v5715 = vadd.f32 %v5602, %v5714
      %5716 = vmatmul.f32.gmra.mxu0 %v4545
      %v5717 = vpop.f32.mrf.mxu0
      %v5718 = vadd.f32 %v5605, %v5717
      %5719 = vmatmul.f32.gmra.mxu0 %v4549
      %v5720 = vpop.f32.mrf.mxu0
      %v5721 = vadd.f32 %v5608, %v5720
      %5722 = vmatmul.f32.gmra.mxu0 %v4553
      %v5723 = vpop.f32.mrf.mxu0
      %v5724 = vadd.f32 %v5611, %v5723
      %5725 = vmatmul.f32.gmra.mxu0 %v4557
      %v5726 = vpop.f32.mrf.mxu0
      %v5727 = vadd.f32 %v5614, %v5726
      %5728 = vmatmul.f32.gmra.mxu0 %v4561
      %v5729 = vpop.f32.mrf.mxu0
      %v5730 = vadd.f32 %v5617, %v5729
      %5731 = vdwg.mxu0
      %5732 = vmatpush.msra.mxu0 %v4624
      %5733 = vmatpush.msra.mxu0 %v4620
      %5734 = vmatpush.msra.mxu0 %v4616
      %5735 = vmatpush.msra.mxu0 %v4612
      %5736 = vmatpush.msra.mxu0 %v4608
      %5737 = vmatpush.msra.mxu0 %v4604
      %5738 = vmatpush.msra.mxu0 %v4600
      %5739 = vmatpush.msra.mxu0 %v4596
      %5740 = vmatpush.msra.mxu0 %v4592
      %5741 = vmatpush.msra.mxu0 %v4588
      %5742 = vmatpush.msra.mxu0 %v4584
      %5743 = vmatpush.msra.mxu0 %v4580
      %5744 = vmatpush.msra.mxu0 %v4576
      %5745 = vmatpush.msra.mxu0 %v4572
      %5746 = vmatpush.msra.mxu0 %v4568
      %5747 = vmatpush.msra.mxu0 %v4564
      %5748 = vmatmul.f32.gmra.mxu0 %v4434
      %v5749 = vpop.f32.mrf.mxu0
      %v5750 = vadd.f32 %v4822, %v5749
      %5751 = vmatmul.f32.gmra.mxu0 %v4438
      %v5752 = vpop.f32.mrf.mxu0
      %v5753 = vadd.f32 %v4822, %v5752
      %5754 = vmatmul.f32.gmra.mxu0 %v4442
      %v5755 = vpop.f32.mrf.mxu0
      %v5756 = vadd.f32 %v4822, %v5755
      %5757 = vmatmul.f32.gmra.mxu0 %v4446
      %v5758 = vpop.f32.mrf.mxu0
      %v5759 = vadd.f32 %v4822, %v5758
      %5760 = vmatmul.f32.gmra.mxu0 %v4450
      %v5761 = vpop.f32.mrf.mxu0
      %v5762 = vadd.f32 %v4822, %v5761
      %5763 = vmatmul.f32.gmra.mxu0 %v4454
      %v5764 = vpop.f32.mrf.mxu0
      %v5765 = vadd.f32 %v4822, %v5764
      %5766 = vmatmul.f32.gmra.mxu0 %v4458
      %v5767 = vpop.f32.mrf.mxu0
      %v5768 = vadd.f32 %v4822, %v5767
      %5769 = vmatmul.f32.gmra.mxu0 %v4462
      %v5770 = vpop.f32.mrf.mxu0
      %v5771 = vadd.f32 %v4822, %v5770
      %5772 = vmatmul.f32.gmra.mxu0 %v4466
      %v5773 = vpop.f32.mrf.mxu0
      %v5774 = vadd.f32 %v4822, %v5773
      %5775 = vmatmul.f32.gmra.mxu0 %v4470
      %v5776 = vpop.f32.mrf.mxu0
      %v5777 = vadd.f32 %v4822, %v5776
      %5778 = vmatmul.f32.gmra.mxu0 %v4474
      %v5779 = vpop.f32.mrf.mxu0
      %v5780 = vadd.f32 %v4822, %v5779
      %5781 = vmatmul.f32.gmra.mxu0 %v4478
      %v5782 = vpop.f32.mrf.mxu0
      %v5783 = vadd.f32 %v4822, %v5782
      %5784 = vmatmul.f32.gmra.mxu0 %v4482
      %v5785 = vpop.f32.mrf.mxu0
      %v5786 = vadd.f32 %v4822, %v5785
      %5787 = vmatmul.f32.gmra.mxu0 %v4486
      %v5788 = vpop.f32.mrf.mxu0
      %v5789 = vadd.f32 %v4822, %v5788
      %5790 = vmatmul.f32.gmra.mxu0 %v4490
      %v5791 = vpop.f32.mrf.mxu0
      %v5792 = vadd.f32 %v4822, %v5791
      %5793 = vmatmul.f32.gmra.mxu0 %v4494
      %v5794 = vpop.f32.mrf.mxu0
      %v5795 = vadd.f32 %v4822, %v5794
      %5796 = vmatmul.f32.gmra.mxu0 %v4498
      %v5797 = vpop.f32.mrf.mxu0
      %v5798 = vadd.f32 %v4822, %v5797
      %5799 = vmatmul.f32.gmra.mxu0 %v4502
      %v5800 = vpop.f32.mrf.mxu0
      %v5801 = vadd.f32 %v4822, %v5800
      %5802 = vmatmul.f32.gmra.mxu0 %v4506
      %v5803 = vpop.f32.mrf.mxu0
      %v5804 = vadd.f32 %v4822, %v5803
      %5805 = vmatmul.f32.gmra.mxu0 %v4510
      %v5806 = vpop.f32.mrf.mxu0
      %v5807 = vadd.f32 %v4822, %v5806
      %5808 = vmatmul.f32.gmra.mxu0 %v4514
      %v5809 = vpop.f32.mrf.mxu0
      %v5810 = vadd.f32 %v4822, %v5809
      %5811 = vmatmul.f32.gmra.mxu0 %v4518
      %v5812 = vpop.f32.mrf.mxu0
      %v5813 = vadd.f32 %v4822, %v5812
      %5814 = vmatmul.f32.gmra.mxu0 %v4522
      %v5815 = vpop.f32.mrf.mxu0
      %v5816 = vadd.f32 %v4822, %v5815
      %5817 = vmatmul.f32.gmra.mxu0 %v4526
      %v5818 = vpop.f32.mrf.mxu0
      %v5819 = vadd.f32 %v4822, %v5818
      %5820 = vmatmul.f32.gmra.mxu0 %v4530
      %v5821 = vpop.f32.mrf.mxu0
      %v5822 = vadd.f32 %v4822, %v5821
      %5823 = vmatmul.f32.gmra.mxu0 %v4534
      %v5824 = vpop.f32.mrf.mxu0
      %v5825 = vadd.f32 %v4822, %v5824
      %5826 = vmatmul.f32.gmra.mxu0 %v4538
      %v5827 = vpop.f32.mrf.mxu0
      %v5828 = vadd.f32 %v4822, %v5827
      %5829 = vmatmul.f32.gmra.mxu0 %v4542
      %v5830 = vpop.f32.mrf.mxu0
      %v5831 = vadd.f32 %v4822, %v5830
      %5832 = vmatmul.f32.gmra.mxu0 %v4546
      %v5833 = vpop.f32.mrf.mxu0
      %v5834 = vadd.f32 %v4822, %v5833
      %5835 = vmatmul.f32.gmra.mxu0 %v4550
      %v5836 = vpop.f32.mrf.mxu0
      %v5837 = vadd.f32 %v4822, %v5836
      %5838 = vmatmul.f32.gmra.mxu0 %v4554
      %v5839 = vpop.f32.mrf.mxu0
      %v5840 = vadd.f32 %v4822, %v5839
      %5841 = vmatmul.f32.gmra.mxu0 %v4558
      %v5842 = vpop.f32.mrf.mxu0
      %v5843 = vadd.f32 %v4822, %v5842
      %5844 = vdwg.mxu0
      %5845 = vmatpush.msra.mxu0 %v4688
      %5846 = vmatpush.msra.mxu0 %v4684
      %5847 = vmatpush.msra.mxu0 %v4680
      %5848 = vmatpush.msra.mxu0 %v4676
      %5849 = vmatpush.msra.mxu0 %v4672
      %5850 = vmatpush.msra.mxu0 %v4668
      %5851 = vmatpush.msra.mxu0 %v4664
      %5852 = vmatpush.msra.mxu0 %v4660
      %5853 = vmatpush.msra.mxu0 %v4656
      %5854 = vmatpush.msra.mxu0 %v4652
      %5855 = vmatpush.msra.mxu0 %v4648
      %5856 = vmatpush.msra.mxu0 %v4644
      %5857 = vmatpush.msra.mxu0 %v4640
      %5858 = vmatpush.msra.mxu0 %v4636
      %5859 = vmatpush.msra.mxu0 %v4632
      %5860 = vmatpush.msra.mxu0 %v4628
      %5861 = vmatmul.f32.gmra.mxu0 %v4435
      %v5862 = vpop.f32.mrf.mxu0
      %v5863 = vadd.f32 %v5750, %v5862
      %5864 = vmatmul.f32.gmra.mxu0 %v4439
      %v5865 = vpop.f32.mrf.mxu0
      %v5866 = vadd.f32 %v5753, %v5865
      %5867 = vmatmul.f32.gmra.mxu0 %v4443
      %v5868 = vpop.f32.mrf.mxu0
      %v5869 = vadd.f32 %v5756, %v5868
      %5870 = vmatmul.f32.gmra.mxu0 %v4447
      %v5871 = vpop.f32.mrf.mxu0
      %v5872 = vadd.f32 %v5759, %v5871
      %5873 = vmatmul.f32.gmra.mxu0 %v4451
      %v5874 = vpop.f32.mrf.mxu0
      %v5875 = vadd.f32 %v5762, %v5874
      %5876 = vmatmul.f32.gmra.mxu0 %v4455
      %v5877 = vpop.f32.mrf.mxu0
      %v5878 = vadd.f32 %v5765, %v5877
      %5879 = vmatmul.f32.gmra.mxu0 %v4459
      %v5880 = vpop.f32.mrf.mxu0
      %v5881 = vadd.f32 %v5768, %v5880
      %5882 = vmatmul.f32.gmra.mxu0 %v4463
      %v5883 = vpop.f32.mrf.mxu0
      %v5884 = vadd.f32 %v5771, %v5883
      %5885 = vmatmul.f32.gmra.mxu0 %v4467
      %v5886 = vpop.f32.mrf.mxu0
      %v5887 = vadd.f32 %v5774, %v5886
      %5888 = vmatmul.f32.gmra.mxu0 %v4471
      %v5889 = vpop.f32.mrf.mxu0
      %v5890 = vadd.f32 %v5777, %v5889
      %5891 = vmatmul.f32.gmra.mxu0 %v4475
      %v5892 = vpop.f32.mrf.mxu0
      %v5893 = vadd.f32 %v5780, %v5892
      %5894 = vmatmul.f32.gmra.mxu0 %v4479
      %v5895 = vpop.f32.mrf.mxu0
      %v5896 = vadd.f32 %v5783, %v5895
      %5897 = vmatmul.f32.gmra.mxu0 %v4483
      %v5898 = vpop.f32.mrf.mxu0
      %v5899 = vadd.f32 %v5786, %v5898
      %5900 = vmatmul.f32.gmra.mxu0 %v4487
      %v5901 = vpop.f32.mrf.mxu0
      %v5902 = vadd.f32 %v5789, %v5901
      %5903 = vmatmul.f32.gmra.mxu0 %v4491
      %v5904 = vpop.f32.mrf.mxu0
      %v5905 = vadd.f32 %v5792, %v5904
      %5906 = vmatmul.f32.gmra.mxu0 %v4495
      %v5907 = vpop.f32.mrf.mxu0
      %v5908 = vadd.f32 %v5795, %v5907
      %5909 = vmatmul.f32.gmra.mxu0 %v4499
      %v5910 = vpop.f32.mrf.mxu0
      %v5911 = vadd.f32 %v5798, %v5910
      %5912 = vmatmul.f32.gmra.mxu0 %v4503
      %v5913 = vpop.f32.mrf.mxu0
      %v5914 = vadd.f32 %v5801, %v5913
      %5915 = vmatmul.f32.gmra.mxu0 %v4507
      %v5916 = vpop.f32.mrf.mxu0
      %v5917 = vadd.f32 %v5804, %v5916
      %5918 = vmatmul.f32.gmra.mxu0 %v4511
      %v5919 = vpop.f32.mrf.mxu0
      %v5920 = vadd.f32 %v5807, %v5919
      %5921 = vmatmul.f32.gmra.mxu0 %v4515
      %v5922 = vpop.f32.mrf.mxu0
      %v5923 = vadd.f32 %v5810, %v5922
      %5924 = vmatmul.f32.gmra.mxu0 %v4519
      %v5925 = vpop.f32.mrf.mxu0
      %v5926 = vadd.f32 %v5813, %v5925
      %5927 = vmatmul.f32.gmra.mxu0 %v4523
      %v5928 = vpop.f32.mrf.mxu0
      %v5929 = vadd.f32 %v5816, %v5928
      %5930 = vmatmul.f32.gmra.mxu0 %v4527
      %v5931 = vpop.f32.mrf.mxu0
      %v5932 = vadd.f32 %v5819, %v5931
      %5933 = vmatmul.f32.gmra.mxu0 %v4531
      %v5934 = vpop.f32.mrf.mxu0
      %v5935 = vadd.f32 %v5822, %v5934
      %5936 = vmatmul.f32.gmra.mxu0 %v4535
      %v5937 = vpop.f32.mrf.mxu0
      %v5938 = vadd.f32 %v5825, %v5937
      %5939 = vmatmul.f32.gmra.mxu0 %v4539
      %v5940 = vpop.f32.mrf.mxu0
      %v5941 = vadd.f32 %v5828, %v5940
      %5942 = vmatmul.f32.gmra.mxu0 %v4543
      %v5943 = vpop.f32.mrf.mxu0
      %v5944 = vadd.f32 %v5831, %v5943
      %5945 = vmatmul.f32.gmra.mxu0 %v4547
      %v5946 = vpop.f32.mrf.mxu0
      %v5947 = vadd.f32 %v5834, %v5946
      %5948 = vmatmul.f32.gmra.mxu0 %v4551
      %v5949 = vpop.f32.mrf.mxu0
      %v5950 = vadd.f32 %v5837, %v5949
      %5951 = vmatmul.f32.gmra.mxu0 %v4555
      %v5952 = vpop.f32.mrf.mxu0
      %v5953 = vadd.f32 %v5840, %v5952
      %5954 = vmatmul.f32.gmra.mxu0 %v4559
      %v5955 = vpop.f32.mrf.mxu0
      %v5956 = vadd.f32 %v5843, %v5955
      %5957 = vdwg.mxu0
      %5958 = vmatpush.msra.mxu0 %v4752
      %5959 = vmatpush.msra.mxu0 %v4748
      %5960 = vmatpush.msra.mxu0 %v4744
      %5961 = vmatpush.msra.mxu0 %v4740
      %5962 = vmatpush.msra.mxu0 %v4736
      %5963 = vmatpush.msra.mxu0 %v4732
      %5964 = vmatpush.msra.mxu0 %v4728
      %5965 = vmatpush.msra.mxu0 %v4724
      %5966 = vmatpush.msra.mxu0 %v4720
      %5967 = vmatpush.msra.mxu0 %v4716
      %5968 = vmatpush.msra.mxu0 %v4712
      %5969 = vmatpush.msra.mxu0 %v4708
      %5970 = vmatpush.msra.mxu0 %v4704
      %5971 = vmatpush.msra.mxu0 %v4700
      %5972 = vmatpush.msra.mxu0 %v4696
      %5973 = vmatpush.msra.mxu0 %v4692
      %5974 = vmatmul.f32.gmra.mxu0 %v4436
      %v5975 = vpop.f32.mrf.mxu0
      %v5976 = vadd.f32 %v5863, %v5975
      %5977 = vmatmul.f32.gmra.mxu0 %v4440
      %v5978 = vpop.f32.mrf.mxu0
      %v5979 = vadd.f32 %v5866, %v5978
      %5980 = vmatmul.f32.gmra.mxu0 %v4444
      %v5981 = vpop.f32.mrf.mxu0
      %v5982 = vadd.f32 %v5869, %v5981
      %5983 = vmatmul.f32.gmra.mxu0 %v4448
      %v5984 = vpop.f32.mrf.mxu0
      %v5985 = vadd.f32 %v5872, %v5984
      %5986 = vmatmul.f32.gmra.mxu0 %v4452
      %v5987 = vpop.f32.mrf.mxu0
      %v5988 = vadd.f32 %v5875, %v5987
      %5989 = vmatmul.f32.gmra.mxu0 %v4456
      %v5990 = vpop.f32.mrf.mxu0
      %v5991 = vadd.f32 %v5878, %v5990
      %5992 = vmatmul.f32.gmra.mxu0 %v4460
      %v5993 = vpop.f32.mrf.mxu0
      %v5994 = vadd.f32 %v5881, %v5993
      %5995 = vmatmul.f32.gmra.mxu0 %v4464
      %v5996 = vpop.f32.mrf.mxu0
      %v5997 = vadd.f32 %v5884, %v5996
      %5998 = vmatmul.f32.gmra.mxu0 %v4468
      %v5999 = vpop.f32.mrf.mxu0
      %v6000 = vadd.f32 %v5887, %v5999
      %6001 = vmatmul.f32.gmra.mxu0 %v4472
      %v6002 = vpop.f32.mrf.mxu0
      %v6003 = vadd.f32 %v5890, %v6002
      %6004 = vmatmul.f32.gmra.mxu0 %v4476
      %v6005 = vpop.f32.mrf.mxu0
      %v6006 = vadd.f32 %v5893, %v6005
      %6007 = vmatmul.f32.gmra.mxu0 %v4480
      %v6008 = vpop.f32.mrf.mxu0
      %v6009 = vadd.f32 %v5896, %v6008
      %6010 = vmatmul.f32.gmra.mxu0 %v4484
      %v6011 = vpop.f32.mrf.mxu0
      %v6012 = vadd.f32 %v5899, %v6011
      %6013 = vmatmul.f32.gmra.mxu0 %v4488
      %v6014 = vpop.f32.mrf.mxu0
      %v6015 = vadd.f32 %v5902, %v6014
      %6016 = vmatmul.f32.gmra.mxu0 %v4492
      %v6017 = vpop.f32.mrf.mxu0
      %v6018 = vadd.f32 %v5905, %v6017
      %6019 = vmatmul.f32.gmra.mxu0 %v4496
      %v6020 = vpop.f32.mrf.mxu0
      %v6021 = vadd.f32 %v5908, %v6020
      %6022 = vmatmul.f32.gmra.mxu0 %v4500
      %v6023 = vpop.f32.mrf.mxu0
      %v6024 = vadd.f32 %v5911, %v6023
      %6025 = vmatmul.f32.gmra.mxu0 %v4504
      %v6026 = vpop.f32.mrf.mxu0
      %v6027 = vadd.f32 %v5914, %v6026
      %6028 = vmatmul.f32.gmra.mxu0 %v4508
      %v6029 = vpop.f32.mrf.mxu0
      %v6030 = vadd.f32 %v5917, %v6029
      %6031 = vmatmul.f32.gmra.mxu0 %v4512
      %v6032 = vpop.f32.mrf.mxu0
      %v6033 = vadd.f32 %v5920, %v6032
      %6034 = vmatmul.f32.gmra.mxu0 %v4516
      %v6035 = vpop.f32.mrf.mxu0
      %v6036 = vadd.f32 %v5923, %v6035
      %6037 = vmatmul.f32.gmra.mxu0 %v4520
      %v6038 = vpop.f32.mrf.mxu0
      %v6039 = vadd.f32 %v5926, %v6038
      %6040 = vmatmul.f32.gmra.mxu0 %v4524
      %v6041 = vpop.f32.mrf.mxu0
      %v6042 = vadd.f32 %v5929, %v6041
      %6043 = vmatmul.f32.gmra.mxu0 %v4528
      %v6044 = vpop.f32.mrf.mxu0
      %v6045 = vadd.f32 %v5932, %v6044
      %6046 = vmatmul.f32.gmra.mxu0 %v4532
      %v6047 = vpop.f32.mrf.mxu0
      %v6048 = vadd.f32 %v5935, %v6047
      %6049 = vmatmul.f32.gmra.mxu0 %v4536
      %v6050 = vpop.f32.mrf.mxu0
      %v6051 = vadd.f32 %v5938, %v6050
      %6052 = vmatmul.f32.gmra.mxu0 %v4540
      %v6053 = vpop.f32.mrf.mxu0
      %v6054 = vadd.f32 %v5941, %v6053
      %6055 = vmatmul.f32.gmra.mxu0 %v4544
      %v6056 = vpop.f32.mrf.mxu0
      %v6057 = vadd.f32 %v5944, %v6056
      %6058 = vmatmul.f32.gmra.mxu0 %v4548
      %v6059 = vpop.f32.mrf.mxu0
      %v6060 = vadd.f32 %v5947, %v6059
      %6061 = vmatmul.f32.gmra.mxu0 %v4552
      %v6062 = vpop.f32.mrf.mxu0
      %v6063 = vadd.f32 %v5950, %v6062
      %6064 = vmatmul.f32.gmra.mxu0 %v4556
      %v6065 = vpop.f32.mrf.mxu0
      %v6066 = vadd.f32 %v5953, %v6065
      %6067 = vmatmul.f32.gmra.mxu0 %v4560
      %v6068 = vpop.f32.mrf.mxu0
      %v6069 = vadd.f32 %v5956, %v6068
      %6070 = vdwg.mxu0
      %6071 = vmatpush.msra.mxu0 %v4816
      %6072 = vmatpush.msra.mxu0 %v4812
      %6073 = vmatpush.msra.mxu0 %v4808
      %6074 = vmatpush.msra.mxu0 %v4804
      %6075 = vmatpush.msra.mxu0 %v4800
      %6076 = vmatpush.msra.mxu0 %v4796
      %6077 = vmatpush.msra.mxu0 %v4792
      %6078 = vmatpush.msra.mxu0 %v4788
      %6079 = vmatpush.msra.mxu0 %v4784
      %6080 = vmatpush.msra.mxu0 %v4780
      %6081 = vmatpush.msra.mxu0 %v4776
      %6082 = vmatpush.msra.mxu0 %v4772
      %6083 = vmatpush.msra.mxu0 %v4768
      %6084 = vmatpush.msra.mxu0 %v4764
      %6085 = vmatpush.msra.mxu0 %v4760
      %6086 = vmatpush.msra.mxu0 %v4756
      %6087 = vmatmul.f32.gmra.mxu0 %v4437
      %v6088 = vpop.f32.mrf.mxu0
      %v6089 = vadd.f32 %v5976, %v6088
      %6090 = vmatmul.f32.gmra.mxu0 %v4441
      %v6091 = vpop.f32.mrf.mxu0
      %v6092 = vadd.f32 %v5979, %v6091
      %6093 = vmatmul.f32.gmra.mxu0 %v4445
      %v6094 = vpop.f32.mrf.mxu0
      %v6095 = vadd.f32 %v5982, %v6094
      %6096 = vmatmul.f32.gmra.mxu0 %v4449
      %v6097 = vpop.f32.mrf.mxu0
      %v6098 = vadd.f32 %v5985, %v6097
      %6099 = vmatmul.f32.gmra.mxu0 %v4453
      %v6100 = vpop.f32.mrf.mxu0
      %v6101 = vadd.f32 %v5988, %v6100
      %6102 = vmatmul.f32.gmra.mxu0 %v4457
      %v6103 = vpop.f32.mrf.mxu0
      %v6104 = vadd.f32 %v5991, %v6103
      %6105 = vmatmul.f32.gmra.mxu0 %v4461
      %v6106 = vpop.f32.mrf.mxu0
      %v6107 = vadd.f32 %v5994, %v6106
      %6108 = vmatmul.f32.gmra.mxu0 %v4465
      %v6109 = vpop.f32.mrf.mxu0
      %v6110 = vadd.f32 %v5997, %v6109
      %6111 = vmatmul.f32.gmra.mxu0 %v4469
      %v6112 = vpop.f32.mrf.mxu0
      %v6113 = vadd.f32 %v6000, %v6112
      %6114 = vmatmul.f32.gmra.mxu0 %v4473
      %v6115 = vpop.f32.mrf.mxu0
      %v6116 = vadd.f32 %v6003, %v6115
      %6117 = vmatmul.f32.gmra.mxu0 %v4477
      %v6118 = vpop.f32.mrf.mxu0
      %v6119 = vadd.f32 %v6006, %v6118
      %6120 = vmatmul.f32.gmra.mxu0 %v4481
      %v6121 = vpop.f32.mrf.mxu0
      %v6122 = vadd.f32 %v6009, %v6121
      %6123 = vmatmul.f32.gmra.mxu0 %v4485
      %v6124 = vpop.f32.mrf.mxu0
      %v6125 = vadd.f32 %v6012, %v6124
      %6126 = vmatmul.f32.gmra.mxu0 %v4489
      %v6127 = vpop.f32.mrf.mxu0
      %v6128 = vadd.f32 %v6015, %v6127
      %6129 = vmatmul.f32.gmra.mxu0 %v4493
      %v6130 = vpop.f32.mrf.mxu0
      %v6131 = vadd.f32 %v6018, %v6130
      %6132 = vmatmul.f32.gmra.mxu0 %v4497
      %v6133 = vpop.f32.mrf.mxu0
      %v6134 = vadd.f32 %v6021, %v6133
      %6135 = vmatmul.f32.gmra.mxu0 %v4501
      %v6136 = vpop.f32.mrf.mxu0
      %v6137 = vadd.f32 %v6024, %v6136
      %6138 = vmatmul.f32.gmra.mxu0 %v4505
      %v6139 = vpop.f32.mrf.mxu0
      %v6140 = vadd.f32 %v6027, %v6139
      %6141 = vmatmul.f32.gmra.mxu0 %v4509
      %v6142 = vpop.f32.mrf.mxu0
      %v6143 = vadd.f32 %v6030, %v6142
      %6144 = vmatmul.f32.gmra.mxu0 %v4513
      %v6145 = vpop.f32.mrf.mxu0
      %v6146 = vadd.f32 %v6033, %v6145
      %6147 = vmatmul.f32.gmra.mxu0 %v4517
      %v6148 = vpop.f32.mrf.mxu0
      %v6149 = vadd.f32 %v6036, %v6148
      %6150 = vmatmul.f32.gmra.mxu0 %v4521
      %v6151 = vpop.f32.mrf.mxu0
      %v6152 = vadd.f32 %v6039, %v6151
      %6153 = vmatmul.f32.gmra.mxu0 %v4525
      %v6154 = vpop.f32.mrf.mxu0
      %v6155 = vadd.f32 %v6042, %v6154
      %6156 = vmatmul.f32.gmra.mxu0 %v4529
      %v6157 = vpop.f32.mrf.mxu0
      %v6158 = vadd.f32 %v6045, %v6157
      %6159 = vmatmul.f32.gmra.mxu0 %v4533
      %v6160 = vpop.f32.mrf.mxu0
      %v6161 = vadd.f32 %v6048, %v6160
      %6162 = vmatmul.f32.gmra.mxu0 %v4537
      %v6163 = vpop.f32.mrf.mxu0
      %v6164 = vadd.f32 %v6051, %v6163
      %6165 = vmatmul.f32.gmra.mxu0 %v4541
      %v6166 = vpop.f32.mrf.mxu0
      %v6167 = vadd.f32 %v6054, %v6166
      %6168 = vmatmul.f32.gmra.mxu0 %v4545
      %v6169 = vpop.f32.mrf.mxu0
      %v6170 = vadd.f32 %v6057, %v6169
      %6171 = vmatmul.f32.gmra.mxu0 %v4549
      %v6172 = vpop.f32.mrf.mxu0
      %v6173 = vadd.f32 %v6060, %v6172
      %6174 = vmatmul.f32.gmra.mxu0 %v4553
      %v6175 = vpop.f32.mrf.mxu0
      %v6176 = vadd.f32 %v6063, %v6175
      %6177 = vmatmul.f32.gmra.mxu0 %v4557
      %v6178 = vpop.f32.mrf.mxu0
      %v6179 = vadd.f32 %v6066, %v6178
      %6180 = vmatmul.f32.gmra.mxu0 %v4561
      %v6181 = vpop.f32.mrf.mxu0
      %v6182 = vadd.f32 %v6069, %v6181
      %6183 = vdwg.mxu0
      %6184 = vmatpush.msra.mxu0 %v4625
      %6185 = vmatpush.msra.mxu0 %v4621
      %6186 = vmatpush.msra.mxu0 %v4617
      %6187 = vmatpush.msra.mxu0 %v4613
      %6188 = vmatpush.msra.mxu0 %v4609
      %6189 = vmatpush.msra.mxu0 %v4605
      %6190 = vmatpush.msra.mxu0 %v4601
      %6191 = vmatpush.msra.mxu0 %v4597
      %6192 = vmatpush.msra.mxu0 %v4593
      %6193 = vmatpush.msra.mxu0 %v4589
      %6194 = vmatpush.msra.mxu0 %v4585
      %6195 = vmatpush.msra.mxu0 %v4581
      %6196 = vmatpush.msra.mxu0 %v4577
      %6197 = vmatpush.msra.mxu0 %v4573
      %6198 = vmatpush.msra.mxu0 %v4569
      %6199 = vmatpush.msra.mxu0 %v4565
      %6200 = vmatmul.f32.gmra.mxu0 %v4434
      %v6201 = vpop.f32.mrf.mxu0
      %v6202 = vadd.f32 %v4823, %v6201
      %6203 = vmatmul.f32.gmra.mxu0 %v4438
      %v6204 = vpop.f32.mrf.mxu0
      %v6205 = vadd.f32 %v4823, %v6204
      %6206 = vmatmul.f32.gmra.mxu0 %v4442
      %v6207 = vpop.f32.mrf.mxu0
      %v6208 = vadd.f32 %v4823, %v6207
      %6209 = vmatmul.f32.gmra.mxu0 %v4446
      %v6210 = vpop.f32.mrf.mxu0
      %v6211 = vadd.f32 %v4823, %v6210
      %6212 = vmatmul.f32.gmra.mxu0 %v4450
      %v6213 = vpop.f32.mrf.mxu0
      %v6214 = vadd.f32 %v4823, %v6213
      %6215 = vmatmul.f32.gmra.mxu0 %v4454
      %v6216 = vpop.f32.mrf.mxu0
      %v6217 = vadd.f32 %v4823, %v6216
      %6218 = vmatmul.f32.gmra.mxu0 %v4458
      %v6219 = vpop.f32.mrf.mxu0
      %v6220 = vadd.f32 %v4823, %v6219
      %6221 = vmatmul.f32.gmra.mxu0 %v4462
      %v6222 = vpop.f32.mrf.mxu0
      %v6223 = vadd.f32 %v4823, %v6222
      %6224 = vmatmul.f32.gmra.mxu0 %v4466
      %v6225 = vpop.f32.mrf.mxu0
      %v6226 = vadd.f32 %v4823, %v6225
      %6227 = vmatmul.f32.gmra.mxu0 %v4470
      %v6228 = vpop.f32.mrf.mxu0
      %v6229 = vadd.f32 %v4823, %v6228
      %6230 = vmatmul.f32.gmra.mxu0 %v4474
      %v6231 = vpop.f32.mrf.mxu0
      %v6232 = vadd.f32 %v4823, %v6231
      %6233 = vmatmul.f32.gmra.mxu0 %v4478
      %v6234 = vpop.f32.mrf.mxu0
      %v6235 = vadd.f32 %v4823, %v6234
      %6236 = vmatmul.f32.gmra.mxu0 %v4482
      %v6237 = vpop.f32.mrf.mxu0
      %v6238 = vadd.f32 %v4823, %v6237
      %6239 = vmatmul.f32.gmra.mxu0 %v4486
      %v6240 = vpop.f32.mrf.mxu0
      %v6241 = vadd.f32 %v4823, %v6240
      %6242 = vmatmul.f32.gmra.mxu0 %v4490
      %v6243 = vpop.f32.mrf.mxu0
      %v6244 = vadd.f32 %v4823, %v6243
      %6245 = vmatmul.f32.gmra.mxu0 %v4494
      %v6246 = vpop.f32.mrf.mxu0
      %v6247 = vadd.f32 %v4823, %v6246
      %6248 = vmatmul.f32.gmra.mxu0 %v4498
      %v6249 = vpop.f32.mrf.mxu0
      %v6250 = vadd.f32 %v4823, %v6249
      %6251 = vmatmul.f32.gmra.mxu0 %v4502
      %v6252 = vpop.f32.mrf.mxu0
      %v6253 = vadd.f32 %v4823, %v6252
      %6254 = vmatmul.f32.gmra.mxu0 %v4506
      %v6255 = vpop.f32.mrf.mxu0
      %v6256 = vadd.f32 %v4823, %v6255
      %6257 = vmatmul.f32.gmra.mxu0 %v4510
      %v6258 = vpop.f32.mrf.mxu0
      %v6259 = vadd.f32 %v4823, %v6258
      %6260 = vmatmul.f32.gmra.mxu0 %v4514
      %v6261 = vpop.f32.mrf.mxu0
      %v6262 = vadd.f32 %v4823, %v6261
      %6263 = vmatmul.f32.gmra.mxu0 %v4518
      %v6264 = vpop.f32.mrf.mxu0
      %v6265 = vadd.f32 %v4823, %v6264
      %6266 = vmatmul.f32.gmra.mxu0 %v4522
      %v6267 = vpop.f32.mrf.mxu0
      %v6268 = vadd.f32 %v4823, %v6267
      %6269 = vmatmul.f32.gmra.mxu0 %v4526
      %v6270 = vpop.f32.mrf.mxu0
      %v6271 = vadd.f32 %v4823, %v6270
      %6272 = vmatmul.f32.gmra.mxu0 %v4530
      %v6273 = vpop.f32.mrf.mxu0
      %v6274 = vadd.f32 %v4823, %v6273
      %6275 = vmatmul.f32.gmra.mxu0 %v4534
      %v6276 = vpop.f32.mrf.mxu0
      %v6277 = vadd.f32 %v4823, %v6276
      %6278 = vmatmul.f32.gmra.mxu0 %v4538
      %v6279 = vpop.f32.mrf.mxu0
      %v6280 = vadd.f32 %v4823, %v6279
      %6281 = vmatmul.f32.gmra.mxu0 %v4542
      %v6282 = vpop.f32.mrf.mxu0
      %v6283 = vadd.f32 %v4823, %v6282
      %6284 = vmatmul.f32.gmra.mxu0 %v4546
      %v6285 = vpop.f32.mrf.mxu0
      %v6286 = vadd.f32 %v4823, %v6285
      %6287 = vmatmul.f32.gmra.mxu0 %v4550
      %v6288 = vpop.f32.mrf.mxu0
      %v6289 = vadd.f32 %v4823, %v6288
      %6290 = vmatmul.f32.gmra.mxu0 %v4554
      %v6291 = vpop.f32.mrf.mxu0
      %v6292 = vadd.f32 %v4823, %v6291
      %6293 = vmatmul.f32.gmra.mxu0 %v4558
      %v6294 = vpop.f32.mrf.mxu0
      %v6295 = vadd.f32 %v4823, %v6294
      %6296 = vdwg.mxu0
      %6297 = vmatpush.msra.mxu0 %v4689
      %6298 = vmatpush.msra.mxu0 %v4685
      %6299 = vmatpush.msra.mxu0 %v4681
      %6300 = vmatpush.msra.mxu0 %v4677
      %6301 = vmatpush.msra.mxu0 %v4673
      %6302 = vmatpush.msra.mxu0 %v4669
      %6303 = vmatpush.msra.mxu0 %v4665
      %6304 = vmatpush.msra.mxu0 %v4661
      %6305 = vmatpush.msra.mxu0 %v4657
      %6306 = vmatpush.msra.mxu0 %v4653
      %6307 = vmatpush.msra.mxu0 %v4649
      %6308 = vmatpush.msra.mxu0 %v4645
      %6309 = vmatpush.msra.mxu0 %v4641
      %6310 = vmatpush.msra.mxu0 %v4637
      %6311 = vmatpush.msra.mxu0 %v4633
      %6312 = vmatpush.msra.mxu0 %v4629
      %6313 = vmatmul.f32.gmra.mxu0 %v4435
      %v6314 = vpop.f32.mrf.mxu0
      %v6315 = vadd.f32 %v6202, %v6314
      %6316 = vmatmul.f32.gmra.mxu0 %v4439
      %v6317 = vpop.f32.mrf.mxu0
      %v6318 = vadd.f32 %v6205, %v6317
      %6319 = vmatmul.f32.gmra.mxu0 %v4443
      %v6320 = vpop.f32.mrf.mxu0
      %v6321 = vadd.f32 %v6208, %v6320
      %6322 = vmatmul.f32.gmra.mxu0 %v4447
      %v6323 = vpop.f32.mrf.mxu0
      %v6324 = vadd.f32 %v6211, %v6323
      %6325 = vmatmul.f32.gmra.mxu0 %v4451
      %v6326 = vpop.f32.mrf.mxu0
      %v6327 = vadd.f32 %v6214, %v6326
      %6328 = vmatmul.f32.gmra.mxu0 %v4455
      %v6329 = vpop.f32.mrf.mxu0
      %v6330 = vadd.f32 %v6217, %v6329
      %6331 = vmatmul.f32.gmra.mxu0 %v4459
      %v6332 = vpop.f32.mrf.mxu0
      %v6333 = vadd.f32 %v6220, %v6332
      %6334 = vmatmul.f32.gmra.mxu0 %v4463
      %v6335 = vpop.f32.mrf.mxu0
      %v6336 = vadd.f32 %v6223, %v6335
      %6337 = vmatmul.f32.gmra.mxu0 %v4467
      %v6338 = vpop.f32.mrf.mxu0
      %v6339 = vadd.f32 %v6226, %v6338
      %6340 = vmatmul.f32.gmra.mxu0 %v4471
      %v6341 = vpop.f32.mrf.mxu0
      %v6342 = vadd.f32 %v6229, %v6341
      %6343 = vmatmul.f32.gmra.mxu0 %v4475
      %v6344 = vpop.f32.mrf.mxu0
      %v6345 = vadd.f32 %v6232, %v6344
      %6346 = vmatmul.f32.gmra.mxu0 %v4479
      %v6347 = vpop.f32.mrf.mxu0
      %v6348 = vadd.f32 %v6235, %v6347
      %6349 = vmatmul.f32.gmra.mxu0 %v4483
      %v6350 = vpop.f32.mrf.mxu0
      %v6351 = vadd.f32 %v6238, %v6350
      %6352 = vmatmul.f32.gmra.mxu0 %v4487
      %v6353 = vpop.f32.mrf.mxu0
      %v6354 = vadd.f32 %v6241, %v6353
      %6355 = vmatmul.f32.gmra.mxu0 %v4491
      %v6356 = vpop.f32.mrf.mxu0
      %v6357 = vadd.f32 %v6244, %v6356
      %6358 = vmatmul.f32.gmra.mxu0 %v4495
      %v6359 = vpop.f32.mrf.mxu0
      %v6360 = vadd.f32 %v6247, %v6359
      %6361 = vmatmul.f32.gmra.mxu0 %v4499
      %v6362 = vpop.f32.mrf.mxu0
      %v6363 = vadd.f32 %v6250, %v6362
      %6364 = vmatmul.f32.gmra.mxu0 %v4503
      %v6365 = vpop.f32.mrf.mxu0
      %v6366 = vadd.f32 %v6253, %v6365
      %6367 = vmatmul.f32.gmra.mxu0 %v4507
      %v6368 = vpop.f32.mrf.mxu0
      %v6369 = vadd.f32 %v6256, %v6368
      %6370 = vmatmul.f32.gmra.mxu0 %v4511
      %v6371 = vpop.f32.mrf.mxu0
      %v6372 = vadd.f32 %v6259, %v6371
      %6373 = vmatmul.f32.gmra.mxu0 %v4515
      %v6374 = vpop.f32.mrf.mxu0
      %v6375 = vadd.f32 %v6262, %v6374
      %6376 = vmatmul.f32.gmra.mxu0 %v4519
      %v6377 = vpop.f32.mrf.mxu0
      %v6378 = vadd.f32 %v6265, %v6377
      %6379 = vmatmul.f32.gmra.mxu0 %v4523
      %v6380 = vpop.f32.mrf.mxu0
      %v6381 = vadd.f32 %v6268, %v6380
      %6382 = vmatmul.f32.gmra.mxu0 %v4527
      %v6383 = vpop.f32.mrf.mxu0
      %v6384 = vadd.f32 %v6271, %v6383
      %6385 = vmatmul.f32.gmra.mxu0 %v4531
      %v6386 = vpop.f32.mrf.mxu0
      %v6387 = vadd.f32 %v6274, %v6386
      %6388 = vmatmul.f32.gmra.mxu0 %v4535
      %v6389 = vpop.f32.mrf.mxu0
      %v6390 = vadd.f32 %v6277, %v6389
      %6391 = vmatmul.f32.gmra.mxu0 %v4539
      %v6392 = vpop.f32.mrf.mxu0
      %v6393 = vadd.f32 %v6280, %v6392
      %6394 = vmatmul.f32.gmra.mxu0 %v4543
      %v6395 = vpop.f32.mrf.mxu0
      %v6396 = vadd.f32 %v6283, %v6395
      %6397 = vmatmul.f32.gmra.mxu0 %v4547
      %v6398 = vpop.f32.mrf.mxu0
      %v6399 = vadd.f32 %v6286, %v6398
      %6400 = vmatmul.f32.gmra.mxu0 %v4551
      %v6401 = vpop.f32.mrf.mxu0
      %v6402 = vadd.f32 %v6289, %v6401
      %6403 = vmatmul.f32.gmra.mxu0 %v4555
      %v6404 = vpop.f32.mrf.mxu0
      %v6405 = vadd.f32 %v6292, %v6404
      %6406 = vmatmul.f32.gmra.mxu0 %v4559
      %v6407 = vpop.f32.mrf.mxu0
      %v6408 = vadd.f32 %v6295, %v6407
      %6409 = vdwg.mxu0
      %6410 = vmatpush.msra.mxu0 %v4753
      %6411 = vmatpush.msra.mxu0 %v4749
      %6412 = vmatpush.msra.mxu0 %v4745
      %6413 = vmatpush.msra.mxu0 %v4741
      %6414 = vmatpush.msra.mxu0 %v4737
      %6415 = vmatpush.msra.mxu0 %v4733
      %6416 = vmatpush.msra.mxu0 %v4729
      %6417 = vmatpush.msra.mxu0 %v4725
      %6418 = vmatpush.msra.mxu0 %v4721
      %6419 = vmatpush.msra.mxu0 %v4717
      %6420 = vmatpush.msra.mxu0 %v4713
      %6421 = vmatpush.msra.mxu0 %v4709
      %6422 = vmatpush.msra.mxu0 %v4705
      %6423 = vmatpush.msra.mxu0 %v4701
      %6424 = vmatpush.msra.mxu0 %v4697
      %6425 = vmatpush.msra.mxu0 %v4693
      %6426 = vmatmul.f32.gmra.mxu0 %v4436
      %v6427 = vpop.f32.mrf.mxu0
      %v6428 = vadd.f32 %v6315, %v6427
      %6429 = vmatmul.f32.gmra.mxu0 %v4440
      %v6430 = vpop.f32.mrf.mxu0
      %v6431 = vadd.f32 %v6318, %v6430
      %6432 = vmatmul.f32.gmra.mxu0 %v4444
      %v6433 = vpop.f32.mrf.mxu0
      %v6434 = vadd.f32 %v6321, %v6433
      %6435 = vmatmul.f32.gmra.mxu0 %v4448
      %v6436 = vpop.f32.mrf.mxu0
      %v6437 = vadd.f32 %v6324, %v6436
      %6438 = vmatmul.f32.gmra.mxu0 %v4452
      %v6439 = vpop.f32.mrf.mxu0
      %v6440 = vadd.f32 %v6327, %v6439
      %6441 = vmatmul.f32.gmra.mxu0 %v4456
      %v6442 = vpop.f32.mrf.mxu0
      %v6443 = vadd.f32 %v6330, %v6442
      %6444 = vmatmul.f32.gmra.mxu0 %v4460
      %v6445 = vpop.f32.mrf.mxu0
      %v6446 = vadd.f32 %v6333, %v6445
      %6447 = vmatmul.f32.gmra.mxu0 %v4464
      %v6448 = vpop.f32.mrf.mxu0
      %v6449 = vadd.f32 %v6336, %v6448
      %6450 = vmatmul.f32.gmra.mxu0 %v4468
      %v6451 = vpop.f32.mrf.mxu0
      %v6452 = vadd.f32 %v6339, %v6451
      %6453 = vmatmul.f32.gmra.mxu0 %v4472
      %v6454 = vpop.f32.mrf.mxu0
      %v6455 = vadd.f32 %v6342, %v6454
      %6456 = vmatmul.f32.gmra.mxu0 %v4476
      %v6457 = vpop.f32.mrf.mxu0
      %v6458 = vadd.f32 %v6345, %v6457
      %6459 = vmatmul.f32.gmra.mxu0 %v4480
      %v6460 = vpop.f32.mrf.mxu0
      %v6461 = vadd.f32 %v6348, %v6460
      %6462 = vmatmul.f32.gmra.mxu0 %v4484
      %v6463 = vpop.f32.mrf.mxu0
      %v6464 = vadd.f32 %v6351, %v6463
      %6465 = vmatmul.f32.gmra.mxu0 %v4488
      %v6466 = vpop.f32.mrf.mxu0
      %v6467 = vadd.f32 %v6354, %v6466
      %6468 = vmatmul.f32.gmra.mxu0 %v4492
      %v6469 = vpop.f32.mrf.mxu0
      %v6470 = vadd.f32 %v6357, %v6469
      %6471 = vmatmul.f32.gmra.mxu0 %v4496
      %v6472 = vpop.f32.mrf.mxu0
      %v6473 = vadd.f32 %v6360, %v6472
      %6474 = vmatmul.f32.gmra.mxu0 %v4500
      %v6475 = vpop.f32.mrf.mxu0
      %v6476 = vadd.f32 %v6363, %v6475
      %6477 = vmatmul.f32.gmra.mxu0 %v4504
      %v6478 = vpop.f32.mrf.mxu0
      %v6479 = vadd.f32 %v6366, %v6478
      %6480 = vmatmul.f32.gmra.mxu0 %v4508
      %v6481 = vpop.f32.mrf.mxu0
      %v6482 = vadd.f32 %v6369, %v6481
      %6483 = vmatmul.f32.gmra.mxu0 %v4512
      %v6484 = vpop.f32.mrf.mxu0
      %v6485 = vadd.f32 %v6372, %v6484
      %6486 = vmatmul.f32.gmra.mxu0 %v4516
      %v6487 = vpop.f32.mrf.mxu0
      %v6488 = vadd.f32 %v6375, %v6487
      %6489 = vmatmul.f32.gmra.mxu0 %v4520
      %v6490 = vpop.f32.mrf.mxu0
      %v6491 = vadd.f32 %v6378, %v6490
      %6492 = vmatmul.f32.gmra.mxu0 %v4524
      %v6493 = vpop.f32.mrf.mxu0
      %v6494 = vadd.f32 %v6381, %v6493
      %6495 = vmatmul.f32.gmra.mxu0 %v4528
      %v6496 = vpop.f32.mrf.mxu0
      %v6497 = vadd.f32 %v6384, %v6496
      %6498 = vmatmul.f32.gmra.mxu0 %v4532
      %v6499 = vpop.f32.mrf.mxu0
      %v6500 = vadd.f32 %v6387, %v6499
      %6501 = vmatmul.f32.gmra.mxu0 %v4536
      %v6502 = vpop.f32.mrf.mxu0
      %v6503 = vadd.f32 %v6390, %v6502
      %6504 = vmatmul.f32.gmra.mxu0 %v4540
      %v6505 = vpop.f32.mrf.mxu0
      %v6506 = vadd.f32 %v6393, %v6505
      %6507 = vmatmul.f32.gmra.mxu0 %v4544
      %v6508 = vpop.f32.mrf.mxu0
      %v6509 = vadd.f32 %v6396, %v6508
      %6510 = vmatmul.f32.gmra.mxu0 %v4548
      %v6511 = vpop.f32.mrf.mxu0
      %v6512 = vadd.f32 %v6399, %v6511
      %6513 = vmatmul.f32.gmra.mxu0 %v4552
      %v6514 = vpop.f32.mrf.mxu0
      %v6515 = vadd.f32 %v6402, %v6514
      %6516 = vmatmul.f32.gmra.mxu0 %v4556
      %v6517 = vpop.f32.mrf.mxu0
      %v6518 = vadd.f32 %v6405, %v6517
      %6519 = vmatmul.f32.gmra.mxu0 %v4560
      %v6520 = vpop.f32.mrf.mxu0
      %v6521 = vadd.f32 %v6408, %v6520
      %6522 = vdwg.mxu0
      %6523 = vmatpush.msra.mxu0 %v4817
      %6524 = vmatpush.msra.mxu0 %v4813
      %6525 = vmatpush.msra.mxu0 %v4809
      %6526 = vmatpush.msra.mxu0 %v4805
      %6527 = vmatpush.msra.mxu0 %v4801
      %6528 = vmatpush.msra.mxu0 %v4797
      %6529 = vmatpush.msra.mxu0 %v4793
      %6530 = vmatpush.msra.mxu0 %v4789
      %6531 = vmatpush.msra.mxu0 %v4785
      %6532 = vmatpush.msra.mxu0 %v4781
      %6533 = vmatpush.msra.mxu0 %v4777
      %6534 = vmatpush.msra.mxu0 %v4773
      %6535 = vmatpush.msra.mxu0 %v4769
      %6536 = vmatpush.msra.mxu0 %v4765
      %6537 = vmatpush.msra.mxu0 %v4761
      %6538 = vmatpush.msra.mxu0 %v4757
      %6539 = vmatmul.f32.gmra.mxu0 %v4437
      %v6540 = vpop.f32.mrf.mxu0
      %v6541 = vadd.f32 %v6428, %v6540
      %6542 = vmatmul.f32.gmra.mxu0 %v4441
      %v6543 = vpop.f32.mrf.mxu0
      %v6544 = vadd.f32 %v6431, %v6543
      %6545 = vmatmul.f32.gmra.mxu0 %v4445
      %v6546 = vpop.f32.mrf.mxu0
      %v6547 = vadd.f32 %v6434, %v6546
      %6548 = vmatmul.f32.gmra.mxu0 %v4449
      %v6549 = vpop.f32.mrf.mxu0
      %v6550 = vadd.f32 %v6437, %v6549
      %6551 = vmatmul.f32.gmra.mxu0 %v4453
      %v6552 = vpop.f32.mrf.mxu0
      %v6553 = vadd.f32 %v6440, %v6552
      %6554 = vmatmul.f32.gmra.mxu0 %v4457
      %v6555 = vpop.f32.mrf.mxu0
      %v6556 = vadd.f32 %v6443, %v6555
      %6557 = vmatmul.f32.gmra.mxu0 %v4461
      %v6558 = vpop.f32.mrf.mxu0
      %v6559 = vadd.f32 %v6446, %v6558
      %6560 = vmatmul.f32.gmra.mxu0 %v4465
      %v6561 = vpop.f32.mrf.mxu0
      %v6562 = vadd.f32 %v6449, %v6561
      %6563 = vmatmul.f32.gmra.mxu0 %v4469
      %v6564 = vpop.f32.mrf.mxu0
      %v6565 = vadd.f32 %v6452, %v6564
      %6566 = vmatmul.f32.gmra.mxu0 %v4473
      %v6567 = vpop.f32.mrf.mxu0
      %v6568 = vadd.f32 %v6455, %v6567
      %6569 = vmatmul.f32.gmra.mxu0 %v4477
      %v6570 = vpop.f32.mrf.mxu0
      %v6571 = vadd.f32 %v6458, %v6570
      %6572 = vmatmul.f32.gmra.mxu0 %v4481
      %v6573 = vpop.f32.mrf.mxu0
      %v6574 = vadd.f32 %v6461, %v6573
      %6575 = vmatmul.f32.gmra.mxu0 %v4485
      %v6576 = vpop.f32.mrf.mxu0
      %v6577 = vadd.f32 %v6464, %v6576
      %6578 = vmatmul.f32.gmra.mxu0 %v4489
      %v6579 = vpop.f32.mrf.mxu0
      %v6580 = vadd.f32 %v6467, %v6579
      %6581 = vmatmul.f32.gmra.mxu0 %v4493
      %v6582 = vpop.f32.mrf.mxu0
      %v6583 = vadd.f32 %v6470, %v6582
      %6584 = vmatmul.f32.gmra.mxu0 %v4497
      %v6585 = vpop.f32.mrf.mxu0
      %v6586 = vadd.f32 %v6473, %v6585
      %6587 = vmatmul.f32.gmra.mxu0 %v4501
      %v6588 = vpop.f32.mrf.mxu0
      %v6589 = vadd.f32 %v6476, %v6588
      %6590 = vmatmul.f32.gmra.mxu0 %v4505
      %v6591 = vpop.f32.mrf.mxu0
      %v6592 = vadd.f32 %v6479, %v6591
      %6593 = vmatmul.f32.gmra.mxu0 %v4509
      %v6594 = vpop.f32.mrf.mxu0
      %v6595 = vadd.f32 %v6482, %v6594
      %6596 = vmatmul.f32.gmra.mxu0 %v4513
      %v6597 = vpop.f32.mrf.mxu0
      %v6598 = vadd.f32 %v6485, %v6597
      %6599 = vmatmul.f32.gmra.mxu0 %v4517
      %v6600 = vpop.f32.mrf.mxu0
      %v6601 = vadd.f32 %v6488, %v6600
      %6602 = vmatmul.f32.gmra.mxu0 %v4521
      %v6603 = vpop.f32.mrf.mxu0
      %v6604 = vadd.f32 %v6491, %v6603
      %6605 = vmatmul.f32.gmra.mxu0 %v4525
      %v6606 = vpop.f32.mrf.mxu0
      %v6607 = vadd.f32 %v6494, %v6606
      %6608 = vmatmul.f32.gmra.mxu0 %v4529
      %v6609 = vpop.f32.mrf.mxu0
      %v6610 = vadd.f32 %v6497, %v6609
      %6611 = vmatmul.f32.gmra.mxu0 %v4533
      %v6612 = vpop.f32.mrf.mxu0
      %v6613 = vadd.f32 %v6500, %v6612
      %6614 = vmatmul.f32.gmra.mxu0 %v4537
      %v6615 = vpop.f32.mrf.mxu0
      %v6616 = vadd.f32 %v6503, %v6615
      %6617 = vmatmul.f32.gmra.mxu0 %v4541
      %v6618 = vpop.f32.mrf.mxu0
      %v6619 = vadd.f32 %v6506, %v6618
      %6620 = vmatmul.f32.gmra.mxu0 %v4545
      %v6621 = vpop.f32.mrf.mxu0
      %v6622 = vadd.f32 %v6509, %v6621
      %6623 = vmatmul.f32.gmra.mxu0 %v4549
      %v6624 = vpop.f32.mrf.mxu0
      %v6625 = vadd.f32 %v6512, %v6624
      %6626 = vmatmul.f32.gmra.mxu0 %v4553
      %v6627 = vpop.f32.mrf.mxu0
      %v6628 = vadd.f32 %v6515, %v6627
      %6629 = vmatmul.f32.gmra.mxu0 %v4557
      %v6630 = vpop.f32.mrf.mxu0
      %v6631 = vadd.f32 %v6518, %v6630
      %6632 = vmatmul.f32.gmra.mxu0 %v4561
      %v6633 = vpop.f32.mrf.mxu0
      %v6634 = vadd.f32 %v6521, %v6633
      %6635 = vdwg.mxu0
      %v6636 = vmax.f32 %v5185, 0.0
      %v6637 = vmax.f32 %v5637, 0.0
      %v6638 = vmax.f32 %v6089, 0.0
      %v6639 = vmax.f32 %v6541, 0.0
      %v6640 = vmax.f32 %v5188, 0.0
      %v6641 = vmax.f32 %v5640, 0.0
      %v6642 = vmax.f32 %v6092, 0.0
      %v6643 = vmax.f32 %v6544, 0.0
      %v6644 = vmax.f32 %v5191, 0.0
      %v6645 = vmax.f32 %v5643, 0.0
      %v6646 = vmax.f32 %v6095, 0.0
      %v6647 = vmax.f32 %v6547, 0.0
      %v6648 = vmax.f32 %v5194, 0.0
      %v6649 = vmax.f32 %v5646, 0.0
      %v6650 = vmax.f32 %v6098, 0.0
      %v6651 = vmax.f32 %v6550, 0.0
      %v6652 = vmax.f32 %v5197, 0.0
      %v6653 = vmax.f32 %v5649, 0.0
      %v6654 = vmax.f32 %v6101, 0.0
      %v6655 = vmax.f32 %v6553, 0.0
      %v6656 = vmax.f32 %v5200, 0.0
      %v6657 = vmax.f32 %v5652, 0.0
      %v6658 = vmax.f32 %v6104, 0.0
      %v6659 = vmax.f32 %v6556, 0.0
      %v6660 = vmax.f32 %v5203, 0.0
      %v6661 = vmax.f32 %v5655, 0.0
      %v6662 = vmax.f32 %v6107, 0.0
      %v6663 = vmax.f32 %v6559, 0.0
      %v6664 = vmax.f32 %v5206, 0.0
      %v6665 = vmax.f32 %v5658, 0.0
      %v6666 = vmax.f32 %v6110, 0.0
      %v6667 = vmax.f32 %v6562, 0.0
      %v6668 = vmax.f32 %v5209, 0.0
      %v6669 = vmax.f32 %v5661, 0.0
      %v6670 = vmax.f32 %v6113, 0.0
      %v6671 = vmax.f32 %v6565, 0.0
      %v6672 = vmax.f32 %v5212, 0.0
      %v6673 = vmax.f32 %v5664, 0.0
      %v6674 = vmax.f32 %v6116, 0.0
      %v6675 = vmax.f32 %v6568, 0.0
      %v6676 = vmax.f32 %v5215, 0.0
      %v6677 = vmax.f32 %v5667, 0.0
      %v6678 = vmax.f32 %v6119, 0.0
      %v6679 = vmax.f32 %v6571, 0.0
      %v6680 = vmax.f32 %v5218, 0.0
      %v6681 = vmax.f32 %v5670, 0.0
      %v6682 = vmax.f32 %v6122, 0.0
      %v6683 = vmax.f32 %v6574, 0.0
      %v6684 = vmax.f32 %v5221, 0.0
      %v6685 = vmax.f32 %v5673, 0.0
      %v6686 = vmax.f32 %v6125, 0.0
      %v6687 = vmax.f32 %v6577, 0.0
      %v6688 = vmax.f32 %v5224, 0.0
      %v6689 = vmax.f32 %v5676, 0.0
      %v6690 = vmax.f32 %v6128, 0.0
      %v6691 = vmax.f32 %v6580, 0.0
      %v6692 = vmax.f32 %v5227, 0.0
      %v6693 = vmax.f32 %v5679, 0.0
      %v6694 = vmax.f32 %v6131, 0.0
      %v6695 = vmax.f32 %v6583, 0.0
      %v6696 = vmax.f32 %v5230, 0.0
      %v6697 = vmax.f32 %v5682, 0.0
      %v6698 = vmax.f32 %v6134, 0.0
      %v6699 = vmax.f32 %v6586, 0.0
      %v6700 = vmax.f32 %v5233, 0.0
      %v6701 = vmax.f32 %v5685, 0.0
      %v6702 = vmax.f32 %v6137, 0.0
      %v6703 = vmax.f32 %v6589, 0.0
      %v6704 = vmax.f32 %v5236, 0.0
      %v6705 = vmax.f32 %v5688, 0.0
      %v6706 = vmax.f32 %v6140, 0.0
      %v6707 = vmax.f32 %v6592, 0.0
      %v6708 = vmax.f32 %v5239, 0.0
      %v6709 = vmax.f32 %v5691, 0.0
      %v6710 = vmax.f32 %v6143, 0.0
      %v6711 = vmax.f32 %v6595, 0.0
      %v6712 = vmax.f32 %v5242, 0.0
      %v6713 = vmax.f32 %v5694, 0.0
      %v6714 = vmax.f32 %v6146, 0.0
      %v6715 = vmax.f32 %v6598, 0.0
      %v6716 = vmax.f32 %v5245, 0.0
      %v6717 = vmax.f32 %v5697, 0.0
      %v6718 = vmax.f32 %v6149, 0.0
      %v6719 = vmax.f32 %v6601, 0.0
      %v6720 = vmax.f32 %v5248, 0.0
      %v6721 = vmax.f32 %v5700, 0.0
      %v6722 = vmax.f32 %v6152, 0.0
      %v6723 = vmax.f32 %v6604, 0.0
      %v6724 = vmax.f32 %v5251, 0.0
      %v6725 = vmax.f32 %v5703, 0.0
      %v6726 = vmax.f32 %v6155, 0.0
      %v6727 = vmax.f32 %v6607, 0.0
      %v6728 = vmax.f32 %v5254, 0.0
      %v6729 = vmax.f32 %v5706, 0.0
      %v6730 = vmax.f32 %v6158, 0.0
      %v6731 = vmax.f32 %v6610, 0.0
      %v6732 = vmax.f32 %v5257, 0.0
      %v6733 = vmax.f32 %v5709, 0.0
      %v6734 = vmax.f32 %v6161, 0.0
      %v6735 = vmax.f32 %v6613, 0.0
      %v6736 = vmax.f32 %v5260, 0.0
      %v6737 = vmax.f32 %v5712, 0.0
      %v6738 = vmax.f32 %v6164, 0.0
      %v6739 = vmax.f32 %v6616, 0.0
      %v6740 = vmax.f32 %v5263, 0.0
      %v6741 = vmax.f32 %v5715, 0.0
      %v6742 = vmax.f32 %v6167, 0.0
      %v6743 = vmax.f32 %v6619, 0.0
      %v6744 = vmax.f32 %v5266, 0.0
      %v6745 = vmax.f32 %v5718, 0.0
      %v6746 = vmax.f32 %v6170, 0.0
      %v6747 = vmax.f32 %v6622, 0.0
      %v6748 = vmax.f32 %v5269, 0.0
      %v6749 = vmax.f32 %v5721, 0.0
      %v6750 = vmax.f32 %v6173, 0.0
      %v6751 = vmax.f32 %v6625, 0.0
      %v6752 = vmax.f32 %v5272, 0.0
      %v6753 = vmax.f32 %v5724, 0.0
      %v6754 = vmax.f32 %v6176, 0.0
      %v6755 = vmax.f32 %v6628, 0.0
      %v6756 = vmax.f32 %v5275, 0.0
      %v6757 = vmax.f32 %v5727, 0.0
      %v6758 = vmax.f32 %v6179, 0.0
      %v6759 = vmax.f32 %v6631, 0.0
      %v6760 = vmax.f32 %v5278, 0.0
      %v6761 = vmax.f32 %v5730, 0.0
      %v6762 = vmax.f32 %v6182, 0.0
      %v6763 = vmax.f32 %v6634, 0.0
      %v6764 = vld [vmem:[%s11] sm:$0xff]
      %v6765 = vld [vmem:[%s11 + $0x8] sm:$0xff]
      %v6766 = vld [vmem:[%s11 + $0x10] sm:$0xff]
      %v6767 = vld [vmem:[%s11 + $0x18] sm:$0xff]
      %v6768 = vld [vmem:[%s11 + $0x20] sm:$0xff]
      %v6769 = vld [vmem:[%s11 + $0x28] sm:$0xff]
      %v6770 = vld [vmem:[%s11 + $0x30] sm:$0xff]
      %v6771 = vld [vmem:[%s11 + $0x38] sm:$0xff]
      %v6772 = vld [vmem:[%s11 + $0x40] sm:$0xff]
      %v6773 = vld [vmem:[%s11 + $0x48] sm:$0xff]
      %v6774 = vld [vmem:[%s11 + $0x50] sm:$0xff]
      %v6775 = vld [vmem:[%s11 + $0x58] sm:$0xff]
      %v6776 = vld [vmem:[%s11 + $0x60] sm:$0xff]
      %v6777 = vld [vmem:[%s11 + $0x68] sm:$0xff]
      %v6778 = vld [vmem:[%s11 + $0x70] sm:$0xff]
      %v6779 = vld [vmem:[%s11 + $0x78] sm:$0xff]
      %v6780 = vld [vmem:[%s11 + $0x80] sm:$0xff]
      %v6781 = vld [vmem:[%s11 + $0x88] sm:$0xff]
      %v6782 = vld [vmem:[%s11 + $0x90] sm:$0xff]
      %v6783 = vld [vmem:[%s11 + $0x98] sm:$0xff]
      %v6784 = vld [vmem:[%s11 + $0xa0] sm:$0xff]
      %v6785 = vld [vmem:[%s11 + $0xa8] sm:$0xff]
      %v6786 = vld [vmem:[%s11 + $0xb0] sm:$0xff]
      %v6787 = vld [vmem:[%s11 + $0xb8] sm:$0xff]
      %v6788 = vld [vmem:[%s11 + $0xc0] sm:$0xff]
      %v6789 = vld [vmem:[%s11 + $0xc8] sm:$0xff]
      %v6790 = vld [vmem:[%s11 + $0xd0] sm:$0xff]
      %v6791 = vld [vmem:[%s11 + $0xd8] sm:$0xff]
      %v6792 = vld [vmem:[%s11 + $0xe0] sm:$0xff]
      %v6793 = vld [vmem:[%s11 + $0xe8] sm:$0xff]
      %v6794 = vld [vmem:[%s11 + $0xf0] sm:$0xff]
      %v6795 = vld [vmem:[%s11 + $0xf8] sm:$0xff]
      %v6796 = vld [vmem:[%s11 + $0x100] sm:$0xff]
      %v6797 = vld [vmem:[%s11 + $0x108] sm:$0xff]
      %v6798 = vld [vmem:[%s11 + $0x110] sm:$0xff]
      %v6799 = vld [vmem:[%s11 + $0x118] sm:$0xff]
      %v6800 = vld [vmem:[%s11 + $0x120] sm:$0xff]
      %v6801 = vld [vmem:[%s11 + $0x128] sm:$0xff]
      %v6802 = vld [vmem:[%s11 + $0x130] sm:$0xff]
      %v6803 = vld [vmem:[%s11 + $0x138] sm:$0xff]
      %v6804 = vld [vmem:[%s11 + $0x140] sm:$0xff]
      %v6805 = vld [vmem:[%s11 + $0x148] sm:$0xff]
      %v6806 = vld [vmem:[%s11 + $0x150] sm:$0xff]
      %v6807 = vld [vmem:[%s11 + $0x158] sm:$0xff]
      %v6808 = vld [vmem:[%s11 + $0x160] sm:$0xff]
      %v6809 = vld [vmem:[%s11 + $0x168] sm:$0xff]
      %v6810 = vld [vmem:[%s11 + $0x170] sm:$0xff]
      %v6811 = vld [vmem:[%s11 + $0x178] sm:$0xff]
      %v6812 = vld [vmem:[%s11 + $0x180] sm:$0xff]
      %v6813 = vld [vmem:[%s11 + $0x188] sm:$0xff]
      %v6814 = vld [vmem:[%s11 + $0x190] sm:$0xff]
      %v6815 = vld [vmem:[%s11 + $0x198] sm:$0xff]
      %v6816 = vld [vmem:[%s11 + $0x1a0] sm:$0xff]
      %v6817 = vld [vmem:[%s11 + $0x1a8] sm:$0xff]
      %v6818 = vld [vmem:[%s11 + $0x1b0] sm:$0xff]
      %v6819 = vld [vmem:[%s11 + $0x1b8] sm:$0xff]
      %v6820 = vld [vmem:[%s11 + $0x1c0] sm:$0xff]
      %v6821 = vld [vmem:[%s11 + $0x1c8] sm:$0xff]
      %v6822 = vld [vmem:[%s11 + $0x1d0] sm:$0xff]
      %v6823 = vld [vmem:[%s11 + $0x1d8] sm:$0xff]
      %v6824 = vld [vmem:[%s11 + $0x1e0] sm:$0xff]
      %v6825 = vld [vmem:[%s11 + $0x1e8] sm:$0xff]
      %v6826 = vld [vmem:[%s11 + $0x1f0] sm:$0xff]
      %v6827 = vld [vmem:[%s11 + $0x1f8] sm:$0xff]
      %v6828 = vld [vmem:[%s12] sm:$0x1]
      %v6830 = vperm.slane %v6828, 0
      %6832 = vmatpush.msra.mxu0 %v6779
      %6833 = vmatpush.msra.mxu0 %v6778
      %6834 = vmatpush.msra.mxu0 %v6777
      %6835 = vmatpush.msra.mxu0 %v6776
      %6836 = vmatpush.msra.mxu0 %v6775
      %6837 = vmatpush.msra.mxu0 %v6774
      %6838 = vmatpush.msra.mxu0 %v6773
      %6839 = vmatpush.msra.mxu0 %v6772
      %6840 = vmatpush.msra.mxu0 %v6771
      %6841 = vmatpush.msra.mxu0 %v6770
      %6842 = vmatpush.msra.mxu0 %v6769
      %6843 = vmatpush.msra.mxu0 %v6768
      %6844 = vmatpush.msra.mxu0 %v6767
      %6845 = vmatpush.msra.mxu0 %v6766
      %6846 = vmatpush.msra.mxu0 %v6765
      %6847 = vmatpush.msra.mxu0 %v6764
      %6848 = vmatmul.f32.gmra.mxu0 %v6636
      %v6849 = vpop.f32.mrf.mxu0
      %v6850 = vadd.f32 %v6830, %v6849
      %6851 = vmatmul.f32.gmra.mxu0 %v6640
      %v6852 = vpop.f32.mrf.mxu0
      %v6853 = vadd.f32 %v6830, %v6852
      %6854 = vmatmul.f32.gmra.mxu0 %v6644
      %v6855 = vpop.f32.mrf.mxu0
      %v6856 = vadd.f32 %v6830, %v6855
      %6857 = vmatmul.f32.gmra.mxu0 %v6648
      %v6858 = vpop.f32.mrf.mxu0
      %v6859 = vadd.f32 %v6830, %v6858
      %6860 = vmatmul.f32.gmra.mxu0 %v6652
      %v6861 = vpop.f32.mrf.mxu0
      %v6862 = vadd.f32 %v6830, %v6861
      %6863 = vmatmul.f32.gmra.mxu0 %v6656
      %v6864 = vpop.f32.mrf.mxu0
      %v6865 = vadd.f32 %v6830, %v6864
      %6866 = vmatmul.f32.gmra.mxu0 %v6660
      %v6867 = vpop.f32.mrf.mxu0
      %v6868 = vadd.f32 %v6830, %v6867
      %6869 = vmatmul.f32.gmra.mxu0 %v6664
      %v6870 = vpop.f32.mrf.mxu0
      %v6871 = vadd.f32 %v6830, %v6870
      %6872 = vmatmul.f32.gmra.mxu0 %v6668
      %v6873 = vpop.f32.mrf.mxu0
      %v6874 = vadd.f32 %v6830, %v6873
      %6875 = vmatmul.f32.gmra.mxu0 %v6672
      %v6876 = vpop.f32.mrf.mxu0
      %v6877 = vadd.f32 %v6830, %v6876
      %6878 = vmatmul.f32.gmra.mxu0 %v6676
      %v6879 = vpop.f32.mrf.mxu0
      %v6880 = vadd.f32 %v6830, %v6879
      %6881 = vmatmul.f32.gmra.mxu0 %v6680
      %v6882 = vpop.f32.mrf.mxu0
      %v6883 = vadd.f32 %v6830, %v6882
      %6884 = vmatmul.f32.gmra.mxu0 %v6684
      %v6885 = vpop.f32.mrf.mxu0
      %v6886 = vadd.f32 %v6830, %v6885
      %6887 = vmatmul.f32.gmra.mxu0 %v6688
      %v6888 = vpop.f32.mrf.mxu0
      %v6889 = vadd.f32 %v6830, %v6888
      %6890 = vmatmul.f32.gmra.mxu0 %v6692
      %v6891 = vpop.f32.mrf.mxu0
      %v6892 = vadd.f32 %v6830, %v6891
      %6893 = vmatmul.f32.gmra.mxu0 %v6696
      %v6894 = vpop.f32.mrf.mxu0
      %v6895 = vadd.f32 %v6830, %v6894
      %6896 = vmatmul.f32.gmra.mxu0 %v6700
      %v6897 = vpop.f32.mrf.mxu0
      %v6898 = vadd.f32 %v6830, %v6897
      %6899 = vmatmul.f32.gmra.mxu0 %v6704
      %v6900 = vpop.f32.mrf.mxu0
      %v6901 = vadd.f32 %v6830, %v6900
      %6902 = vmatmul.f32.gmra.mxu0 %v6708
      %v6903 = vpop.f32.mrf.mxu0
      %v6904 = vadd.f32 %v6830, %v6903
      %6905 = vmatmul.f32.gmra.mxu0 %v6712
      %v6906 = vpop.f32.mrf.mxu0
      %v6907 = vadd.f32 %v6830, %v6906
      %6908 = vmatmul.f32.gmra.mxu0 %v6716
      %v6909 = vpop.f32.mrf.mxu0
      %v6910 = vadd.f32 %v6830, %v6909
      %6911 = vmatmul.f32.gmra.mxu0 %v6720
      %v6912 = vpop.f32.mrf.mxu0
      %v6913 = vadd.f32 %v6830, %v6912
      %6914 = vmatmul.f32.gmra.mxu0 %v6724
      %v6915 = vpop.f32.mrf.mxu0
      %v6916 = vadd.f32 %v6830, %v6915
      %6917 = vmatmul.f32.gmra.mxu0 %v6728
      %v6918 = vpop.f32.mrf.mxu0
      %v6919 = vadd.f32 %v6830, %v6918
      %6920 = vmatmul.f32.gmra.mxu0 %v6732
      %v6921 = vpop.f32.mrf.mxu0
      %v6922 = vadd.f32 %v6830, %v6921
      %6923 = vmatmul.f32.gmra.mxu0 %v6736
      %v6924 = vpop.f32.mrf.mxu0
      %v6925 = vadd.f32 %v6830, %v6924
      %6926 = vmatmul.f32.gmra.mxu0 %v6740
      %v6927 = vpop.f32.mrf.mxu0
      %v6928 = vadd.f32 %v6830, %v6927
      %6929 = vmatmul.f32.gmra.mxu0 %v6744
      %v6930 = vpop.f32.mrf.mxu0
      %v6931 = vadd.f32 %v6830, %v6930
      %6932 = vmatmul.f32.gmra.mxu0 %v6748
      %v6933 = vpop.f32.mrf.mxu0
      %v6934 = vadd.f32 %v6830, %v6933
      %6935 = vmatmul.f32.gmra.mxu0 %v6752
      %v6936 = vpop.f32.mrf.mxu0
      %v6937 = vadd.f32 %v6830, %v6936
      %6938 = vmatmul.f32.gmra.mxu0 %v6756
      %v6939 = vpop.f32.mrf.mxu0
      %v6940 = vadd.f32 %v6830, %v6939
      %6941 = vmatmul.f32.gmra.mxu0 %v6760
      %v6942 = vpop.f32.mrf.mxu0
      %v6943 = vadd.f32 %v6830, %v6942
      %6944 = vdwg.mxu0
      %6945 = vmatpush.msra.mxu0 %v6795
      %6946 = vmatpush.msra.mxu0 %v6794
      %6947 = vmatpush.msra.mxu0 %v6793
      %6948 = vmatpush.msra.mxu0 %v6792
      %6949 = vmatpush.msra.mxu0 %v6791
      %6950 = vmatpush.msra.mxu0 %v6790
      %6951 = vmatpush.msra.mxu0 %v6789
      %6952 = vmatpush.msra.mxu0 %v6788
      %6953 = vmatpush.msra.mxu0 %v6787
      %6954 = vmatpush.msra.mxu0 %v6786
      %6955 = vmatpush.msra.mxu0 %v6785
      %6956 = vmatpush.msra.mxu0 %v6784
      %6957 = vmatpush.msra.mxu0 %v6783
      %6958 = vmatpush.msra.mxu0 %v6782
      %6959 = vmatpush.msra.mxu0 %v6781
      %6960 = vmatpush.msra.mxu0 %v6780
      %6961 = vmatmul.f32.gmra.mxu0 %v6637
      %v6962 = vpop.f32.mrf.mxu0
      %v6963 = vadd.f32 %v6850, %v6962
      %6964 = vmatmul.f32.gmra.mxu0 %v6641
      %v6965 = vpop.f32.mrf.mxu0
      %v6966 = vadd.f32 %v6853, %v6965
      %6967 = vmatmul.f32.gmra.mxu0 %v6645
      %v6968 = vpop.f32.mrf.mxu0
      %v6969 = vadd.f32 %v6856, %v6968
      %6970 = vmatmul.f32.gmra.mxu0 %v6649
      %v6971 = vpop.f32.mrf.mxu0
      %v6972 = vadd.f32 %v6859, %v6971
      %6973 = vmatmul.f32.gmra.mxu0 %v6653
      %v6974 = vpop.f32.mrf.mxu0
      %v6975 = vadd.f32 %v6862, %v6974
      %6976 = vmatmul.f32.gmra.mxu0 %v6657
      %v6977 = vpop.f32.mrf.mxu0
      %v6978 = vadd.f32 %v6865, %v6977
      %6979 = vmatmul.f32.gmra.mxu0 %v6661
      %v6980 = vpop.f32.mrf.mxu0
      %v6981 = vadd.f32 %v6868, %v6980
      %6982 = vmatmul.f32.gmra.mxu0 %v6665
      %v6983 = vpop.f32.mrf.mxu0
      %v6984 = vadd.f32 %v6871, %v6983
      %6985 = vmatmul.f32.gmra.mxu0 %v6669
      %v6986 = vpop.f32.mrf.mxu0
      %v6987 = vadd.f32 %v6874, %v6986
      %6988 = vmatmul.f32.gmra.mxu0 %v6673
      %v6989 = vpop.f32.mrf.mxu0
      %v6990 = vadd.f32 %v6877, %v6989
      %6991 = vmatmul.f32.gmra.mxu0 %v6677
      %v6992 = vpop.f32.mrf.mxu0
      %v6993 = vadd.f32 %v6880, %v6992
      %6994 = vmatmul.f32.gmra.mxu0 %v6681
      %v6995 = vpop.f32.mrf.mxu0
      %v6996 = vadd.f32 %v6883, %v6995
      %6997 = vmatmul.f32.gmra.mxu0 %v6685
      %v6998 = vpop.f32.mrf.mxu0
      %v6999 = vadd.f32 %v6886, %v6998
      %7000 = vmatmul.f32.gmra.mxu0 %v6689
      %v7001 = vpop.f32.mrf.mxu0
      %v7002 = vadd.f32 %v6889, %v7001
      %7003 = vmatmul.f32.gmra.mxu0 %v6693
      %v7004 = vpop.f32.mrf.mxu0
      %v7005 = vadd.f32 %v6892, %v7004
      %7006 = vmatmul.f32.gmra.mxu0 %v6697
      %v7007 = vpop.f32.mrf.mxu0
      %v7008 = vadd.f32 %v6895, %v7007
      %7009 = vmatmul.f32.gmra.mxu0 %v6701
      %v7010 = vpop.f32.mrf.mxu0
      %v7011 = vadd.f32 %v6898, %v7010
      %7012 = vmatmul.f32.gmra.mxu0 %v6705
      %v7013 = vpop.f32.mrf.mxu0
      %v7014 = vadd.f32 %v6901, %v7013
      %7015 = vmatmul.f32.gmra.mxu0 %v6709
      %v7016 = vpop.f32.mrf.mxu0
      %v7017 = vadd.f32 %v6904, %v7016
      %7018 = vmatmul.f32.gmra.mxu0 %v6713
      %v7019 = vpop.f32.mrf.mxu0
      %v7020 = vadd.f32 %v6907, %v7019
      %7021 = vmatmul.f32.gmra.mxu0 %v6717
      %v7022 = vpop.f32.mrf.mxu0
      %v7023 = vadd.f32 %v6910, %v7022
      %7024 = vmatmul.f32.gmra.mxu0 %v6721
      %v7025 = vpop.f32.mrf.mxu0
      %v7026 = vadd.f32 %v6913, %v7025
      %7027 = vmatmul.f32.gmra.mxu0 %v6725
      %v7028 = vpop.f32.mrf.mxu0
      %v7029 = vadd.f32 %v6916, %v7028
      %7030 = vmatmul.f32.gmra.mxu0 %v6729
      %v7031 = vpop.f32.mrf.mxu0
      %v7032 = vadd.f32 %v6919, %v7031
      %7033 = vmatmul.f32.gmra.mxu0 %v6733
      %v7034 = vpop.f32.mrf.mxu0
      %v7035 = vadd.f32 %v6922, %v7034
      %7036 = vmatmul.f32.gmra.mxu0 %v6737
      %v7037 = vpop.f32.mrf.mxu0
      %v7038 = vadd.f32 %v6925, %v7037
      %7039 = vmatmul.f32.gmra.mxu0 %v6741
      %v7040 = vpop.f32.mrf.mxu0
      %v7041 = vadd.f32 %v6928, %v7040
      %7042 = vmatmul.f32.gmra.mxu0 %v6745
      %v7043 = vpop.f32.mrf.mxu0
      %v7044 = vadd.f32 %v6931, %v7043
      %7045 = vmatmul.f32.gmra.mxu0 %v6749
      %v7046 = vpop.f32.mrf.mxu0
      %v7047 = vadd.f32 %v6934, %v7046
      %7048 = vmatmul.f32.gmra.mxu0 %v6753
      %v7049 = vpop.f32.mrf.mxu0
      %v7050 = vadd.f32 %v6937, %v7049
      %7051 = vmatmul.f32.gmra.mxu0 %v6757
      %v7052 = vpop.f32.mrf.mxu0
      %v7053 = vadd.f32 %v6940, %v7052
      %7054 = vmatmul.f32.gmra.mxu0 %v6761
      %v7055 = vpop.f32.mrf.mxu0
      %v7056 = vadd.f32 %v6943, %v7055
      %7057 = vdwg.mxu0
      %7058 = vmatpush.msra.mxu0 %v6811
      %7059 = vmatpush.msra.mxu0 %v6810
      %7060 = vmatpush.msra.mxu0 %v6809
      %7061 = vmatpush.msra.mxu0 %v6808
      %7062 = vmatpush.msra.mxu0 %v6807
      %7063 = vmatpush.msra.mxu0 %v6806
      %7064 = vmatpush.msra.mxu0 %v6805
      %7065 = vmatpush.msra.mxu0 %v6804
      %7066 = vmatpush.msra.mxu0 %v6803
      %7067 = vmatpush.msra.mxu0 %v6802
      %7068 = vmatpush.msra.mxu0 %v6801
      %7069 = vmatpush.msra.mxu0 %v6800
      %7070 = vmatpush.msra.mxu0 %v6799
      %7071 = vmatpush.msra.mxu0 %v6798
      %7072 = vmatpush.msra.mxu0 %v6797
      %7073 = vmatpush.msra.mxu0 %v6796
      %7074 = vmatmul.f32.gmra.mxu0 %v6638
      %v7075 = vpop.f32.mrf.mxu0
      %v7076 = vadd.f32 %v6963, %v7075
      %7077 = vmatmul.f32.gmra.mxu0 %v6642
      %v7078 = vpop.f32.mrf.mxu0
      %v7079 = vadd.f32 %v6966, %v7078
      %7080 = vmatmul.f32.gmra.mxu0 %v6646
      %v7081 = vpop.f32.mrf.mxu0
      %v7082 = vadd.f32 %v6969, %v7081
      %7083 = vmatmul.f32.gmra.mxu0 %v6650
      %v7084 = vpop.f32.mrf.mxu0
      %v7085 = vadd.f32 %v6972, %v7084
      %7086 = vmatmul.f32.gmra.mxu0 %v6654
      %v7087 = vpop.f32.mrf.mxu0
      %v7088 = vadd.f32 %v6975, %v7087
      %7089 = vmatmul.f32.gmra.mxu0 %v6658
      %v7090 = vpop.f32.mrf.mxu0
      %v7091 = vadd.f32 %v6978, %v7090
      %7092 = vmatmul.f32.gmra.mxu0 %v6662
      %v7093 = vpop.f32.mrf.mxu0
      %v7094 = vadd.f32 %v6981, %v7093
      %7095 = vmatmul.f32.gmra.mxu0 %v6666
      %v7096 = vpop.f32.mrf.mxu0
      %v7097 = vadd.f32 %v6984, %v7096
      %7098 = vmatmul.f32.gmra.mxu0 %v6670
      %v7099 = vpop.f32.mrf.mxu0
      %v7100 = vadd.f32 %v6987, %v7099
      %7101 = vmatmul.f32.gmra.mxu0 %v6674
      %v7102 = vpop.f32.mrf.mxu0
      %v7103 = vadd.f32 %v6990, %v7102
      %7104 = vmatmul.f32.gmra.mxu0 %v6678
      %v7105 = vpop.f32.mrf.mxu0
      %v7106 = vadd.f32 %v6993, %v7105
      %7107 = vmatmul.f32.gmra.mxu0 %v6682
      %v7108 = vpop.f32.mrf.mxu0
      %v7109 = vadd.f32 %v6996, %v7108
      %7110 = vmatmul.f32.gmra.mxu0 %v6686
      %v7111 = vpop.f32.mrf.mxu0
      %v7112 = vadd.f32 %v6999, %v7111
      %7113 = vmatmul.f32.gmra.mxu0 %v6690
      %v7114 = vpop.f32.mrf.mxu0
      %v7115 = vadd.f32 %v7002, %v7114
      %7116 = vmatmul.f32.gmra.mxu0 %v6694
      %v7117 = vpop.f32.mrf.mxu0
      %v7118 = vadd.f32 %v7005, %v7117
      %7119 = vmatmul.f32.gmra.mxu0 %v6698
      %v7120 = vpop.f32.mrf.mxu0
      %v7121 = vadd.f32 %v7008, %v7120
      %7122 = vmatmul.f32.gmra.mxu0 %v6702
      %v7123 = vpop.f32.mrf.mxu0
      %v7124 = vadd.f32 %v7011, %v7123
      %7125 = vmatmul.f32.gmra.mxu0 %v6706
      %v7126 = vpop.f32.mrf.mxu0
      %v7127 = vadd.f32 %v7014, %v7126
      %7128 = vmatmul.f32.gmra.mxu0 %v6710
      %v7129 = vpop.f32.mrf.mxu0
      %v7130 = vadd.f32 %v7017, %v7129
      %7131 = vmatmul.f32.gmra.mxu0 %v6714
      %v7132 = vpop.f32.mrf.mxu0
      %v7133 = vadd.f32 %v7020, %v7132
      %7134 = vmatmul.f32.gmra.mxu0 %v6718
      %v7135 = vpop.f32.mrf.mxu0
      %v7136 = vadd.f32 %v7023, %v7135
      %7137 = vmatmul.f32.gmra.mxu0 %v6722
      %v7138 = vpop.f32.mrf.mxu0
      %v7139 = vadd.f32 %v7026, %v7138
      %7140 = vmatmul.f32.gmra.mxu0 %v6726
      %v7141 = vpop.f32.mrf.mxu0
      %v7142 = vadd.f32 %v7029, %v7141
      %7143 = vmatmul.f32.gmra.mxu0 %v6730
      %v7144 = vpop.f32.mrf.mxu0
      %v7145 = vadd.f32 %v7032, %v7144
      %7146 = vmatmul.f32.gmra.mxu0 %v6734
      %v7147 = vpop.f32.mrf.mxu0
      %v7148 = vadd.f32 %v7035, %v7147
      %7149 = vmatmul.f32.gmra.mxu0 %v6738
      %v7150 = vpop.f32.mrf.mxu0
      %v7151 = vadd.f32 %v7038, %v7150
      %7152 = vmatmul.f32.gmra.mxu0 %v6742
      %v7153 = vpop.f32.mrf.mxu0
      %v7154 = vadd.f32 %v7041, %v7153
      %7155 = vmatmul.f32.gmra.mxu0 %v6746
      %v7156 = vpop.f32.mrf.mxu0
      %v7157 = vadd.f32 %v7044, %v7156
      %7158 = vmatmul.f32.gmra.mxu0 %v6750
      %v7159 = vpop.f32.mrf.mxu0
      %v7160 = vadd.f32 %v7047, %v7159
      %7161 = vmatmul.f32.gmra.mxu0 %v6754
      %v7162 = vpop.f32.mrf.mxu0
      %v7163 = vadd.f32 %v7050, %v7162
      %7164 = vmatmul.f32.gmra.mxu0 %v6758
      %v7165 = vpop.f32.mrf.mxu0
      %v7166 = vadd.f32 %v7053, %v7165
      %7167 = vmatmul.f32.gmra.mxu0 %v6762
      %v7168 = vpop.f32.mrf.mxu0
      %v7169 = vadd.f32 %v7056, %v7168
      %7170 = vdwg.mxu0
      %7171 = vmatpush.msra.mxu0 %v6827
      %7172 = vmatpush.msra.mxu0 %v6826
      %7173 = vmatpush.msra.mxu0 %v6825
      %7174 = vmatpush.msra.mxu0 %v6824
      %7175 = vmatpush.msra.mxu0 %v6823
      %7176 = vmatpush.msra.mxu0 %v6822
      %7177 = vmatpush.msra.mxu0 %v6821
      %7178 = vmatpush.msra.mxu0 %v6820
      %7179 = vmatpush.msra.mxu0 %v6819
      %7180 = vmatpush.msra.mxu0 %v6818
      %7181 = vmatpush.msra.mxu0 %v6817
      %7182 = vmatpush.msra.mxu0 %v6816
      %7183 = vmatpush.msra.mxu0 %v6815
      %7184 = vmatpush.msra.mxu0 %v6814
      %7185 = vmatpush.msra.mxu0 %v6813
      %7186 = vmatpush.msra.mxu0 %v6812
      %7187 = vmatmul.f32.gmra.mxu0 %v6639
      %v7188 = vpop.f32.mrf.mxu0
      %v7189 = vadd.f32 %v7076, %v7188
      %7190 = vmatmul.f32.gmra.mxu0 %v6643
      %v7191 = vpop.f32.mrf.mxu0
      %v7192 = vadd.f32 %v7079, %v7191
      %7193 = vmatmul.f32.gmra.mxu0 %v6647
      %v7194 = vpop.f32.mrf.mxu0
      %v7195 = vadd.f32 %v7082, %v7194
      %7196 = vmatmul.f32.gmra.mxu0 %v6651
      %v7197 = vpop.f32.mrf.mxu0
      %v7198 = vadd.f32 %v7085, %v7197
      %7199 = vmatmul.f32.gmra.mxu0 %v6655
      %v7200 = vpop.f32.mrf.mxu0
      %v7201 = vadd.f32 %v7088, %v7200
      %7202 = vmatmul.f32.gmra.mxu0 %v6659
      %v7203 = vpop.f32.mrf.mxu0
      %v7204 = vadd.f32 %v7091, %v7203
      %7205 = vmatmul.f32.gmra.mxu0 %v6663
      %v7206 = vpop.f32.mrf.mxu0
      %v7207 = vadd.f32 %v7094, %v7206
      %7208 = vmatmul.f32.gmra.mxu0 %v6667
      %v7209 = vpop.f32.mrf.mxu0
      %v7210 = vadd.f32 %v7097, %v7209
      %7211 = vmatmul.f32.gmra.mxu0 %v6671
      %v7212 = vpop.f32.mrf.mxu0
      %v7213 = vadd.f32 %v7100, %v7212
      %7214 = vmatmul.f32.gmra.mxu0 %v6675
      %v7215 = vpop.f32.mrf.mxu0
      %v7216 = vadd.f32 %v7103, %v7215
      %7217 = vmatmul.f32.gmra.mxu0 %v6679
      %v7218 = vpop.f32.mrf.mxu0
      %v7219 = vadd.f32 %v7106, %v7218
      %7220 = vmatmul.f32.gmra.mxu0 %v6683
      %v7221 = vpop.f32.mrf.mxu0
      %v7222 = vadd.f32 %v7109, %v7221
      %7223 = vmatmul.f32.gmra.mxu0 %v6687
      %v7224 = vpop.f32.mrf.mxu0
      %v7225 = vadd.f32 %v7112, %v7224
      %7226 = vmatmul.f32.gmra.mxu0 %v6691
      %v7227 = vpop.f32.mrf.mxu0
      %v7228 = vadd.f32 %v7115, %v7227
      %7229 = vmatmul.f32.gmra.mxu0 %v6695
      %v7230 = vpop.f32.mrf.mxu0
      %v7231 = vadd.f32 %v7118, %v7230
      %7232 = vmatmul.f32.gmra.mxu0 %v6699
      %v7233 = vpop.f32.mrf.mxu0
      %v7234 = vadd.f32 %v7121, %v7233
      %7235 = vmatmul.f32.gmra.mxu0 %v6703
      %v7236 = vpop.f32.mrf.mxu0
      %v7237 = vadd.f32 %v7124, %v7236
      %7238 = vmatmul.f32.gmra.mxu0 %v6707
      %v7239 = vpop.f32.mrf.mxu0
      %v7240 = vadd.f32 %v7127, %v7239
      %7241 = vmatmul.f32.gmra.mxu0 %v6711
      %v7242 = vpop.f32.mrf.mxu0
      %v7243 = vadd.f32 %v7130, %v7242
      %7244 = vmatmul.f32.gmra.mxu0 %v6715
      %v7245 = vpop.f32.mrf.mxu0
      %v7246 = vadd.f32 %v7133, %v7245
      %7247 = vmatmul.f32.gmra.mxu0 %v6719
      %v7248 = vpop.f32.mrf.mxu0
      %v7249 = vadd.f32 %v7136, %v7248
      %7250 = vmatmul.f32.gmra.mxu0 %v6723
      %v7251 = vpop.f32.mrf.mxu0
      %v7252 = vadd.f32 %v7139, %v7251
      %7253 = vmatmul.f32.gmra.mxu0 %v6727
      %v7254 = vpop.f32.mrf.mxu0
      %v7255 = vadd.f32 %v7142, %v7254
      %7256 = vmatmul.f32.gmra.mxu0 %v6731
      %v7257 = vpop.f32.mrf.mxu0
      %v7258 = vadd.f32 %v7145, %v7257
      %7259 = vmatmul.f32.gmra.mxu0 %v6735
      %v7260 = vpop.f32.mrf.mxu0
      %v7261 = vadd.f32 %v7148, %v7260
      %7262 = vmatmul.f32.gmra.mxu0 %v6739
      %v7263 = vpop.f32.mrf.mxu0
      %v7264 = vadd.f32 %v7151, %v7263
      %7265 = vmatmul.f32.gmra.mxu0 %v6743
      %v7266 = vpop.f32.mrf.mxu0
      %v7267 = vadd.f32 %v7154, %v7266
      %7268 = vmatmul.f32.gmra.mxu0 %v6747
      %v7269 = vpop.f32.mrf.mxu0
      %v7270 = vadd.f32 %v7157, %v7269
      %7271 = vmatmul.f32.gmra.mxu0 %v6751
      %v7272 = vpop.f32.mrf.mxu0
      %v7273 = vadd.f32 %v7160, %v7272
      %7274 = vmatmul.f32.gmra.mxu0 %v6755
      %v7275 = vpop.f32.mrf.mxu0
      %v7276 = vadd.f32 %v7163, %v7275
      %7277 = vmatmul.f32.gmra.mxu0 %v6759
      %v7278 = vpop.f32.mrf.mxu0
      %v7279 = vadd.f32 %v7166, %v7278
      %7280 = vmatmul.f32.gmra.mxu0 %v6763
      %v7281 = vpop.f32.mrf.mxu0
      %v7282 = vadd.f32 %v7169, %v7281
      %7283 = vdwg.mxu0
      %7284 = vst [vmem:[%s498] sm:$0xff] %v7189
      %7285 = vst [vmem:[%s498 + $0x8] sm:$0xff] %v7192
      %7286 = vst [vmem:[%s498 + $0x10] sm:$0xff] %v7195
      %7287 = vst [vmem:[%s498 + $0x18] sm:$0xff] %v7198
      %7288 = vst [vmem:[%s498 + $0x20] sm:$0xff] %v7201
      %7289 = vst [vmem:[%s498 + $0x28] sm:$0xff] %v7204
      %7290 = vst [vmem:[%s498 + $0x30] sm:$0xff] %v7207
      %7291 = vst [vmem:[%s498 + $0x38] sm:$0xff] %v7210
      %7292 = vst [vmem:[%s498 + $0x40] sm:$0xff] %v7213
      %7293 = vst [vmem:[%s498 + $0x48] sm:$0xff] %v7216
      %7294 = vst [vmem:[%s498 + $0x50] sm:$0xff] %v7219
      %7295 = vst [vmem:[%s498 + $0x58] sm:$0xff] %v7222
      %7296 = vst [vmem:[%s498 + $0x60] sm:$0xff] %v7225
      %7297 = vst [vmem:[%s498 + $0x68] sm:$0xff] %v7228
      %7298 = vst [vmem:[%s498 + $0x70] sm:$0xff] %v7231
      %7299 = vst [vmem:[%s498 + $0x78] sm:$0xff] %v7234
      %7300 = vst [vmem:[%s498 + $0x80] sm:$0xff] %v7237
      %7301 = vst [vmem:[%s498 + $0x88] sm:$0xff] %v7240
      %7302 = vst [vmem:[%s498 + $0x90] sm:$0xff] %v7243
      %7303 = vst [vmem:[%s498 + $0x98] sm:$0xff] %v7246
      %7304 = vst [vmem:[%s498 + $0xa0] sm:$0xff] %v7249
      %7305 = vst [vmem:[%s498 + $0xa8] sm:$0xff] %v7252
      %7306 = vst [vmem:[%s498 + $0xb0] sm:$0xff] %v7255
      %7307 = vst [vmem:[%s498 + $0xb8] sm:$0xff] %v7258
      %7308 = vst [vmem:[%s498 + $0xc0] sm:$0xff] %v7261
      %7309 = vst [vmem:[%s498 + $0xc8] sm:$0xff] %v7264
      %7310 = vst [vmem:[%s498 + $0xd0] sm:$0xff] %v7267
      %7311 = vst [vmem:[%s498 + $0xd8] sm:$0xff] %v7270
      %7312 = vst [vmem:[%s498 + $0xe0] sm:$0xff] %v7273
      %7313 = vst [vmem:[%s498 + $0xe8] sm:$0xff] %v7276
      %7314 = vst [vmem:[%s498 + $0xf0] sm:$0xff] %v7279
      %7315 = vst [vmem:[%s498 + $0xf8] sm:$0xff] %v7282
      %s7316 = smul.u32 32, %s29
      %p7317 = scmp.lt.s32.totalorder %s28, 1
      %s7318 = scalar_select %p7317, %s28, 1
      %p7319 = scmp.lt.s32.totalorder %s7316, 255
      %s7320 = scalar_select %p7319, %s7316, 255
      %s7321 = smul.addr %s7318, 256
      %s7322 = sadd.s32 %s7320, %s7321
      %s7323 = smul.addr %s7322, 8
      %s7324 = scalar_lea.vmem %s13, %s7323
      // Predicated region
      $region73: #{foldingnet_decoder_forward.1} parent=71 // pred_check
        %p7325 = pneg %p344
      $region74: #{foldingnet_decoder_forward.1} parent=71 // pred_check_branch
        %7327 = sbr.rel (%p7325) target = $region76
      $region75: #{foldingnet_decoder_forward.1} parent=71 // pred_region
        %s7328 = smul.u32 32, %s29
      $region76: #{foldingnet_decoder_forward.1} parent=71 // pred_fallthru
        _
    $region72: #{foldingnet_decoder_forward.1} parent=5 // pred_fallthru
      _
    %p7329 = scmp.le.s32.totalorder 2, %s19
    // Predicated region
    $region77: #{foldingnet_decoder_forward.1} parent=5 // pred_check
      %p7330 = pneg %p7329
    $region78: #{foldingnet_decoder_forward.1} parent=5 // pred_check_branch
      %7332 = sbr.rel (%p7330) target = $region80
    $region79: #{foldingnet_decoder_forward.1} parent=5 // pred_region
      %s7333 = ssub.s32 %s19, 2
      // Predicated region
      $region81: #{foldingnet_decoder_forward.1} parent=79 // pred_check
        %p7334 = pneg %p350
      $region82: #{foldingnet_decoder_forward.1} parent=79 // pred_check_branch
        %7336 = sbr.rel (%p7334) target = $region84
      $region83: #{foldingnet_decoder_forward.1} parent=79 // pred_region
        %s7337 = smul.u32 32, %s31
        %p7338 = scmp.lt.s32.totalorder %s30, 1
        %s7339 = scalar_select %p7338, %s30, 1
        %p7340 = scmp.lt.s32.totalorder %s7337, 255
        %s7341 = scalar_select %p7340, %s7337, 255
        %s7342 = smul.addr %s7339, 256
        %s7343 = sadd.s32 %s7341, %s7342
        %s7344 = smul.addr %s7343, 8
        %s7345 = scalar_lea.vmem %s13, %s7344
      $region84: #{foldingnet_decoder_forward.1} parent=79 // pred_fallthru
        _
    $region80: #{foldingnet_decoder_forward.1} parent=5 // pred_fallthru
      _
  $region6: #{foldingnet_decoder_forward.1} parent=0 // loop_footer
    %s23 = sadd.s32 1, %s19
  $region7: #{foldingnet_decoder_forward.1} parent=0 // loop_footer_branch
    %18 = sbr.rel target = $region3
  $region8: #{foldingnet_decoder_forward.1} parent=0 // loop_exit
    _

</llo_original>
